<compile_context>
chip_gen: v7x
topology: tpu7x:2x2x1
jax: 0.10.0
libtpu: 0.0.40
codegen_flags: <defaults>
</compile_context>

<pallas_src>
import functools

import jax
import jax.numpy as jnp
from jax import lax
from jax.experimental import pallas as pl
from jax.experimental.pallas import tpu as pltpu  # noqa: F401

C_H = 32               # para['encoder_attention_size']
NUM_HEADS = 2
HEAD_DIM = C_H // NUM_HEADS
C2 = 2 * C_H           # merged [K|V] / padded-query width
N_LANES = 55           # fixed by the module (repeat(1, 55, 1), c_mask[:, :55])
L_MID = 64             # hmid / c_mask length
L_INT = 56             # hinteraction length (slice [:, 55:56] must exist)
N_COORDS = 64          # number of candidate coordinates (heatmap size)
BATCH = 2


# --------------------------- in-kernel building blocks ---------------------------- #

def _head_masks():
    """(1, 64) head masks over the merged [K|V] layout, built once per kernel call."""
    col = lax.broadcasted_iota(jnp.int32, (1, C2), 1)
    kmasks = tuple(((col >= h * HEAD_DIM) & (col < (h + 1) * HEAD_DIM)).astype(jnp.float32)
                   for h in range(NUM_HEADS))
    vmasks = tuple(((col >= C_H + h * HEAD_DIM) & (col < C_H + (h + 1) * HEAD_DIM)
                    ).astype(jnp.float32) for h in range(NUM_HEADS))
    return kmasks, vmasks


def _mha(q_in, kv, neg, wq_pad, bq_pad, wkv, bkv, kmasks, vmasks):
    """Multi-head cross-attention with a merged [K|V] projection and no slicing.

    wq_pad/bq_pad: (d,64)/(1,64) with 1/sqrt(head_dim)-scaled Wq in cols 0:32, zeros after.
    wkv/bkv:       (d,64)/(1,64) = [Wk | Wv].
    Returns (Lq, 64): the concatenated attention output lives in cols 32:64, cols 0:32 = 0.
    """
    qp = jnp.dot(q_in, wq_pad, preferred_element_type=jnp.float32) + bq_pad    # (Lq, 64)
    kvp = jnp.dot(kv, wkv, preferred_element_type=jnp.float32) + bkv           # (Lk, 64)
    out = jnp.zeros_like(qp)
    for h in range(NUM_HEADS):                                                 # static unroll
        s = lax.dot_general(qp, kvp * kmasks[h], (((1,), (1,)), ((), ())),
                            preferred_element_type=jnp.float32) + neg          # (Lq, Lk)
        mx = jnp.max(s, axis=-1, keepdims=True)
        e = jnp.exp(s - mx)
        p = e / jnp.sum(e, axis=-1, keepdims=True)                             # exact division
        out = out + jnp.dot(p, kvp * vmasks[h], preferred_element_type=jnp.float32)
    return out


def _ln_relu(h, gamma, beta, eps=1e-5):
    mu = jnp.mean(h, axis=-1, keepdims=True)
    var = jnp.mean(jnp.square(h - mu), axis=-1, keepdims=True)
    return jnp.maximum((h - mu) * lax.rsqrt(var + eps) * gamma + beta, 0.0)


def _row_reduce(w_row, x):
    """(1, C) x (L, C) -> (1, L): MXU matvec that reduces over channels AND transposes,
    producing the lane-dense score row directly (no XLU cross-lane reduce, no (L,1) column)."""
    return lax.dot_general(w_row, x, (((1,), (1,)), ((), ())),
                           preferred_element_type=jnp.float32)


def _log_softmax_row(z):
    mx = jnp.max(z, axis=-1, keepdims=True)
    return z - (mx + jnp.log(jnp.sum(jnp.exp(z - mx), axis=-1, keepdims=True)))


# --------------------------------- Pallas kernels --------------------------------- #
# Packed-operand row indices (see prepare_* below):
#   lanescore rows64: 0=bq_pad 1=bkv 2=w2a_pad     rows32: 0=b1 1=g1 2=be1 3=w2e 4=w2l 5=w2h
#   heatmap   rows64: 0=bq2 1=bkv2 2=bq3 3=bkv3 4=w2p2_pad 5=w2p3_pad
#             rows32: 0=bce 1=gce 2=bece 3=b1 4=g1 5=be1 6=w2e 7=w2p1 8=w2h

def lanescore_kernel(hlane_ref, hmid_ref, hego_ref, amask_ref, smask_ref,
                     wA_ref, w1el_ref, w1a_ref, rows64_ref, rows32_ref, out_ref):
    """cross-attn(hlane, hmid) -> cat(hego, hlane, attn) -> DecoderResCat(3C, C, 1)
    -> masked log-softmax over 55 lanes.  Output: (B, 1, 55) lane-dense log-probs."""
    kmasks, vmasks = _head_masks()
    wq_pad, wkv = wA_ref[0], wA_ref[1]          # (32,64) each
    w1e, w1l = w1el_ref[0], w1el_ref[1]         # (32,32) each
    w1a = w1a_ref[...]                          # (64,32), rows 0:32 zero
    R64 = rows64_ref[...]                       # (3,64)
    R32 = rows32_ref[...]                       # (6,32)
    bq, bkv, w2a = R64[0:1], R64[1:2], R64[2:3]
    b1, g1, be1 = R32[0:1], R32[1:2], R32[2:3]
    w2e, w2l, w2h = R32[3:4], R32[4:5], R32[5:6]
    ones32 = jnp.ones((1, C_H), jnp.float32)

    for b in range(BATCH):                                      # static unroll, B = 2
        hl = hlane_ref[b]                                       # (55, 32)
        he = hego_ref[b]                                        # (1, 32)
        neg = -1e9 * (1.0 - amask_ref[b])                       # (1, 64) additive attn mask

        attn = _mha(hl, hmid_ref[b], neg, wq_pad, bq, wkv, bkv, kmasks, vmasks)   # (55, 64)

        # DecoderResCat hidden on cat[hego(bcast), hlane, attn]; W1 split per component.
        h1 = _ln_relu(jnp.dot(he, w1e, preferred_element_type=jnp.float32)
                      + jnp.dot(hl, w1l, preferred_element_type=jnp.float32)
                      + jnp.dot(attn, w1a, preferred_element_type=jnp.float32)
                      + b1, g1, be1)                                               # (55, 32)

        # O=1 projection: VPU-accumulate same-width parts, one MXU row-reduce per width.
        acc = hl * w2l + h1 * w2h                                                  # (55, 32)
        sc = (_row_reduce(ones32, acc) + _row_reduce(w2a, attn)
              + jnp.sum(he * w2e, axis=-1, keepdims=True))                         # (1, 55)
        # (connect bias b2 is constant over lanes -> dropped: log-softmax shift-invariant)

        z = sc - 1e7 * (1.0 - smask_ref[b])                                        # (1, 55)
        out_ref[b] = _log_softmax_row(z)


def heatmap_kernel(hlane_ref, hmid_ref, hego_ref, coords_ref, amid_ref, alane_ref,
                   wc_ref, wqkv_ref, w32_ref, w64_ref, rows64_ref, rows32_ref,
                   out_ref, *, apply_log_softmax):
    """EgoAssign(coords, hego) -> l2c attn (hmid, c_mask) -> l2c2 attn (hlane, lanescore_mask)
    -> cat -> DecoderResCat(4C, C, 1) -> log-softmax ('nll').  Output: (B, 1, N) rows."""
    kmasks, vmasks = _head_masks()
    we, w1e, w1p1 = w32_ref[0], w32_ref[1], w32_ref[2]          # (32,32) each
    w1p2, w1p3 = w64_ref[0], w64_ref[1]                         # (64,32), rows 0:32 zero
    R64 = rows64_ref[...]                                       # (6,64)
    R32 = rows32_ref[...]                                       # (9,32)
    bq2, bkv2, bq3, bkv3 = R64[0:1], R64[1:2], R64[2:3], R64[3:4]
    w2p2, w2p3 = R64[4:5], R64[5:6]
    bce, gce, bece = R32[0:1], R32[1:2], R32[2:3]
    b1, g1, be1 = R32[3:4], R32[4:5], R32[5:6]
    w2e, w2p1, w2h = R32[6:7], R32[7:8], R32[8:9]
    ones32 = jnp.ones((1, C_H), jnp.float32)
    ones64 = jnp.ones((1, C2), jnp.float32)

    # coords @ Wc is batch-invariant: compute once.
    base = jnp.dot(coords_ref[...], wc_ref[...], preferred_element_type=jnp.float32)  # (N, 32)

    for b in range(BATCH):                                      # static unroll, B = 2
        he = hego_ref[b]                                        # (1, 32)
        # EgoAssign: relu(LN(Linear(cat[coords, ego]))) with the concat folded.
        p1 = _ln_relu(base + jnp.dot(he, we, preferred_element_type=jnp.float32) + bce,
                      gce, bece)                                                   # (N, 32)

        neg_mid = -1e9 * (1.0 - amid_ref[b])                    # (1, 64)
        neg_lane = -1e9 * (1.0 - alane_ref[b])                  # (1, 55)
        p2 = _mha(p1, hmid_ref[b], neg_mid, wqkv_ref[0], bq2, wqkv_ref[1], bkv2,
                  kmasks, vmasks)                                                  # (N, 64)
        p3 = _mha(p1, hlane_ref[b], neg_lane, wqkv_ref[2], bq3, wqkv_ref[3], bkv3,
                  kmasks, vmasks)                                                  # (N, 64)

        # DecoderResCat on cat[hego(bcast), p1, p2, p3]; W1/W2 split per component.
        h1 = _ln_relu(jnp.dot(he, w1e, preferred_element_type=jnp.float32)
                      + jnp.dot(p1, w1p1, preferred_element_type=jnp.float32)
                      + jnp.dot(p2, w1p2, preferred_element_type=jnp.float32)
                      + jnp.dot(p3, w1p3, preferred_element_type=jnp.float32)
                      + b1, g1, be1)                                               # (N, 32)

        acc32 = p1 * w2p1 + h1 * w2h                                               # (N, 32)
        acc64 = p2 * w2p2 + p3 * w2p3                                              # (N, 64)
        sc = (_row_reduce(ones32, acc32) + _row_reduce(ones64, acc64)
              + jnp.sum(he * w2e, axis=-1, keepdims=True))                         # (1, N)

        if apply_log_softmax:       # prob_mode == 'nll' (b2 shift-invariant -> dropped)
            out_ref[b] = _log_softmax_row(sc)
        else:
            out_ref[b] = sc         # convert bias b2 added post-hoc in the wrapper


# ---------------------------------- Pallas wrappers -------------------------------- #

def lanescore_forward(pk, hlane, hmid, hego, c_mask):
    B = hlane.shape[0]
    amask = c_mask.astype(jnp.float32).reshape(B, 1, L_MID)
    smask = c_mask[:, :N_LANES].astype(jnp.float32).reshape(B, 1, N_LANES)
    out = pl.pallas_call(
        lanescore_kernel,
        out_shape=jax.ShapeDtypeStruct((B, 1, N_LANES), jnp.float32),
    )(hlane, hmid, hego, amask, smask,
      pk["wA"], pk["w1el"], pk["w1a"], pk["rows64"], pk["rows32"])
    return out.reshape(B, N_LANES)


def heatmap_forward(pk, hlane, hmid, hego, coordinates, c_mask, lanescore_mask,
                    apply_log_softmax=True):
    B = hlane.shape[0]
    N, K = coordinates.shape
    amid = c_mask.astype(jnp.float32).reshape(B, 1, L_MID)
    alane = lanescore_mask.astype(jnp.float32).reshape(B, 1, N_LANES)
    # Pad the tiny K=2 coordinate contraction up to 8 (zero rows of Wc are exact no-ops).
    coords_p = jnp.pad(coordinates.astype(jnp.float32), ((0, 0), (0, (-K) % 8)))
    kern = functools.partial(heatmap_kernel, apply_log_softmax=apply_log_softmax)
    out = pl.pallas_call(
        kern,
        out_shape=jax.ShapeDtypeStruct((B, 1, N), jnp.float32),
    )(hlane, hmid, hego, coords_p, amid, alane,
      pk["wc"], pk["wqkv"], pk["w32"], pk["w64"], pk["rows64"], pk["rows32"])
    out = out.reshape(B, N)
    if not apply_log_softmax:
        out = out + pk["b2"][0, 0]     # O-projection bias only matters without log-softmax
    return out


# ------------------------------ parameter construction ----------------------------- #

def _dense(key, fan_in, fan_out, scale=0.05):
    kw, kb = jax.random.split(key)
    w = jax.random.normal(kw, (fan_in, fan_out), jnp.float32) * scale
    b = jax.random.normal(kb, (1, fan_out), jnp.float32) * scale
    return w, b


def init_attention(key, dq, dkv, d_model):
    kq, kk, kv = jax.random.split(key, 3)
    wq, bq = _dense(kq, dq, d_model)
    wk, bk = _dense(kk, dkv, d_model)
    wv, bv = _dense(kv, dkv, d_model)
    return dict(wq=wq, bq=bq, wk=wk, bk=bk, wv=wv, bv=bv)


def init_egoassign(key, c_h):
    k1, k2 = jax.random.split(key)
    wc = jax.random.normal(k1, (2, c_h), jnp.float32) * 0.05
    we, b = _dense(k2, c_h, c_h)
    return dict(wc=wc, we=we, b=b,
                g=jnp.ones((1, c_h), jnp.float32),
                beta=jnp.zeros((1, c_h), jnp.float32))


def init_rescat(key, c_h, n_parts):
    """DecoderResCat(n_parts * c_h, c_h, 1) with W1/W2 split per concat-component."""
    keys = jax.random.split(key, 2 * n_parts + 3)
    w1 = [jax.random.normal(keys[i], (c_h, c_h), jnp.float32) * 0.05 for i in range(n_parts)]
    w2 = [jax.random.normal(keys[n_parts + i], (1, c_h), jnp.float32) * 0.05
          for i in range(n_parts)]
    b1 = jax.random.normal(keys[2 * n_parts], (1, c_h), jnp.float32) * 0.05
    w2h = jax.random.normal(keys[2 * n_parts + 1], (1, c_h), jnp.float32) * 0.05
    b2 = jax.random.normal(keys[2 * n_parts + 2], (1, 1), jnp.float32) * 0.05
    return dict(w1=w1, b1=b1,
                g1=jnp.ones((1, c_h), jnp.float32),
                be1=jnp.zeros((1, c_h), jnp.float32),
                w2=w2, w2h=w2h, b2=b2)


# --------------------- one-time packing (runs OUTSIDE the jit) --------------------- #

def _pack_attention(a):
    """Fold 1/sqrt(head_dim) into Wq, zero-pad Wq to 64 wide, merge [Wk|Wv]."""
    s = 1.0 / (float(HEAD_DIM) ** 0.5)
    zc = jnp.zeros_like(a["wq"])
    zb = jnp.zeros_like(a["bq"])
    wq_pad = jnp.concatenate([a["wq"] * s, zc], axis=1)      # (32, 64)
    bq_pad = jnp.concatenate([a["bq"] * s, zb], axis=1)      # (1, 64)
    wkv = jnp.concatenate([a["wk"], a["wv"]], axis=1)        # (32, 64)
    bkv = jnp.concatenate([a["bk"], a["bv"]], axis=1)        # (1, 64)
    return wq_pad, wkv, bq_pad, bkv


def prepare_lanescore(p):
    a, r = p["attn"], p["connect"]
    wq_pad, wkv, bq_pad, bkv = _pack_attention(a)
    zsq = jnp.zeros((C_H, C_H), jnp.float32)
    zrow = jnp.zeros((1, C_H), jnp.float32)
    return dict(
        wA=jnp.stack([wq_pad, wkv]),                                      # (2, 32, 64)
        w1el=jnp.stack([r["w1"][0], r["w1"][1]]),                         # (2, 32, 32)
        w1a=jnp.concatenate([zsq, r["w1"][2]], axis=0),                   # (64, 32)
        rows64=jnp.concatenate(
            [bq_pad, bkv, jnp.concatenate([zrow, r["w2"][2]], axis=1)], axis=0),   # (3, 64)
        rows32=jnp.concatenate(
            [r["b1"], r["g1"], r["be1"], r["w2"][0], r["w2"][1], r["w2h"]], axis=0),  # (6, 32)
        b2=r["b2"])


def prepare_heatmap(p):
    e, a2, a3, cv = p["ego2coor"], p["l2c"], p["l2c2"], p["convert"]
    wq2, wkv2, bq2, bkv2 = _pack_attention(a2)
    wq3, wkv3, bq3, bkv3 = _pack_attention(a3)
    zsq = jnp.zeros((C_H, C_H), jnp.float32)
    zrow = jnp.zeros((1, C_H), jnp.float32)
    return dict(
        wqkv=jnp.stack([wq2, wkv2, wq3, wkv3]),                           # (4, 32, 64)
        w32=jnp.stack([e["we"], cv["w1"][0], cv["w1"][1]]),               # (3, 32, 32)
        w64=jnp.stack([jnp.concatenate([zsq, cv["w1"][2]], axis=0),
                       jnp.concatenate([zsq, cv["w1"][3]], axis=0)]),     # (2, 64, 32)
        rows64=jnp.concatenate(
            [bq2, bkv2, bq3, bkv3,
             jnp.concatenate([zrow, cv["w2"][2]], axis=1),
             jnp.concatenate([zrow, cv["w2"][3]], axis=1)], axis=0),      # (6, 64)
        rows32=jnp.concatenate(
            [e["b"], e["g"], e["beta"], cv["b1"], cv["g1"], cv["be1"],
             cv["w2"][0], cv["w2"][1], cv["w2h"]], axis=0),               # (9, 32)
        wc=jnp.pad(e["wc"], ((0, 8 - e["wc"].shape[0]), (0, 0))),         # (8, 32) K-padded
        b2=cv["b2"])


# ---------------------------------- full forward ----------------------------------- #

def vector_decoder_forward(packed, hlane, hmid, hinteraction, coordinates,
                           c_mask, masker, prob_mode="nll", drivable=False):
    del masker  # only used when drivable=True
    B = hlane.shape[0]
    hego = hinteraction[:, 55:56]                        # (B, 1, C)

    # -------- fused pallas_call #1: LanescoreModule --------
    log_lanescore = lanescore_forward(packed["lanescore"], hlane, hmid, hego, c_mask)

    # -------- top-p (>0.95 cumulative prob) lane selection --------
    # Data-dependent per-batch break loop in torch; vectorized top_k + cumsum + scatter
    # in plain JAX (glue between the two fused kernels, not the hot path).
    lanescore = jnp.exp(log_lanescore)
    vals, sorted_idx = jax.lax.top_k(lanescore, N_LANES)
    csum = jnp.cumsum(vals, axis=-1)
    first = jnp.argmax(csum > 0.95, axis=-1)
    exceeded = csum[:, -1] > 0.95                        # torch leaves all-zeros otherwise
    keep_sorted = (jnp.arange(N_LANES)[None, :] <= first[:, None]) & exceeded[:, None]
    lanescore_mask = jnp.zeros((B, N_LANES), jnp.float32).at[
        jnp.arange(B)[:, None], sorted_idx].set(keep_sorted.astype(jnp.float32))

    if drivable:
        # TODO(synk): drivable coordinate masking (uses `masker`) not exercised with
        # drivable=False; would be jnp.minimum against a +100/-9999 view of masker.
        pass

    # -------- fused pallas_call #2: heatmap branch --------
    heatmap = heatmap_forward(packed, hlane, hmid, hego, coordinates, c_mask,
                              lanescore_mask, apply_log_softmax=(prob_mode == "nll"))
    return log_lanescore.astype(jnp.float32), heatmap


# --------------------------------------- main --------------------------------------- #

if __name__ == "__main__":
    para = {"prob_mode": "nll", "encoder_attention_size": C_H}
    key = jax.random.PRNGKey(0)
    keys = jax.random.split(key, 12)

    raw_params = {
        "lanescore": {
            "attn": init_attention(keys[0], C_H, C_H, C_H),
            "connect": init_rescat(keys[1], C_H, 3),     # DecoderResCat(3C, C, 1)
        },
        "ego2coor": init_egoassign(keys[2], C_H),        # EgoAssign
        "l2c": init_attention(keys[3], C_H, C_H, C_H),
        "l2c2": init_attention(keys[4], C_H, C_H, C_H),
        "convert": init_rescat(keys[5], C_H, 4),         # DecoderResCat(4C, C, 1)
    }

    # One-time operand packing (outside the jit): few large DMAs instead of ~20-35 tiny ones.
    packed = dict(prepare_heatmap(raw_params))
    packed["lanescore"] = prepare_lanescore(raw_params["lanescore"])

    hlane = jax.random.normal(keys[6], (BATCH, N_LANES, C_H), jnp.float32)
    hmid = jax.random.normal(keys[7], (BATCH, L_MID, C_H), jnp.float32)
    hinteraction = jax.random.normal(keys[8], (BATCH, L_INT, C_H), jnp.float32)
    coordinates = jax.random.normal(keys[9], (N_COORDS, 2), jnp.float32)
    c_mask = (jax.random.uniform(keys[10], (BATCH, L_MID)) > 0.2).astype(jnp.float32)
    masker = (jax.random.uniform(keys[11], (BATCH, 8, 8)) > 0.5).astype(jnp.float32)

    fwd = jax.jit(functools.partial(vector_decoder_forward,
                                    prob_mode=para["prob_mode"], drivable=False))
    log_lanescore, heatmap = fwd(packed, hlane, hmid, hinteraction,
                                 coordinates, c_mask, masker)
    jax.block_until_ready((log_lanescore, heatmap))

    assert log_lanescore.shape == (BATCH, N_LANES)
    assert heatmap.shape == (BATCH, N_COORDS)
    assert bool(jnp.isfinite(log_lanescore).all()) and bool(jnp.isfinite(heatmap).all())
    print("KERNEL_OK")
</pallas_src>

<mosaic_0001>
module attributes {stable_mosaic.version = 11 : i64} {
  func.func @lanescore_kernel(%arg0: memref<2x55x32xf32, #tpu.memory_space<vmem>>, %arg1: memref<2x64x32xf32, #tpu.memory_space<vmem>>, %arg2: memref<2x1x32xf32, #tpu.memory_space<vmem>>, %arg3: memref<2x1x64xf32, #tpu.memory_space<vmem>>, %arg4: memref<2x1x55xf32, #tpu.memory_space<vmem>>, %arg5: memref<2x32x64xf32, #tpu.memory_space<vmem>>, %arg6: memref<2x32x32xf32, #tpu.memory_space<vmem>>, %arg7: memref<64x32xf32, #tpu.memory_space<vmem>>, %arg8: memref<3x64xf32, #tpu.memory_space<vmem>>, %arg9: memref<6x32xf32, #tpu.memory_space<vmem>>, %arg10: memref<2x1x55xf32, #tpu.memory_space<vmem>>) attributes {dimension_semantics = [], scalar_prefetch = 0 : i64, scratch_operands = 0 : i64, tpu.core_type = #tpu.core_type<tc>} {
    %0 = tpu.iota {dimensions = array<i32: 1>} : vector<1x64xi32>
    %c0_i32 = arith.constant 0 : i32
    %1 = vector.broadcast %c0_i32 : i32 to vector<1x64xi32>
    %2 = arith.cmpi sge, %0, %1 : vector<1x64xi32>
    %c16_i32 = arith.constant 16 : i32
    %3 = vector.broadcast %c16_i32 : i32 to vector<1x64xi32>
    %4 = arith.cmpi slt, %0, %3 : vector<1x64xi32>
    %5 = arith.andi %2, %4 : vector<1x64xi1>
    %6 = arith.extui %5 : vector<1x64xi1> to vector<1x64xi32>
    %7 = arith.sitofp %6 : vector<1x64xi32> to vector<1x64xf32>
    %c16_i32_0 = arith.constant 16 : i32
    %8 = vector.broadcast %c16_i32_0 : i32 to vector<1x64xi32>
    %9 = arith.cmpi sge, %0, %8 : vector<1x64xi32>
    %c32_i32 = arith.constant 32 : i32
    %10 = vector.broadcast %c32_i32 : i32 to vector<1x64xi32>
    %11 = arith.cmpi slt, %0, %10 : vector<1x64xi32>
    %12 = arith.andi %9, %11 : vector<1x64xi1>
    %13 = arith.extui %12 : vector<1x64xi1> to vector<1x64xi32>
    %14 = arith.sitofp %13 : vector<1x64xi32> to vector<1x64xf32>
    %c32_i32_1 = arith.constant 32 : i32
    %15 = vector.broadcast %c32_i32_1 : i32 to vector<1x64xi32>
    %16 = arith.cmpi sge, %0, %15 : vector<1x64xi32>
    %c48_i32 = arith.constant 48 : i32
    %17 = vector.broadcast %c48_i32 : i32 to vector<1x64xi32>
    %18 = arith.cmpi slt, %0, %17 : vector<1x64xi32>
    %19 = arith.andi %16, %18 : vector<1x64xi1>
    %20 = arith.extui %19 : vector<1x64xi1> to vector<1x64xi32>
    %21 = arith.sitofp %20 : vector<1x64xi32> to vector<1x64xf32>
    %c48_i32_2 = arith.constant 48 : i32
    %22 = vector.broadcast %c48_i32_2 : i32 to vector<1x64xi32>
    %23 = arith.cmpi sge, %0, %22 : vector<1x64xi32>
    %c64_i32 = arith.constant 64 : i32
    %24 = vector.broadcast %c64_i32 : i32 to vector<1x64xi32>
    %25 = arith.cmpi slt, %0, %24 : vector<1x64xi32>
    %26 = arith.andi %23, %25 : vector<1x64xi1>
    %27 = arith.extui %26 : vector<1x64xi1> to vector<1x64xi32>
    %28 = arith.sitofp %27 : vector<1x64xi32> to vector<1x64xf32>
    %c0 = arith.constant 0 : index
    %c0_3 = arith.constant 0 : index
    %c0_4 = arith.constant 0 : index
    %29 = vector.load %arg5[%c0, %c0_3, %c0_4] : memref<2x32x64xf32, #tpu.memory_space<vmem>>, vector<1x32x64xf32>
    %30 = vector.shape_cast %29 : vector<1x32x64xf32> to vector<32x64xf32>
    %c1 = arith.constant 1 : index
    %c0_5 = arith.constant 0 : index
    %c0_6 = arith.constant 0 : index
    %31 = vector.load %arg5[%c1, %c0_5, %c0_6] : memref<2x32x64xf32, #tpu.memory_space<vmem>>, vector<1x32x64xf32>
    %32 = vector.shape_cast %31 : vector<1x32x64xf32> to vector<32x64xf32>
    %c0_7 = arith.constant 0 : index
    %c0_8 = arith.constant 0 : index
    %c0_9 = arith.constant 0 : index
    %33 = vector.load %arg6[%c0_7, %c0_8, %c0_9] : memref<2x32x32xf32, #tpu.memory_space<vmem>>, vector<1x32x32xf32>
    %34 = vector.shape_cast %33 : vector<1x32x32xf32> to vector<32x32xf32>
    %c1_10 = arith.constant 1 : index
    %c0_11 = arith.constant 0 : index
    %c0_12 = arith.constant 0 : index
    %35 = vector.load %arg6[%c1_10, %c0_11, %c0_12] : memref<2x32x32xf32, #tpu.memory_space<vmem>>, vector<1x32x32xf32>
    %36 = vector.shape_cast %35 : vector<1x32x32xf32> to vector<32x32xf32>
    %c0_13 = arith.constant 0 : index
    %c0_14 = arith.constant 0 : index
    %37 = vector.load %arg7[%c0_13, %c0_14] : memref<64x32xf32, #tpu.memory_space<vmem>>, vector<64x32xf32>
    %c0_15 = arith.constant 0 : index
    %c0_16 = arith.constant 0 : index
    %38 = vector.load %arg8[%c0_15, %c0_16] : memref<3x64xf32, #tpu.memory_space<vmem>>, vector<3x64xf32>
    %c0_17 = arith.constant 0 : index
    %c0_18 = arith.constant 0 : index
    %39 = vector.load %arg9[%c0_17, %c0_18] : memref<6x32xf32, #tpu.memory_space<vmem>>, vector<6x32xf32>
    %40 = vector.extract_strided_slice %38 {offsets = [0, 0], sizes = [1, 64], strides = [1, 1]} : vector<3x64xf32> to vector<1x64xf32>
    %41 = vector.extract_strided_slice %38 {offsets = [1, 0], sizes = [1, 64], strides = [1, 1]} : vector<3x64xf32> to vector<1x64xf32>
    %42 = vector.extract_strided_slice %38 {offsets = [2, 0], sizes = [1, 64], strides = [1, 1]} : vector<3x64xf32> to vector<1x64xf32>
    %43 = vector.extract_strided_slice %39 {offsets = [0, 0], sizes = [1, 32], strides = [1, 1]} : vector<6x32xf32> to vector<1x32xf32>
    %44 = vector.extract_strided_slice %39 {offsets = [1, 0], sizes = [1, 32], strides = [1, 1]} : vector<6x32xf32> to vector<1x32xf32>
    %45 = vector.extract_strided_slice %39 {offsets = [2, 0], sizes = [1, 32], strides = [1, 1]} : vector<6x32xf32> to vector<1x32xf32>
    %46 = vector.extract_strided_slice %39 {offsets = [3, 0], sizes = [1, 32], strides = [1, 1]} : vector<6x32xf32> to vector<1x32xf32>
    %47 = vector.extract_strided_slice %39 {offsets = [4, 0], sizes = [1, 32], strides = [1, 1]} : vector<6x32xf32> to vector<1x32xf32>
    %48 = vector.extract_strided_slice %39 {offsets = [5, 0], sizes = [1, 32], strides = [1, 1]} : vector<6x32xf32> to vector<1x32xf32>
    %cst = arith.constant 1.000000e+00 : f32
    %49 = vector.broadcast %cst : f32 to vector<1x32xf32>
    %c0_19 = arith.constant 0 : index
    %c0_20 = arith.constant 0 : index
    %c0_21 = arith.constant 0 : index
    %50 = vector.load %arg0[%c0_19, %c0_20, %c0_21] : memref<2x55x32xf32, #tpu.memory_space<vmem>>, vector<1x55x32xf32>
    %51 = vector.shape_cast %50 : vector<1x55x32xf32> to vector<55x32xf32>
    %c0_22 = arith.constant 0 : index
    %c0_23 = arith.constant 0 : index
    %c0_24 = arith.constant 0 : index
    %52 = vector.load %arg2[%c0_22, %c0_23, %c0_24] : memref<2x1x32xf32, #tpu.memory_space<vmem>>, vector<1x1x32xf32>
    %53 = vector.shape_cast %52 : vector<1x1x32xf32> to vector<1x32xf32>
    %c0_25 = arith.constant 0 : index
    %c0_26 = arith.constant 0 : index
    %c0_27 = arith.constant 0 : index
    %54 = vector.load %arg3[%c0_25, %c0_26, %c0_27] : memref<2x1x64xf32, #tpu.memory_space<vmem>>, vector<1x1x64xf32>
    %55 = vector.shape_cast %54 : vector<1x1x64xf32> to vector<1x64xf32>
    %cst_28 = arith.constant 1.000000e+00 : f32
    %56 = vector.broadcast %cst_28 : f32 to vector<1x64xf32>
    %57 = arith.subf %56, %55 : vector<1x64xf32>
    %cst_29 = arith.constant -1.000000e+09 : f32
    %58 = vector.broadcast %cst_29 : f32 to vector<1x64xf32>
    %59 = arith.mulf %58, %57 : vector<1x64xf32>
    %c0_30 = arith.constant 0 : index
    %c0_31 = arith.constant 0 : index
    %c0_32 = arith.constant 0 : index
    %60 = vector.load %arg1[%c0_30, %c0_31, %c0_32] : memref<2x64x32xf32, #tpu.memory_space<vmem>>, vector<1x64x32xf32>
    %61 = vector.shape_cast %60 : vector<1x64x32xf32> to vector<64x32xf32>
    %cst_33 = arith.constant dense<0.000000e+00> : vector<55x64xf32>
    %62 = tpu.matmul %51, %30, %cst_33 {dimension_numbers = #tpu.dot_dimension_numbers<[1], [0], [0], [1], [0, 0, 1, 1], [], []>} : vector<55x32xf32>, vector<32x64xf32>, vector<55x64xf32> -> vector<55x64xf32>
    %63 = vector.broadcast %40 : vector<1x64xf32> to vector<55x64xf32>
    %64 = arith.addf %62, %63 : vector<55x64xf32>
    %cst_34 = arith.constant dense<0.000000e+00> : vector<64x64xf32>
    %65 = tpu.matmul %61, %32, %cst_34 {dimension_numbers = #tpu.dot_dimension_numbers<[1], [0], [0], [1], [0, 0, 1, 1], [], []>} : vector<64x32xf32>, vector<32x64xf32>, vector<64x64xf32> -> vector<64x64xf32>
    %66 = vector.broadcast %41 : vector<1x64xf32> to vector<64x64xf32>
    %67 = arith.addf %65, %66 : vector<64x64xf32>
    %cst_35 = arith.constant 0.000000e+00 : f32
    %68 = vector.broadcast %cst_35 : f32 to vector<55x64xf32>
    %69 = vector.broadcast %7 : vector<1x64xf32> to vector<64x64xf32>
    %70 = arith.mulf %67, %69 : vector<64x64xf32>
    %cst_36 = arith.constant dense<0.000000e+00> : vector<55x64xf32>
    %71 = tpu.matmul %64, %70, %cst_36 {dimension_numbers = #tpu.dot_dimension_numbers<[1], [1], [0], [0], [0, 0, 1, 0], [], []>} : vector<55x64xf32>, vector<64x64xf32>, vector<55x64xf32> -> vector<55x64xf32>
    %72 = vector.broadcast %59 : vector<1x64xf32> to vector<55x64xf32>
    %73 = arith.addf %71, %72 : vector<55x64xf32>
    %cst_37 = arith.constant dense<0xFF800000> : vector<55xf32>
    %74 = vector.multi_reduction <maximumf>, %73, %cst_37 [1] : vector<55x64xf32> to vector<55xf32>
    %75 = vector.shape_cast %74 : vector<55xf32> to vector<55x1xf32>
    %76 = vector.broadcast %75 : vector<55x1xf32> to vector<55x64xf32>
    %77 = arith.subf %73, %76 : vector<55x64xf32>
    %78 = math.exp %77 : vector<55x64xf32>
    %cst_38 = arith.constant dense<0.000000e+00> : vector<55xf32>
    %79 = vector.multi_reduction <add>, %78, %cst_38 [1] : vector<55x64xf32> to vector<55xf32>
    %80 = vector.shape_cast %79 : vector<55xf32> to vector<55x1xf32>
    %81 = vector.broadcast %80 : vector<55x1xf32> to vector<55x64xf32>
    %82 = arith.divf %78, %81 : vector<55x64xf32>
    %83 = vector.broadcast %21 : vector<1x64xf32> to vector<64x64xf32>
    %84 = arith.mulf %67, %83 : vector<64x64xf32>
    %cst_39 = arith.constant dense<0.000000e+00> : vector<55x64xf32>
    %85 = tpu.matmul %82, %84, %cst_39 {dimension_numbers = #tpu.dot_dimension_numbers<[1], [0], [0], [1], [0, 0, 1, 1], [], []>} : vector<55x64xf32>, vector<64x64xf32>, vector<55x64xf32> -> vector<55x64xf32>
    %86 = arith.addf %68, %85 : vector<55x64xf32>
    %87 = vector.broadcast %14 : vector<1x64xf32> to vector<64x64xf32>
    %88 = arith.mulf %67, %87 : vector<64x64xf32>
    %cst_40 = arith.constant dense<0.000000e+00> : vector<55x64xf32>
    %89 = tpu.matmul %64, %88, %cst_40 {dimension_numbers = #tpu.dot_dimension_numbers<[1], [1], [0], [0], [0, 0, 1, 0], [], []>} : vector<55x64xf32>, vector<64x64xf32>, vector<55x64xf32> -> vector<55x64xf32>
    %90 = vector.broadcast %59 : vector<1x64xf32> to vector<55x64xf32>
    %91 = arith.addf %89, %90 : vector<55x64xf32>
    %cst_41 = arith.constant dense<0xFF800000> : vector<55xf32>
    %92 = vector.multi_reduction <maximumf>, %91, %cst_41 [1] : vector<55x64xf32> to vector<55xf32>
    %93 = vector.shape_cast %92 : vector<55xf32> to vector<55x1xf32>
    %94 = vector.broadcast %93 : vector<55x1xf32> to vector<55x64xf32>
    %95 = arith.subf %91, %94 : vector<55x64xf32>
    %96 = math.exp %95 : vector<55x64xf32>
    %cst_42 = arith.constant dense<0.000000e+00> : vector<55xf32>
    %97 = vector.multi_reduction <add>, %96, %cst_42 [1] : vector<55x64xf32> to vector<55xf32>
    %98 = vector.shape_cast %97 : vector<55xf32> to vector<55x1xf32>
    %99 = vector.broadcast %98 : vector<55x1xf32> to vector<55x64xf32>
    %100 = arith.divf %96, %99 : vector<55x64xf32>
    %101 = vector.broadcast %28 : vector<1x64xf32> to vector<64x64xf32>
    %102 = arith.mulf %67, %101 : vector<64x64xf32>
    %cst_43 = arith.constant dense<0.000000e+00> : vector<55x64xf32>
    %103 = tpu.matmul %100, %102, %cst_43 {dimension_numbers = #tpu.dot_dimension_numbers<[1], [0], [0], [1], [0, 0, 1, 1], [], []>} : vector<55x64xf32>, vector<64x64xf32>, vector<55x64xf32> -> vector<55x64xf32>
    %104 = arith.addf %86, %103 : vector<55x64xf32>
    %cst_44 = arith.constant dense<0.000000e+00> : vector<1x32xf32>
    %105 = tpu.matmul %53, %34, %cst_44 {dimension_numbers = #tpu.dot_dimension_numbers<[1], [0], [0], [1], [0, 0, 1, 1], [], []>} : vector<1x32xf32>, vector<32x32xf32>, vector<1x32xf32> -> vector<1x32xf32>
    %cst_45 = arith.constant dense<0.000000e+00> : vector<55x32xf32>
    %106 = tpu.matmul %51, %36, %cst_45 {dimension_numbers = #tpu.dot_dimension_numbers<[1], [0], [0], [1], [0, 0, 1, 1], [], []>} : vector<55x32xf32>, vector<32x32xf32>, vector<55x32xf32> -> vector<55x32xf32>
    %107 = vector.broadcast %105 : vector<1x32xf32> to vector<55x32xf32>
    %108 = arith.addf %107, %106 : vector<55x32xf32>
    %cst_46 = arith.constant dense<0.000000e+00> : vector<55x32xf32>
    %109 = tpu.matmul %104, %37, %cst_46 {dimension_numbers = #tpu.dot_dimension_numbers<[1], [0], [0], [1], [0, 0, 1, 1], [], []>} : vector<55x64xf32>, vector<64x32xf32>, vector<55x32xf32> -> vector<55x32xf32>
    %110 = arith.addf %108, %109 : vector<55x32xf32>
    %111 = vector.broadcast %43 : vector<1x32xf32> to vector<55x32xf32>
    %112 = arith.addf %110, %111 : vector<55x32xf32>
    %cst_47 = arith.constant dense<0.000000e+00> : vector<55xf32>
    %113 = vector.multi_reduction <add>, %112, %cst_47 [1] : vector<55x32xf32> to vector<55xf32>
    %114 = vector.shape_cast %113 : vector<55xf32> to vector<55x1xf32>
    %cst_48 = arith.constant 3.200000e+01 : f32
    %115 = vector.broadcast %cst_48 : f32 to vector<55x1xf32>
    %116 = arith.divf %114, %115 : vector<55x1xf32>
    %117 = vector.broadcast %116 : vector<55x1xf32> to vector<55x32xf32>
    %118 = arith.subf %112, %117 : vector<55x32xf32>
    %119 = arith.mulf %118, %118 : vector<55x32xf32>
    %cst_49 = arith.constant dense<0.000000e+00> : vector<55xf32>
    %120 = vector.multi_reduction <add>, %119, %cst_49 [1] : vector<55x32xf32> to vector<55xf32>
    %121 = vector.shape_cast %120 : vector<55xf32> to vector<55x1xf32>
    %cst_50 = arith.constant 3.200000e+01 : f32
    %122 = vector.broadcast %cst_50 : f32 to vector<55x1xf32>
    %123 = arith.divf %121, %122 : vector<55x1xf32>
    %124 = vector.broadcast %116 : vector<55x1xf32> to vector<55x32xf32>
    %125 = arith.subf %112, %124 : vector<55x32xf32>
    %cst_51 = arith.constant 9.99999974E-6 : f32
    %126 = vector.broadcast %cst_51 : f32 to vector<55x1xf32>
    %127 = arith.addf %123, %126 : vector<55x1xf32>
    %128 = math.rsqrt %127 : vector<55x1xf32>
    %129 = vector.broadcast %128 : vector<55x1xf32> to vector<55x32xf32>
    %130 = arith.mulf %125, %129 : vector<55x32xf32>
    %131 = vector.broadcast %44 : vector<1x32xf32> to vector<55x32xf32>
    %132 = arith.mulf %130, %131 : vector<55x32xf32>
    %133 = vector.broadcast %45 : vector<1x32xf32> to vector<55x32xf32>
    %134 = arith.addf %132, %133 : vector<55x32xf32>
    %cst_52 = arith.constant 0.000000e+00 : f32
    %135 = vector.broadcast %cst_52 : f32 to vector<55x32xf32>
    %136 = arith.maximumf %134, %135 : vector<55x32xf32>
    %137 = vector.broadcast %47 : vector<1x32xf32> to vector<55x32xf32>
    %138 = arith.mulf %51, %137 : vector<55x32xf32>
    %139 = vector.broadcast %48 : vector<1x32xf32> to vector<55x32xf32>
    %140 = arith.mulf %136, %139 : vector<55x32xf32>
    %141 = arith.addf %138, %140 : vector<55x32xf32>
    %cst_53 = arith.constant dense<0.000000e+00> : vector<1x55xf32>
    %142 = tpu.matmul %49, %141, %cst_53 {dimension_numbers = #tpu.dot_dimension_numbers<[1], [1], [0], [0], [0, 0, 1, 0], [], []>} : vector<1x32xf32>, vector<55x32xf32>, vector<1x55xf32> -> vector<1x55xf32>
    %cst_54 = arith.constant dense<0.000000e+00> : vector<1x55xf32>
    %143 = tpu.matmul %42, %104, %cst_54 {dimension_numbers = #tpu.dot_dimension_numbers<[1], [1], [0], [0], [0, 0, 1, 0], [], []>} : vector<1x64xf32>, vector<55x64xf32>, vector<1x55xf32> -> vector<1x55xf32>
    %144 = arith.addf %142, %143 : vector<1x55xf32>
    %145 = arith.mulf %53, %46 : vector<1x32xf32>
    %cst_55 = arith.constant dense<0.000000e+00> : vector<1xf32>
    %146 = vector.multi_reduction <add>, %145, %cst_55 [1] : vector<1x32xf32> to vector<1xf32>
    %147 = vector.shape_cast %146 : vector<1xf32> to vector<1x1xf32>
    %148 = vector.broadcast %147 : vector<1x1xf32> to vector<1x55xf32>
    %149 = arith.addf %144, %148 : vector<1x55xf32>
    %c0_56 = arith.constant 0 : index
    %c0_57 = arith.constant 0 : index
    %c0_58 = arith.constant 0 : index
    %150 = vector.load %arg4[%c0_56, %c0_57, %c0_58] : memref<2x1x55xf32, #tpu.memory_space<vmem>>, vector<1x1x55xf32>
    %151 = vector.shape_cast %150 : vector<1x1x55xf32> to vector<1x55xf32>
    %cst_59 = arith.constant 1.000000e+00 : f32
    %152 = vector.broadcast %cst_59 : f32 to vector<1x55xf32>
    %153 = arith.subf %152, %151 : vector<1x55xf32>
    %cst_60 = arith.constant 1.000000e+07 : f32
    %154 = vector.broadcast %cst_60 : f32 to vector<1x55xf32>
    %155 = arith.mulf %154, %153 : vector<1x55xf32>
    %156 = arith.subf %149, %155 : vector<1x55xf32>
    %cst_61 = arith.constant dense<0xFF800000> : vector<1xf32>
    %157 = vector.multi_reduction <maximumf>, %156, %cst_61 [1] : vector<1x55xf32> to vector<1xf32>
    %158 = vector.shape_cast %157 : vector<1xf32> to vector<1x1xf32>
    %159 = vector.broadcast %158 : vector<1x1xf32> to vector<1x55xf32>
    %160 = arith.subf %156, %159 : vector<1x55xf32>
    %161 = math.exp %160 : vector<1x55xf32>
    %cst_62 = arith.constant dense<0.000000e+00> : vector<1xf32>
    %162 = vector.multi_reduction <add>, %161, %cst_62 [1] : vector<1x55xf32> to vector<1xf32>
    %163 = vector.shape_cast %162 : vector<1xf32> to vector<1x1xf32>
    %164 = math.log %163 : vector<1x1xf32>
    %165 = arith.addf %158, %164 : vector<1x1xf32>
    %166 = vector.broadcast %165 : vector<1x1xf32> to vector<1x55xf32>
    %167 = arith.subf %156, %166 : vector<1x55xf32>
    %c0_63 = arith.constant 0 : index
    %c0_64 = arith.constant 0 : index
    %c0_65 = arith.constant 0 : index
    %168 = vector.load %arg10[%c0_63, %c0_64, %c0_65] : memref<2x1x55xf32, #tpu.memory_space<vmem>>, vector<1x1x55xf32>
    %169 = vector.shape_cast %168 : vector<1x1x55xf32> to vector<1x55xf32>
    %170 = vector.shape_cast %167 : vector<1x55xf32> to vector<1x1x55xf32>
    tpu.vector_store %arg10[%c0_63, %c0_64, %c0_65], %170 {strides = array<i32>} : memref<2x1x55xf32, #tpu.memory_space<vmem>>, vector<1x1x55xf32>,
    %c1_66 = arith.constant 1 : index
    %c0_67 = arith.constant 0 : index
    %c0_68 = arith.constant 0 : index
    %171 = vector.load %arg0[%c1_66, %c0_67, %c0_68] : memref<2x55x32xf32, #tpu.memory_space<vmem>>, vector<1x55x32xf32>
    %172 = vector.shape_cast %171 : vector<1x55x32xf32> to vector<55x32xf32>
    %c1_69 = arith.constant 1 : index
    %c0_70 = arith.constant 0 : index
    %c0_71 = arith.constant 0 : index
    %173 = vector.load %arg2[%c1_69, %c0_70, %c0_71] : memref<2x1x32xf32, #tpu.memory_space<vmem>>, vector<1x1x32xf32>
    %174 = vector.shape_cast %173 : vector<1x1x32xf32> to vector<1x32xf32>
    %c1_72 = arith.constant 1 : index
    %c0_73 = arith.constant 0 : index
    %c0_74 = arith.constant 0 : index
    %175 = vector.load %arg3[%c1_72, %c0_73, %c0_74] : memref<2x1x64xf32, #tpu.memory_space<vmem>>, vector<1x1x64xf32>
    %176 = vector.shape_cast %175 : vector<1x1x64xf32> to vector<1x64xf32>
    %cst_75 = arith.constant 1.000000e+00 : f32
    %177 = vector.broadcast %cst_75 : f32 to vector<1x64xf32>
    %178 = arith.subf %177, %176 : vector<1x64xf32>
    %cst_76 = arith.constant -1.000000e+09 : f32
    %179 = vector.broadcast %cst_76 : f32 to vector<1x64xf32>
    %180 = arith.mulf %179, %178 : vector<1x64xf32>
    %c1_77 = arith.constant 1 : index
    %c0_78 = arith.constant 0 : index
    %c0_79 = arith.constant 0 : index
    %181 = vector.load %arg1[%c1_77, %c0_78, %c0_79] : memref<2x64x32xf32, #tpu.memory_space<vmem>>, vector<1x64x32xf32>
    %182 = vector.shape_cast %181 : vector<1x64x32xf32> to vector<64x32xf32>
    %cst_80 = arith.constant dense<0.000000e+00> : vector<55x64xf32>
    %183 = tpu.matmul %172, %30, %cst_80 {dimension_numbers = #tpu.dot_dimension_numbers<[1], [0], [0], [1], [0, 0, 1, 1], [], []>} : vector<55x32xf32>, vector<32x64xf32>, vector<55x64xf32> -> vector<55x64xf32>
    %184 = vector.broadcast %40 : vector<1x64xf32> to vector<55x64xf32>
    %185 = arith.addf %183, %184 : vector<55x64xf32>
    %cst_81 = arith.constant dense<0.000000e+00> : vector<64x64xf32>
    %186 = tpu.matmul %182, %32, %cst_81 {dimension_numbers = #tpu.dot_dimension_numbers<[1], [0], [0], [1], [0, 0, 1, 1], [], []>} : vector<64x32xf32>, vector<32x64xf32>, vector<64x64xf32> -> vector<64x64xf32>
    %187 = vector.broadcast %41 : vector<1x64xf32> to vector<64x64xf32>
    %188 = arith.addf %186, %187 : vector<64x64xf32>
    %cst_82 = arith.constant 0.000000e+00 : f32
    %189 = vector.broadcast %cst_82 : f32 to vector<55x64xf32>
    %190 = vector.broadcast %7 : vector<1x64xf32> to vector<64x64xf32>
    %191 = arith.mulf %188, %190 : vector<64x64xf32>
    %cst_83 = arith.constant dense<0.000000e+00> : vector<55x64xf32>
    %192 = tpu.matmul %185, %191, %cst_83 {dimension_numbers = #tpu.dot_dimension_numbers<[1], [1], [0], [0], [0, 0, 1, 0], [], []>} : vector<55x64xf32>, vector<64x64xf32>, vector<55x64xf32> -> vector<55x64xf32>
    %193 = vector.broadcast %180 : vector<1x64xf32> to vector<55x64xf32>
    %194 = arith.addf %192, %193 : vector<55x64xf32>
    %cst_84 = arith.constant dense<0xFF800000> : vector<55xf32>
    %195 = vector.multi_reduction <maximumf>, %194, %cst_84 [1] : vector<55x64xf32> to vector<55xf32>
    %196 = vector.shape_cast %195 : vector<55xf32> to vector<55x1xf32>
    %197 = vector.broadcast %196 : vector<55x1xf32> to vector<55x64xf32>
    %198 = arith.subf %194, %197 : vector<55x64xf32>
    %199 = math.exp %198 : vector<55x64xf32>
    %cst_85 = arith.constant dense<0.000000e+00> : vector<55xf32>
    %200 = vector.multi_reduction <add>, %199, %cst_85 [1] : vector<55x64xf32> to vector<55xf32>
    %201 = vector.shape_cast %200 : vector<55xf32> to vector<55x1xf32>
    %202 = vector.broadcast %201 : vector<55x1xf32> to vector<55x64xf32>
    %203 = arith.divf %199, %202 : vector<55x64xf32>
    %204 = vector.broadcast %21 : vector<1x64xf32> to vector<64x64xf32>
    %205 = arith.mulf %188, %204 : vector<64x64xf32>
    %cst_86 = arith.constant dense<0.000000e+00> : vector<55x64xf32>
    %206 = tpu.matmul %203, %205, %cst_86 {dimension_numbers = #tpu.dot_dimension_numbers<[1], [0], [0], [1], [0, 0, 1, 1], [], []>} : vector<55x64xf32>, vector<64x64xf32>, vector<55x64xf32> -> vector<55x64xf32>
    %207 = arith.addf %189, %206 : vector<55x64xf32>
    %208 = vector.broadcast %14 : vector<1x64xf32> to vector<64x64xf32>
    %209 = arith.mulf %188, %208 : vector<64x64xf32>
    %cst_87 = arith.constant dense<0.000000e+00> : vector<55x64xf32>
    %210 = tpu.matmul %185, %209, %cst_87 {dimension_numbers = #tpu.dot_dimension_numbers<[1], [1], [0], [0], [0, 0, 1, 0], [], []>} : vector<55x64xf32>, vector<64x64xf32>, vector<55x64xf32> -> vector<55x64xf32>
    %211 = vector.broadcast %180 : vector<1x64xf32> to vector<55x64xf32>
    %212 = arith.addf %210, %211 : vector<55x64xf32>
    %cst_88 = arith.constant dense<0xFF800000> : vector<55xf32>
    %213 = vector.multi_reduction <maximumf>, %212, %cst_88 [1] : vector<55x64xf32> to vector<55xf32>
    %214 = vector.shape_cast %213 : vector<55xf32> to vector<55x1xf32>
    %215 = vector.broadcast %214 : vector<55x1xf32> to vector<55x64xf32>
    %216 = arith.subf %212, %215 : vector<55x64xf32>
    %217 = math.exp %216 : vector<55x64xf32>
    %cst_89 = arith.constant dense<0.000000e+00> : vector<55xf32>
    %218 = vector.multi_reduction <add>, %217, %cst_89 [1] : vector<55x64xf32> to vector<55xf32>
    %219 = vector.shape_cast %218 : vector<55xf32> to vector<55x1xf32>
    %220 = vector.broadcast %219 : vector<55x1xf32> to vector<55x64xf32>
    %221 = arith.divf %217, %220 : vector<55x64xf32>
    %222 = vector.broadcast %28 : vector<1x64xf32> to vector<64x64xf32>
    %223 = arith.mulf %188, %222 : vector<64x64xf32>
    %cst_90 = arith.constant dense<0.000000e+00> : vector<55x64xf32>
    %224 = tpu.matmul %221, %223, %cst_90 {dimension_numbers = #tpu.dot_dimension_numbers<[1], [0], [0], [1], [0, 0, 1, 1], [], []>} : vector<55x64xf32>, vector<64x64xf32>, vector<55x64xf32> -> vector<55x64xf32>
    %225 = arith.addf %207, %224 : vector<55x64xf32>
    %cst_91 = arith.constant dense<0.000000e+00> : vector<1x32xf32>
    %226 = tpu.matmul %174, %34, %cst_91 {dimension_numbers = #tpu.dot_dimension_numbers<[1], [0], [0], [1], [0, 0, 1, 1], [], []>} : vector<1x32xf32>, vector<32x32xf32>, vector<1x32xf32> -> vector<1x32xf32>
    %cst_92 = arith.constant dense<0.000000e+00> : vector<55x32xf32>
    %227 = tpu.matmul %172, %36, %cst_92 {dimension_numbers = #tpu.dot_dimension_numbers<[1], [0], [0], [1], [0, 0, 1, 1], [], []>} : vector<55x32xf32>, vector<32x32xf32>, vector<55x32xf32> -> vector<55x32xf32>
    %228 = vector.broadcast %226 : vector<1x32xf32> to vector<55x32xf32>
    %229 = arith.addf %228, %227 : vector<55x32xf32>
    %cst_93 = arith.constant dense<0.000000e+00> : vector<55x32xf32>
    %230 = tpu.matmul %225, %37, %cst_93 {dimension_numbers = #tpu.dot_dimension_numbers<[1], [0], [0], [1], [0, 0, 1, 1], [], []>} : vector<55x64xf32>, vector<64x32xf32>, vector<55x32xf32> -> vector<55x32xf32>
    %231 = arith.addf %229, %230 : vector<55x32xf32>
    %232 = vector.broadcast %43 : vector<1x32xf32> to vector<55x32xf32>
    %233 = arith.addf %231, %232 : vector<55x32xf32>
    %cst_94 = arith.constant dense<0.000000e+00> : vector<55xf32>
    %234 = vector.multi_reduction <add>, %233, %cst_94 [1] : vector<55x32xf32> to vector<55xf32>
    %235 = vector.shape_cast %234 : vector<55xf32> to vector<55x1xf32>
    %cst_95 = arith.constant 3.200000e+01 : f32
    %236 = vector.broadcast %cst_95 : f32 to vector<55x1xf32>
    %237 = arith.divf %235, %236 : vector<55x1xf32>
    %238 = vector.broadcast %237 : vector<55x1xf32> to vector<55x32xf32>
    %239 = arith.subf %233, %238 : vector<55x32xf32>
    %240 = arith.mulf %239, %239 : vector<55x32xf32>
    %cst_96 = arith.constant dense<0.000000e+00> : vector<55xf32>
    %241 = vector.multi_reduction <add>, %240, %cst_96 [1] : vector<55x32xf32> to vector<55xf32>
    %242 = vector.shape_cast %241 : vector<55xf32> to vector<55x1xf32>
    %cst_97 = arith.constant 3.200000e+01 : f32
    %243 = vector.broadcast %cst_97 : f32 to vector<55x1xf32>
    %244 = arith.divf %242, %243 : vector<55x1xf32>
    %245 = vector.broadcast %237 : vector<55x1xf32> to vector<55x32xf32>
    %246 = arith.subf %233, %245 : vector<55x32xf32>
    %cst_98 = arith.constant 9.99999974E-6 : f32
    %247 = vector.broadcast %cst_98 : f32 to vector<55x1xf32>
    %248 = arith.addf %244, %247 : vector<55x1xf32>
    %249 = math.rsqrt %248 : vector<55x1xf32>
    %250 = vector.broadcast %249 : vector<55x1xf32> to vector<55x32xf32>
    %251 = arith.mulf %246, %250 : vector<55x32xf32>
    %252 = vector.broadcast %44 : vector<1x32xf32> to vector<55x32xf32>
    %253 = arith.mulf %251, %252 : vector<55x32xf32>
    %254 = vector.broadcast %45 : vector<1x32xf32> to vector<55x32xf32>
    %255 = arith.addf %253, %254 : vector<55x32xf32>
    %cst_99 = arith.constant 0.000000e+00 : f32
    %256 = vector.broadcast %cst_99 : f32 to vector<55x32xf32>
    %257 = arith.maximumf %255, %256 : vector<55x32xf32>
    %258 = vector.broadcast %47 : vector<1x32xf32> to vector<55x32xf32>
    %259 = arith.mulf %172, %258 : vector<55x32xf32>
    %260 = vector.broadcast %48 : vector<1x32xf32> to vector<55x32xf32>
    %261 = arith.mulf %257, %260 : vector<55x32xf32>
    %262 = arith.addf %259, %261 : vector<55x32xf32>
    %cst_100 = arith.constant dense<0.000000e+00> : vector<1x55xf32>
    %263 = tpu.matmul %49, %262, %cst_100 {dimension_numbers = #tpu.dot_dimension_numbers<[1], [1], [0], [0], [0, 0, 1, 0], [], []>} : vector<1x32xf32>, vector<55x32xf32>, vector<1x55xf32> -> vector<1x55xf32>
    %cst_101 = arith.constant dense<0.000000e+00> : vector<1x55xf32>
    %264 = tpu.matmul %42, %225, %cst_101 {dimension_numbers = #tpu.dot_dimension_numbers<[1], [1], [0], [0], [0, 0, 1, 0], [], []>} : vector<1x64xf32>, vector<55x64xf32>, vector<1x55xf32> -> vector<1x55xf32>
    %265 = arith.addf %263, %264 : vector<1x55xf32>
    %266 = arith.mulf %174, %46 : vector<1x32xf32>
    %cst_102 = arith.constant dense<0.000000e+00> : vector<1xf32>
    %267 = vector.multi_reduction <add>, %266, %cst_102 [1] : vector<1x32xf32> to vector<1xf32>
    %268 = vector.shape_cast %267 : vector<1xf32> to vector<1x1xf32>
    %269 = vector.broadcast %268 : vector<1x1xf32> to vector<1x55xf32>
    %270 = arith.addf %265, %269 : vector<1x55xf32>
    %c1_103 = arith.constant 1 : index
    %c0_104 = arith.constant 0 : index
    %c0_105 = arith.constant 0 : index
    %271 = vector.load %arg4[%c1_103, %c0_104, %c0_105] : memref<2x1x55xf32, #tpu.memory_space<vmem>>, vector<1x1x55xf32>
    %272 = vector.shape_cast %271 : vector<1x1x55xf32> to vector<1x55xf32>
    %cst_106 = arith.constant 1.000000e+00 : f32
    %273 = vector.broadcast %cst_106 : f32 to vector<1x55xf32>
    %274 = arith.subf %273, %272 : vector<1x55xf32>
    %cst_107 = arith.constant 1.000000e+07 : f32
    %275 = vector.broadcast %cst_107 : f32 to vector<1x55xf32>
    %276 = arith.mulf %275, %274 : vector<1x55xf32>
    %277 = arith.subf %270, %276 : vector<1x55xf32>
    %cst_108 = arith.constant dense<0xFF800000> : vector<1xf32>
    %278 = vector.multi_reduction <maximumf>, %277, %cst_108 [1] : vector<1x55xf32> to vector<1xf32>
    %279 = vector.shape_cast %278 : vector<1xf32> to vector<1x1xf32>
    %280 = vector.broadcast %279 : vector<1x1xf32> to vector<1x55xf32>
    %281 = arith.subf %277, %280 : vector<1x55xf32>
    %282 = math.exp %281 : vector<1x55xf32>
    %cst_109 = arith.constant dense<0.000000e+00> : vector<1xf32>
    %283 = vector.multi_reduction <add>, %282, %cst_109 [1] : vector<1x55xf32> to vector<1xf32>
    %284 = vector.shape_cast %283 : vector<1xf32> to vector<1x1xf32>
    %285 = math.log %284 : vector<1x1xf32>
    %286 = arith.addf %279, %285 : vector<1x1xf32>
    %287 = vector.broadcast %286 : vector<1x1xf32> to vector<1x55xf32>
    %288 = arith.subf %277, %287 : vector<1x55xf32>
    %c1_110 = arith.constant 1 : index
    %c0_111 = arith.constant 0 : index
    %c0_112 = arith.constant 0 : index
    %289 = vector.load %arg10[%c1_110, %c0_111, %c0_112] : memref<2x1x55xf32, #tpu.memory_space<vmem>>, vector<1x1x55xf32>
    %290 = vector.shape_cast %289 : vector<1x1x55xf32> to vector<1x55xf32>
    %291 = vector.shape_cast %288 : vector<1x55xf32> to vector<1x1x55xf32>
    tpu.vector_store %arg10[%c1_110, %c0_111, %c0_112], %291 {strides = array<i32>} : memref<2x1x55xf32, #tpu.memory_space<vmem>>, vector<1x1x55xf32>,
    return
  }
}

module attributes {stable_mosaic.version = 11 : i64} {
  func.func @heatmap_kernel(%arg0: memref<2x55x32xf32, #tpu.memory_space<vmem>>, %arg1: memref<2x64x32xf32, #tpu.memory_space<vmem>>, %arg2: memref<2x1x32xf32, #tpu.memory_space<vmem>>, %arg3: memref<64x8xf32, #tpu.memory_space<vmem>>, %arg4: memref<2x1x64xf32, #tpu.memory_space<vmem>>, %arg5: memref<2x1x55xf32, #tpu.memory_space<vmem>>, %arg6: memref<8x32xf32, #tpu.memory_space<vmem>>, %arg7: memref<4x32x64xf32, #tpu.memory_space<vmem>>, %arg8: memref<3x32x32xf32, #tpu.memory_space<vmem>>, %arg9: memref<2x64x32xf32, #tpu.memory_space<vmem>>, %arg10: memref<6x64xf32, #tpu.memory_space<vmem>>, %arg11: memref<9x32xf32, #tpu.memory_space<vmem>>, %arg12: memref<2x1x64xf32, #tpu.memory_space<vmem>>) attributes {dimension_semantics = [], scalar_prefetch = 0 : i64, scratch_operands = 0 : i64, tpu.core_type = #tpu.core_type<tc>} {
    %0 = tpu.iota {dimensions = array<i32: 1>} : vector<1x64xi32>
    %c0_i32 = arith.constant 0 : i32
    %1 = vector.broadcast %c0_i32 : i32 to vector<1x64xi32>
    %2 = arith.cmpi sge, %0, %1 : vector<1x64xi32>
    %c16_i32 = arith.constant 16 : i32
    %3 = vector.broadcast %c16_i32 : i32 to vector<1x64xi32>
    %4 = arith.cmpi slt, %0, %3 : vector<1x64xi32>
    %5 = arith.andi %2, %4 : vector<1x64xi1>
    %6 = arith.extui %5 : vector<1x64xi1> to vector<1x64xi32>
    %7 = arith.sitofp %6 : vector<1x64xi32> to vector<1x64xf32>
    %c16_i32_0 = arith.constant 16 : i32
    %8 = vector.broadcast %c16_i32_0 : i32 to vector<1x64xi32>
    %9 = arith.cmpi sge, %0, %8 : vector<1x64xi32>
    %c32_i32 = arith.constant 32 : i32
    %10 = vector.broadcast %c32_i32 : i32 to vector<1x64xi32>
    %11 = arith.cmpi slt, %0, %10 : vector<1x64xi32>
    %12 = arith.andi %9, %11 : vector<1x64xi1>
    %13 = arith.extui %12 : vector<1x64xi1> to vector<1x64xi32>
    %14 = arith.sitofp %13 : vector<1x64xi32> to vector<1x64xf32>
    %c32_i32_1 = arith.constant 32 : i32
    %15 = vector.broadcast %c32_i32_1 : i32 to vector<1x64xi32>
    %16 = arith.cmpi sge, %0, %15 : vector<1x64xi32>
    %c48_i32 = arith.constant 48 : i32
    %17 = vector.broadcast %c48_i32 : i32 to vector<1x64xi32>
    %18 = arith.cmpi slt, %0, %17 : vector<1x64xi32>
    %19 = arith.andi %16, %18 : vector<1x64xi1>
    %20 = arith.extui %19 : vector<1x64xi1> to vector<1x64xi32>
    %21 = arith.sitofp %20 : vector<1x64xi32> to vector<1x64xf32>
    %c48_i32_2 = arith.constant 48 : i32
    %22 = vector.broadcast %c48_i32_2 : i32 to vector<1x64xi32>
    %23 = arith.cmpi sge, %0, %22 : vector<1x64xi32>
    %c64_i32 = arith.constant 64 : i32
    %24 = vector.broadcast %c64_i32 : i32 to vector<1x64xi32>
    %25 = arith.cmpi slt, %0, %24 : vector<1x64xi32>
    %26 = arith.andi %23, %25 : vector<1x64xi1>
    %27 = arith.extui %26 : vector<1x64xi1> to vector<1x64xi32>
    %28 = arith.sitofp %27 : vector<1x64xi32> to vector<1x64xf32>
    %c0 = arith.constant 0 : index
    %c0_3 = arith.constant 0 : index
    %c0_4 = arith.constant 0 : index
    %29 = vector.load %arg8[%c0, %c0_3, %c0_4] : memref<3x32x32xf32, #tpu.memory_space<vmem>>, vector<1x32x32xf32>
    %30 = vector.shape_cast %29 : vector<1x32x32xf32> to vector<32x32xf32>
    %c1 = arith.constant 1 : index
    %c0_5 = arith.constant 0 : index
    %c0_6 = arith.constant 0 : index
    %31 = vector.load %arg8[%c1, %c0_5, %c0_6] : memref<3x32x32xf32, #tpu.memory_space<vmem>>, vector<1x32x32xf32>
    %32 = vector.shape_cast %31 : vector<1x32x32xf32> to vector<32x32xf32>
    %c2 = arith.constant 2 : index
    %c0_7 = arith.constant 0 : index
    %c0_8 = arith.constant 0 : index
    %33 = vector.load %arg8[%c2, %c0_7, %c0_8] : memref<3x32x32xf32, #tpu.memory_space<vmem>>, vector<1x32x32xf32>
    %34 = vector.shape_cast %33 : vector<1x32x32xf32> to vector<32x32xf32>
    %c0_9 = arith.constant 0 : index
    %c0_10 = arith.constant 0 : index
    %c0_11 = arith.constant 0 : index
    %35 = vector.load %arg9[%c0_9, %c0_10, %c0_11] : memref<2x64x32xf32, #tpu.memory_space<vmem>>, vector<1x64x32xf32>
    %36 = vector.shape_cast %35 : vector<1x64x32xf32> to vector<64x32xf32>
    %c1_12 = arith.constant 1 : index
    %c0_13 = arith.constant 0 : index
    %c0_14 = arith.constant 0 : index
    %37 = vector.load %arg9[%c1_12, %c0_13, %c0_14] : memref<2x64x32xf32, #tpu.memory_space<vmem>>, vector<1x64x32xf32>
    %38 = vector.shape_cast %37 : vector<1x64x32xf32> to vector<64x32xf32>
    %c0_15 = arith.constant 0 : index
    %c0_16 = arith.constant 0 : index
    %39 = vector.load %arg10[%c0_15, %c0_16] : memref<6x64xf32, #tpu.memory_space<vmem>>, vector<6x64xf32>
    %c0_17 = arith.constant 0 : index
    %c0_18 = arith.constant 0 : index
    %40 = vector.load %arg11[%c0_17, %c0_18] : memref<9x32xf32, #tpu.memory_space<vmem>>, vector<9x32xf32>
    %41 = vector.extract_strided_slice %39 {offsets = [0, 0], sizes = [1, 64], strides = [1, 1]} : vector<6x64xf32> to vector<1x64xf32>
    %42 = vector.extract_strided_slice %39 {offsets = [1, 0], sizes = [1, 64], strides = [1, 1]} : vector<6x64xf32> to vector<1x64xf32>
    %43 = vector.extract_strided_slice %39 {offsets = [2, 0], sizes = [1, 64], strides = [1, 1]} : vector<6x64xf32> to vector<1x64xf32>
    %44 = vector.extract_strided_slice %39 {offsets = [3, 0], sizes = [1, 64], strides = [1, 1]} : vector<6x64xf32> to vector<1x64xf32>
    %45 = vector.extract_strided_slice %39 {offsets = [4, 0], sizes = [1, 64], strides = [1, 1]} : vector<6x64xf32> to vector<1x64xf32>
    %46 = vector.extract_strided_slice %39 {offsets = [5, 0], sizes = [1, 64], strides = [1, 1]} : vector<6x64xf32> to vector<1x64xf32>
    %47 = vector.extract_strided_slice %40 {offsets = [0, 0], sizes = [1, 32], strides = [1, 1]} : vector<9x32xf32> to vector<1x32xf32>
    %48 = vector.extract_strided_slice %40 {offsets = [1, 0], sizes = [1, 32], strides = [1, 1]} : vector<9x32xf32> to vector<1x32xf32>
    %49 = vector.extract_strided_slice %40 {offsets = [2, 0], sizes = [1, 32], strides = [1, 1]} : vector<9x32xf32> to vector<1x32xf32>
    %50 = vector.extract_strided_slice %40 {offsets = [3, 0], sizes = [1, 32], strides = [1, 1]} : vector<9x32xf32> to vector<1x32xf32>
    %51 = vector.extract_strided_slice %40 {offsets = [4, 0], sizes = [1, 32], strides = [1, 1]} : vector<9x32xf32> to vector<1x32xf32>
    %52 = vector.extract_strided_slice %40 {offsets = [5, 0], sizes = [1, 32], strides = [1, 1]} : vector<9x32xf32> to vector<1x32xf32>
    %53 = vector.extract_strided_slice %40 {offsets = [6, 0], sizes = [1, 32], strides = [1, 1]} : vector<9x32xf32> to vector<1x32xf32>
    %54 = vector.extract_strided_slice %40 {offsets = [7, 0], sizes = [1, 32], strides = [1, 1]} : vector<9x32xf32> to vector<1x32xf32>
    %55 = vector.extract_strided_slice %40 {offsets = [8, 0], sizes = [1, 32], strides = [1, 1]} : vector<9x32xf32> to vector<1x32xf32>
    %cst = arith.constant 1.000000e+00 : f32
    %56 = vector.broadcast %cst : f32 to vector<1x32xf32>
    %cst_19 = arith.constant 1.000000e+00 : f32
    %57 = vector.broadcast %cst_19 : f32 to vector<1x64xf32>
    %c0_20 = arith.constant 0 : index
    %c0_21 = arith.constant 0 : index
    %58 = vector.load %arg3[%c0_20, %c0_21] : memref<64x8xf32, #tpu.memory_space<vmem>>, vector<64x8xf32>
    %c0_22 = arith.constant 0 : index
    %c0_23 = arith.constant 0 : index
    %59 = vector.load %arg6[%c0_22, %c0_23] : memref<8x32xf32, #tpu.memory_space<vmem>>, vector<8x32xf32>
    %cst_24 = arith.constant dense<0.000000e+00> : vector<64x32xf32>
    %60 = tpu.matmul %58, %59, %cst_24 {dimension_numbers = #tpu.dot_dimension_numbers<[1], [0], [0], [1], [0, 0, 1, 1], [], []>} : vector<64x8xf32>, vector<8x32xf32>, vector<64x32xf32> -> vector<64x32xf32>
    %c0_25 = arith.constant 0 : index
    %c0_26 = arith.constant 0 : index
    %c0_27 = arith.constant 0 : index
    %61 = vector.load %arg2[%c0_25, %c0_26, %c0_27] : memref<2x1x32xf32, #tpu.memory_space<vmem>>, vector<1x1x32xf32>
    %62 = vector.shape_cast %61 : vector<1x1x32xf32> to vector<1x32xf32>
    %cst_28 = arith.constant dense<0.000000e+00> : vector<1x32xf32>
    %63 = tpu.matmul %62, %30, %cst_28 {dimension_numbers = #tpu.dot_dimension_numbers<[1], [0], [0], [1], [0, 0, 1, 1], [], []>} : vector<1x32xf32>, vector<32x32xf32>, vector<1x32xf32> -> vector<1x32xf32>
    %64 = vector.broadcast %63 : vector<1x32xf32> to vector<64x32xf32>
    %65 = arith.addf %60, %64 : vector<64x32xf32>
    %66 = vector.broadcast %47 : vector<1x32xf32> to vector<64x32xf32>
    %67 = arith.addf %65, %66 : vector<64x32xf32>
    %cst_29 = arith.constant dense<0.000000e+00> : vector<64xf32>
    %68 = vector.multi_reduction <add>, %67, %cst_29 [1] : vector<64x32xf32> to vector<64xf32>
    %69 = vector.shape_cast %68 : vector<64xf32> to vector<64x1xf32>
    %cst_30 = arith.constant 3.200000e+01 : f32
    %70 = vector.broadcast %cst_30 : f32 to vector<64x1xf32>
    %71 = arith.divf %69, %70 : vector<64x1xf32>
    %72 = vector.broadcast %71 : vector<64x1xf32> to vector<64x32xf32>
    %73 = arith.subf %67, %72 : vector<64x32xf32>
    %74 = arith.mulf %73, %73 : vector<64x32xf32>
    %cst_31 = arith.constant dense<0.000000e+00> : vector<64xf32>
    %75 = vector.multi_reduction <add>, %74, %cst_31 [1] : vector<64x32xf32> to vector<64xf32>
    %76 = vector.shape_cast %75 : vector<64xf32> to vector<64x1xf32>
    %cst_32 = arith.constant 3.200000e+01 : f32
    %77 = vector.broadcast %cst_32 : f32 to vector<64x1xf32>
    %78 = arith.divf %76, %77 : vector<64x1xf32>
    %79 = vector.broadcast %71 : vector<64x1xf32> to vector<64x32xf32>
    %80 = arith.subf %67, %79 : vector<64x32xf32>
    %cst_33 = arith.constant 9.99999974E-6 : f32
    %81 = vector.broadcast %cst_33 : f32 to vector<64x1xf32>
    %82 = arith.addf %78, %81 : vector<64x1xf32>
    %83 = math.rsqrt %82 : vector<64x1xf32>
    %84 = vector.broadcast %83 : vector<64x1xf32> to vector<64x32xf32>
    %85 = arith.mulf %80, %84 : vector<64x32xf32>
    %86 = vector.broadcast %48 : vector<1x32xf32> to vector<64x32xf32>
    %87 = arith.mulf %85, %86 : vector<64x32xf32>
    %88 = vector.broadcast %49 : vector<1x32xf32> to vector<64x32xf32>
    %89 = arith.addf %87, %88 : vector<64x32xf32>
    %cst_34 = arith.constant 0.000000e+00 : f32
    %90 = vector.broadcast %cst_34 : f32 to vector<64x32xf32>
    %91 = arith.maximumf %89, %90 : vector<64x32xf32>
    %c0_35 = arith.constant 0 : index
    %c0_36 = arith.constant 0 : index
    %c0_37 = arith.constant 0 : index
    %92 = vector.load %arg4[%c0_35, %c0_36, %c0_37] : memref<2x1x64xf32, #tpu.memory_space<vmem>>, vector<1x1x64xf32>
    %93 = vector.shape_cast %92 : vector<1x1x64xf32> to vector<1x64xf32>
    %cst_38 = arith.constant 1.000000e+00 : f32
    %94 = vector.broadcast %cst_38 : f32 to vector<1x64xf32>
    %95 = arith.subf %94, %93 : vector<1x64xf32>
    %cst_39 = arith.constant -1.000000e+09 : f32
    %96 = vector.broadcast %cst_39 : f32 to vector<1x64xf32>
    %97 = arith.mulf %96, %95 : vector<1x64xf32>
    %c0_40 = arith.constant 0 : index
    %c0_41 = arith.constant 0 : index
    %c0_42 = arith.constant 0 : index
    %98 = vector.load %arg5[%c0_40, %c0_41, %c0_42] : memref<2x1x55xf32, #tpu.memory_space<vmem>>, vector<1x1x55xf32>
    %99 = vector.shape_cast %98 : vector<1x1x55xf32> to vector<1x55xf32>
    %cst_43 = arith.constant 1.000000e+00 : f32
    %100 = vector.broadcast %cst_43 : f32 to vector<1x55xf32>
    %101 = arith.subf %100, %99 : vector<1x55xf32>
    %cst_44 = arith.constant -1.000000e+09 : f32
    %102 = vector.broadcast %cst_44 : f32 to vector<1x55xf32>
    %103 = arith.mulf %102, %101 : vector<1x55xf32>
    %c0_45 = arith.constant 0 : index
    %c0_46 = arith.constant 0 : index
    %c0_47 = arith.constant 0 : index
    %104 = vector.load %arg1[%c0_45, %c0_46, %c0_47] : memref<2x64x32xf32, #tpu.memory_space<vmem>>, vector<1x64x32xf32>
    %105 = vector.shape_cast %104 : vector<1x64x32xf32> to vector<64x32xf32>
    %c0_48 = arith.constant 0 : index
    %c0_49 = arith.constant 0 : index
    %c0_50 = arith.constant 0 : index
    %106 = vector.load %arg7[%c0_48, %c0_49, %c0_50] : memref<4x32x64xf32, #tpu.memory_space<vmem>>, vector<1x32x64xf32>
    %107 = vector.shape_cast %106 : vector<1x32x64xf32> to vector<32x64xf32>
    %c1_51 = arith.constant 1 : index
    %c0_52 = arith.constant 0 : index
    %c0_53 = arith.constant 0 : index
    %108 = vector.load %arg7[%c1_51, %c0_52, %c0_53] : memref<4x32x64xf32, #tpu.memory_space<vmem>>, vector<1x32x64xf32>
    %109 = vector.shape_cast %108 : vector<1x32x64xf32> to vector<32x64xf32>
    %cst_54 = arith.constant dense<0.000000e+00> : vector<64x64xf32>
    %110 = tpu.matmul %91, %107, %cst_54 {dimension_numbers = #tpu.dot_dimension_numbers<[1], [0], [0], [1], [0, 0, 1, 1], [], []>} : vector<64x32xf32>, vector<32x64xf32>, vector<64x64xf32> -> vector<64x64xf32>
    %111 = vector.broadcast %41 : vector<1x64xf32> to vector<64x64xf32>
    %112 = arith.addf %110, %111 : vector<64x64xf32>
    %cst_55 = arith.constant dense<0.000000e+00> : vector<64x64xf32>
    %113 = tpu.matmul %105, %109, %cst_55 {dimension_numbers = #tpu.dot_dimension_numbers<[1], [0], [0], [1], [0, 0, 1, 1], [], []>} : vector<64x32xf32>, vector<32x64xf32>, vector<64x64xf32> -> vector<64x64xf32>
    %114 = vector.broadcast %42 : vector<1x64xf32> to vector<64x64xf32>
    %115 = arith.addf %113, %114 : vector<64x64xf32>
    %cst_56 = arith.constant 0.000000e+00 : f32
    %116 = vector.broadcast %cst_56 : f32 to vector<64x64xf32>
    %117 = vector.broadcast %7 : vector<1x64xf32> to vector<64x64xf32>
    %118 = arith.mulf %115, %117 : vector<64x64xf32>
    %cst_57 = arith.constant dense<0.000000e+00> : vector<64x64xf32>
    %119 = tpu.matmul %112, %118, %cst_57 {dimension_numbers = #tpu.dot_dimension_numbers<[1], [1], [0], [0], [0, 0, 1, 0], [], []>} : vector<64x64xf32>, vector<64x64xf32>, vector<64x64xf32> -> vector<64x64xf32>
    %120 = vector.broadcast %97 : vector<1x64xf32> to vector<64x64xf32>
    %121 = arith.addf %119, %120 : vector<64x64xf32>
    %cst_58 = arith.constant dense<0xFF800000> : vector<64xf32>
    %122 = vector.multi_reduction <maximumf>, %121, %cst_58 [1] : vector<64x64xf32> to vector<64xf32>
    %123 = vector.shape_cast %122 : vector<64xf32> to vector<64x1xf32>
    %124 = vector.broadcast %123 : vector<64x1xf32> to vector<64x64xf32>
    %125 = arith.subf %121, %124 : vector<64x64xf32>
    %126 = math.exp %125 : vector<64x64xf32>
    %cst_59 = arith.constant dense<0.000000e+00> : vector<64xf32>
    %127 = vector.multi_reduction <add>, %126, %cst_59 [1] : vector<64x64xf32> to vector<64xf32>
    %128 = vector.shape_cast %127 : vector<64xf32> to vector<64x1xf32>
    %129 = vector.broadcast %128 : vector<64x1xf32> to vector<64x64xf32>
    %130 = arith.divf %126, %129 : vector<64x64xf32>
    %131 = vector.broadcast %21 : vector<1x64xf32> to vector<64x64xf32>
    %132 = arith.mulf %115, %131 : vector<64x64xf32>
    %cst_60 = arith.constant dense<0.000000e+00> : vector<64x64xf32>
    %133 = tpu.matmul %130, %132, %cst_60 {dimension_numbers = #tpu.dot_dimension_numbers<[1], [0], [0], [1], [0, 0, 1, 1], [], []>} : vector<64x64xf32>, vector<64x64xf32>, vector<64x64xf32> -> vector<64x64xf32>
    %134 = arith.addf %116, %133 : vector<64x64xf32>
    %135 = vector.broadcast %14 : vector<1x64xf32> to vector<64x64xf32>
    %136 = arith.mulf %115, %135 : vector<64x64xf32>
    %cst_61 = arith.constant dense<0.000000e+00> : vector<64x64xf32>
    %137 = tpu.matmul %112, %136, %cst_61 {dimension_numbers = #tpu.dot_dimension_numbers<[1], [1], [0], [0], [0, 0, 1, 0], [], []>} : vector<64x64xf32>, vector<64x64xf32>, vector<64x64xf32> -> vector<64x64xf32>
    %138 = vector.broadcast %97 : vector<1x64xf32> to vector<64x64xf32>
    %139 = arith.addf %137, %138 : vector<64x64xf32>
    %cst_62 = arith.constant dense<0xFF800000> : vector<64xf32>
    %140 = vector.multi_reduction <maximumf>, %139, %cst_62 [1] : vector<64x64xf32> to vector<64xf32>
    %141 = vector.shape_cast %140 : vector<64xf32> to vector<64x1xf32>
    %142 = vector.broadcast %141 : vector<64x1xf32> to vector<64x64xf32>
    %143 = arith.subf %139, %142 : vector<64x64xf32>
    %144 = math.exp %143 : vector<64x64xf32>
    %cst_63 = arith.constant dense<0.000000e+00> : vector<64xf32>
    %145 = vector.multi_reduction <add>, %144, %cst_63 [1] : vector<64x64xf32> to vector<64xf32>
    %146 = vector.shape_cast %145 : vector<64xf32> to vector<64x1xf32>
    %147 = vector.broadcast %146 : vector<64x1xf32> to vector<64x64xf32>
    %148 = arith.divf %144, %147 : vector<64x64xf32>
    %149 = vector.broadcast %28 : vector<1x64xf32> to vector<64x64xf32>
    %150 = arith.mulf %115, %149 : vector<64x64xf32>
    %cst_64 = arith.constant dense<0.000000e+00> : vector<64x64xf32>
    %151 = tpu.matmul %148, %150, %cst_64 {dimension_numbers = #tpu.dot_dimension_numbers<[1], [0], [0], [1], [0, 0, 1, 1], [], []>} : vector<64x64xf32>, vector<64x64xf32>, vector<64x64xf32> -> vector<64x64xf32>
    %152 = arith.addf %134, %151 : vector<64x64xf32>
    %c0_65 = arith.constant 0 : index
    %c0_66 = arith.constant 0 : index
    %c0_67 = arith.constant 0 : index
    %153 = vector.load %arg0[%c0_65, %c0_66, %c0_67] : memref<2x55x32xf32, #tpu.memory_space<vmem>>, vector<1x55x32xf32>
    %154 = vector.shape_cast %153 : vector<1x55x32xf32> to vector<55x32xf32>
    %c2_68 = arith.constant 2 : index
    %c0_69 = arith.constant 0 : index
    %c0_70 = arith.constant 0 : index
    %155 = vector.load %arg7[%c2_68, %c0_69, %c0_70] : memref<4x32x64xf32, #tpu.memory_space<vmem>>, vector<1x32x64xf32>
    %156 = vector.shape_cast %155 : vector<1x32x64xf32> to vector<32x64xf32>
    %c3 = arith.constant 3 : index
    %c0_71 = arith.constant 0 : index
    %c0_72 = arith.constant 0 : index
    %157 = vector.load %arg7[%c3, %c0_71, %c0_72] : memref<4x32x64xf32, #tpu.memory_space<vmem>>, vector<1x32x64xf32>
    %158 = vector.shape_cast %157 : vector<1x32x64xf32> to vector<32x64xf32>
    %cst_73 = arith.constant dense<0.000000e+00> : vector<64x64xf32>
    %159 = tpu.matmul %91, %156, %cst_73 {dimension_numbers = #tpu.dot_dimension_numbers<[1], [0], [0], [1], [0, 0, 1, 1], [], []>} : vector<64x32xf32>, vector<32x64xf32>, vector<64x64xf32> -> vector<64x64xf32>
    %160 = vector.broadcast %43 : vector<1x64xf32> to vector<64x64xf32>
    %161 = arith.addf %159, %160 : vector<64x64xf32>
    %cst_74 = arith.constant dense<0.000000e+00> : vector<55x64xf32>
    %162 = tpu.matmul %154, %158, %cst_74 {dimension_numbers = #tpu.dot_dimension_numbers<[1], [0], [0], [1], [0, 0, 1, 1], [], []>} : vector<55x32xf32>, vector<32x64xf32>, vector<55x64xf32> -> vector<55x64xf32>
    %163 = vector.broadcast %44 : vector<1x64xf32> to vector<55x64xf32>
    %164 = arith.addf %162, %163 : vector<55x64xf32>
    %cst_75 = arith.constant 0.000000e+00 : f32
    %165 = vector.broadcast %cst_75 : f32 to vector<64x64xf32>
    %166 = vector.broadcast %7 : vector<1x64xf32> to vector<55x64xf32>
    %167 = arith.mulf %164, %166 : vector<55x64xf32>
    %cst_76 = arith.constant dense<0.000000e+00> : vector<64x55xf32>
    %168 = tpu.matmul %161, %167, %cst_76 {dimension_numbers = #tpu.dot_dimension_numbers<[1], [1], [0], [0], [0, 0, 1, 0], [], []>} : vector<64x64xf32>, vector<55x64xf32>, vector<64x55xf32> -> vector<64x55xf32>
    %169 = vector.broadcast %103 : vector<1x55xf32> to vector<64x55xf32>
    %170 = arith.addf %168, %169 : vector<64x55xf32>
    %cst_77 = arith.constant dense<0xFF800000> : vector<64xf32>
    %171 = vector.multi_reduction <maximumf>, %170, %cst_77 [1] : vector<64x55xf32> to vector<64xf32>
    %172 = vector.shape_cast %171 : vector<64xf32> to vector<64x1xf32>
    %173 = vector.broadcast %172 : vector<64x1xf32> to vector<64x55xf32>
    %174 = arith.subf %170, %173 : vector<64x55xf32>
    %175 = math.exp %174 : vector<64x55xf32>
    %cst_78 = arith.constant dense<0.000000e+00> : vector<64xf32>
    %176 = vector.multi_reduction <add>, %175, %cst_78 [1] : vector<64x55xf32> to vector<64xf32>
    %177 = vector.shape_cast %176 : vector<64xf32> to vector<64x1xf32>
    %178 = vector.broadcast %177 : vector<64x1xf32> to vector<64x55xf32>
    %179 = arith.divf %175, %178 : vector<64x55xf32>
    %180 = vector.broadcast %21 : vector<1x64xf32> to vector<55x64xf32>
    %181 = arith.mulf %164, %180 : vector<55x64xf32>
    %cst_79 = arith.constant dense<0.000000e+00> : vector<64x64xf32>
    %182 = tpu.matmul %179, %181, %cst_79 {dimension_numbers = #tpu.dot_dimension_numbers<[1], [0], [0], [1], [0, 0, 1, 1], [], []>} : vector<64x55xf32>, vector<55x64xf32>, vector<64x64xf32> -> vector<64x64xf32>
    %183 = arith.addf %165, %182 : vector<64x64xf32>
    %184 = vector.broadcast %14 : vector<1x64xf32> to vector<55x64xf32>
    %185 = arith.mulf %164, %184 : vector<55x64xf32>
    %cst_80 = arith.constant dense<0.000000e+00> : vector<64x55xf32>
    %186 = tpu.matmul %161, %185, %cst_80 {dimension_numbers = #tpu.dot_dimension_numbers<[1], [1], [0], [0], [0, 0, 1, 0], [], []>} : vector<64x64xf32>, vector<55x64xf32>, vector<64x55xf32> -> vector<64x55xf32>
    %187 = vector.broadcast %103 : vector<1x55xf32> to vector<64x55xf32>
    %188 = arith.addf %186, %187 : vector<64x55xf32>
    %cst_81 = arith.constant dense<0xFF800000> : vector<64xf32>
    %189 = vector.multi_reduction <maximumf>, %188, %cst_81 [1] : vector<64x55xf32> to vector<64xf32>
    %190 = vector.shape_cast %189 : vector<64xf32> to vector<64x1xf32>
    %191 = vector.broadcast %190 : vector<64x1xf32> to vector<64x55xf32>
    %192 = arith.subf %188, %191 : vector<64x55xf32>
    %193 = math.exp %192 : vector<64x55xf32>
    %cst_82 = arith.constant dense<0.000000e+00> : vector<64xf32>
    %194 = vector.multi_reduction <add>, %193, %cst_82 [1] : vector<64x55xf32> to vector<64xf32>
    %195 = vector.shape_cast %194 : vector<64xf32> to vector<64x1xf32>
    %196 = vector.broadcast %195 : vector<64x1xf32> to vector<64x55xf32>
    %197 = arith.divf %193, %196 : vector<64x55xf32>
    %198 = vector.broadcast %28 : vector<1x64xf32> to vector<55x64xf32>
    %199 = arith.mulf %164, %198 : vector<55x64xf32>
    %cst_83 = arith.constant dense<0.000000e+00> : vector<64x64xf32>
    %200 = tpu.matmul %197, %199, %cst_83 {dimension_numbers = #tpu.dot_dimension_numbers<[1], [0], [0], [1], [0, 0, 1, 1], [], []>} : vector<64x55xf32>, vector<55x64xf32>, vector<64x64xf32> -> vector<64x64xf32>
    %201 = arith.addf %183, %200 : vector<64x64xf32>
    %cst_84 = arith.constant dense<0.000000e+00> : vector<1x32xf32>
    %202 = tpu.matmul %62, %32, %cst_84 {dimension_numbers = #tpu.dot_dimension_numbers<[1], [0], [0], [1], [0, 0, 1, 1], [], []>} : vector<1x32xf32>, vector<32x32xf32>, vector<1x32xf32> -> vector<1x32xf32>
    %cst_85 = arith.constant dense<0.000000e+00> : vector<64x32xf32>
    %203 = tpu.matmul %91, %34, %cst_85 {dimension_numbers = #tpu.dot_dimension_numbers<[1], [0], [0], [1], [0, 0, 1, 1], [], []>} : vector<64x32xf32>, vector<32x32xf32>, vector<64x32xf32> -> vector<64x32xf32>
    %204 = vector.broadcast %202 : vector<1x32xf32> to vector<64x32xf32>
    %205 = arith.addf %204, %203 : vector<64x32xf32>
    %cst_86 = arith.constant dense<0.000000e+00> : vector<64x32xf32>
    %206 = tpu.matmul %152, %36, %cst_86 {dimension_numbers = #tpu.dot_dimension_numbers<[1], [0], [0], [1], [0, 0, 1, 1], [], []>} : vector<64x64xf32>, vector<64x32xf32>, vector<64x32xf32> -> vector<64x32xf32>
    %207 = arith.addf %205, %206 : vector<64x32xf32>
    %cst_87 = arith.constant dense<0.000000e+00> : vector<64x32xf32>
    %208 = tpu.matmul %201, %38, %cst_87 {dimension_numbers = #tpu.dot_dimension_numbers<[1], [0], [0], [1], [0, 0, 1, 1], [], []>} : vector<64x64xf32>, vector<64x32xf32>, vector<64x32xf32> -> vector<64x32xf32>
    %209 = arith.addf %207, %208 : vector<64x32xf32>
    %210 = vector.broadcast %50 : vector<1x32xf32> to vector<64x32xf32>
    %211 = arith.addf %209, %210 : vector<64x32xf32>
    %cst_88 = arith.constant dense<0.000000e+00> : vector<64xf32>
    %212 = vector.multi_reduction <add>, %211, %cst_88 [1] : vector<64x32xf32> to vector<64xf32>
    %213 = vector.shape_cast %212 : vector<64xf32> to vector<64x1xf32>
    %cst_89 = arith.constant 3.200000e+01 : f32
    %214 = vector.broadcast %cst_89 : f32 to vector<64x1xf32>
    %215 = arith.divf %213, %214 : vector<64x1xf32>
    %216 = vector.broadcast %215 : vector<64x1xf32> to vector<64x32xf32>
    %217 = arith.subf %211, %216 : vector<64x32xf32>
    %218 = arith.mulf %217, %217 : vector<64x32xf32>
    %cst_90 = arith.constant dense<0.000000e+00> : vector<64xf32>
    %219 = vector.multi_reduction <add>, %218, %cst_90 [1] : vector<64x32xf32> to vector<64xf32>
    %220 = vector.shape_cast %219 : vector<64xf32> to vector<64x1xf32>
    %cst_91 = arith.constant 3.200000e+01 : f32
    %221 = vector.broadcast %cst_91 : f32 to vector<64x1xf32>
    %222 = arith.divf %220, %221 : vector<64x1xf32>
    %223 = vector.broadcast %215 : vector<64x1xf32> to vector<64x32xf32>
    %224 = arith.subf %211, %223 : vector<64x32xf32>
    %cst_92 = arith.constant 9.99999974E-6 : f32
    %225 = vector.broadcast %cst_92 : f32 to vector<64x1xf32>
    %226 = arith.addf %222, %225 : vector<64x1xf32>
    %227 = math.rsqrt %226 : vector<64x1xf32>
    %228 = vector.broadcast %227 : vector<64x1xf32> to vector<64x32xf32>
    %229 = arith.mulf %224, %228 : vector<64x32xf32>
    %230 = vector.broadcast %51 : vector<1x32xf32> to vector<64x32xf32>
    %231 = arith.mulf %229, %230 : vector<64x32xf32>
    %232 = vector.broadcast %52 : vector<1x32xf32> to vector<64x32xf32>
    %233 = arith.addf %231, %232 : vector<64x32xf32>
    %cst_93 = arith.constant 0.000000e+00 : f32
    %234 = vector.broadcast %cst_93 : f32 to vector<64x32xf32>
    %235 = arith.maximumf %233, %234 : vector<64x32xf32>
    %236 = vector.broadcast %54 : vector<1x32xf32> to vector<64x32xf32>
    %237 = arith.mulf %91, %236 : vector<64x32xf32>
    %238 = vector.broadcast %55 : vector<1x32xf32> to vector<64x32xf32>
    %239 = arith.mulf %235, %238 : vector<64x32xf32>
    %240 = arith.addf %237, %239 : vector<64x32xf32>
    %241 = vector.broadcast %45 : vector<1x64xf32> to vector<64x64xf32>
    %242 = arith.mulf %152, %241 : vector<64x64xf32>
    %243 = vector.broadcast %46 : vector<1x64xf32> to vector<64x64xf32>
    %244 = arith.mulf %201, %243 : vector<64x64xf32>
    %245 = arith.addf %242, %244 : vector<64x64xf32>
    %cst_94 = arith.constant dense<0.000000e+00> : vector<1x64xf32>
    %246 = tpu.matmul %56, %240, %cst_94 {dimension_numbers = #tpu.dot_dimension_numbers<[1], [1], [0], [0], [0, 0, 1, 0], [], []>} : vector<1x32xf32>, vector<64x32xf32>, vector<1x64xf32> -> vector<1x64xf32>
    %cst_95 = arith.constant dense<0.000000e+00> : vector<1x64xf32>
    %247 = tpu.matmul %57, %245, %cst_95 {dimension_numbers = #tpu.dot_dimension_numbers<[1], [1], [0], [0], [0, 0, 1, 0], [], []>} : vector<1x64xf32>, vector<64x64xf32>, vector<1x64xf32> -> vector<1x64xf32>
    %248 = arith.addf %246, %247 : vector<1x64xf32>
    %249 = arith.mulf %62, %53 : vector<1x32xf32>
    %cst_96 = arith.constant dense<0.000000e+00> : vector<1xf32>
    %250 = vector.multi_reduction <add>, %249, %cst_96 [1] : vector<1x32xf32> to vector<1xf32>
    %251 = vector.shape_cast %250 : vector<1xf32> to vector<1x1xf32>
    %252 = vector.broadcast %251 : vector<1x1xf32> to vector<1x64xf32>
    %253 = arith.addf %248, %252 : vector<1x64xf32>
    %cst_97 = arith.constant dense<0xFF800000> : vector<1xf32>
    %254 = vector.multi_reduction <maximumf>, %253, %cst_97 [1] : vector<1x64xf32> to vector<1xf32>
    %255 = vector.shape_cast %254 : vector<1xf32> to vector<1x1xf32>
    %256 = vector.broadcast %255 : vector<1x1xf32> to vector<1x64xf32>
    %257 = arith.subf %253, %256 : vector<1x64xf32>
    %258 = math.exp %257 : vector<1x64xf32>
    %cst_98 = arith.constant dense<0.000000e+00> : vector<1xf32>
    %259 = vector.multi_reduction <add>, %258, %cst_98 [1] : vector<1x64xf32> to vector<1xf32>
    %260 = vector.shape_cast %259 : vector<1xf32> to vector<1x1xf32>
    %261 = math.log %260 : vector<1x1xf32>
    %262 = arith.addf %255, %261 : vector<1x1xf32>
    %263 = vector.broadcast %262 : vector<1x1xf32> to vector<1x64xf32>
    %264 = arith.subf %253, %263 : vector<1x64xf32>
    %c0_99 = arith.constant 0 : index
    %c0_100 = arith.constant 0 : index
    %c0_101 = arith.constant 0 : index
    %265 = vector.load %arg12[%c0_99, %c0_100, %c0_101] : memref<2x1x64xf32, #tpu.memory_space<vmem>>, vector<1x1x64xf32>
    %266 = vector.shape_cast %265 : vector<1x1x64xf32> to vector<1x64xf32>
    %267 = vector.shape_cast %264 : vector<1x64xf32> to vector<1x1x64xf32>
    tpu.vector_store %arg12[%c0_99, %c0_100, %c0_101], %267 {strides = array<i32>} : memref<2x1x64xf32, #tpu.memory_space<vmem>>, vector<1x1x64xf32>,
    %c1_102 = arith.constant 1 : index
    %c0_103 = arith.constant 0 : index
    %c0_104 = arith.constant 0 : index
    %268 = vector.load %arg2[%c1_102, %c0_103, %c0_104] : memref<2x1x32xf32, #tpu.memory_space<vmem>>, vector<1x1x32xf32>
    %269 = vector.shape_cast %268 : vector<1x1x32xf32> to vector<1x32xf32>
    %cst_105 = arith.constant dense<0.000000e+00> : vector<1x32xf32>
    %270 = tpu.matmul %269, %30, %cst_105 {dimension_numbers = #tpu.dot_dimension_numbers<[1], [0], [0], [1], [0, 0, 1, 1], [], []>} : vector<1x32xf32>, vector<32x32xf32>, vector<1x32xf32> -> vector<1x32xf32>
    %271 = vector.broadcast %270 : vector<1x32xf32> to vector<64x32xf32>
    %272 = arith.addf %60, %271 : vector<64x32xf32>
    %273 = vector.broadcast %47 : vector<1x32xf32> to vector<64x32xf32>
    %274 = arith.addf %272, %273 : vector<64x32xf32>
    %cst_106 = arith.constant dense<0.000000e+00> : vector<64xf32>
    %275 = vector.multi_reduction <add>, %274, %cst_106 [1] : vector<64x32xf32> to vector<64xf32>
    %276 = vector.shape_cast %275 : vector<64xf32> to vector<64x1xf32>
    %cst_107 = arith.constant 3.200000e+01 : f32
    %277 = vector.broadcast %cst_107 : f32 to vector<64x1xf32>
    %278 = arith.divf %276, %277 : vector<64x1xf32>
    %279 = vector.broadcast %278 : vector<64x1xf32> to vector<64x32xf32>
    %280 = arith.subf %274, %279 : vector<64x32xf32>
    %281 = arith.mulf %280, %280 : vector<64x32xf32>
    %cst_108 = arith.constant dense<0.000000e+00> : vector<64xf32>
    %282 = vector.multi_reduction <add>, %281, %cst_108 [1] : vector<64x32xf32> to vector<64xf32>
    %283 = vector.shape_cast %282 : vector<64xf32> to vector<64x1xf32>
    %cst_109 = arith.constant 3.200000e+01 : f32
    %284 = vector.broadcast %cst_109 : f32 to vector<64x1xf32>
    %285 = arith.divf %283, %284 : vector<64x1xf32>
    %286 = vector.broadcast %278 : vector<64x1xf32> to vector<64x32xf32>
    %287 = arith.subf %274, %286 : vector<64x32xf32>
    %cst_110 = arith.constant 9.99999974E-6 : f32
    %288 = vector.broadcast %cst_110 : f32 to vector<64x1xf32>
    %289 = arith.addf %285, %288 : vector<64x1xf32>
    %290 = math.rsqrt %289 : vector<64x1xf32>
    %291 = vector.broadcast %290 : vector<64x1xf32> to vector<64x32xf32>
    %292 = arith.mulf %287, %291 : vector<64x32xf32>
    %293 = vector.broadcast %48 : vector<1x32xf32> to vector<64x32xf32>
    %294 = arith.mulf %292, %293 : vector<64x32xf32>
    %295 = vector.broadcast %49 : vector<1x32xf32> to vector<64x32xf32>
    %296 = arith.addf %294, %295 : vector<64x32xf32>
    %cst_111 = arith.constant 0.000000e+00 : f32
    %297 = vector.broadcast %cst_111 : f32 to vector<64x32xf32>
    %298 = arith.maximumf %296, %297 : vector<64x32xf32>
    %c1_112 = arith.constant 1 : index
    %c0_113 = arith.constant 0 : index
    %c0_114 = arith.constant 0 : index
    %299 = vector.load %arg4[%c1_112, %c0_113, %c0_114] : memref<2x1x64xf32, #tpu.memory_space<vmem>>, vector<1x1x64xf32>
    %300 = vector.shape_cast %299 : vector<1x1x64xf32> to vector<1x64xf32>
    %cst_115 = arith.constant 1.000000e+00 : f32
    %301 = vector.broadcast %cst_115 : f32 to vector<1x64xf32>
    %302 = arith.subf %301, %300 : vector<1x64xf32>
    %cst_116 = arith.constant -1.000000e+09 : f32
    %303 = vector.broadcast %cst_116 : f32 to vector<1x64xf32>
    %304 = arith.mulf %303, %302 : vector<1x64xf32>
    %c1_117 = arith.constant 1 : index
    %c0_118 = arith.constant 0 : index
    %c0_119 = arith.constant 0 : index
    %305 = vector.load %arg5[%c1_117, %c0_118, %c0_119] : memref<2x1x55xf32, #tpu.memory_space<vmem>>, vector<1x1x55xf32>
    %306 = vector.shape_cast %305 : vector<1x1x55xf32> to vector<1x55xf32>
    %cst_120 = arith.constant 1.000000e+00 : f32
    %307 = vector.broadcast %cst_120 : f32 to vector<1x55xf32>
    %308 = arith.subf %307, %306 : vector<1x55xf32>
    %cst_121 = arith.constant -1.000000e+09 : f32
    %309 = vector.broadcast %cst_121 : f32 to vector<1x55xf32>
    %310 = arith.mulf %309, %308 : vector<1x55xf32>
    %c1_122 = arith.constant 1 : index
    %c0_123 = arith.constant 0 : index
    %c0_124 = arith.constant 0 : index
    %311 = vector.load %arg1[%c1_122, %c0_123, %c0_124] : memref<2x64x32xf32, #tpu.memory_space<vmem>>, vector<1x64x32xf32>
    %312 = vector.shape_cast %311 : vector<1x64x32xf32> to vector<64x32xf32>
    %c0_125 = arith.constant 0 : index
    %c0_126 = arith.constant 0 : index
    %c0_127 = arith.constant 0 : index
    %313 = vector.load %arg7[%c0_125, %c0_126, %c0_127] : memref<4x32x64xf32, #tpu.memory_space<vmem>>, vector<1x32x64xf32>
    %314 = vector.shape_cast %313 : vector<1x32x64xf32> to vector<32x64xf32>
    %c1_128 = arith.constant 1 : index
    %c0_129 = arith.constant 0 : index
    %c0_130 = arith.constant 0 : index
    %315 = vector.load %arg7[%c1_128, %c0_129, %c0_130] : memref<4x32x64xf32, #tpu.memory_space<vmem>>, vector<1x32x64xf32>
    %316 = vector.shape_cast %315 : vector<1x32x64xf32> to vector<32x64xf32>
    %cst_131 = arith.constant dense<0.000000e+00> : vector<64x64xf32>
    %317 = tpu.matmul %298, %314, %cst_131 {dimension_numbers = #tpu.dot_dimension_numbers<[1], [0], [0], [1], [0, 0, 1, 1], [], []>} : vector<64x32xf32>, vector<32x64xf32>, vector<64x64xf32> -> vector<64x64xf32>
    %318 = vector.broadcast %41 : vector<1x64xf32> to vector<64x64xf32>
    %319 = arith.addf %317, %318 : vector<64x64xf32>
    %cst_132 = arith.constant dense<0.000000e+00> : vector<64x64xf32>
    %320 = tpu.matmul %312, %316, %cst_132 {dimension_numbers = #tpu.dot_dimension_numbers<[1], [0], [0], [1], [0, 0, 1, 1], [], []>} : vector<64x32xf32>, vector<32x64xf32>, vector<64x64xf32> -> vector<64x64xf32>
    %321 = vector.broadcast %42 : vector<1x64xf32> to vector<64x64xf32>
    %322 = arith.addf %320, %321 : vector<64x64xf32>
    %cst_133 = arith.constant 0.000000e+00 : f32
    %323 = vector.broadcast %cst_133 : f32 to vector<64x64xf32>
    %324 = vector.broadcast %7 : vector<1x64xf32> to vector<64x64xf32>
    %325 = arith.mulf %322, %324 : vector<64x64xf32>
    %cst_134 = arith.constant dense<0.000000e+00> : vector<64x64xf32>
    %326 = tpu.matmul %319, %325, %cst_134 {dimension_numbers = #tpu.dot_dimension_numbers<[1], [1], [0], [0], [0, 0, 1, 0], [], []>} : vector<64x64xf32>, vector<64x64xf32>, vector<64x64xf32> -> vector<64x64xf32>
    %327 = vector.broadcast %304 : vector<1x64xf32> to vector<64x64xf32>
    %328 = arith.addf %326, %327 : vector<64x64xf32>
    %cst_135 = arith.constant dense<0xFF800000> : vector<64xf32>
    %329 = vector.multi_reduction <maximumf>, %328, %cst_135 [1] : vector<64x64xf32> to vector<64xf32>
    %330 = vector.shape_cast %329 : vector<64xf32> to vector<64x1xf32>
    %331 = vector.broadcast %330 : vector<64x1xf32> to vector<64x64xf32>
    %332 = arith.subf %328, %331 : vector<64x64xf32>
    %333 = math.exp %332 : vector<64x64xf32>
    %cst_136 = arith.constant dense<0.000000e+00> : vector<64xf32>
    %334 = vector.multi_reduction <add>, %333, %cst_136 [1] : vector<64x64xf32> to vector<64xf32>
    %335 = vector.shape_cast %334 : vector<64xf32> to vector<64x1xf32>
    %336 = vector.broadcast %335 : vector<64x1xf32> to vector<64x64xf32>
    %337 = arith.divf %333, %336 : vector<64x64xf32>
    %338 = vector.broadcast %21 : vector<1x64xf32> to vector<64x64xf32>
    %339 = arith.mulf %322, %338 : vector<64x64xf32>
    %cst_137 = arith.constant dense<0.000000e+00> : vector<64x64xf32>
    %340 = tpu.matmul %337, %339, %cst_137 {dimension_numbers = #tpu.dot_dimension_numbers<[1], [0], [0], [1], [0, 0, 1, 1], [], []>} : vector<64x64xf32>, vector<64x64xf32>, vector<64x64xf32> -> vector<64x64xf32>
    %341 = arith.addf %323, %340 : vector<64x64xf32>
    %342 = vector.broadcast %14 : vector<1x64xf32> to vector<64x64xf32>
    %343 = arith.mulf %322, %342 : vector<64x64xf32>
    %cst_138 = arith.constant dense<0.000000e+00> : vector<64x64xf32>
    %344 = tpu.matmul %319, %343, %cst_138 {dimension_numbers = #tpu.dot_dimension_numbers<[1], [1], [0], [0], [0, 0, 1, 0], [], []>} : vector<64x64xf32>, vector<64x64xf32>, vector<64x64xf32> -> vector<64x64xf32>
    %345 = vector.broadcast %304 : vector<1x64xf32> to vector<64x64xf32>
    %346 = arith.addf %344, %345 : vector<64x64xf32>
    %cst_139 = arith.constant dense<0xFF800000> : vector<64xf32>
    %347 = vector.multi_reduction <maximumf>, %346, %cst_139 [1] : vector<64x64xf32> to vector<64xf32>
    %348 = vector.shape_cast %347 : vector<64xf32> to vector<64x1xf32>
    %349 = vector.broadcast %348 : vector<64x1xf32> to vector<64x64xf32>
    %350 = arith.subf %346, %349 : vector<64x64xf32>
    %351 = math.exp %350 : vector<64x64xf32>
    %cst_140 = arith.constant dense<0.000000e+00> : vector<64xf32>
    %352 = vector.multi_reduction <add>, %351, %cst_140 [1] : vector<64x64xf32> to vector<64xf32>
    %353 = vector.shape_cast %352 : vector<64xf32> to vector<64x1xf32>
    %354 = vector.broadcast %353 : vector<64x1xf32> to vector<64x64xf32>
    %355 = arith.divf %351, %354 : vector<64x64xf32>
    %356 = vector.broadcast %28 : vector<1x64xf32> to vector<64x64xf32>
    %357 = arith.mulf %322, %356 : vector<64x64xf32>
    %cst_141 = arith.constant dense<0.000000e+00> : vector<64x64xf32>
    %358 = tpu.matmul %355, %357, %cst_141 {dimension_numbers = #tpu.dot_dimension_numbers<[1], [0], [0], [1], [0, 0, 1, 1], [], []>} : vector<64x64xf32>, vector<64x64xf32>, vector<64x64xf32> -> vector<64x64xf32>
    %359 = arith.addf %341, %358 : vector<64x64xf32>
    %c1_142 = arith.constant 1 : index
    %c0_143 = arith.constant 0 : index
    %c0_144 = arith.constant 0 : index
    %360 = vector.load %arg0[%c1_142, %c0_143, %c0_144] : memref<2x55x32xf32, #tpu.memory_space<vmem>>, vector<1x55x32xf32>
    %361 = vector.shape_cast %360 : vector<1x55x32xf32> to vector<55x32xf32>
    %c2_145 = arith.constant 2 : index
    %c0_146 = arith.constant 0 : index
    %c0_147 = arith.constant 0 : index
    %362 = vector.load %arg7[%c2_145, %c0_146, %c0_147] : memref<4x32x64xf32, #tpu.memory_space<vmem>>, vector<1x32x64xf32>
    %363 = vector.shape_cast %362 : vector<1x32x64xf32> to vector<32x64xf32>
    %c3_148 = arith.constant 3 : index
    %c0_149 = arith.constant 0 : index
    %c0_150 = arith.constant 0 : index
    %364 = vector.load %arg7[%c3_148, %c0_149, %c0_150] : memref<4x32x64xf32, #tpu.memory_space<vmem>>, vector<1x32x64xf32>
    %365 = vector.shape_cast %364 : vector<1x32x64xf32> to vector<32x64xf32>
    %cst_151 = arith.constant dense<0.000000e+00> : vector<64x64xf32>
    %366 = tpu.matmul %298, %363, %cst_151 {dimension_numbers = #tpu.dot_dimension_numbers<[1], [0], [0], [1], [0, 0, 1, 1], [], []>} : vector<64x32xf32>, vector<32x64xf32>, vector<64x64xf32> -> vector<64x64xf32>
    %367 = vector.broadcast %43 : vector<1x64xf32> to vector<64x64xf32>
    %368 = arith.addf %366, %367 : vector<64x64xf32>
    %cst_152 = arith.constant dense<0.000000e+00> : vector<55x64xf32>
    %369 = tpu.matmul %361, %365, %cst_152 {dimension_numbers = #tpu.dot_dimension_numbers<[1], [0], [0], [1], [0, 0, 1, 1], [], []>} : vector<55x32xf32>, vector<32x64xf32>, vector<55x64xf32> -> vector<55x64xf32>
    %370 = vector.broadcast %44 : vector<1x64xf32> to vector<55x64xf32>
    %371 = arith.addf %369, %370 : vector<55x64xf32>
    %cst_153 = arith.constant 0.000000e+00 : f32
    %372 = vector.broadcast %cst_153 : f32 to vector<64x64xf32>
    %373 = vector.broadcast %7 : vector<1x64xf32> to vector<55x64xf32>
    %374 = arith.mulf %371, %373 : vector<55x64xf32>
    %cst_154 = arith.constant dense<0.000000e+00> : vector<64x55xf32>
    %375 = tpu.matmul %368, %374, %cst_154 {dimension_numbers = #tpu.dot_dimension_numbers<[1], [1], [0], [0], [0, 0, 1, 0], [], []>} : vector<64x64xf32>, vector<55x64xf32>, vector<64x55xf32> -> vector<64x55xf32>
    %376 = vector.broadcast %310 : vector<1x55xf32> to vector<64x55xf32>
    %377 = arith.addf %375, %376 : vector<64x55xf32>
    %cst_155 = arith.constant dense<0xFF800000> : vector<64xf32>
    %378 = vector.multi_reduction <maximumf>, %377, %cst_155 [1] : vector<64x55xf32> to vector<64xf32>
    %379 = vector.shape_cast %378 : vector<64xf32> to vector<64x1xf32>
    %380 = vector.broadcast %379 : vector<64x1xf32> to vector<64x55xf32>
    %381 = arith.subf %377, %380 : vector<64x55xf32>
    %382 = math.exp %381 : vector<64x55xf32>
    %cst_156 = arith.constant dense<0.000000e+00> : vector<64xf32>
    %383 = vector.multi_reduction <add>, %382, %cst_156 [1] : vector<64x55xf32> to vector<64xf32>
    %384 = vector.shape_cast %383 : vector<64xf32> to vector<64x1xf32>
    %385 = vector.broadcast %384 : vector<64x1xf32> to vector<64x55xf32>
    %386 = arith.divf %382, %385 : vector<64x55xf32>
    %387 = vector.broadcast %21 : vector<1x64xf32> to vector<55x64xf32>
    %388 = arith.mulf %371, %387 : vector<55x64xf32>
    %cst_157 = arith.constant dense<0.000000e+00> : vector<64x64xf32>
    %389 = tpu.matmul %386, %388, %cst_157 {dimension_numbers = #tpu.dot_dimension_numbers<[1], [0], [0], [1], [0, 0, 1, 1], [], []>} : vector<64x55xf32>, vector<55x64xf32>, vector<64x64xf32> -> vector<64x64xf32>
    %390 = arith.addf %372, %389 : vector<64x64xf32>
    %391 = vector.broadcast %14 : vector<1x64xf32> to vector<55x64xf32>
    %392 = arith.mulf %371, %391 : vector<55x64xf32>
    %cst_158 = arith.constant dense<0.000000e+00> : vector<64x55xf32>
    %393 = tpu.matmul %368, %392, %cst_158 {dimension_numbers = #tpu.dot_dimension_numbers<[1], [1], [0], [0], [0, 0, 1, 0], [], []>} : vector<64x64xf32>, vector<55x64xf32>, vector<64x55xf32> -> vector<64x55xf32>
    %394 = vector.broadcast %310 : vector<1x55xf32> to vector<64x55xf32>
    %395 = arith.addf %393, %394 : vector<64x55xf32>
    %cst_159 = arith.constant dense<0xFF800000> : vector<64xf32>
    %396 = vector.multi_reduction <maximumf>, %395, %cst_159 [1] : vector<64x55xf32> to vector<64xf32>
    %397 = vector.shape_cast %396 : vector<64xf32> to vector<64x1xf32>
    %398 = vector.broadcast %397 : vector<64x1xf32> to vector<64x55xf32>
    %399 = arith.subf %395, %398 : vector<64x55xf32>
    %400 = math.exp %399 : vector<64x55xf32>
    %cst_160 = arith.constant dense<0.000000e+00> : vector<64xf32>
    %401 = vector.multi_reduction <add>, %400, %cst_160 [1] : vector<64x55xf32> to vector<64xf32>
    %402 = vector.shape_cast %401 : vector<64xf32> to vector<64x1xf32>
    %403 = vector.broadcast %402 : vector<64x1xf32> to vector<64x55xf32>
    %404 = arith.divf %400, %403 : vector<64x55xf32>
    %405 = vector.broadcast %28 : vector<1x64xf32> to vector<55x64xf32>
    %406 = arith.mulf %371, %405 : vector<55x64xf32>
    %cst_161 = arith.constant dense<0.000000e+00> : vector<64x64xf32>
    %407 = tpu.matmul %404, %406, %cst_161 {dimension_numbers = #tpu.dot_dimension_numbers<[1], [0], [0], [1], [0, 0, 1, 1], [], []>} : vector<64x55xf32>, vector<55x64xf32>, vector<64x64xf32> -> vector<64x64xf32>
    %408 = arith.addf %390, %407 : vector<64x64xf32>
    %cst_162 = arith.constant dense<0.000000e+00> : vector<1x32xf32>
    %409 = tpu.matmul %269, %32, %cst_162 {dimension_numbers = #tpu.dot_dimension_numbers<[1], [0], [0], [1], [0, 0, 1, 1], [], []>} : vector<1x32xf32>, vector<32x32xf32>, vector<1x32xf32> -> vector<1x32xf32>
    %cst_163 = arith.constant dense<0.000000e+00> : vector<64x32xf32>
    %410 = tpu.matmul %298, %34, %cst_163 {dimension_numbers = #tpu.dot_dimension_numbers<[1], [0], [0], [1], [0, 0, 1, 1], [], []>} : vector<64x32xf32>, vector<32x32xf32>, vector<64x32xf32> -> vector<64x32xf32>
    %411 = vector.broadcast %409 : vector<1x32xf32> to vector<64x32xf32>
    %412 = arith.addf %411, %410 : vector<64x32xf32>
    %cst_164 = arith.constant dense<0.000000e+00> : vector<64x32xf32>
    %413 = tpu.matmul %359, %36, %cst_164 {dimension_numbers = #tpu.dot_dimension_numbers<[1], [0], [0], [1], [0, 0, 1, 1], [], []>} : vector<64x64xf32>, vector<64x32xf32>, vector<64x32xf32> -> vector<64x32xf32>
    %414 = arith.addf %412, %413 : vector<64x32xf32>
    %cst_165 = arith.constant dense<0.000000e+00> : vector<64x32xf32>
    %415 = tpu.matmul %408, %38, %cst_165 {dimension_numbers = #tpu.dot_dimension_numbers<[1], [0], [0], [1], [0, 0, 1, 1], [], []>} : vector<64x64xf32>, vector<64x32xf32>, vector<64x32xf32> -> vector<64x32xf32>
    %416 = arith.addf %414, %415 : vector<64x32xf32>
    %417 = vector.broadcast %50 : vector<1x32xf32> to vector<64x32xf32>
    %418 = arith.addf %416, %417 : vector<64x32xf32>
    %cst_166 = arith.constant dense<0.000000e+00> : vector<64xf32>
    %419 = vector.multi_reduction <add>, %418, %cst_166 [1] : vector<64x32xf32> to vector<64xf32>
    %420 = vector.shape_cast %419 : vector<64xf32> to vector<64x1xf32>
    %cst_167 = arith.constant 3.200000e+01 : f32
    %421 = vector.broadcast %cst_167 : f32 to vector<64x1xf32>
    %422 = arith.divf %420, %421 : vector<64x1xf32>
    %423 = vector.broadcast %422 : vector<64x1xf32> to vector<64x32xf32>
    %424 = arith.subf %418, %423 : vector<64x32xf32>
    %425 = arith.mulf %424, %424 : vector<64x32xf32>
    %cst_168 = arith.constant dense<0.000000e+00> : vector<64xf32>
    %426 = vector.multi_reduction <add>, %425, %cst_168 [1] : vector<64x32xf32> to vector<64xf32>
    %427 = vector.shape_cast %426 : vector<64xf32> to vector<64x1xf32>
    %cst_169 = arith.constant 3.200000e+01 : f32
    %428 = vector.broadcast %cst_169 : f32 to vector<64x1xf32>
    %429 = arith.divf %427, %428 : vector<64x1xf32>
    %430 = vector.broadcast %422 : vector<64x1xf32> to vector<64x32xf32>
    %431 = arith.subf %418, %430 : vector<64x32xf32>
    %cst_170 = arith.constant 9.99999974E-6 : f32
    %432 = vector.broadcast %cst_170 : f32 to vector<64x1xf32>
    %433 = arith.addf %429, %432 : vector<64x1xf32>
    %434 = math.rsqrt %433 : vector<64x1xf32>
    %435 = vector.broadcast %434 : vector<64x1xf32> to vector<64x32xf32>
    %436 = arith.mulf %431, %435 : vector<64x32xf32>
    %437 = vector.broadcast %51 : vector<1x32xf32> to vector<64x32xf32>
    %438 = arith.mulf %436, %437 : vector<64x32xf32>
    %439 = vector.broadcast %52 : vector<1x32xf32> to vector<64x32xf32>
    %440 = arith.addf %438, %439 : vector<64x32xf32>
    %cst_171 = arith.constant 0.000000e+00 : f32
    %441 = vector.broadcast %cst_171 : f32 to vector<64x32xf32>
    %442 = arith.maximumf %440, %441 : vector<64x32xf32>
    %443 = vector.broadcast %54 : vector<1x32xf32> to vector<64x32xf32>
    %444 = arith.mulf %298, %443 : vector<64x32xf32>
    %445 = vector.broadcast %55 : vector<1x32xf32> to vector<64x32xf32>
    %446 = arith.mulf %442, %445 : vector<64x32xf32>
    %447 = arith.addf %444, %446 : vector<64x32xf32>
    %448 = vector.broadcast %45 : vector<1x64xf32> to vector<64x64xf32>
    %449 = arith.mulf %359, %448 : vector<64x64xf32>
    %450 = vector.broadcast %46 : vector<1x64xf32> to vector<64x64xf32>
    %451 = arith.mulf %408, %450 : vector<64x64xf32>
    %452 = arith.addf %449, %451 : vector<64x64xf32>
    %cst_172 = arith.constant dense<0.000000e+00> : vector<1x64xf32>
    %453 = tpu.matmul %56, %447, %cst_172 {dimension_numbers = #tpu.dot_dimension_numbers<[1], [1], [0], [0], [0, 0, 1, 0], [], []>} : vector<1x32xf32>, vector<64x32xf32>, vector<1x64xf32> -> vector<1x64xf32>
    %cst_173 = arith.constant dense<0.000000e+00> : vector<1x64xf32>
    %454 = tpu.matmul %57, %452, %cst_173 {dimension_numbers = #tpu.dot_dimension_numbers<[1], [1], [0], [0], [0, 0, 1, 0], [], []>} : vector<1x64xf32>, vector<64x64xf32>, vector<1x64xf32> -> vector<1x64xf32>
    %455 = arith.addf %453, %454 : vector<1x64xf32>
    %456 = arith.mulf %269, %53 : vector<1x32xf32>
    %cst_174 = arith.constant dense<0.000000e+00> : vector<1xf32>
    %457 = vector.multi_reduction <add>, %456, %cst_174 [1] : vector<1x32xf32> to vector<1xf32>
    %458 = vector.shape_cast %457 : vector<1xf32> to vector<1x1xf32>
    %459 = vector.broadcast %458 : vector<1x1xf32> to vector<1x64xf32>
    %460 = arith.addf %455, %459 : vector<1x64xf32>
    %cst_175 = arith.constant dense<0xFF800000> : vector<1xf32>
    %461 = vector.multi_reduction <maximumf>, %460, %cst_175 [1] : vector<1x64xf32> to vector<1xf32>
    %462 = vector.shape_cast %461 : vector<1xf32> to vector<1x1xf32>
    %463 = vector.broadcast %462 : vector<1x1xf32> to vector<1x64xf32>
    %464 = arith.subf %460, %463 : vector<1x64xf32>
    %465 = math.exp %464 : vector<1x64xf32>
    %cst_176 = arith.constant dense<0.000000e+00> : vector<1xf32>
    %466 = vector.multi_reduction <add>, %465, %cst_176 [1] : vector<1x64xf32> to vector<1xf32>
    %467 = vector.shape_cast %466 : vector<1xf32> to vector<1x1xf32>
    %468 = math.log %467 : vector<1x1xf32>
    %469 = arith.addf %462, %468 : vector<1x1xf32>
    %470 = vector.broadcast %469 : vector<1x1xf32> to vector<1x64xf32>
    %471 = arith.subf %460, %470 : vector<1x64xf32>
    %c1_177 = arith.constant 1 : index
    %c0_178 = arith.constant 0 : index
    %c0_179 = arith.constant 0 : index
    %472 = vector.load %arg12[%c1_177, %c0_178, %c0_179] : memref<2x1x64xf32, #tpu.memory_space<vmem>>, vector<1x1x64xf32>
    %473 = vector.shape_cast %472 : vector<1x1x64xf32> to vector<1x64xf32>
    %474 = vector.shape_cast %471 : vector<1x64xf32> to vector<1x1x64xf32>
    tpu.vector_store %arg12[%c1_177, %c0_178, %c0_179], %474 {strides = array<i32>} : memref<2x1x64xf32, #tpu.memory_space<vmem>>, vector<1x1x64xf32>,
    return
  }
}

</mosaic_0001>

<llo_original>
// kernel: vector_decoder_forward.2
$region0: #{vector_decoder_forward.2}
  #allocation0 [shape = 'u32[]', space=smem, size = 0x4, offset = 0x4, fixed_abs, tag = 'smem constant byte address 0x4 - core index']
  #allocation1 [shape = 'u32[144,128]{1,0:T(1,128)}', space=vmem, size = 0x12000, scoped, tag = 'internal scratch']
  %s0 = inlined_call_operand.vmem [shape: f32[2,55,32], index: 0, kind: input, shape index: {}]
  %s1 = inlined_call_operand.vmem [shape: f32[2,64,32], index: 1, kind: input, shape index: {}]
  %s2 = inlined_call_operand.vmem [shape: f32[2,1,32], index: 2, kind: input, shape index: {}]
  %s3 = inlined_call_operand.vmem [shape: f32[2,1,64], index: 3, kind: input, shape index: {}, may-alias: {3,4}]
  %s4 = inlined_call_operand.vmem [shape: f32[2,1,55], index: 4, kind: input, shape index: {}, may-alias: {3,4}]
  %s5 = inlined_call_operand.vmem [shape: f32[2,32,64], index: 5, kind: input, shape index: {}]
  %s6 = inlined_call_operand.vmem [shape: f32[2,32,32], index: 6, kind: input, shape index: {}]
  %s7 = inlined_call_operand.vmem [shape: f32[64,32], index: 7, kind: input, shape index: {}]
  %s8 = inlined_call_operand.vmem [shape: f32[3,64], index: 8, kind: input, shape index: {}]
  %s9 = inlined_call_operand.vmem [shape: f32[6,32], index: 9, kind: input, shape index: {}]
  %s10 = inlined_call_operand.vmem [shape: f32[2,1,55], index: 10, kind: output, shape index: {}]
  %s11 = sld [smem:[#allocation0]]
  $region50: #{vector_decoder_forward.2} parent=0
    _
  %s13 = ssub.s32 1, %s11
  %s14 = scalar_select 0, %s13, %s11
  // Predicated region
  $region2: #{vector_decoder_forward.2} parent=0 // pred_check
    _
  $region3: #{vector_decoder_forward.2} parent=0 // pred_check_branch
    %16 = sbr.rel (0) target = $region5
  $region4: #{vector_decoder_forward.2} parent=0 // pred_region
    _
  $region5: #{vector_decoder_forward.2} parent=0 // pred_fallthru
    _
  // Predicated region
  $region6: #{vector_decoder_forward.2} parent=0 // pred_check
    _
  $region7: #{vector_decoder_forward.2} parent=0 // pred_check_branch
    %18 = sbr.rel (0) target = $region9
  $region8: #{vector_decoder_forward.2} parent=0 // pred_region
    _
  $region9: #{vector_decoder_forward.2} parent=0 // pred_fallthru
    _
  // Predicated region
  $region10: #{vector_decoder_forward.2} parent=0 // pred_check
    _
  $region11: #{vector_decoder_forward.2} parent=0 // pred_check_branch
    %20 = sbr.rel (0) target = $region13
  $region12: #{vector_decoder_forward.2} parent=0 // pred_region
    _
  $region13: #{vector_decoder_forward.2} parent=0 // pred_fallthru
    _
  // Predicated region
  $region14: #{vector_decoder_forward.2} parent=0 // pred_check
    _
  $region15: #{vector_decoder_forward.2} parent=0 // pred_check_branch
    %22 = sbr.rel (0) target = $region17
  $region16: #{vector_decoder_forward.2} parent=0 // pred_region
    _
  $region17: #{vector_decoder_forward.2} parent=0 // pred_fallthru
    _
  // Predicated region
  $region18: #{vector_decoder_forward.2} parent=0 // pred_check
    _
  $region19: #{vector_decoder_forward.2} parent=0 // pred_check_branch
    %24 = sbr.rel (0) target = $region21
  $region20: #{vector_decoder_forward.2} parent=0 // pred_region
    _
  $region21: #{vector_decoder_forward.2} parent=0 // pred_fallthru
    _
  // Predicated region
  $region22: #{vector_decoder_forward.2} parent=0 // pred_check
    _
  $region23: #{vector_decoder_forward.2} parent=0 // pred_check_branch
    %26 = sbr.rel (0) target = $region25
  $region24: #{vector_decoder_forward.2} parent=0 // pred_region
    _
  $region25: #{vector_decoder_forward.2} parent=0 // pred_fallthru
    _
  // Predicated region
  $region26: #{vector_decoder_forward.2} parent=0 // pred_check
    _
  $region27: #{vector_decoder_forward.2} parent=0 // pred_check_branch
    %28 = sbr.rel (0) target = $region29
  $region28: #{vector_decoder_forward.2} parent=0 // pred_region
    _
  $region29: #{vector_decoder_forward.2} parent=0 // pred_fallthru
    _
  // Predicated region
  $region30: #{vector_decoder_forward.2} parent=0 // pred_check
    _
  $region31: #{vector_decoder_forward.2} parent=0 // pred_check_branch
    %30 = sbr.rel (0) target = $region33
  $region32: #{vector_decoder_forward.2} parent=0 // pred_region
    _
  $region33: #{vector_decoder_forward.2} parent=0 // pred_fallthru
    _
  // Predicated region
  $region34: #{vector_decoder_forward.2} parent=0 // pred_check
    _
  $region35: #{vector_decoder_forward.2} parent=0 // pred_check_branch
    %32 = sbr.rel (0) target = $region37
  $region36: #{vector_decoder_forward.2} parent=0 // pred_region
    _
  $region37: #{vector_decoder_forward.2} parent=0 // pred_fallthru
    _
  // Predicated region
  $region38: #{vector_decoder_forward.2} parent=0 // pred_check
    _
  $region39: #{vector_decoder_forward.2} parent=0 // pred_check_branch
    %34 = sbr.rel (0) target = $region41
  $region40: #{vector_decoder_forward.2} parent=0 // pred_region
    _
  $region41: #{vector_decoder_forward.2} parent=0 // pred_fallthru
    _
  %v35 = vlaneseq
  %v36 = vand.u32 %v35, 127
  %vm37 = vcmp.ge.s32.totalorder %v36, 0
  %vm38 = vcmp.lt.s32.totalorder %v36, 16
  %vm39 = vmand %vm37, %vm38
  %v40 = vsel %vm39, 1, 0
  %v41 = vcvt.s32.f32 %v40
  %vm42 = vcmp.ge.s32.totalorder %v36, 16
  %vm43 = vcmp.lt.s32.totalorder %v36, 32
  %vm44 = vmand %vm42, %vm43
  %v45 = vsel %vm44, 1, 0
  %v46 = vcvt.s32.f32 %v45
  %vm47 = vcmp.ge.s32.totalorder %v36, 32
  %vm48 = vcmp.lt.s32.totalorder %v36, 48
  %vm49 = vmand %vm47, %vm48
  %v50 = vsel %vm49, 1, 0
  %v51 = vcvt.s32.f32 %v50
  %vm52 = vcmp.ge.s32.totalorder %v36, 48
  %vm53 = vcmp.lt.s32.totalorder %v36, 64
  %vm54 = vmand %vm52, %vm53
  %v55 = vsel %vm54, 1, 0
  %v56 = vcvt.s32.f32 %v55
  %v57 = vld [vmem:[%s5] sm:$0xff]
  %v58 = vld [vmem:[%s5 + $0x8] sm:$0xff]
  %v59 = vld [vmem:[%s5 + $0x10] sm:$0xff]
  %v60 = vld [vmem:[%s5 + $0x18] sm:$0xff]
  %s61 = scalar_lea.vmem %s5, 32
  %v62 = vld [vmem:[%s61] sm:$0xff]
  %v63 = vld [vmem:[%s61 + $0x8] sm:$0xff]
  %v64 = vld [vmem:[%s61 + $0x10] sm:$0xff]
  %v65 = vld [vmem:[%s61 + $0x18] sm:$0xff]
  %v66 = vld [vmem:[%s6] sm:$0xff]
  %v67 = vld [vmem:[%s6 + $0x8] sm:$0xff]
  %v68 = vld [vmem:[%s6 + $0x10] sm:$0xff]
  %v69 = vld [vmem:[%s6 + $0x18] sm:$0xff]
  %s70 = scalar_lea.vmem %s6, 32
  %v71 = vld [vmem:[%s70] sm:$0xff]
  %v72 = vld [vmem:[%s70 + $0x8] sm:$0xff]
  %v73 = vld [vmem:[%s70 + $0x10] sm:$0xff]
  %v74 = vld [vmem:[%s70 + $0x18] sm:$0xff]
  %v75 = vld [vmem:[%s7] sm:$0xff]
  %v76 = vld [vmem:[%s7 + $0x8] sm:$0xff]
  %v77 = vld [vmem:[%s7 + $0x10] sm:$0xff]
  %v78 = vld [vmem:[%s7 + $0x18] sm:$0xff]
  %v79 = vld [vmem:[%s7 + $0x20] sm:$0xff]
  %v80 = vld [vmem:[%s7 + $0x28] sm:$0xff]
  %v81 = vld [vmem:[%s7 + $0x30] sm:$0xff]
  %v82 = vld [vmem:[%s7 + $0x38] sm:$0xff]
  %v83 = vld [vmem:[%s8] sm:$0x7]
  %v84 = vld [vmem:[%s9] sm:$0x3f]
  %v85 = vld [vmem:[%s0] sm:$0xff]
  %v86 = vld [vmem:[%s0 + $0x8] sm:$0xff]
  %v87 = vld [vmem:[%s0 + $0x10] sm:$0xff]
  %v88 = vld [vmem:[%s0 + $0x18] sm:$0xff]
  %v89 = vld [vmem:[%s0 + $0x20] sm:$0xff]
  %v90 = vld [vmem:[%s0 + $0x28] sm:$0xff]
  %v91 = vld [vmem:[%s0 + $0x30] sm:$0x7f]
  %v92 = vld [vmem:[%s2] sm:$0x1]
  %v93 = vld [vmem:[%s3] sm:$0x1]
  %v94 = vsub.f32 1.0, %v93
  %v95 = vmul.f32 %v94, -1e+09
  %v96 = vld [vmem:[%s1] sm:$0xff]
  %v97 = vld [vmem:[%s1 + $0x8] sm:$0xff]
  %v98 = vld [vmem:[%s1 + $0x10] sm:$0xff]
  %v99 = vld [vmem:[%s1 + $0x18] sm:$0xff]
  %v100 = vld [vmem:[%s1 + $0x20] sm:$0xff]
  %v101 = vld [vmem:[%s1 + $0x28] sm:$0xff]
  %v102 = vld [vmem:[%s1 + $0x30] sm:$0xff]
  %v103 = vld [vmem:[%s1 + $0x38] sm:$0xff]
  %v104 = vlaneseq
  %v105 = vshrl.u32 %v104, 7
  %v106 = vsub.s32 0, %v105
  %v107 = vrot.slane %v83, %v106
  %vm108 = vcmask 261120
  %v110 = vsel %vm108, %v85, 0
  %v113 = vsel %vm108, %v86, 0
  %v116 = vsel %vm108, %v87, 0
  %v119 = vsel %vm108, %v88, 0
  %v122 = vsel %vm108, %v89, 0
  %v125 = vsel %vm108, %v90, 0
  %v128 = vsel %vm108, %v91, 0
  %130 = vmatprep.subr.mxu0 0.0
  %131 = vmatpush1.msra.mxu0 %v57
  %132 = vmatprep.subr.mxu0 0.0
  %133 = vmatpush1.msra.mxu0 %v58
  %134 = vmatprep.subr.mxu0 0.0
  %135 = vmatpush1.msra.mxu0 %v59
  %136 = vmatprep.subr.mxu0 0.0
  %137 = vmatpush1.msra.mxu0 %v60
  %138 = vmatprep.subr.mxu0 0.0
  %139 = vmatpush1.msra.mxu0 0.0
  %140 = vmatprep.subr.mxu0 0.0
  %141 = vmatpush1.msra.mxu0 0.0
  %142 = vmatprep.subr.mxu0 0.0
  %143 = vmatpush1.msra.mxu0 0.0
  %144 = vmatprep.subr.mxu0 0.0
  %145 = vmatpush1.msra.mxu0 0.0
  %146 = vmatprep.subr.mxu0 0.0
  %147 = vmatpush1.msra.mxu0 0.0
  %148 = vmatprep.subr.mxu0 0.0
  %149 = vmatpush1.msra.mxu0 0.0
  %150 = vmatprep.subr.mxu0 0.0
  %151 = vmatpush1.msra.mxu0 0.0
  %152 = vmatprep.subr.mxu0 0.0
  %153 = vmatpush1.msra.mxu0 0.0
  %154 = vmatprep.subr.mxu0 0.0
  %155 = vmatpush1.msra.mxu0 0.0
  %156 = vmatprep.subr.mxu0 0.0
  %157 = vmatpush1.msra.mxu0 0.0
  %158 = vmatprep.subr.mxu0 0.0
  %159 = vmatpush1.msra.mxu0 0.0
  %160 = vmatprep.subr.mxu0 0.0
  %161 = vmatpush1.msra.mxu0 0.0
  %162 = vmatprep.subr.mxu0 0.0
  %163 = vmatpush1.msra.mxu0 0.0
  %164 = vmatprep.subr.mxu0 0.0
  %165 = vmatpush1.msra.mxu0 0.0
  %166 = vmatprep.subr.mxu0 0.0
  %167 = vmatpush1.msra.mxu0 0.0
  %168 = vmatprep.subr.mxu0 0.0
  %169 = vmatpush1.msra.mxu0 0.0
  %170 = vmatprep.subr.mxu0 0.0
  %171 = vmatpush1.msra.mxu0 0.0
  %172 = vmatprep.subr.mxu0 0.0
  %173 = vmatpush1.msra.mxu0 0.0
  %174 = vmatprep.subr.mxu0 0.0
  %175 = vmatpush1.msra.mxu0 0.0
  %176 = vmatprep.subr.mxu0 0.0
  %177 = vmatpush1.msra.mxu0 0.0
  %178 = vmatprep.subr.mxu0 0.0
  %179 = vmatpush1.msra.mxu0 0.0
  %180 = vmatprep.subr.mxu0 0.0
  %181 = vmatpush1.msra.mxu0 0.0
  %182 = vmatprep.subr.mxu0 0.0
  %183 = vmatpush1.msra.mxu0 0.0
  %184 = vmatprep.subr.mxu0 0.0
  %185 = vmatpush1.msra.mxu0 0.0
  %186 = vmatprep.subr.mxu0 0.0
  %187 = vmatpush1.msra.mxu0 0.0
  %188 = vmatprep.subr.mxu0 0.0
  %189 = vmatpush1.msra.mxu0 0.0
  %190 = vmatprep.subr.mxu0 0.0
  %191 = vmatpush1.msra.mxu0 0.0
  %192 = vmatprep.subr.mxu0 0.0
  %193 = vmatpush1.msra.mxu0 0.0
  %194 = vmatprep.mubr.f32.mxu0 0.0
  %195 = vmatmul.mubr.f32.gmra.mrb[0].mxu0 %v110
  %v196 = vpop.f32.mrb[0].mxu0
  %v197 = vadd.f32 %v107, %v196
  %v198 = vpop.f32.mrb[0].mxu0
  %199 = vmatprep.mubr.f32.mxu0 0.0
  %200 = vmatmul.mubr.f32.gmra.mrb[0].mxu0 %v113
  %v201 = vpop.f32.mrb[0].mxu0
  %v202 = vadd.f32 %v107, %v201
  %v203 = vpop.f32.mrb[0].mxu0
  %204 = vmatprep.mubr.f32.mxu0 0.0
  %205 = vmatmul.mubr.f32.gmra.mrb[0].mxu0 %v116
  %v206 = vpop.f32.mrb[0].mxu0
  %v207 = vadd.f32 %v107, %v206
  %v208 = vpop.f32.mrb[0].mxu0
  %209 = vmatprep.mubr.f32.mxu0 0.0
  %210 = vmatmul.mubr.f32.gmra.mrb[0].mxu0 %v119
  %v211 = vpop.f32.mrb[0].mxu0
  %v212 = vadd.f32 %v107, %v211
  %v213 = vpop.f32.mrb[0].mxu0
  %214 = vmatprep.mubr.f32.mxu0 0.0
  %215 = vmatmul.mubr.f32.gmra.mrb[0].mxu0 %v122
  %v216 = vpop.f32.mrb[0].mxu0
  %v217 = vadd.f32 %v107, %v216
  %v218 = vpop.f32.mrb[0].mxu0
  %219 = vmatprep.mubr.f32.mxu0 0.0
  %220 = vmatmul.mubr.f32.gmra.mrb[0].mxu0 %v125
  %v221 = vpop.f32.mrb[0].mxu0
  %v222 = vadd.f32 %v107, %v221
  %v223 = vpop.f32.mrb[0].mxu0
  %224 = vmatprep.mubr.f32.mxu0 0.0
  %225 = vmatmul.mubr.f32.gmra.mrb[0].mxu0 %v128
  %v226 = vpop.f32.mrb[0].mxu0
  %v227 = vadd.f32 %v107, %v226
  %v228 = vpop.f32.mrb[0].mxu0
  %229 = vdwg.mxu0
  %v230 = vlaneseq
  %v231 = vshrl.u32 %v230, 7
  %v232 = vsub.s32 1, %v231
  %v233 = vrot.slane %v83, %v232
  %v235 = vsel %vm108, %v96, 0
  %v238 = vsel %vm108, %v97, 0
  %v241 = vsel %vm108, %v98, 0
  %v244 = vsel %vm108, %v99, 0
  %v247 = vsel %vm108, %v100, 0
  %v250 = vsel %vm108, %v101, 0
  %v253 = vsel %vm108, %v102, 0
  %v256 = vsel %vm108, %v103, 0
  %258 = vmatprep.subr.mxu0 0.0
  %259 = vmatpush1.msra.mxu0 %v62
  %260 = vmatprep.subr.mxu0 0.0
  %261 = vmatpush1.msra.mxu0 %v63
  %262 = vmatprep.subr.mxu0 0.0
  %263 = vmatpush1.msra.mxu0 %v64
  %264 = vmatprep.subr.mxu0 0.0
  %265 = vmatpush1.msra.mxu0 %v65
  %266 = vmatprep.subr.mxu0 0.0
  %267 = vmatpush1.msra.mxu0 0.0
  %268 = vmatprep.subr.mxu0 0.0
  %269 = vmatpush1.msra.mxu0 0.0
  %270 = vmatprep.subr.mxu0 0.0
  %271 = vmatpush1.msra.mxu0 0.0
  %272 = vmatprep.subr.mxu0 0.0
  %273 = vmatpush1.msra.mxu0 0.0
  %274 = vmatprep.subr.mxu0 0.0
  %275 = vmatpush1.msra.mxu0 0.0
  %276 = vmatprep.subr.mxu0 0.0
  %277 = vmatpush1.msra.mxu0 0.0
  %278 = vmatprep.subr.mxu0 0.0
  %279 = vmatpush1.msra.mxu0 0.0
  %280 = vmatprep.subr.mxu0 0.0
  %281 = vmatpush1.msra.mxu0 0.0
  %282 = vmatprep.subr.mxu0 0.0
  %283 = vmatpush1.msra.mxu0 0.0
  %284 = vmatprep.subr.mxu0 0.0
  %285 = vmatpush1.msra.mxu0 0.0
  %286 = vmatprep.subr.mxu0 0.0
  %287 = vmatpush1.msra.mxu0 0.0
  %288 = vmatprep.subr.mxu0 0.0
  %289 = vmatpush1.msra.mxu0 0.0
  %290 = vmatprep.subr.mxu0 0.0
  %291 = vmatpush1.msra.mxu0 0.0
  %292 = vmatprep.subr.mxu0 0.0
  %293 = vmatpush1.msra.mxu0 0.0
  %294 = vmatprep.subr.mxu0 0.0
  %295 = vmatpush1.msra.mxu0 0.0
  %296 = vmatprep.subr.mxu0 0.0
  %297 = vmatpush1.msra.mxu0 0.0
  %298 = vmatprep.subr.mxu0 0.0
  %299 = vmatpush1.msra.mxu0 0.0
  %300 = vmatprep.subr.mxu0 0.0
  %301 = vmatpush1.msra.mxu0 0.0
  %302 = vmatprep.subr.mxu0 0.0
  %303 = vmatpush1.msra.mxu0 0.0
  %304 = vmatprep.subr.mxu0 0.0
  %305 = vmatpush1.msra.mxu0 0.0
  %306 = vmatprep.subr.mxu0 0.0
  %307 = vmatpush1.msra.mxu0 0.0
  %308 = vmatprep.subr.mxu0 0.0
  %309 = vmatpush1.msra.mxu0 0.0
  %310 = vmatprep.subr.mxu0 0.0
  %311 = vmatpush1.msra.mxu0 0.0
  %312 = vmatprep.subr.mxu0 0.0
  %313 = vmatpush1.msra.mxu0 0.0
  %314 = vmatprep.subr.mxu0 0.0
  %315 = vmatpush1.msra.mxu0 0.0
  %316 = vmatprep.subr.mxu0 0.0
  %317 = vmatpush1.msra.mxu0 0.0
  %318 = vmatprep.subr.mxu0 0.0
  %319 = vmatpush1.msra.mxu0 0.0
  %320 = vmatprep.subr.mxu0 0.0
  %321 = vmatpush1.msra.mxu0 0.0
  %322 = vmatprep.mubr.f32.mxu0 0.0
  %323 = vmatmul.mubr.f32.gmra.mrb[0].mxu0 %v235
  %v324 = vpop.f32.mrb[0].mxu0
  %v325 = vadd.f32 %v233, %v324
  %v326 = vpop.f32.mrb[0].mxu0
  %327 = vmatprep.mubr.f32.mxu0 0.0
  %328 = vmatmul.mubr.f32.gmra.mrb[0].mxu0 %v238
  %v329 = vpop.f32.mrb[0].mxu0
  %v330 = vadd.f32 %v233, %v329
  %v331 = vpop.f32.mrb[0].mxu0
  %332 = vmatprep.mubr.f32.mxu0 0.0
  %333 = vmatmul.mubr.f32.gmra.mrb[0].mxu0 %v241
  %v334 = vpop.f32.mrb[0].mxu0
  %v335 = vadd.f32 %v233, %v334
  %v336 = vpop.f32.mrb[0].mxu0
  %337 = vmatprep.mubr.f32.mxu0 0.0
  %338 = vmatmul.mubr.f32.gmra.mrb[0].mxu0 %v244
  %v339 = vpop.f32.mrb[0].mxu0
  %v340 = vadd.f32 %v233, %v339
  %v341 = vpop.f32.mrb[0].mxu0
  %342 = vmatprep.mubr.f32.mxu0 0.0
  %343 = vmatmul.mubr.f32.gmra.mrb[0].mxu0 %v247
  %v344 = vpop.f32.mrb[0].mxu0
  %v345 = vadd.f32 %v233, %v344
  %v346 = vpop.f32.mrb[0].mxu0
  %347 = vmatprep.mubr.f32.mxu0 0.0
  %348 = vmatmul.mubr.f32.gmra.mrb[0].mxu0 %v250
  %v349 = vpop.f32.mrb[0].mxu0
  %v350 = vadd.f32 %v233, %v349
  %v351 = vpop.f32.mrb[0].mxu0
  %352 = vmatprep.mubr.f32.mxu0 0.0
  %353 = vmatmul.mubr.f32.gmra.mrb[0].mxu0 %v253
  %v354 = vpop.f32.mrb[0].mxu0
  %v355 = vadd.f32 %v233, %v354
  %v356 = vpop.f32.mrb[0].mxu0
  %357 = vmatprep.mubr.f32.mxu0 0.0
  %358 = vmatmul.mubr.f32.gmra.mrb[0].mxu0 %v256
  %v359 = vpop.f32.mrb[0].mxu0
  %v360 = vadd.f32 %v233, %v359
  %v361 = vpop.f32.mrb[0].mxu0
  %362 = vdwg.mxu0
  %v363 = vmul.f32 %v325, %v41
  %v364 = vmul.f32 %v330, %v41
  %v365 = vmul.f32 %v335, %v41
  %v366 = vmul.f32 %v340, %v41
  %v367 = vmul.f32 %v345, %v41
  %v368 = vmul.f32 %v350, %v41
  %v369 = vmul.f32 %v355, %v41
  %v370 = vmul.f32 %v360, %v41
  %v372 = vlaneseq
  %v373 = vshrl.u32 %v372, 7
  %v374 = vsub.s32 0, %v373
  %v375 = vrot.slane %v95, %v374
  %vm377 = vcmask 523264
  %v379 = vsel %vm377, %v197, 0
  %v382 = vsel %vm377, %v202, 0
  %v385 = vsel %vm377, %v207, 0
  %v388 = vsel %vm377, %v212, 0
  %v391 = vsel %vm377, %v217, 0
  %v394 = vsel %vm377, %v222, 0
  %v397 = vsel %vm377, %v227, 0
  %v400 = vsel %vm377, %v363, 0
  %v403 = vsel %vm377, %v364, 0
  %v406 = vsel %vm377, %v365, 0
  %v409 = vsel %vm377, %v366, 0
  %v412 = vsel %vm377, %v367, 0
  %v415 = vsel %vm377, %v368, 0
  %v418 = vsel %vm377, %v369, 0
  %v421 = vsel %vm377, %v370, 0
  %423 = vmatprep.subr.mxu0 0.0
  %424 = vmatpush1.xpose.msra.mxu0 %v400
  %425 = vmatprep.subr.mxu0 0.0
  %426 = vmatpush1.xpose.msra.mxu0 %v403
  %427 = vmatprep.subr.mxu0 0.0
  %428 = vmatpush1.xpose.msra.mxu0 %v406
  %429 = vmatprep.subr.mxu0 0.0
  %430 = vmatpush1.xpose.msra.mxu0 %v409
  %431 = vmatprep.subr.mxu0 0.0
  %432 = vmatpush1.xpose.msra.mxu0 %v412
  %433 = vmatprep.subr.mxu0 0.0
  %434 = vmatpush1.xpose.msra.mxu0 %v415
  %435 = vmatprep.subr.mxu0 0.0
  %436 = vmatpush1.xpose.msra.mxu0 %v418
  %437 = vmatprep.subr.mxu0 0.0
  %438 = vmatpush1.xpose.msra.mxu0 %v421
  %439 = vmatprep.subr.mxu0 0.0
  %440 = vmatpush1.xpose.msra.mxu0 0.0
  %441 = vmatprep.subr.mxu0 0.0
  %442 = vmatpush1.xpose.msra.mxu0 0.0
  %443 = vmatprep.subr.mxu0 0.0
  %444 = vmatpush1.xpose.msra.mxu0 0.0
  %445 = vmatprep.subr.mxu0 0.0
  %446 = vmatpush1.xpose.msra.mxu0 0.0
  %447 = vmatprep.subr.mxu0 0.0
  %448 = vmatpush1.xpose.msra.mxu0 0.0
  %449 = vmatprep.subr.mxu0 0.0
  %450 = vmatpush1.xpose.msra.mxu0 0.0
  %451 = vmatprep.subr.mxu0 0.0
  %452 = vmatpush1.xpose.msra.mxu0 0.0
  %453 = vmatprep.subr.mxu0 0.0
  %454 = vmatpush1.xpose.msra.mxu0 0.0
  %455 = vmatprep.subr.mxu0 0.0
  %456 = vmatpush1.xpose.msra.mxu0 0.0
  %457 = vmatprep.subr.mxu0 0.0
  %458 = vmatpush1.xpose.msra.mxu0 0.0
  %459 = vmatprep.subr.mxu0 0.0
  %460 = vmatpush1.xpose.msra.mxu0 0.0
  %461 = vmatprep.subr.mxu0 0.0
  %462 = vmatpush1.xpose.msra.mxu0 0.0
  %463 = vmatprep.subr.mxu0 0.0
  %464 = vmatpush1.xpose.msra.mxu0 0.0
  %465 = vmatprep.subr.mxu0 0.0
  %466 = vmatpush1.xpose.msra.mxu0 0.0
  %467 = vmatprep.subr.mxu0 0.0
  %468 = vmatpush1.xpose.msra.mxu0 0.0
  %469 = vmatprep.subr.mxu0 0.0
  %470 = vmatpush1.xpose.msra.mxu0 0.0
  %471 = vmatprep.subr.mxu0 0.0
  %472 = vmatpush1.xpose.msra.mxu0 0.0
  %473 = vmatprep.subr.mxu0 0.0
  %474 = vmatpush1.xpose.msra.mxu0 0.0
  %475 = vmatprep.subr.mxu0 0.0
  %476 = vmatpush1.xpose.msra.mxu0 0.0
  %477 = vmatprep.subr.mxu0 0.0
  %478 = vmatpush1.xpose.msra.mxu0 0.0
  %479 = vmatprep.subr.mxu0 0.0
  %480 = vmatpush1.xpose.msra.mxu0 0.0
  %481 = vmatprep.subr.mxu0 0.0
  %482 = vmatpush1.xpose.msra.mxu0 0.0
  %483 = vmatprep.subr.mxu0 0.0
  %484 = vmatpush1.xpose.msra.mxu0 0.0
  %485 = vmatprep.subr.mxu0 0.0
  %486 = vmatpush1.xpose.msra.mxu0 0.0
  %487 = vmatprep.mubr.f32.mxu0 0.0
  %488 = vmatmul.mubr.f32.gmra.mrb[0].mxu0 %v379
  %v489 = vpop.f32.mrb[0].mxu0
  %v490 = vadd.f32 %v375, %v489
  %v491 = vpop.f32.mrb[0].mxu0
  %492 = vmatprep.mubr.f32.mxu0 0.0
  %493 = vmatmul.mubr.f32.gmra.mrb[0].mxu0 %v382
  %v494 = vpop.f32.mrb[0].mxu0
  %v495 = vadd.f32 %v375, %v494
  %v496 = vpop.f32.mrb[0].mxu0
  %497 = vmatprep.mubr.f32.mxu0 0.0
  %498 = vmatmul.mubr.f32.gmra.mrb[0].mxu0 %v385
  %v499 = vpop.f32.mrb[0].mxu0
  %v500 = vadd.f32 %v375, %v499
  %v501 = vpop.f32.mrb[0].mxu0
  %502 = vmatprep.mubr.f32.mxu0 0.0
  %503 = vmatmul.mubr.f32.gmra.mrb[0].mxu0 %v388
  %v504 = vpop.f32.mrb[0].mxu0
  %v505 = vadd.f32 %v375, %v504
  %v506 = vpop.f32.mrb[0].mxu0
  %507 = vmatprep.mubr.f32.mxu0 0.0
  %508 = vmatmul.mubr.f32.gmra.mrb[0].mxu0 %v391
  %v509 = vpop.f32.mrb[0].mxu0
  %v510 = vadd.f32 %v375, %v509
  %v511 = vpop.f32.mrb[0].mxu0
  %512 = vmatprep.mubr.f32.mxu0 0.0
  %513 = vmatmul.mubr.f32.gmra.mrb[0].mxu0 %v394
  %v514 = vpop.f32.mrb[0].mxu0
  %v515 = vadd.f32 %v375, %v514
  %v516 = vpop.f32.mrb[0].mxu0
  %517 = vmatprep.mubr.f32.mxu0 0.0
  %518 = vmatmul.mubr.f32.gmra.mrb[0].mxu0 %v397
  %v519 = vpop.f32.mrb[0].mxu0
  %v520 = vadd.f32 %v375, %v519
  %v521 = vpop.f32.mrb[0].mxu0
  %522 = vdwg.mxu0
  %v523 = vsel %vm377, %v490, -inf
  %524 = vmax.xlane.f32.xlu0 %v523
  %v525 = vpop.xlane.xlu0 %524
  %v526 = vsel %vm377, %v495, -inf
  %527 = vmax.xlane.f32.xlu0 %v526
  %v528 = vpop.xlane.xlu0 %527
  %v529 = vsel %vm377, %v500, -inf
  %530 = vmax.xlane.f32.xlu0 %v529
  %v531 = vpop.xlane.xlu0 %530
  %v532 = vsel %vm377, %v505, -inf
  %533 = vmax.xlane.f32.xlu0 %v532
  %v534 = vpop.xlane.xlu0 %533
  %v535 = vsel %vm377, %v510, -inf
  %536 = vmax.xlane.f32.xlu0 %v535
  %v537 = vpop.xlane.xlu0 %536
  %v538 = vsel %vm377, %v515, -inf
  %539 = vmax.xlane.f32.xlu0 %v538
  %v540 = vpop.xlane.xlu0 %539
  %vm541 = vcmask 522240
  %v542 = vsel %vm541, %v520, -inf
  %543 = vmax.xlane.f32.xlu0 %v542
  %v544 = vpop.xlane.xlu0 %543
  %v545 = vsub.f32 %v490, %v525
  %v546 = vsub.f32 %v495, %v528
  %v547 = vsub.f32 %v500, %v531
  %v548 = vsub.f32 %v505, %v534
  %v549 = vsub.f32 %v510, %v537
  %v550 = vsub.f32 %v515, %v540
  %v551 = vsub.f32 %v520, %v544
  %v552 = vmul.f32 %v545, 1.442695
  %v553 = vpow.pop %v552
  %v554 = vmul.f32 %v546, 1.442695
  %v555 = vpow.pop %v554
  %v556 = vmul.f32 %v547, 1.442695
  %v557 = vpow.pop %v556
  %v558 = vmul.f32 %v548, 1.442695
  %v559 = vpow.pop %v558
  %v560 = vmul.f32 %v549, 1.442695
  %v561 = vpow.pop %v560
  %v562 = vmul.f32 %v550, 1.442695
  %v563 = vpow.pop %v562
  %v564 = vmul.f32 %v551, 1.442695
  %v565 = vpow.pop %v564
  %v566 = vsel %vm377, %v553, 0.0
  %567 = vadd.xlane.f32.xlu0 %v566
  %v568 = vpop.xlane.xlu0 %567
  %v569 = vsel %vm377, %v555, 0.0
  %570 = vadd.xlane.f32.xlu0 %v569
  %v571 = vpop.xlane.xlu0 %570
  %v572 = vsel %vm377, %v557, 0.0
  %573 = vadd.xlane.f32.xlu0 %v572
  %v574 = vpop.xlane.xlu0 %573
  %v575 = vsel %vm377, %v559, 0.0
  %576 = vadd.xlane.f32.xlu0 %v575
  %v577 = vpop.xlane.xlu0 %576
  %v578 = vsel %vm377, %v561, 0.0
  %579 = vadd.xlane.f32.xlu0 %v578
  %v580 = vpop.xlane.xlu0 %579
  %v581 = vsel %vm377, %v563, 0.0
  %582 = vadd.xlane.f32.xlu0 %v581
  %v583 = vpop.xlane.xlu0 %582
  %v584 = vsel %vm541, %v565, 0.0
  %585 = vadd.xlane.f32.xlu0 %v584
  %v586 = vpop.xlane.xlu0 %585
  %v587 = vrcp.pop %v568
  %v588 = vmul.f32 %v553, %v587
  %v589 = vrcp.pop %v571
  %v590 = vmul.f32 %v555, %v589
  %v591 = vrcp.pop %v574
  %v592 = vmul.f32 %v557, %v591
  %v593 = vrcp.pop %v577
  %v594 = vmul.f32 %v559, %v593
  %v595 = vrcp.pop %v580
  %v596 = vmul.f32 %v561, %v595
  %v597 = vrcp.pop %v583
  %v598 = vmul.f32 %v563, %v597
  %v599 = vrcp.pop %v586
  %v600 = vmul.f32 %v565, %v599
  %v601 = vmul.f32 %v325, %v51
  %v602 = vmul.f32 %v330, %v51
  %v603 = vmul.f32 %v335, %v51
  %v604 = vmul.f32 %v340, %v51
  %v605 = vmul.f32 %v345, %v51
  %v606 = vmul.f32 %v350, %v51
  %v607 = vmul.f32 %v355, %v51
  %v608 = vmul.f32 %v360, %v51
  %v609 = vmul.f32 %v325, %v46
  %v610 = vmul.f32 %v330, %v46
  %v611 = vmul.f32 %v335, %v46
  %v612 = vmul.f32 %v340, %v46
  %v613 = vmul.f32 %v345, %v46
  %v614 = vmul.f32 %v350, %v46
  %v615 = vmul.f32 %v355, %v46
  %v616 = vmul.f32 %v360, %v46
  %v618 = vsel %vm377, %v609, 0
  %v621 = vsel %vm377, %v610, 0
  %v624 = vsel %vm377, %v611, 0
  %v627 = vsel %vm377, %v612, 0
  %v630 = vsel %vm377, %v613, 0
  %v633 = vsel %vm377, %v614, 0
  %v636 = vsel %vm377, %v615, 0
  %v639 = vsel %vm377, %v616, 0
  %641 = vmatprep.subr.mxu0 0.0
  %642 = vmatpush1.xpose.msra.mxu0 %v618
  %643 = vmatprep.subr.mxu0 0.0
  %644 = vmatpush1.xpose.msra.mxu0 %v621
  %645 = vmatprep.subr.mxu0 0.0
  %646 = vmatpush1.xpose.msra.mxu0 %v624
  %647 = vmatprep.subr.mxu0 0.0
  %648 = vmatpush1.xpose.msra.mxu0 %v627
  %649 = vmatprep.subr.mxu0 0.0
  %650 = vmatpush1.xpose.msra.mxu0 %v630
  %651 = vmatprep.subr.mxu0 0.0
  %652 = vmatpush1.xpose.msra.mxu0 %v633
  %653 = vmatprep.subr.mxu0 0.0
  %654 = vmatpush1.xpose.msra.mxu0 %v636
  %655 = vmatprep.subr.mxu0 0.0
  %656 = vmatpush1.xpose.msra.mxu0 %v639
  %657 = vmatprep.subr.mxu0 0.0
  %658 = vmatpush1.xpose.msra.mxu0 0.0
  %659 = vmatprep.subr.mxu0 0.0
  %660 = vmatpush1.xpose.msra.mxu0 0.0
  %661 = vmatprep.subr.mxu0 0.0
  %662 = vmatpush1.xpose.msra.mxu0 0.0
  %663 = vmatprep.subr.mxu0 0.0
  %664 = vmatpush1.xpose.msra.mxu0 0.0
  %665 = vmatprep.subr.mxu0 0.0
  %666 = vmatpush1.xpose.msra.mxu0 0.0
  %667 = vmatprep.subr.mxu0 0.0
  %668 = vmatpush1.xpose.msra.mxu0 0.0
  %669 = vmatprep.subr.mxu0 0.0
  %670 = vmatpush1.xpose.msra.mxu0 0.0
  %671 = vmatprep.subr.mxu0 0.0
  %672 = vmatpush1.xpose.msra.mxu0 0.0
  %673 = vmatprep.subr.mxu0 0.0
  %674 = vmatpush1.xpose.msra.mxu0 0.0
  %675 = vmatprep.subr.mxu0 0.0
  %676 = vmatpush1.xpose.msra.mxu0 0.0
  %677 = vmatprep.subr.mxu0 0.0
  %678 = vmatpush1.xpose.msra.mxu0 0.0
  %679 = vmatprep.subr.mxu0 0.0
  %680 = vmatpush1.xpose.msra.mxu0 0.0
  %681 = vmatprep.subr.mxu0 0.0
  %682 = vmatpush1.xpose.msra.mxu0 0.0
  %683 = vmatprep.subr.mxu0 0.0
  %684 = vmatpush1.xpose.msra.mxu0 0.0
  %685 = vmatprep.subr.mxu0 0.0
  %686 = vmatpush1.xpose.msra.mxu0 0.0
  %687 = vmatprep.subr.mxu0 0.0
  %688 = vmatpush1.xpose.msra.mxu0 0.0
  %689 = vmatprep.subr.mxu0 0.0
  %690 = vmatpush1.xpose.msra.mxu0 0.0
  %691 = vmatprep.subr.mxu0 0.0
  %692 = vmatpush1.xpose.msra.mxu0 0.0
  %693 = vmatprep.subr.mxu0 0.0
  %694 = vmatpush1.xpose.msra.mxu0 0.0
  %695 = vmatprep.subr.mxu0 0.0
  %696 = vmatpush1.xpose.msra.mxu0 0.0
  %697 = vmatprep.subr.mxu0 0.0
  %698 = vmatpush1.xpose.msra.mxu0 0.0
  %699 = vmatprep.subr.mxu0 0.0
  %700 = vmatpush1.xpose.msra.mxu0 0.0
  %701 = vmatprep.subr.mxu0 0.0
  %702 = vmatpush1.xpose.msra.mxu0 0.0
  %703 = vmatprep.subr.mxu0 0.0
  %704 = vmatpush1.xpose.msra.mxu0 0.0
  %705 = vmatprep.mubr.f32.mxu0 0.0
  %706 = vmatmul.mubr.f32.gmra.mrb[0].mxu0 %v379
  %v707 = vpop.f32.mrb[0].mxu0
  %v708 = vadd.f32 %v375, %v707
  %v709 = vpop.f32.mrb[0].mxu0
  %710 = vmatprep.mubr.f32.mxu0 0.0
  %711 = vmatmul.mubr.f32.gmra.mrb[0].mxu0 %v382
  %v712 = vpop.f32.mrb[0].mxu0
  %v713 = vadd.f32 %v375, %v712
  %v714 = vpop.f32.mrb[0].mxu0
  %715 = vmatprep.mubr.f32.mxu0 0.0
  %716 = vmatmul.mubr.f32.gmra.mrb[0].mxu0 %v385
  %v717 = vpop.f32.mrb[0].mxu0
  %v718 = vadd.f32 %v375, %v717
  %v719 = vpop.f32.mrb[0].mxu0
  %720 = vmatprep.mubr.f32.mxu0 0.0
  %721 = vmatmul.mubr.f32.gmra.mrb[0].mxu0 %v388
  %v722 = vpop.f32.mrb[0].mxu0
  %v723 = vadd.f32 %v375, %v722
  %v724 = vpop.f32.mrb[0].mxu0
  %725 = vmatprep.mubr.f32.mxu0 0.0
  %726 = vmatmul.mubr.f32.gmra.mrb[0].mxu0 %v391
  %v727 = vpop.f32.mrb[0].mxu0
  %v728 = vadd.f32 %v375, %v727
  %v729 = vpop.f32.mrb[0].mxu0
  %730 = vmatprep.mubr.f32.mxu0 0.0
  %731 = vmatmul.mubr.f32.gmra.mrb[0].mxu0 %v394
  %v732 = vpop.f32.mrb[0].mxu0
  %v733 = vadd.f32 %v375, %v732
  %v734 = vpop.f32.mrb[0].mxu0
  %735 = vmatprep.mubr.f32.mxu0 0.0
  %736 = vmatmul.mubr.f32.gmra.mrb[0].mxu0 %v397
  %v737 = vpop.f32.mrb[0].mxu0
  %v738 = vadd.f32 %v375, %v737
  %v739 = vpop.f32.mrb[0].mxu0
  %740 = vdwg.mxu0
  %v741 = vsel %vm377, %v708, -inf
  %742 = vmax.xlane.f32.xlu0 %v741
  %v743 = vpop.xlane.xlu0 %742
  %v744 = vsel %vm377, %v713, -inf
  %745 = vmax.xlane.f32.xlu0 %v744
  %v746 = vpop.xlane.xlu0 %745
  %v747 = vsel %vm377, %v718, -inf
  %748 = vmax.xlane.f32.xlu0 %v747
  %v749 = vpop.xlane.xlu0 %748
  %v750 = vsel %vm377, %v723, -inf
  %751 = vmax.xlane.f32.xlu0 %v750
  %v752 = vpop.xlane.xlu0 %751
  %v753 = vsel %vm377, %v728, -inf
  %754 = vmax.xlane.f32.xlu0 %v753
  %v755 = vpop.xlane.xlu0 %754
  %v756 = vsel %vm377, %v733, -inf
  %757 = vmax.xlane.f32.xlu0 %v756
  %v758 = vpop.xlane.xlu0 %757
  %v759 = vsel %vm541, %v738, -inf
  %760 = vmax.xlane.f32.xlu0 %v759
  %v761 = vpop.xlane.xlu0 %760
  %v762 = vsub.f32 %v708, %v743
  %v763 = vsub.f32 %v713, %v746
  %v764 = vsub.f32 %v718, %v749
  %v765 = vsub.f32 %v723, %v752
  %v766 = vsub.f32 %v728, %v755
  %v767 = vsub.f32 %v733, %v758
  %v768 = vsub.f32 %v738, %v761
  %v769 = vmul.f32 %v762, 1.442695
  %v770 = vpow.pop %v769
  %v771 = vmul.f32 %v763, 1.442695
  %v772 = vpow.pop %v771
  %v773 = vmul.f32 %v764, 1.442695
  %v774 = vpow.pop %v773
  %v775 = vmul.f32 %v765, 1.442695
  %v776 = vpow.pop %v775
  %v777 = vmul.f32 %v766, 1.442695
  %v778 = vpow.pop %v777
  %v779 = vmul.f32 %v767, 1.442695
  %v780 = vpow.pop %v779
  %v781 = vmul.f32 %v768, 1.442695
  %v782 = vpow.pop %v781
  %v783 = vsel %vm377, %v770, 0.0
  %784 = vadd.xlane.f32.xlu0 %v783
  %v785 = vpop.xlane.xlu0 %784
  %v786 = vsel %vm377, %v772, 0.0
  %787 = vadd.xlane.f32.xlu0 %v786
  %v788 = vpop.xlane.xlu0 %787
  %v789 = vsel %vm377, %v774, 0.0
  %790 = vadd.xlane.f32.xlu0 %v789
  %v791 = vpop.xlane.xlu0 %790
  %v792 = vsel %vm377, %v776, 0.0
  %793 = vadd.xlane.f32.xlu0 %v792
  %v794 = vpop.xlane.xlu0 %793
  %v795 = vsel %vm377, %v778, 0.0
  %796 = vadd.xlane.f32.xlu0 %v795
  %v797 = vpop.xlane.xlu0 %796
  %v798 = vsel %vm377, %v780, 0.0
  %799 = vadd.xlane.f32.xlu0 %v798
  %v800 = vpop.xlane.xlu0 %799
  %v801 = vsel %vm541, %v782, 0.0
  %802 = vadd.xlane.f32.xlu0 %v801
  %v803 = vpop.xlane.xlu0 %802
  %v804 = vrcp.pop %v785
  %v805 = vmul.f32 %v770, %v804
  %v806 = vrcp.pop %v788
  %v807 = vmul.f32 %v772, %v806
  %v808 = vrcp.pop %v791
  %v809 = vmul.f32 %v774, %v808
  %v810 = vrcp.pop %v794
  %v811 = vmul.f32 %v776, %v810
  %v812 = vrcp.pop %v797
  %v813 = vmul.f32 %v778, %v812
  %v814 = vrcp.pop %v800
  %v815 = vmul.f32 %v780, %v814
  %v816 = vrcp.pop %v803
  %v817 = vmul.f32 %v782, %v816
  %v818 = vmul.f32 %v325, %v56
  %v819 = vmul.f32 %v330, %v56
  %v820 = vmul.f32 %v335, %v56
  %v821 = vmul.f32 %v340, %v56
  %v822 = vmul.f32 %v345, %v56
  %v823 = vmul.f32 %v350, %v56
  %v824 = vmul.f32 %v355, %v56
  %v825 = vmul.f32 %v360, %v56
  %v827 = vsel %vm377, %v805, 0
  %v830 = vsel %vm377, %v807, 0
  %v833 = vsel %vm377, %v809, 0
  %v836 = vsel %vm377, %v811, 0
  %v839 = vsel %vm377, %v813, 0
  %v842 = vsel %vm377, %v815, 0
  %v845 = vsel %vm377, %v817, 0
  %847 = vmatprep.subr.mxu0 0.0
  %848 = vmatpush1.msra.mxu0 %v818
  %849 = vmatprep.subr.mxu0 0.0
  %850 = vmatpush1.msra.mxu0 %v819
  %851 = vmatprep.subr.mxu0 0.0
  %852 = vmatpush1.msra.mxu0 %v820
  %853 = vmatprep.subr.mxu0 0.0
  %854 = vmatpush1.msra.mxu0 %v821
  %855 = vmatprep.subr.mxu0 0.0
  %856 = vmatpush1.msra.mxu0 %v822
  %857 = vmatprep.subr.mxu0 0.0
  %858 = vmatpush1.msra.mxu0 %v823
  %859 = vmatprep.subr.mxu0 0.0
  %860 = vmatpush1.msra.mxu0 %v824
  %861 = vmatprep.subr.mxu0 0.0
  %862 = vmatpush1.msra.mxu0 %v825
  %863 = vmatprep.subr.mxu0 0.0
  %864 = vmatpush1.msra.mxu0 0.0
  %865 = vmatprep.subr.mxu0 0.0
  %866 = vmatpush1.msra.mxu0 0.0
  %867 = vmatprep.subr.mxu0 0.0
  %868 = vmatpush1.msra.mxu0 0.0
  %869 = vmatprep.subr.mxu0 0.0
  %870 = vmatpush1.msra.mxu0 0.0
  %871 = vmatprep.subr.mxu0 0.0
  %872 = vmatpush1.msra.mxu0 0.0
  %873 = vmatprep.subr.mxu0 0.0
  %874 = vmatpush1.msra.mxu0 0.0
  %875 = vmatprep.subr.mxu0 0.0
  %876 = vmatpush1.msra.mxu0 0.0
  %877 = vmatprep.subr.mxu0 0.0
  %878 = vmatpush1.msra.mxu0 0.0
  %879 = vmatprep.subr.mxu0 0.0
  %880 = vmatpush1.msra.mxu0 0.0
  %881 = vmatprep.subr.mxu0 0.0
  %882 = vmatpush1.msra.mxu0 0.0
  %883 = vmatprep.subr.mxu0 0.0
  %884 = vmatpush1.msra.mxu0 0.0
  %885 = vmatprep.subr.mxu0 0.0
  %886 = vmatpush1.msra.mxu0 0.0
  %887 = vmatprep.subr.mxu0 0.0
  %888 = vmatpush1.msra.mxu0 0.0
  %889 = vmatprep.subr.mxu0 0.0
  %890 = vmatpush1.msra.mxu0 0.0
  %891 = vmatprep.subr.mxu0 0.0
  %892 = vmatpush1.msra.mxu0 0.0
  %893 = vmatprep.subr.mxu0 0.0
  %894 = vmatpush1.msra.mxu0 0.0
  %895 = vmatprep.subr.mxu0 0.0
  %896 = vmatpush1.msra.mxu0 0.0
  %897 = vmatprep.subr.mxu0 0.0
  %898 = vmatpush1.msra.mxu0 0.0
  %899 = vmatprep.subr.mxu0 0.0
  %900 = vmatpush1.msra.mxu0 0.0
  %901 = vmatprep.subr.mxu0 0.0
  %902 = vmatpush1.msra.mxu0 0.0
  %903 = vmatprep.subr.mxu0 0.0
  %904 = vmatpush1.msra.mxu0 0.0
  %905 = vmatprep.subr.mxu0 0.0
  %906 = vmatpush1.msra.mxu0 0.0
  %907 = vmatprep.subr.mxu0 0.0
  %908 = vmatpush1.msra.mxu0 0.0
  %909 = vmatprep.subr.mxu0 0.0
  %910 = vmatpush1.msra.mxu0 0.0
  %911 = vmatprep.mubr.f32.mxu0 0.0
  %912 = vmatmul.mubr.f32.gmra.mrb[0].mxu0 %v827
  %v913 = vpop.f32.mrb[0].mxu0
  %v914 = vadd.f32 0.0, %v913
  %v915 = vpop.f32.mrb[0].mxu0
  %916 = vmatprep.mubr.f32.mxu0 0.0
  %917 = vmatmul.mubr.f32.gmra.mrb[0].mxu0 %v830
  %v918 = vpop.f32.mrb[0].mxu0
  %v919 = vadd.f32 0.0, %v918
  %v920 = vpop.f32.mrb[0].mxu0
  %921 = vmatprep.mubr.f32.mxu0 0.0
  %922 = vmatmul.mubr.f32.gmra.mrb[0].mxu0 %v833
  %v923 = vpop.f32.mrb[0].mxu0
  %v924 = vadd.f32 0.0, %v923
  %v925 = vpop.f32.mrb[0].mxu0
  %926 = vmatprep.mubr.f32.mxu0 0.0
  %927 = vmatmul.mubr.f32.gmra.mrb[0].mxu0 %v836
  %v928 = vpop.f32.mrb[0].mxu0
  %v929 = vadd.f32 0.0, %v928
  %v930 = vpop.f32.mrb[0].mxu0
  %931 = vmatprep.mubr.f32.mxu0 0.0
  %932 = vmatmul.mubr.f32.gmra.mrb[0].mxu0 %v839
  %v933 = vpop.f32.mrb[0].mxu0
  %v934 = vadd.f32 0.0, %v933
  %v935 = vpop.f32.mrb[0].mxu0
  %936 = vmatprep.mubr.f32.mxu0 0.0
  %937 = vmatmul.mubr.f32.gmra.mrb[0].mxu0 %v842
  %v938 = vpop.f32.mrb[0].mxu0
  %v939 = vadd.f32 0.0, %v938
  %v940 = vpop.f32.mrb[0].mxu0
  %941 = vmatprep.mubr.f32.mxu0 0.0
  %942 = vmatmul.mubr.f32.gmra.mrb[0].mxu0 %v845
  %v943 = vpop.f32.mrb[0].mxu0
  %v944 = vadd.f32 0.0, %v943
  %v945 = vpop.f32.mrb[0].mxu0
  %946 = vdwg.mxu0
  %v948 = vsel %vm377, %v588, 0
  %v951 = vsel %vm377, %v590, 0
  %v954 = vsel %vm377, %v592, 0
  %v957 = vsel %vm377, %v594, 0
  %v960 = vsel %vm377, %v596, 0
  %v963 = vsel %vm377, %v598, 0
  %v966 = vsel %vm377, %v600, 0
  %968 = vmatprep.subr.mxu0 0.0
  %969 = vmatpush1.msra.mxu0 %v601
  %970 = vmatprep.subr.mxu0 0.0
  %971 = vmatpush1.msra.mxu0 %v602
  %972 = vmatprep.subr.mxu0 0.0
  %973 = vmatpush1.msra.mxu0 %v603
  %974 = vmatprep.subr.mxu0 0.0
  %975 = vmatpush1.msra.mxu0 %v604
  %976 = vmatprep.subr.mxu0 0.0
  %977 = vmatpush1.msra.mxu0 %v605
  %978 = vmatprep.subr.mxu0 0.0
  %979 = vmatpush1.msra.mxu0 %v606
  %980 = vmatprep.subr.mxu0 0.0
  %981 = vmatpush1.msra.mxu0 %v607
  %982 = vmatprep.subr.mxu0 0.0
  %983 = vmatpush1.msra.mxu0 %v608
  %984 = vmatprep.subr.mxu0 0.0
  %985 = vmatpush1.msra.mxu0 0.0
  %986 = vmatprep.subr.mxu0 0.0
  %987 = vmatpush1.msra.mxu0 0.0
  %988 = vmatprep.subr.mxu0 0.0
  %989 = vmatpush1.msra.mxu0 0.0
  %990 = vmatprep.subr.mxu0 0.0
  %991 = vmatpush1.msra.mxu0 0.0
  %992 = vmatprep.subr.mxu0 0.0
  %993 = vmatpush1.msra.mxu0 0.0
  %994 = vmatprep.subr.mxu0 0.0
  %995 = vmatpush1.msra.mxu0 0.0
  %996 = vmatprep.subr.mxu0 0.0
  %997 = vmatpush1.msra.mxu0 0.0
  %998 = vmatprep.subr.mxu0 0.0
  %999 = vmatpush1.msra.mxu0 0.0
  %1000 = vmatprep.subr.mxu0 0.0
  %1001 = vmatpush1.msra.mxu0 0.0
  %1002 = vmatprep.subr.mxu0 0.0
  %1003 = vmatpush1.msra.mxu0 0.0
  %1004 = vmatprep.subr.mxu0 0.0
  %1005 = vmatpush1.msra.mxu0 0.0
  %1006 = vmatprep.subr.mxu0 0.0
  %1007 = vmatpush1.msra.mxu0 0.0
  %1008 = vmatprep.subr.mxu0 0.0
  %1009 = vmatpush1.msra.mxu0 0.0
  %1010 = vmatprep.subr.mxu0 0.0
  %1011 = vmatpush1.msra.mxu0 0.0
  %1012 = vmatprep.subr.mxu0 0.0
  %1013 = vmatpush1.msra.mxu0 0.0
  %1014 = vmatprep.subr.mxu0 0.0
  %1015 = vmatpush1.msra.mxu0 0.0
  %1016 = vmatprep.subr.mxu0 0.0
  %1017 = vmatpush1.msra.mxu0 0.0
  %1018 = vmatprep.subr.mxu0 0.0
  %1019 = vmatpush1.msra.mxu0 0.0
  %1020 = vmatprep.subr.mxu0 0.0
  %1021 = vmatpush1.msra.mxu0 0.0
  %1022 = vmatprep.subr.mxu0 0.0
  %1023 = vmatpush1.msra.mxu0 0.0
  %1024 = vmatprep.subr.mxu0 0.0
  %1025 = vmatpush1.msra.mxu0 0.0
  %1026 = vmatprep.subr.mxu0 0.0
  %1027 = vmatpush1.msra.mxu0 0.0
  %1028 = vmatprep.subr.mxu0 0.0
  %1029 = vmatpush1.msra.mxu0 0.0
  %1030 = vmatprep.subr.mxu0 0.0
  %1031 = vmatpush1.msra.mxu0 0.0
  %1032 = vmatprep.mubr.f32.mxu0 0.0
  %1033 = vmatmul.mubr.f32.gmra.mrb[0].mxu0 %v948
  %v1034 = vpop.f32.mrb[0].mxu0
  %v1035 = vadd.f32 %v914, %v1034
  %v1036 = vpop.f32.mrb[0].mxu0
  %1037 = vmatprep.mubr.f32.mxu0 0.0
  %1038 = vmatmul.mubr.f32.gmra.mrb[0].mxu0 %v951
  %v1039 = vpop.f32.mrb[0].mxu0
  %v1040 = vadd.f32 %v919, %v1039
  %v1041 = vpop.f32.mrb[0].mxu0
  %1042 = vmatprep.mubr.f32.mxu0 0.0
  %1043 = vmatmul.mubr.f32.gmra.mrb[0].mxu0 %v954
  %v1044 = vpop.f32.mrb[0].mxu0
  %v1045 = vadd.f32 %v924, %v1044
  %v1046 = vpop.f32.mrb[0].mxu0
  %1047 = vmatprep.mubr.f32.mxu0 0.0
  %1048 = vmatmul.mubr.f32.gmra.mrb[0].mxu0 %v957
  %v1049 = vpop.f32.mrb[0].mxu0
  %v1050 = vadd.f32 %v929, %v1049
  %v1051 = vpop.f32.mrb[0].mxu0
  %1052 = vmatprep.mubr.f32.mxu0 0.0
  %1053 = vmatmul.mubr.f32.gmra.mrb[0].mxu0 %v960
  %v1054 = vpop.f32.mrb[0].mxu0
  %v1055 = vadd.f32 %v934, %v1054
  %v1056 = vpop.f32.mrb[0].mxu0
  %1057 = vmatprep.mubr.f32.mxu0 0.0
  %1058 = vmatmul.mubr.f32.gmra.mrb[0].mxu0 %v963
  %v1059 = vpop.f32.mrb[0].mxu0
  %v1060 = vadd.f32 %v939, %v1059
  %v1061 = vpop.f32.mrb[0].mxu0
  %1062 = vmatprep.mubr.f32.mxu0 0.0
  %1063 = vmatmul.mubr.f32.gmra.mrb[0].mxu0 %v966
  %v1064 = vpop.f32.mrb[0].mxu0
  %v1065 = vadd.f32 %v944, %v1064
  %v1066 = vpop.f32.mrb[0].mxu0
  %1067 = vdwg.mxu0
  %v1069 = vsel %vm108, %v92, 0
  %1071 = vmatprep.subr.mxu0 0.0
  %1072 = vmatpush1.msra.mxu0 %v66
  %1073 = vmatprep.subr.mxu0 0.0
  %1074 = vmatpush1.msra.mxu0 %v67
  %1075 = vmatprep.subr.mxu0 0.0
  %1076 = vmatpush1.msra.mxu0 %v68
  %1077 = vmatprep.subr.mxu0 0.0
  %1078 = vmatpush1.msra.mxu0 %v69
  %1079 = vmatprep.subr.mxu0 0.0
  %1080 = vmatpush1.msra.mxu0 0.0
  %1081 = vmatprep.subr.mxu0 0.0
  %1082 = vmatpush1.msra.mxu0 0.0
  %1083 = vmatprep.subr.mxu0 0.0
  %1084 = vmatpush1.msra.mxu0 0.0
  %1085 = vmatprep.subr.mxu0 0.0
  %1086 = vmatpush1.msra.mxu0 0.0
  %1087 = vmatprep.subr.mxu0 0.0
  %1088 = vmatpush1.msra.mxu0 0.0
  %1089 = vmatprep.subr.mxu0 0.0
  %1090 = vmatpush1.msra.mxu0 0.0
  %1091 = vmatprep.subr.mxu0 0.0
  %1092 = vmatpush1.msra.mxu0 0.0
  %1093 = vmatprep.subr.mxu0 0.0
  %1094 = vmatpush1.msra.mxu0 0.0
  %1095 = vmatprep.subr.mxu0 0.0
  %1096 = vmatpush1.msra.mxu0 0.0
  %1097 = vmatprep.subr.mxu0 0.0
  %1098 = vmatpush1.msra.mxu0 0.0
  %1099 = vmatprep.subr.mxu0 0.0
  %1100 = vmatpush1.msra.mxu0 0.0
  %1101 = vmatprep.subr.mxu0 0.0
  %1102 = vmatpush1.msra.mxu0 0.0
  %1103 = vmatprep.subr.mxu0 0.0
  %1104 = vmatpush1.msra.mxu0 0.0
  %1105 = vmatprep.subr.mxu0 0.0
  %1106 = vmatpush1.msra.mxu0 0.0
  %1107 = vmatprep.subr.mxu0 0.0
  %1108 = vmatpush1.msra.mxu0 0.0
  %1109 = vmatprep.subr.mxu0 0.0
  %1110 = vmatpush1.msra.mxu0 0.0
  %1111 = vmatprep.subr.mxu0 0.0
  %1112 = vmatpush1.msra.mxu0 0.0
  %1113 = vmatprep.subr.mxu0 0.0
  %1114 = vmatpush1.msra.mxu0 0.0
  %1115 = vmatprep.subr.mxu0 0.0
  %1116 = vmatpush1.msra.mxu0 0.0
  %1117 = vmatprep.subr.mxu0 0.0
  %1118 = vmatpush1.msra.mxu0 0.0
  %1119 = vmatprep.subr.mxu0 0.0
  %1120 = vmatpush1.msra.mxu0 0.0
  %1121 = vmatprep.subr.mxu0 0.0
  %1122 = vmatpush1.msra.mxu0 0.0
  %1123 = vmatprep.subr.mxu0 0.0
  %1124 = vmatpush1.msra.mxu0 0.0
  %1125 = vmatprep.subr.mxu0 0.0
  %1126 = vmatpush1.msra.mxu0 0.0
  %1127 = vmatprep.subr.mxu0 0.0
  %1128 = vmatpush1.msra.mxu0 0.0
  %1129 = vmatprep.subr.mxu0 0.0
  %1130 = vmatpush1.msra.mxu0 0.0
  %1131 = vmatprep.subr.mxu0 0.0
  %1132 = vmatpush1.msra.mxu0 0.0
  %1133 = vmatprep.subr.mxu0 0.0
  %1134 = vmatpush1.msra.mxu0 0.0
  %1135 = vmatprep.mubr.f32.mxu0 0.0
  %1136 = vmatmul.mubr.f32.gmra.mrb[0].mxu0 %v1069
  %v1137 = vpop.f32.mrb[0].mxu0
  %v1138 = vadd.f32 0.0, %v1137
  %v1139 = vpop.f32.mrb[0].mxu0
  %1140 = vdwg.mxu0
  %1141 = vmatprep.subr.mxu0 0.0
  %1142 = vmatpush1.msra.mxu0 %v71
  %1143 = vmatprep.subr.mxu0 0.0
  %1144 = vmatpush1.msra.mxu0 %v72
  %1145 = vmatprep.subr.mxu0 0.0
  %1146 = vmatpush1.msra.mxu0 %v73
  %1147 = vmatprep.subr.mxu0 0.0
  %1148 = vmatpush1.msra.mxu0 %v74
  %1149 = vmatprep.subr.mxu0 0.0
  %1150 = vmatpush1.msra.mxu0 0.0
  %1151 = vmatprep.subr.mxu0 0.0
  %1152 = vmatpush1.msra.mxu0 0.0
  %1153 = vmatprep.subr.mxu0 0.0
  %1154 = vmatpush1.msra.mxu0 0.0
  %1155 = vmatprep.subr.mxu0 0.0
  %1156 = vmatpush1.msra.mxu0 0.0
  %1157 = vmatprep.subr.mxu0 0.0
  %1158 = vmatpush1.msra.mxu0 0.0
  %1159 = vmatprep.subr.mxu0 0.0
  %1160 = vmatpush1.msra.mxu0 0.0
  %1161 = vmatprep.subr.mxu0 0.0
  %1162 = vmatpush1.msra.mxu0 0.0
  %1163 = vmatprep.subr.mxu0 0.0
  %1164 = vmatpush1.msra.mxu0 0.0
  %1165 = vmatprep.subr.mxu0 0.0
  %1166 = vmatpush1.msra.mxu0 0.0
  %1167 = vmatprep.subr.mxu0 0.0
  %1168 = vmatpush1.msra.mxu0 0.0
  %1169 = vmatprep.subr.mxu0 0.0
  %1170 = vmatpush1.msra.mxu0 0.0
  %1171 = vmatprep.subr.mxu0 0.0
  %1172 = vmatpush1.msra.mxu0 0.0
  %1173 = vmatprep.subr.mxu0 0.0
  %1174 = vmatpush1.msra.mxu0 0.0
  %1175 = vmatprep.subr.mxu0 0.0
  %1176 = vmatpush1.msra.mxu0 0.0
  %1177 = vmatprep.subr.mxu0 0.0
  %1178 = vmatpush1.msra.mxu0 0.0
  %1179 = vmatprep.subr.mxu0 0.0
  %1180 = vmatpush1.msra.mxu0 0.0
  %1181 = vmatprep.subr.mxu0 0.0
  %1182 = vmatpush1.msra.mxu0 0.0
  %1183 = vmatprep.subr.mxu0 0.0
  %1184 = vmatpush1.msra.mxu0 0.0
  %1185 = vmatprep.subr.mxu0 0.0
  %1186 = vmatpush1.msra.mxu0 0.0
  %1187 = vmatprep.subr.mxu0 0.0
  %1188 = vmatpush1.msra.mxu0 0.0
  %1189 = vmatprep.subr.mxu0 0.0
  %1190 = vmatpush1.msra.mxu0 0.0
  %1191 = vmatprep.subr.mxu0 0.0
  %1192 = vmatpush1.msra.mxu0 0.0
  %1193 = vmatprep.subr.mxu0 0.0
  %1194 = vmatpush1.msra.mxu0 0.0
  %1195 = vmatprep.subr.mxu0 0.0
  %1196 = vmatpush1.msra.mxu0 0.0
  %1197 = vmatprep.subr.mxu0 0.0
  %1198 = vmatpush1.msra.mxu0 0.0
  %1199 = vmatprep.subr.mxu0 0.0
  %1200 = vmatpush1.msra.mxu0 0.0
  %1201 = vmatprep.subr.mxu0 0.0
  %1202 = vmatpush1.msra.mxu0 0.0
  %1203 = vmatprep.subr.mxu0 0.0
  %1204 = vmatpush1.msra.mxu0 0.0
  %1205 = vmatprep.mubr.f32.mxu0 0.0
  %1206 = vmatmul.mubr.f32.gmra.mrb[0].mxu0 %v110
  %v1207 = vpop.f32.mrb[0].mxu0
  %v1208 = vadd.f32 0.0, %v1207
  %v1209 = vpop.f32.mrb[0].mxu0
  %1210 = vmatprep.mubr.f32.mxu0 0.0
  %1211 = vmatmul.mubr.f32.gmra.mrb[0].mxu0 %v113
  %v1212 = vpop.f32.mrb[0].mxu0
  %v1213 = vadd.f32 0.0, %v1212
  %v1214 = vpop.f32.mrb[0].mxu0
  %1215 = vmatprep.mubr.f32.mxu0 0.0
  %1216 = vmatmul.mubr.f32.gmra.mrb[0].mxu0 %v116
  %v1217 = vpop.f32.mrb[0].mxu0
  %v1218 = vadd.f32 0.0, %v1217
  %v1219 = vpop.f32.mrb[0].mxu0
  %1220 = vmatprep.mubr.f32.mxu0 0.0
  %1221 = vmatmul.mubr.f32.gmra.mrb[0].mxu0 %v119
  %v1222 = vpop.f32.mrb[0].mxu0
  %v1223 = vadd.f32 0.0, %v1222
  %v1224 = vpop.f32.mrb[0].mxu0
  %1225 = vmatprep.mubr.f32.mxu0 0.0
  %1226 = vmatmul.mubr.f32.gmra.mrb[0].mxu0 %v122
  %v1227 = vpop.f32.mrb[0].mxu0
  %v1228 = vadd.f32 0.0, %v1227
  %v1229 = vpop.f32.mrb[0].mxu0
  %1230 = vmatprep.mubr.f32.mxu0 0.0
  %1231 = vmatmul.mubr.f32.gmra.mrb[0].mxu0 %v125
  %v1232 = vpop.f32.mrb[0].mxu0
  %v1233 = vadd.f32 0.0, %v1232
  %v1234 = vpop.f32.mrb[0].mxu0
  %1235 = vmatprep.mubr.f32.mxu0 0.0
  %1236 = vmatmul.mubr.f32.gmra.mrb[0].mxu0 %v128
  %v1237 = vpop.f32.mrb[0].mxu0
  %v1238 = vadd.f32 0.0, %v1237
  %v1239 = vpop.f32.mrb[0].mxu0
  %1240 = vdwg.mxu0
  %v1241 = vlaneseq
  %v1242 = vshrl.u32 %v1241, 7
  %v1243 = vsub.s32 0, %v1242
  %v1244 = vrot.slane %v1138, %v1243
  %v1245 = vadd.f32 %v1244, %v1208
  %v1246 = vadd.f32 %v1244, %v1213
  %v1247 = vadd.f32 %v1244, %v1218
  %v1248 = vadd.f32 %v1244, %v1223
  %v1249 = vadd.f32 %v1244, %v1228
  %v1250 = vadd.f32 %v1244, %v1233
  %v1251 = vadd.f32 %v1244, %v1238
  %v1253 = vsel %vm377, %v1035, 0
  %v1256 = vsel %vm377, %v1040, 0
  %v1259 = vsel %vm377, %v1045, 0
  %v1262 = vsel %vm377, %v1050, 0
  %v1265 = vsel %vm377, %v1055, 0
  %v1268 = vsel %vm377, %v1060, 0
  %v1271 = vsel %vm377, %v1065, 0
  %1273 = vmatprep.subr.mxu0 0.0
  %1274 = vmatpush1.msra.mxu0 %v75
  %1275 = vmatprep.subr.mxu0 0.0
  %1276 = vmatpush1.msra.mxu0 %v76
  %1277 = vmatprep.subr.mxu0 0.0
  %1278 = vmatpush1.msra.mxu0 %v77
  %1279 = vmatprep.subr.mxu0 0.0
  %1280 = vmatpush1.msra.mxu0 %v78
  %1281 = vmatprep.subr.mxu0 0.0
  %1282 = vmatpush1.msra.mxu0 %v79
  %1283 = vmatprep.subr.mxu0 0.0
  %1284 = vmatpush1.msra.mxu0 %v80
  %1285 = vmatprep.subr.mxu0 0.0
  %1286 = vmatpush1.msra.mxu0 %v81
  %1287 = vmatprep.subr.mxu0 0.0
  %1288 = vmatpush1.msra.mxu0 %v82
  %1289 = vmatprep.subr.mxu0 0.0
  %1290 = vmatpush1.msra.mxu0 0.0
  %1291 = vmatprep.subr.mxu0 0.0
  %1292 = vmatpush1.msra.mxu0 0.0
  %1293 = vmatprep.subr.mxu0 0.0
  %1294 = vmatpush1.msra.mxu0 0.0
  %1295 = vmatprep.subr.mxu0 0.0
  %1296 = vmatpush1.msra.mxu0 0.0
  %1297 = vmatprep.subr.mxu0 0.0
  %1298 = vmatpush1.msra.mxu0 0.0
  %1299 = vmatprep.subr.mxu0 0.0
  %1300 = vmatpush1.msra.mxu0 0.0
  %1301 = vmatprep.subr.mxu0 0.0
  %1302 = vmatpush1.msra.mxu0 0.0
  %1303 = vmatprep.subr.mxu0 0.0
  %1304 = vmatpush1.msra.mxu0 0.0
  %1305 = vmatprep.subr.mxu0 0.0
  %1306 = vmatpush1.msra.mxu0 0.0
  %1307 = vmatprep.subr.mxu0 0.0
  %1308 = vmatpush1.msra.mxu0 0.0
  %1309 = vmatprep.subr.mxu0 0.0
  %1310 = vmatpush1.msra.mxu0 0.0
  %1311 = vmatprep.subr.mxu0 0.0
  %1312 = vmatpush1.msra.mxu0 0.0
  %1313 = vmatprep.subr.mxu0 0.0
  %1314 = vmatpush1.msra.mxu0 0.0
  %1315 = vmatprep.subr.mxu0 0.0
  %1316 = vmatpush1.msra.mxu0 0.0
  %1317 = vmatprep.subr.mxu0 0.0
  %1318 = vmatpush1.msra.mxu0 0.0
  %1319 = vmatprep.subr.mxu0 0.0
  %1320 = vmatpush1.msra.mxu0 0.0
  %1321 = vmatprep.subr.mxu0 0.0
  %1322 = vmatpush1.msra.mxu0 0.0
  %1323 = vmatprep.subr.mxu0 0.0
  %1324 = vmatpush1.msra.mxu0 0.0
  %1325 = vmatprep.subr.mxu0 0.0
  %1326 = vmatpush1.msra.mxu0 0.0
  %1327 = vmatprep.subr.mxu0 0.0
  %1328 = vmatpush1.msra.mxu0 0.0
  %1329 = vmatprep.subr.mxu0 0.0
  %1330 = vmatpush1.msra.mxu0 0.0
  %1331 = vmatprep.subr.mxu0 0.0
  %1332 = vmatpush1.msra.mxu0 0.0
  %1333 = vmatprep.subr.mxu0 0.0
  %1334 = vmatpush1.msra.mxu0 0.0
  %1335 = vmatprep.subr.mxu0 0.0
  %1336 = vmatpush1.msra.mxu0 0.0
  %1337 = vmatprep.mubr.f32.mxu0 0.0
  %1338 = vmatmul.mubr.f32.gmra.mrb[0].mxu0 %v1253
  %v1339 = vpop.f32.mrb[0].mxu0
  %v1340 = vadd.f32 0.0, %v1339
  %v1341 = vpop.f32.mrb[0].mxu0
  %1342 = vmatprep.mubr.f32.mxu0 0.0
  %1343 = vmatmul.mubr.f32.gmra.mrb[0].mxu0 %v1256
  %v1344 = vpop.f32.mrb[0].mxu0
  %v1345 = vadd.f32 0.0, %v1344
  %v1346 = vpop.f32.mrb[0].mxu0
  %1347 = vmatprep.mubr.f32.mxu0 0.0
  %1348 = vmatmul.mubr.f32.gmra.mrb[0].mxu0 %v1259
  %v1349 = vpop.f32.mrb[0].mxu0
  %v1350 = vadd.f32 0.0, %v1349
  %v1351 = vpop.f32.mrb[0].mxu0
  %1352 = vmatprep.mubr.f32.mxu0 0.0
  %1353 = vmatmul.mubr.f32.gmra.mrb[0].mxu0 %v1262
  %v1354 = vpop.f32.mrb[0].mxu0
  %v1355 = vadd.f32 0.0, %v1354
  %v1356 = vpop.f32.mrb[0].mxu0
  %1357 = vmatprep.mubr.f32.mxu0 0.0
  %1358 = vmatmul.mubr.f32.gmra.mrb[0].mxu0 %v1265
  %v1359 = vpop.f32.mrb[0].mxu0
  %v1360 = vadd.f32 0.0, %v1359
  %v1361 = vpop.f32.mrb[0].mxu0
  %1362 = vmatprep.mubr.f32.mxu0 0.0
  %1363 = vmatmul.mubr.f32.gmra.mrb[0].mxu0 %v1268
  %v1364 = vpop.f32.mrb[0].mxu0
  %v1365 = vadd.f32 0.0, %v1364
  %v1366 = vpop.f32.mrb[0].mxu0
  %1367 = vmatprep.mubr.f32.mxu0 0.0
  %1368 = vmatmul.mubr.f32.gmra.mrb[0].mxu0 %v1271
  %v1369 = vpop.f32.mrb[0].mxu0
  %v1370 = vadd.f32 0.0, %v1369
  %v1371 = vpop.f32.mrb[0].mxu0
  %1372 = vdwg.mxu0
  %v1373 = vadd.f32 %v1245, %v1340
  %v1374 = vadd.f32 %v1246, %v1345
  %v1375 = vadd.f32 %v1247, %v1350
  %v1376 = vadd.f32 %v1248, %v1355
  %v1377 = vadd.f32 %v1249, %v1360
  %v1378 = vadd.f32 %v1250, %v1365
  %v1379 = vadd.f32 %v1251, %v1370
  %v1380 = vlaneseq
  %v1381 = vshrl.u32 %v1380, 7
  %v1382 = vsub.s32 0, %v1381
  %v1383 = vrot.slane %v84, %v1382
  %v1384 = vadd.f32 %v1373, %v1383
  %v1385 = vadd.f32 %v1374, %v1383
  %v1386 = vadd.f32 %v1375, %v1383
  %v1387 = vadd.f32 %v1376, %v1383
  %v1388 = vadd.f32 %v1377, %v1383
  %v1389 = vadd.f32 %v1378, %v1383
  %v1390 = vadd.f32 %v1379, %v1383
  %v1391 = vsel %vm108, %v1384, 0.0
  %1392 = vadd.xlane.f32.xlu0 %v1391
  %v1393 = vpop.xlane.xlu0 %1392
  %v1394 = vsel %vm108, %v1385, 0.0
  %1395 = vadd.xlane.f32.xlu0 %v1394
  %v1396 = vpop.xlane.xlu0 %1395
  %v1397 = vsel %vm108, %v1386, 0.0
  %1398 = vadd.xlane.f32.xlu0 %v1397
  %v1399 = vpop.xlane.xlu0 %1398
  %v1400 = vsel %vm108, %v1387, 0.0
  %1401 = vadd.xlane.f32.xlu0 %v1400
  %v1402 = vpop.xlane.xlu0 %1401
  %v1403 = vsel %vm108, %v1388, 0.0
  %1404 = vadd.xlane.f32.xlu0 %v1403
  %v1405 = vpop.xlane.xlu0 %1404
  %v1406 = vsel %vm108, %v1389, 0.0
  %1407 = vadd.xlane.f32.xlu0 %v1406
  %v1408 = vpop.xlane.xlu0 %1407
  %vm1409 = vcmask 260096
  %v1410 = vsel %vm1409, %v1390, 0.0
  %1411 = vadd.xlane.f32.xlu0 %v1410
  %v1412 = vpop.xlane.xlu0 %1411
  %v1413 = vrcp.pop 32.0
  %v1414 = vmul.f32 %v1393, %v1413
  %v1415 = vmul.f32 %v1396, %v1413
  %v1416 = vmul.f32 %v1399, %v1413
  %v1417 = vmul.f32 %v1402, %v1413
  %v1418 = vmul.f32 %v1405, %v1413
  %v1419 = vmul.f32 %v1408, %v1413
  %v1420 = vmul.f32 %v1412, %v1413
  %v1421 = vsub.f32 %v1384, %v1414
  %v1422 = vsub.f32 %v1385, %v1415
  %v1423 = vsub.f32 %v1386, %v1416
  %v1424 = vsub.f32 %v1387, %v1417
  %v1425 = vsub.f32 %v1388, %v1418
  %v1426 = vsub.f32 %v1389, %v1419
  %v1427 = vsub.f32 %v1390, %v1420
  %v1428 = vmul.f32 %v1421, %v1421
  %v1429 = vmul.f32 %v1422, %v1422
  %v1430 = vmul.f32 %v1423, %v1423
  %v1431 = vmul.f32 %v1424, %v1424
  %v1432 = vmul.f32 %v1425, %v1425
  %v1433 = vmul.f32 %v1426, %v1426
  %v1434 = vmul.f32 %v1427, %v1427
  %v1435 = vsel %vm108, %v1428, 0.0
  %1436 = vadd.xlane.f32.xlu0 %v1435
  %v1437 = vpop.xlane.xlu0 %1436
  %v1438 = vsel %vm108, %v1429, 0.0
  %1439 = vadd.xlane.f32.xlu0 %v1438
  %v1440 = vpop.xlane.xlu0 %1439
  %v1441 = vsel %vm108, %v1430, 0.0
  %1442 = vadd.xlane.f32.xlu0 %v1441
  %v1443 = vpop.xlane.xlu0 %1442
  %v1444 = vsel %vm108, %v1431, 0.0
  %1445 = vadd.xlane.f32.xlu0 %v1444
  %v1446 = vpop.xlane.xlu0 %1445
  %v1447 = vsel %vm108, %v1432, 0.0
  %1448 = vadd.xlane.f32.xlu0 %v1447
  %v1449 = vpop.xlane.xlu0 %1448
  %v1450 = vsel %vm108, %v1433, 0.0
  %1451 = vadd.xlane.f32.xlu0 %v1450
  %v1452 = vpop.xlane.xlu0 %1451
  %v1453 = vsel %vm1409, %v1434, 0.0
  %1454 = vadd.xlane.f32.xlu0 %v1453
  %v1455 = vpop.xlane.xlu0 %1454
  %v1456 = vmul.f32 %v1437, %v1413
  %v1457 = vmul.f32 %v1440, %v1413
  %v1458 = vmul.f32 %v1443, %v1413
  %v1459 = vmul.f32 %v1446, %v1413
  %v1460 = vmul.f32 %v1449, %v1413
  %v1461 = vmul.f32 %v1452, %v1413
  %v1462 = vmul.f32 %v1455, %v1413
  %v1463 = vadd.f32 %v1456, 1e-05
  %v1464 = vadd.f32 %v1457, 1e-05
  %v1465 = vadd.f32 %v1458, 1e-05
  %v1466 = vadd.f32 %v1459, 1e-05
  %v1467 = vadd.f32 %v1460, 1e-05
  %v1468 = vadd.f32 %v1461, 1e-05
  %v1469 = vadd.f32 %v1462, 1e-05
  %v1470 = vrsqrt.pop %v1463
  %v1471 = vrsqrt.pop %v1464
  %v1472 = vrsqrt.pop %v1465
  %v1473 = vrsqrt.pop %v1466
  %v1474 = vrsqrt.pop %v1467
  %v1475 = vrsqrt.pop %v1468
  %v1476 = vrsqrt.pop %v1469
  %v1477 = vmul.f32 %v1421, %v1470
  %v1478 = vmul.f32 %v1422, %v1471
  %v1479 = vmul.f32 %v1423, %v1472
  %v1480 = vmul.f32 %v1424, %v1473
  %v1481 = vmul.f32 %v1425, %v1474
  %v1482 = vmul.f32 %v1426, %v1475
  %v1483 = vmul.f32 %v1427, %v1476
  %v1484 = vlaneseq
  %v1485 = vshrl.u32 %v1484, 7
  %v1486 = vsub.s32 1, %v1485
  %v1487 = vrot.slane %v84, %v1486
  %v1488 = vmul.f32 %v1477, %v1487
  %v1489 = vmul.f32 %v1478, %v1487
  %v1490 = vmul.f32 %v1479, %v1487
  %v1491 = vmul.f32 %v1480, %v1487
  %v1492 = vmul.f32 %v1481, %v1487
  %v1493 = vmul.f32 %v1482, %v1487
  %v1494 = vmul.f32 %v1483, %v1487
  %v1495 = vlaneseq
  %v1496 = vshrl.u32 %v1495, 7
  %v1497 = vsub.s32 2, %v1496
  %v1498 = vrot.slane %v84, %v1497
  %v1499 = vadd.f32 %v1488, %v1498
  %v1500 = vadd.f32 %v1489, %v1498
  %v1501 = vadd.f32 %v1490, %v1498
  %v1502 = vadd.f32 %v1491, %v1498
  %v1503 = vadd.f32 %v1492, %v1498
  %v1504 = vadd.f32 %v1493, %v1498
  %v1505 = vadd.f32 %v1494, %v1498
  %v1506 = vmax.f32 %v1499, 0.0
  %v1507 = vmax.f32 %v1500, 0.0
  %v1508 = vmax.f32 %v1501, 0.0
  %v1509 = vmax.f32 %v1502, 0.0
  %v1510 = vmax.f32 %v1503, 0.0
  %v1511 = vmax.f32 %v1504, 0.0
  %v1512 = vmax.f32 %v1505, 0.0
  %v1513 = vlaneseq
  %v1514 = vshrl.u32 %v1513, 7
  %v1515 = vsub.s32 4, %v1514
  %v1516 = vrot.slane %v84, %v1515
  %v1517 = vmul.f32 %v85, %v1516
  %v1518 = vmul.f32 %v86, %v1516
  %v1519 = vmul.f32 %v87, %v1516
  %v1520 = vmul.f32 %v88, %v1516
  %v1521 = vmul.f32 %v89, %v1516
  %v1522 = vmul.f32 %v90, %v1516
  %v1523 = vmul.f32 %v91, %v1516
  %v1524 = vlaneseq
  %v1525 = vshrl.u32 %v1524, 7
  %v1526 = vsub.s32 5, %v1525
  %v1527 = vrot.slane %v84, %v1526
  %v1528 = vmul.f32 %v1506, %v1527
  %v1529 = vmul.f32 %v1507, %v1527
  %v1530 = vmul.f32 %v1508, %v1527
  %v1531 = vmul.f32 %v1509, %v1527
  %v1532 = vmul.f32 %v1510, %v1527
  %v1533 = vmul.f32 %v1511, %v1527
  %v1534 = vmul.f32 %v1512, %v1527
  %v1535 = vadd.f32 %v1517, %v1528
  %v1536 = vadd.f32 %v1518, %v1529
  %v1537 = vadd.f32 %v1519, %v1530
  %v1538 = vadd.f32 %v1520, %v1531
  %v1539 = vadd.f32 %v1521, %v1532
  %v1540 = vadd.f32 %v1522, %v1533
  %v1541 = vadd.f32 %v1523, %v1534
  %v1543 = vrot.slane %v83, 2
  %v1544 = vsel %vm377, %v1543, 0
  %1546 = vmatprep.subr.mxu0 0.0
  %1547 = vmatpush1.xpose.msra.mxu0 %v1253
  %1548 = vmatprep.subr.mxu0 0.0
  %1549 = vmatpush1.xpose.msra.mxu0 %v1256
  %1550 = vmatprep.subr.mxu0 0.0
  %1551 = vmatpush1.xpose.msra.mxu0 %v1259
  %1552 = vmatprep.subr.mxu0 0.0
  %1553 = vmatpush1.xpose.msra.mxu0 %v1262
  %1554 = vmatprep.subr.mxu0 0.0
  %1555 = vmatpush1.xpose.msra.mxu0 %v1265
  %1556 = vmatprep.subr.mxu0 0.0
  %1557 = vmatpush1.xpose.msra.mxu0 %v1268
  %1558 = vmatprep.subr.mxu0 0.0
  %1559 = vmatpush1.xpose.msra.mxu0 %v1271
  %1560 = vmatprep.subr.mxu0 0.0
  %1561 = vmatpush1.xpose.msra.mxu0 0.0
  %1562 = vmatprep.subr.mxu0 0.0
  %1563 = vmatpush1.xpose.msra.mxu0 0.0
  %1564 = vmatprep.subr.mxu0 0.0
  %1565 = vmatpush1.xpose.msra.mxu0 0.0
  %1566 = vmatprep.subr.mxu0 0.0
  %1567 = vmatpush1.xpose.msra.mxu0 0.0
  %1568 = vmatprep.subr.mxu0 0.0
  %1569 = vmatpush1.xpose.msra.mxu0 0.0
  %1570 = vmatprep.subr.mxu0 0.0
  %1571 = vmatpush1.xpose.msra.mxu0 0.0
  %1572 = vmatprep.subr.mxu0 0.0
  %1573 = vmatpush1.xpose.msra.mxu0 0.0
  %1574 = vmatprep.subr.mxu0 0.0
  %1575 = vmatpush1.xpose.msra.mxu0 0.0
  %1576 = vmatprep.subr.mxu0 0.0
  %1577 = vmatpush1.xpose.msra.mxu0 0.0
  %1578 = vmatprep.subr.mxu0 0.0
  %1579 = vmatpush1.xpose.msra.mxu0 0.0
  %1580 = vmatprep.subr.mxu0 0.0
  %1581 = vmatpush1.xpose.msra.mxu0 0.0
  %1582 = vmatprep.subr.mxu0 0.0
  %1583 = vmatpush1.xpose.msra.mxu0 0.0
  %1584 = vmatprep.subr.mxu0 0.0
  %1585 = vmatpush1.xpose.msra.mxu0 0.0
  %1586 = vmatprep.subr.mxu0 0.0
  %1587 = vmatpush1.xpose.msra.mxu0 0.0
  %1588 = vmatprep.subr.mxu0 0.0
  %1589 = vmatpush1.xpose.msra.mxu0 0.0
  %1590 = vmatprep.subr.mxu0 0.0
  %1591 = vmatpush1.xpose.msra.mxu0 0.0
  %1592 = vmatprep.subr.mxu0 0.0
  %1593 = vmatpush1.xpose.msra.mxu0 0.0
  %1594 = vmatprep.subr.mxu0 0.0
  %1595 = vmatpush1.xpose.msra.mxu0 0.0
  %1596 = vmatprep.subr.mxu0 0.0
  %1597 = vmatpush1.xpose.msra.mxu0 0.0
  %1598 = vmatprep.subr.mxu0 0.0
  %1599 = vmatpush1.xpose.msra.mxu0 0.0
  %1600 = vmatprep.subr.mxu0 0.0
  %1601 = vmatpush1.xpose.msra.mxu0 0.0
  %1602 = vmatprep.subr.mxu0 0.0
  %1603 = vmatpush1.xpose.msra.mxu0 0.0
  %1604 = vmatprep.subr.mxu0 0.0
  %1605 = vmatpush1.xpose.msra.mxu0 0.0
  %1606 = vmatprep.subr.mxu0 0.0
  %1607 = vmatpush1.xpose.msra.mxu0 0.0
  %1608 = vmatprep.subr.mxu0 0.0
  %1609 = vmatpush1.xpose.msra.mxu0 0.0
  %1610 = vmatprep.mubr.f32.mxu0 0.0
  %1611 = vmatmul.mubr.f32.gmra.mrb[0].mxu0 %v1544
  %v1612 = vpop.f32.mrb[0].mxu0
  %v1613 = vadd.f32 0.0, %v1612
  %v1614 = vpop.f32.mrb[0].mxu0
  %1615 = vdwg.mxu0
  %v1617 = vsel %vm108, 1.0, 0
  %v1620 = vsel %vm108, %v1535, 0
  %v1623 = vsel %vm108, %v1536, 0
  %v1626 = vsel %vm108, %v1537, 0
  %v1629 = vsel %vm108, %v1538, 0
  %v1632 = vsel %vm108, %v1539, 0
  %v1635 = vsel %vm108, %v1540, 0
  %v1638 = vsel %vm108, %v1541, 0
  %1640 = vmatprep.subr.mxu0 0.0
  %1641 = vmatpush1.xpose.msra.mxu0 %v1620
  %1642 = vmatprep.subr.mxu0 0.0
  %1643 = vmatpush1.xpose.msra.mxu0 %v1623
  %1644 = vmatprep.subr.mxu0 0.0
  %1645 = vmatpush1.xpose.msra.mxu0 %v1626
  %1646 = vmatprep.subr.mxu0 0.0
  %1647 = vmatpush1.xpose.msra.mxu0 %v1629
  %1648 = vmatprep.subr.mxu0 0.0
  %1649 = vmatpush1.xpose.msra.mxu0 %v1632
  %1650 = vmatprep.subr.mxu0 0.0
  %1651 = vmatpush1.xpose.msra.mxu0 %v1635
  %1652 = vmatprep.subr.mxu0 0.0
  %1653 = vmatpush1.xpose.msra.mxu0 %v1638
  %1654 = vmatprep.subr.mxu0 0.0
  %1655 = vmatpush1.xpose.msra.mxu0 0.0
  %1656 = vmatprep.subr.mxu0 0.0
  %1657 = vmatpush1.xpose.msra.mxu0 0.0
  %1658 = vmatprep.subr.mxu0 0.0
  %1659 = vmatpush1.xpose.msra.mxu0 0.0
  %1660 = vmatprep.subr.mxu0 0.0
  %1661 = vmatpush1.xpose.msra.mxu0 0.0
  %1662 = vmatprep.subr.mxu0 0.0
  %1663 = vmatpush1.xpose.msra.mxu0 0.0
  %1664 = vmatprep.subr.mxu0 0.0
  %1665 = vmatpush1.xpose.msra.mxu0 0.0
  %1666 = vmatprep.subr.mxu0 0.0
  %1667 = vmatpush1.xpose.msra.mxu0 0.0
  %1668 = vmatprep.subr.mxu0 0.0
  %1669 = vmatpush1.xpose.msra.mxu0 0.0
  %1670 = vmatprep.subr.mxu0 0.0
  %1671 = vmatpush1.xpose.msra.mxu0 0.0
  %1672 = vmatprep.subr.mxu0 0.0
  %1673 = vmatpush1.xpose.msra.mxu0 0.0
  %1674 = vmatprep.subr.mxu0 0.0
  %1675 = vmatpush1.xpose.msra.mxu0 0.0
  %1676 = vmatprep.subr.mxu0 0.0
  %1677 = vmatpush1.xpose.msra.mxu0 0.0
  %1678 = vmatprep.subr.mxu0 0.0
  %1679 = vmatpush1.xpose.msra.mxu0 0.0
  %1680 = vmatprep.subr.mxu0 0.0
  %1681 = vmatpush1.xpose.msra.mxu0 0.0
  %1682 = vmatprep.subr.mxu0 0.0
  %1683 = vmatpush1.xpose.msra.mxu0 0.0
  %1684 = vmatprep.subr.mxu0 0.0
  %1685 = vmatpush1.xpose.msra.mxu0 0.0
  %1686 = vmatprep.subr.mxu0 0.0
  %1687 = vmatpush1.xpose.msra.mxu0 0.0
  %1688 = vmatprep.subr.mxu0 0.0
  %1689 = vmatpush1.xpose.msra.mxu0 0.0
  %1690 = vmatprep.subr.mxu0 0.0
  %1691 = vmatpush1.xpose.msra.mxu0 0.0
  %1692 = vmatprep.subr.mxu0 0.0
  %1693 = vmatpush1.xpose.msra.mxu0 0.0
  %1694 = vmatprep.subr.mxu0 0.0
  %1695 = vmatpush1.xpose.msra.mxu0 0.0
  %1696 = vmatprep.subr.mxu0 0.0
  %1697 = vmatpush1.xpose.msra.mxu0 0.0
  %1698 = vmatprep.subr.mxu0 0.0
  %1699 = vmatpush1.xpose.msra.mxu0 0.0
  %1700 = vmatprep.subr.mxu0 0.0
  %1701 = vmatpush1.xpose.msra.mxu0 0.0
  %1702 = vmatprep.subr.mxu0 0.0
  %1703 = vmatpush1.xpose.msra.mxu0 0.0
  %1704 = vmatprep.mubr.f32.mxu0 0.0
  %1705 = vmatmul.mubr.f32.gmra.mrb[0].mxu0 %v1617
  %v1706 = vpop.f32.mrb[0].mxu0
  %v1707 = vadd.f32 %v1613, %v1706
  %v1708 = vpop.f32.mrb[0].mxu0
  %1709 = vdwg.mxu0
  %v1712 = vunpack.c.l.s4 1966171168
  %v1713 = vunpack.c.0.s8 %v1712
  %v1714 = vlaneseq
  %v1715 = vshrl.u32 %v1714, 7
  %v1716 = vsub.s32 %v1713, %v1715
  %v1717 = vrot.slane %v84, %v1716
  %v1718 = vcombine.high %v1717, %v1717
  %v1720 = vunpack.c.l.s4 1966171168
  %v1721 = vunpack.c.0.s8 %v1720
  %v1722 = vlaneseq
  %v1723 = vshrl.u32 %v1722, 7
  %v1724 = vsub.s32 %v1721, %v1723
  %v1725 = vrot.slane %v1718, %v1724
  %v1726 = vcombine.high %v1725, %v1725
  %v1728 = vmul.f32 %v92, %v1726
  %vm1729 = vcmask 253952
  %v1730 = vsel %vm1729, %v1728, 0.0
  %1731 = vadd.xlane.f32.xlu0 %v1730
  %v1732 = vpop.xlane.xlu0 %1731
  %v1733 = vadd.f32 %v1707, %v1732
  %v1734 = vld [vmem:[%s4] sm:$0x1]
  %v1735 = vsub.f32 1.0, %v1734
  %v1736 = vmul.f32 %v1735, 10000000.0
  %v1737 = vsub.f32 %v1733, %v1736
  %vm1738 = vcmask 442368
  %v1739 = vsel %vm1738, %v1737, -inf
  %1740 = vmax.xlane.f32.xlu0 %v1739
  %v1741 = vpop.xlane.xlu0 %1740
  %v1742 = vsub.f32 %v1737, %v1741
  %v1743 = vmul.f32 %v1742, 1.442695
  %v1744 = vpow.pop %v1743
  %v1745 = vsel %vm1738, %v1744, 0.0
  %1746 = vadd.xlane.f32.xlu0 %v1745
  %v1747 = vpop.xlane.xlu0 %1746
  %v1748 = vlog2.pop %v1747
  %v1749 = vmul.f32 %v1748, 0.6931472
  %v1750 = vadd.f32 %v1741, %v1749
  %v1751 = vsub.f32 %v1737, %v1750
  %1752 = vst.msk [vmem:[%s10] sm:$0x1] %vm1738, %v1751
  %s1753 = scalar_lea.vmem %s0, 56
  %v1754 = vld [vmem:[%s1753] sm:$0xff]
  %v1755 = vld [vmem:[%s1753 + $0x8] sm:$0xff]
  %v1756 = vld [vmem:[%s1753 + $0x10] sm:$0xff]
  %v1757 = vld [vmem:[%s1753 + $0x18] sm:$0xff]
  %v1758 = vld [vmem:[%s1753 + $0x20] sm:$0xff]
  %v1759 = vld [vmem:[%s1753 + $0x28] sm:$0xff]
  %v1760 = vld [vmem:[%s1753 + $0x30] sm:$0x7f]
  %s1761 = scalar_lea.vmem %s2, 1
  %v1762 = vld [vmem:[%s1761] sm:$0x1]
  %s1763 = scalar_lea.vmem %s3, 1
  %v1764 = vld [vmem:[%s1763] sm:$0x1]
  %v1765 = vsub.f32 1.0, %v1764
  %v1766 = vmul.f32 %v1765, -1e+09
  %s1767 = scalar_lea.vmem %s1, 64
  %v1768 = vld [vmem:[%s1767] sm:$0xff]
  %v1769 = vld [vmem:[%s1767 + $0x8] sm:$0xff]
  %v1770 = vld [vmem:[%s1767 + $0x10] sm:$0xff]
  %v1771 = vld [vmem:[%s1767 + $0x18] sm:$0xff]
  %v1772 = vld [vmem:[%s1767 + $0x20] sm:$0xff]
  %v1773 = vld [vmem:[%s1767 + $0x28] sm:$0xff]
  %v1774 = vld [vmem:[%s1767 + $0x30] sm:$0xff]
  %v1775 = vld [vmem:[%s1767 + $0x38] sm:$0xff]
  %v1777 = vsel %vm108, %v1754, 0
  %v1780 = vsel %vm108, %v1755, 0
  %v1783 = vsel %vm108, %v1756, 0
  %v1786 = vsel %vm108, %v1757, 0
  %v1789 = vsel %vm108, %v1758, 0
  %v1792 = vsel %vm108, %v1759, 0
  %v1795 = vsel %vm108, %v1760, 0
  %1797 = vmatprep.subr.mxu0 0.0
  %1798 = vmatpush1.msra.mxu0 %v57
  %1799 = vmatprep.subr.mxu0 0.0
  %1800 = vmatpush1.msra.mxu0 %v58
  %1801 = vmatprep.subr.mxu0 0.0
  %1802 = vmatpush1.msra.mxu0 %v59
  %1803 = vmatprep.subr.mxu0 0.0
  %1804 = vmatpush1.msra.mxu0 %v60
  %1805 = vmatprep.subr.mxu0 0.0
  %1806 = vmatpush1.msra.mxu0 0.0
  %1807 = vmatprep.subr.mxu0 0.0
  %1808 = vmatpush1.msra.mxu0 0.0
  %1809 = vmatprep.subr.mxu0 0.0
  %1810 = vmatpush1.msra.mxu0 0.0
  %1811 = vmatprep.subr.mxu0 0.0
  %1812 = vmatpush1.msra.mxu0 0.0
  %1813 = vmatprep.subr.mxu0 0.0
  %1814 = vmatpush1.msra.mxu0 0.0
  %1815 = vmatprep.subr.mxu0 0.0
  %1816 = vmatpush1.msra.mxu0 0.0
  %1817 = vmatprep.subr.mxu0 0.0
  %1818 = vmatpush1.msra.mxu0 0.0
  %1819 = vmatprep.subr.mxu0 0.0
  %1820 = vmatpush1.msra.mxu0 0.0
  %1821 = vmatprep.subr.mxu0 0.0
  %1822 = vmatpush1.msra.mxu0 0.0
  %1823 = vmatprep.subr.mxu0 0.0
  %1824 = vmatpush1.msra.mxu0 0.0
  %1825 = vmatprep.subr.mxu0 0.0
  %1826 = vmatpush1.msra.mxu0 0.0
  %1827 = vmatprep.subr.mxu0 0.0
  %1828 = vmatpush1.msra.mxu0 0.0
  %1829 = vmatprep.subr.mxu0 0.0
  %1830 = vmatpush1.msra.mxu0 0.0
  %1831 = vmatprep.subr.mxu0 0.0
  %1832 = vmatpush1.msra.mxu0 0.0
  %1833 = vmatprep.subr.mxu0 0.0
  %1834 = vmatpush1.msra.mxu0 0.0
  %1835 = vmatprep.subr.mxu0 0.0
  %1836 = vmatpush1.msra.mxu0 0.0
  %1837 = vmatprep.subr.mxu0 0.0
  %1838 = vmatpush1.msra.mxu0 0.0
  %1839 = vmatprep.subr.mxu0 0.0
  %1840 = vmatpush1.msra.mxu0 0.0
  %1841 = vmatprep.subr.mxu0 0.0
  %1842 = vmatpush1.msra.mxu0 0.0
  %1843 = vmatprep.subr.mxu0 0.0
  %1844 = vmatpush1.msra.mxu0 0.0
  %1845 = vmatprep.subr.mxu0 0.0
  %1846 = vmatpush1.msra.mxu0 0.0
  %1847 = vmatprep.subr.mxu0 0.0
  %1848 = vmatpush1.msra.mxu0 0.0
  %1849 = vmatprep.subr.mxu0 0.0
  %1850 = vmatpush1.msra.mxu0 0.0
  %1851 = vmatprep.subr.mxu0 0.0
  %1852 = vmatpush1.msra.mxu0 0.0
  %1853 = vmatprep.subr.mxu0 0.0
  %1854 = vmatpush1.msra.mxu0 0.0
  %1855 = vmatprep.subr.mxu0 0.0
  %1856 = vmatpush1.msra.mxu0 0.0
  %1857 = vmatprep.subr.mxu0 0.0
  %1858 = vmatpush1.msra.mxu0 0.0
  %1859 = vmatprep.subr.mxu0 0.0
  %1860 = vmatpush1.msra.mxu0 0.0
  %1861 = vmatprep.mubr.f32.mxu0 0.0
  %1862 = vmatmul.mubr.f32.gmra.mrb[0].mxu0 %v1777
  %v1863 = vpop.f32.mrb[0].mxu0
  %v1864 = vadd.f32 %v107, %v1863
  %v1865 = vpop.f32.mrb[0].mxu0
  %1866 = vmatprep.mubr.f32.mxu0 0.0
  %1867 = vmatmul.mubr.f32.gmra.mrb[0].mxu0 %v1780
  %v1868 = vpop.f32.mrb[0].mxu0
  %v1869 = vadd.f32 %v107, %v1868
  %v1870 = vpop.f32.mrb[0].mxu0
  %1871 = vmatprep.mubr.f32.mxu0 0.0
  %1872 = vmatmul.mubr.f32.gmra.mrb[0].mxu0 %v1783
  %v1873 = vpop.f32.mrb[0].mxu0
  %v1874 = vadd.f32 %v107, %v1873
  %v1875 = vpop.f32.mrb[0].mxu0
  %1876 = vmatprep.mubr.f32.mxu0 0.0
  %1877 = vmatmul.mubr.f32.gmra.mrb[0].mxu0 %v1786
  %v1878 = vpop.f32.mrb[0].mxu0
  %v1879 = vadd.f32 %v107, %v1878
  %v1880 = vpop.f32.mrb[0].mxu0
  %1881 = vmatprep.mubr.f32.mxu0 0.0
  %1882 = vmatmul.mubr.f32.gmra.mrb[0].mxu0 %v1789
  %v1883 = vpop.f32.mrb[0].mxu0
  %v1884 = vadd.f32 %v107, %v1883
  %v1885 = vpop.f32.mrb[0].mxu0
  %1886 = vmatprep.mubr.f32.mxu0 0.0
  %1887 = vmatmul.mubr.f32.gmra.mrb[0].mxu0 %v1792
  %v1888 = vpop.f32.mrb[0].mxu0
  %v1889 = vadd.f32 %v107, %v1888
  %v1890 = vpop.f32.mrb[0].mxu0
  %1891 = vmatprep.mubr.f32.mxu0 0.0
  %1892 = vmatmul.mubr.f32.gmra.mrb[0].mxu0 %v1795
  %v1893 = vpop.f32.mrb[0].mxu0
  %v1894 = vadd.f32 %v107, %v1893
  %v1895 = vpop.f32.mrb[0].mxu0
  %1896 = vdwg.mxu0
  %v1898 = vsel %vm108, %v1768, 0
  %v1901 = vsel %vm108, %v1769, 0
  %v1904 = vsel %vm108, %v1770, 0
  %v1907 = vsel %vm108, %v1771, 0
  %v1910 = vsel %vm108, %v1772, 0
  %v1913 = vsel %vm108, %v1773, 0
  %v1916 = vsel %vm108, %v1774, 0
  %v1919 = vsel %vm108, %v1775, 0
  %1921 = vmatprep.subr.mxu0 0.0
  %1922 = vmatpush1.msra.mxu0 %v62
  %1923 = vmatprep.subr.mxu0 0.0
  %1924 = vmatpush1.msra.mxu0 %v63
  %1925 = vmatprep.subr.mxu0 0.0
  %1926 = vmatpush1.msra.mxu0 %v64
  %1927 = vmatprep.subr.mxu0 0.0
  %1928 = vmatpush1.msra.mxu0 %v65
  %1929 = vmatprep.subr.mxu0 0.0
  %1930 = vmatpush1.msra.mxu0 0.0
  %1931 = vmatprep.subr.mxu0 0.0
  %1932 = vmatpush1.msra.mxu0 0.0
  %1933 = vmatprep.subr.mxu0 0.0
  %1934 = vmatpush1.msra.mxu0 0.0
  %1935 = vmatprep.subr.mxu0 0.0
  %1936 = vmatpush1.msra.mxu0 0.0
  %1937 = vmatprep.subr.mxu0 0.0
  %1938 = vmatpush1.msra.mxu0 0.0
  %1939 = vmatprep.subr.mxu0 0.0
  %1940 = vmatpush1.msra.mxu0 0.0
  %1941 = vmatprep.subr.mxu0 0.0
  %1942 = vmatpush1.msra.mxu0 0.0
  %1943 = vmatprep.subr.mxu0 0.0
  %1944 = vmatpush1.msra.mxu0 0.0
  %1945 = vmatprep.subr.mxu0 0.0
  %1946 = vmatpush1.msra.mxu0 0.0
  %1947 = vmatprep.subr.mxu0 0.0
  %1948 = vmatpush1.msra.mxu0 0.0
  %1949 = vmatprep.subr.mxu0 0.0
  %1950 = vmatpush1.msra.mxu0 0.0
  %1951 = vmatprep.subr.mxu0 0.0
  %1952 = vmatpush1.msra.mxu0 0.0
  %1953 = vmatprep.subr.mxu0 0.0
  %1954 = vmatpush1.msra.mxu0 0.0
  %1955 = vmatprep.subr.mxu0 0.0
  %1956 = vmatpush1.msra.mxu0 0.0
  %1957 = vmatprep.subr.mxu0 0.0
  %1958 = vmatpush1.msra.mxu0 0.0
  %1959 = vmatprep.subr.mxu0 0.0
  %1960 = vmatpush1.msra.mxu0 0.0
  %1961 = vmatprep.subr.mxu0 0.0
  %1962 = vmatpush1.msra.mxu0 0.0
  %1963 = vmatprep.subr.mxu0 0.0
  %1964 = vmatpush1.msra.mxu0 0.0
  %1965 = vmatprep.subr.mxu0 0.0
  %1966 = vmatpush1.msra.mxu0 0.0
  %1967 = vmatprep.subr.mxu0 0.0
  %1968 = vmatpush1.msra.mxu0 0.0
  %1969 = vmatprep.subr.mxu0 0.0
  %1970 = vmatpush1.msra.mxu0 0.0
  %1971 = vmatprep.subr.mxu0 0.0
  %1972 = vmatpush1.msra.mxu0 0.0
  %1973 = vmatprep.subr.mxu0 0.0
  %1974 = vmatpush1.msra.mxu0 0.0
  %1975 = vmatprep.subr.mxu0 0.0
  %1976 = vmatpush1.msra.mxu0 0.0
  %1977 = vmatprep.subr.mxu0 0.0
  %1978 = vmatpush1.msra.mxu0 0.0
  %1979 = vmatprep.subr.mxu0 0.0
  %1980 = vmatpush1.msra.mxu0 0.0
  %1981 = vmatprep.subr.mxu0 0.0
  %1982 = vmatpush1.msra.mxu0 0.0
  %1983 = vmatprep.subr.mxu0 0.0
  %1984 = vmatpush1.msra.mxu0 0.0
  %1985 = vmatprep.mubr.f32.mxu0 0.0
  %1986 = vmatmul.mubr.f32.gmra.mrb[0].mxu0 %v1898
  %v1987 = vpop.f32.mrb[0].mxu0
  %v1988 = vadd.f32 %v233, %v1987
  %v1989 = vpop.f32.mrb[0].mxu0
  %1990 = vmatprep.mubr.f32.mxu0 0.0
  %1991 = vmatmul.mubr.f32.gmra.mrb[0].mxu0 %v1901
  %v1992 = vpop.f32.mrb[0].mxu0
  %v1993 = vadd.f32 %v233, %v1992
  %v1994 = vpop.f32.mrb[0].mxu0
  %1995 = vmatprep.mubr.f32.mxu0 0.0
  %1996 = vmatmul.mubr.f32.gmra.mrb[0].mxu0 %v1904
  %v1997 = vpop.f32.mrb[0].mxu0
  %v1998 = vadd.f32 %v233, %v1997
  %v1999 = vpop.f32.mrb[0].mxu0
  %2000 = vmatprep.mubr.f32.mxu0 0.0
  %2001 = vmatmul.mubr.f32.gmra.mrb[0].mxu0 %v1907
  %v2002 = vpop.f32.mrb[0].mxu0
  %v2003 = vadd.f32 %v233, %v2002
  %v2004 = vpop.f32.mrb[0].mxu0
  %2005 = vmatprep.mubr.f32.mxu0 0.0
  %2006 = vmatmul.mubr.f32.gmra.mrb[0].mxu0 %v1910
  %v2007 = vpop.f32.mrb[0].mxu0
  %v2008 = vadd.f32 %v233, %v2007
  %v2009 = vpop.f32.mrb[0].mxu0
  %2010 = vmatprep.mubr.f32.mxu0 0.0
  %2011 = vmatmul.mubr.f32.gmra.mrb[0].mxu0 %v1913
  %v2012 = vpop.f32.mrb[0].mxu0
  %v2013 = vadd.f32 %v233, %v2012
  %v2014 = vpop.f32.mrb[0].mxu0
  %2015 = vmatprep.mubr.f32.mxu0 0.0
  %2016 = vmatmul.mubr.f32.gmra.mrb[0].mxu0 %v1916
  %v2017 = vpop.f32.mrb[0].mxu0
  %v2018 = vadd.f32 %v233, %v2017
  %v2019 = vpop.f32.mrb[0].mxu0
  %2020 = vmatprep.mubr.f32.mxu0 0.0
  %2021 = vmatmul.mubr.f32.gmra.mrb[0].mxu0 %v1919
  %v2022 = vpop.f32.mrb[0].mxu0
  %v2023 = vadd.f32 %v233, %v2022
  %v2024 = vpop.f32.mrb[0].mxu0
  %2025 = vdwg.mxu0
  %v2026 = vmul.f32 %v1988, %v41
  %v2027 = vmul.f32 %v1993, %v41
  %v2028 = vmul.f32 %v1998, %v41
  %v2029 = vmul.f32 %v2003, %v41
  %v2030 = vmul.f32 %v2008, %v41
  %v2031 = vmul.f32 %v2013, %v41
  %v2032 = vmul.f32 %v2018, %v41
  %v2033 = vmul.f32 %v2023, %v41
  %v2035 = vlaneseq
  %v2036 = vshrl.u32 %v2035, 7
  %v2037 = vsub.s32 0, %v2036
  %v2038 = vrot.slane %v1766, %v2037
  %v2041 = vsel %vm377, %v1864, 0
  %v2044 = vsel %vm377, %v1869, 0
  %v2047 = vsel %vm377, %v1874, 0
  %v2050 = vsel %vm377, %v1879, 0
  %v2053 = vsel %vm377, %v1884, 0
  %v2056 = vsel %vm377, %v1889, 0
  %v2059 = vsel %vm377, %v1894, 0
  %v2062 = vsel %vm377, %v2026, 0
  %v2065 = vsel %vm377, %v2027, 0
  %v2068 = vsel %vm377, %v2028, 0
  %v2071 = vsel %vm377, %v2029, 0
  %v2074 = vsel %vm377, %v2030, 0
  %v2077 = vsel %vm377, %v2031, 0
  %v2080 = vsel %vm377, %v2032, 0
  %v2083 = vsel %vm377, %v2033, 0
  %2085 = vmatprep.subr.mxu0 0.0
  %2086 = vmatpush1.xpose.msra.mxu0 %v2062
  %2087 = vmatprep.subr.mxu0 0.0
  %2088 = vmatpush1.xpose.msra.mxu0 %v2065
  %2089 = vmatprep.subr.mxu0 0.0
  %2090 = vmatpush1.xpose.msra.mxu0 %v2068
  %2091 = vmatprep.subr.mxu0 0.0
  %2092 = vmatpush1.xpose.msra.mxu0 %v2071
  %2093 = vmatprep.subr.mxu0 0.0
  %2094 = vmatpush1.xpose.msra.mxu0 %v2074
  %2095 = vmatprep.subr.mxu0 0.0
  %2096 = vmatpush1.xpose.msra.mxu0 %v2077
  %2097 = vmatprep.subr.mxu0 0.0
  %2098 = vmatpush1.xpose.msra.mxu0 %v2080
  %2099 = vmatprep.subr.mxu0 0.0
  %2100 = vmatpush1.xpose.msra.mxu0 %v2083
  %2101 = vmatprep.subr.mxu0 0.0
  %2102 = vmatpush1.xpose.msra.mxu0 0.0
  %2103 = vmatprep.subr.mxu0 0.0
  %2104 = vmatpush1.xpose.msra.mxu0 0.0
  %2105 = vmatprep.subr.mxu0 0.0
  %2106 = vmatpush1.xpose.msra.mxu0 0.0
  %2107 = vmatprep.subr.mxu0 0.0
  %2108 = vmatpush1.xpose.msra.mxu0 0.0
  %2109 = vmatprep.subr.mxu0 0.0
  %2110 = vmatpush1.xpose.msra.mxu0 0.0
  %2111 = vmatprep.subr.mxu0 0.0
  %2112 = vmatpush1.xpose.msra.mxu0 0.0
  %2113 = vmatprep.subr.mxu0 0.0
  %2114 = vmatpush1.xpose.msra.mxu0 0.0
  %2115 = vmatprep.subr.mxu0 0.0
  %2116 = vmatpush1.xpose.msra.mxu0 0.0
  %2117 = vmatprep.subr.mxu0 0.0
  %2118 = vmatpush1.xpose.msra.mxu0 0.0
  %2119 = vmatprep.subr.mxu0 0.0
  %2120 = vmatpush1.xpose.msra.mxu0 0.0
  %2121 = vmatprep.subr.mxu0 0.0
  %2122 = vmatpush1.xpose.msra.mxu0 0.0
  %2123 = vmatprep.subr.mxu0 0.0
  %2124 = vmatpush1.xpose.msra.mxu0 0.0
  %2125 = vmatprep.subr.mxu0 0.0
  %2126 = vmatpush1.xpose.msra.mxu0 0.0
  %2127 = vmatprep.subr.mxu0 0.0
  %2128 = vmatpush1.xpose.msra.mxu0 0.0
  %2129 = vmatprep.subr.mxu0 0.0
  %2130 = vmatpush1.xpose.msra.mxu0 0.0
  %2131 = vmatprep.subr.mxu0 0.0
  %2132 = vmatpush1.xpose.msra.mxu0 0.0
  %2133 = vmatprep.subr.mxu0 0.0
  %2134 = vmatpush1.xpose.msra.mxu0 0.0
  %2135 = vmatprep.subr.mxu0 0.0
  %2136 = vmatpush1.xpose.msra.mxu0 0.0
  %2137 = vmatprep.subr.mxu0 0.0
  %2138 = vmatpush1.xpose.msra.mxu0 0.0
  %2139 = vmatprep.subr.mxu0 0.0
  %2140 = vmatpush1.xpose.msra.mxu0 0.0
  %2141 = vmatprep.subr.mxu0 0.0
  %2142 = vmatpush1.xpose.msra.mxu0 0.0
  %2143 = vmatprep.subr.mxu0 0.0
  %2144 = vmatpush1.xpose.msra.mxu0 0.0
  %2145 = vmatprep.subr.mxu0 0.0
  %2146 = vmatpush1.xpose.msra.mxu0 0.0
  %2147 = vmatprep.subr.mxu0 0.0
  %2148 = vmatpush1.xpose.msra.mxu0 0.0
  %2149 = vmatprep.mubr.f32.mxu0 0.0
  %2150 = vmatmul.mubr.f32.gmra.mrb[0].mxu0 %v2041
  %v2151 = vpop.f32.mrb[0].mxu0
  %v2152 = vadd.f32 %v2038, %v2151
  %v2153 = vpop.f32.mrb[0].mxu0
  %2154 = vmatprep.mubr.f32.mxu0 0.0
  %2155 = vmatmul.mubr.f32.gmra.mrb[0].mxu0 %v2044
  %v2156 = vpop.f32.mrb[0].mxu0
  %v2157 = vadd.f32 %v2038, %v2156
  %v2158 = vpop.f32.mrb[0].mxu0
  %2159 = vmatprep.mubr.f32.mxu0 0.0
  %2160 = vmatmul.mubr.f32.gmra.mrb[0].mxu0 %v2047
  %v2161 = vpop.f32.mrb[0].mxu0
  %v2162 = vadd.f32 %v2038, %v2161
  %v2163 = vpop.f32.mrb[0].mxu0
  %2164 = vmatprep.mubr.f32.mxu0 0.0
  %2165 = vmatmul.mubr.f32.gmra.mrb[0].mxu0 %v2050
  %v2166 = vpop.f32.mrb[0].mxu0
  %v2167 = vadd.f32 %v2038, %v2166
  %v2168 = vpop.f32.mrb[0].mxu0
  %2169 = vmatprep.mubr.f32.mxu0 0.0
  %2170 = vmatmul.mubr.f32.gmra.mrb[0].mxu0 %v2053
  %v2171 = vpop.f32.mrb[0].mxu0
  %v2172 = vadd.f32 %v2038, %v2171
  %v2173 = vpop.f32.mrb[0].mxu0
  %2174 = vmatprep.mubr.f32.mxu0 0.0
  %2175 = vmatmul.mubr.f32.gmra.mrb[0].mxu0 %v2056
  %v2176 = vpop.f32.mrb[0].mxu0
  %v2177 = vadd.f32 %v2038, %v2176
  %v2178 = vpop.f32.mrb[0].mxu0
  %2179 = vmatprep.mubr.f32.mxu0 0.0
  %2180 = vmatmul.mubr.f32.gmra.mrb[0].mxu0 %v2059
  %v2181 = vpop.f32.mrb[0].mxu0
  %v2182 = vadd.f32 %v2038, %v2181
  %v2183 = vpop.f32.mrb[0].mxu0
  %2184 = vdwg.mxu0
  %v2185 = vsel %vm377, %v2152, -inf
  %2186 = vmax.xlane.f32.xlu0 %v2185
  %v2187 = vpop.xlane.xlu0 %2186
  %v2188 = vsel %vm377, %v2157, -inf
  %2189 = vmax.xlane.f32.xlu0 %v2188
  %v2190 = vpop.xlane.xlu0 %2189
  %v2191 = vsel %vm377, %v2162, -inf
  %2192 = vmax.xlane.f32.xlu0 %v2191
  %v2193 = vpop.xlane.xlu0 %2192
  %v2194 = vsel %vm377, %v2167, -inf
  %2195 = vmax.xlane.f32.xlu0 %v2194
  %v2196 = vpop.xlane.xlu0 %2195
  %v2197 = vsel %vm377, %v2172, -inf
  %2198 = vmax.xlane.f32.xlu0 %v2197
  %v2199 = vpop.xlane.xlu0 %2198
  %v2200 = vsel %vm377, %v2177, -inf
  %2201 = vmax.xlane.f32.xlu0 %v2200
  %v2202 = vpop.xlane.xlu0 %2201
  %v2203 = vsel %vm541, %v2182, -inf
  %2204 = vmax.xlane.f32.xlu0 %v2203
  %v2205 = vpop.xlane.xlu0 %2204
  %v2206 = vsub.f32 %v2152, %v2187
  %v2207 = vsub.f32 %v2157, %v2190
  %v2208 = vsub.f32 %v2162, %v2193
  %v2209 = vsub.f32 %v2167, %v2196
  %v2210 = vsub.f32 %v2172, %v2199
  %v2211 = vsub.f32 %v2177, %v2202
  %v2212 = vsub.f32 %v2182, %v2205
  %v2213 = vmul.f32 %v2206, 1.442695
  %v2214 = vpow.pop %v2213
  %v2215 = vmul.f32 %v2207, 1.442695
  %v2216 = vpow.pop %v2215
  %v2217 = vmul.f32 %v2208, 1.442695
  %v2218 = vpow.pop %v2217
  %v2219 = vmul.f32 %v2209, 1.442695
  %v2220 = vpow.pop %v2219
  %v2221 = vmul.f32 %v2210, 1.442695
  %v2222 = vpow.pop %v2221
  %v2223 = vmul.f32 %v2211, 1.442695
  %v2224 = vpow.pop %v2223
  %v2225 = vmul.f32 %v2212, 1.442695
  %v2226 = vpow.pop %v2225
  %v2227 = vsel %vm377, %v2214, 0.0
  %2228 = vadd.xlane.f32.xlu0 %v2227
  %v2229 = vpop.xlane.xlu0 %2228
  %v2230 = vsel %vm377, %v2216, 0.0
  %2231 = vadd.xlane.f32.xlu0 %v2230
  %v2232 = vpop.xlane.xlu0 %2231
  %v2233 = vsel %vm377, %v2218, 0.0
  %2234 = vadd.xlane.f32.xlu0 %v2233
  %v2235 = vpop.xlane.xlu0 %2234
  %v2236 = vsel %vm377, %v2220, 0.0
  %2237 = vadd.xlane.f32.xlu0 %v2236
  %v2238 = vpop.xlane.xlu0 %2237
  %v2239 = vsel %vm377, %v2222, 0.0
  %2240 = vadd.xlane.f32.xlu0 %v2239
  %v2241 = vpop.xlane.xlu0 %2240
  %v2242 = vsel %vm377, %v2224, 0.0
  %2243 = vadd.xlane.f32.xlu0 %v2242
  %v2244 = vpop.xlane.xlu0 %2243
  %v2245 = vsel %vm541, %v2226, 0.0
  %2246 = vadd.xlane.f32.xlu0 %v2245
  %v2247 = vpop.xlane.xlu0 %2246
  %v2248 = vrcp.pop %v2229
  %v2249 = vmul.f32 %v2214, %v2248
  %v2250 = vrcp.pop %v2232
  %v2251 = vmul.f32 %v2216, %v2250
  %v2252 = vrcp.pop %v2235
  %v2253 = vmul.f32 %v2218, %v2252
  %v2254 = vrcp.pop %v2238
  %v2255 = vmul.f32 %v2220, %v2254
  %v2256 = vrcp.pop %v2241
  %v2257 = vmul.f32 %v2222, %v2256
  %v2258 = vrcp.pop %v2244
  %v2259 = vmul.f32 %v2224, %v2258
  %v2260 = vrcp.pop %v2247
  %v2261 = vmul.f32 %v2226, %v2260
  %v2262 = vmul.f32 %v1988, %v51
  %v2263 = vmul.f32 %v1993, %v51
  %v2264 = vmul.f32 %v1998, %v51
  %v2265 = vmul.f32 %v2003, %v51
  %v2266 = vmul.f32 %v2008, %v51
  %v2267 = vmul.f32 %v2013, %v51
  %v2268 = vmul.f32 %v2018, %v51
  %v2269 = vmul.f32 %v2023, %v51
  %v2270 = vmul.f32 %v1988, %v46
  %v2271 = vmul.f32 %v1993, %v46
  %v2272 = vmul.f32 %v1998, %v46
  %v2273 = vmul.f32 %v2003, %v46
  %v2274 = vmul.f32 %v2008, %v46
  %v2275 = vmul.f32 %v2013, %v46
  %v2276 = vmul.f32 %v2018, %v46
  %v2277 = vmul.f32 %v2023, %v46
  %v2279 = vsel %vm377, %v2270, 0
  %v2282 = vsel %vm377, %v2271, 0
  %v2285 = vsel %vm377, %v2272, 0
  %v2288 = vsel %vm377, %v2273, 0
  %v2291 = vsel %vm377, %v2274, 0
  %v2294 = vsel %vm377, %v2275, 0
  %v2297 = vsel %vm377, %v2276, 0
  %v2300 = vsel %vm377, %v2277, 0
  %2302 = vmatprep.subr.mxu0 0.0
  %2303 = vmatpush1.xpose.msra.mxu0 %v2279
  %2304 = vmatprep.subr.mxu0 0.0
  %2305 = vmatpush1.xpose.msra.mxu0 %v2282
  %2306 = vmatprep.subr.mxu0 0.0
  %2307 = vmatpush1.xpose.msra.mxu0 %v2285
  %2308 = vmatprep.subr.mxu0 0.0
  %2309 = vmatpush1.xpose.msra.mxu0 %v2288
  %2310 = vmatprep.subr.mxu0 0.0
  %2311 = vmatpush1.xpose.msra.mxu0 %v2291
  %2312 = vmatprep.subr.mxu0 0.0
  %2313 = vmatpush1.xpose.msra.mxu0 %v2294
  %2314 = vmatprep.subr.mxu0 0.0
  %2315 = vmatpush1.xpose.msra.mxu0 %v2297
  %2316 = vmatprep.subr.mxu0 0.0
  %2317 = vmatpush1.xpose.msra.mxu0 %v2300
  %2318 = vmatprep.subr.mxu0 0.0
  %2319 = vmatpush1.xpose.msra.mxu0 0.0
  %2320 = vmatprep.subr.mxu0 0.0
  %2321 = vmatpush1.xpose.msra.mxu0 0.0
  %2322 = vmatprep.subr.mxu0 0.0
  %2323 = vmatpush1.xpose.msra.mxu0 0.0
  %2324 = vmatprep.subr.mxu0 0.0
  %2325 = vmatpush1.xpose.msra.mxu0 0.0
  %2326 = vmatprep.subr.mxu0 0.0
  %2327 = vmatpush1.xpose.msra.mxu0 0.0
  %2328 = vmatprep.subr.mxu0 0.0
  %2329 = vmatpush1.xpose.msra.mxu0 0.0
  %2330 = vmatprep.subr.mxu0 0.0
  %2331 = vmatpush1.xpose.msra.mxu0 0.0
  %2332 = vmatprep.subr.mxu0 0.0
  %2333 = vmatpush1.xpose.msra.mxu0 0.0
  %2334 = vmatprep.subr.mxu0 0.0
  %2335 = vmatpush1.xpose.msra.mxu0 0.0
  %2336 = vmatprep.subr.mxu0 0.0
  %2337 = vmatpush1.xpose.msra.mxu0 0.0
  %2338 = vmatprep.subr.mxu0 0.0
  %2339 = vmatpush1.xpose.msra.mxu0 0.0
  %2340 = vmatprep.subr.mxu0 0.0
  %2341 = vmatpush1.xpose.msra.mxu0 0.0
  %2342 = vmatprep.subr.mxu0 0.0
  %2343 = vmatpush1.xpose.msra.mxu0 0.0
  %2344 = vmatprep.subr.mxu0 0.0
  %2345 = vmatpush1.xpose.msra.mxu0 0.0
  %2346 = vmatprep.subr.mxu0 0.0
  %2347 = vmatpush1.xpose.msra.mxu0 0.0
  %2348 = vmatprep.subr.mxu0 0.0
  %2349 = vmatpush1.xpose.msra.mxu0 0.0
  %2350 = vmatprep.subr.mxu0 0.0
  %2351 = vmatpush1.xpose.msra.mxu0 0.0
  %2352 = vmatprep.subr.mxu0 0.0
  %2353 = vmatpush1.xpose.msra.mxu0 0.0
  %2354 = vmatprep.subr.mxu0 0.0
  %2355 = vmatpush1.xpose.msra.mxu0 0.0
  %2356 = vmatprep.subr.mxu0 0.0
  %2357 = vmatpush1.xpose.msra.mxu0 0.0
  %2358 = vmatprep.subr.mxu0 0.0
  %2359 = vmatpush1.xpose.msra.mxu0 0.0
  %2360 = vmatprep.subr.mxu0 0.0
  %2361 = vmatpush1.xpose.msra.mxu0 0.0
  %2362 = vmatprep.subr.mxu0 0.0
  %2363 = vmatpush1.xpose.msra.mxu0 0.0
  %2364 = vmatprep.subr.mxu0 0.0
  %2365 = vmatpush1.xpose.msra.mxu0 0.0
  %2366 = vmatprep.mubr.f32.mxu0 0.0
  %2367 = vmatmul.mubr.f32.gmra.mrb[0].mxu0 %v2041
  %v2368 = vpop.f32.mrb[0].mxu0
  %v2369 = vadd.f32 %v2038, %v2368
  %v2370 = vpop.f32.mrb[0].mxu0
  %2371 = vmatprep.mubr.f32.mxu0 0.0
  %2372 = vmatmul.mubr.f32.gmra.mrb[0].mxu0 %v2044
  %v2373 = vpop.f32.mrb[0].mxu0
  %v2374 = vadd.f32 %v2038, %v2373
  %v2375 = vpop.f32.mrb[0].mxu0
  %2376 = vmatprep.mubr.f32.mxu0 0.0
  %2377 = vmatmul.mubr.f32.gmra.mrb[0].mxu0 %v2047
  %v2378 = vpop.f32.mrb[0].mxu0
  %v2379 = vadd.f32 %v2038, %v2378
  %v2380 = vpop.f32.mrb[0].mxu0
  %2381 = vmatprep.mubr.f32.mxu0 0.0
  %2382 = vmatmul.mubr.f32.gmra.mrb[0].mxu0 %v2050
  %v2383 = vpop.f32.mrb[0].mxu0
  %v2384 = vadd.f32 %v2038, %v2383
  %v2385 = vpop.f32.mrb[0].mxu0
  %2386 = vmatprep.mubr.f32.mxu0 0.0
  %2387 = vmatmul.mubr.f32.gmra.mrb[0].mxu0 %v2053
  %v2388 = vpop.f32.mrb[0].mxu0
  %v2389 = vadd.f32 %v2038, %v2388
  %v2390 = vpop.f32.mrb[0].mxu0
  %2391 = vmatprep.mubr.f32.mxu0 0.0
  %2392 = vmatmul.mubr.f32.gmra.mrb[0].mxu0 %v2056
  %v2393 = vpop.f32.mrb[0].mxu0
  %v2394 = vadd.f32 %v2038, %v2393
  %v2395 = vpop.f32.mrb[0].mxu0
  %2396 = vmatprep.mubr.f32.mxu0 0.0
  %2397 = vmatmul.mubr.f32.gmra.mrb[0].mxu0 %v2059
  %v2398 = vpop.f32.mrb[0].mxu0
  %v2399 = vadd.f32 %v2038, %v2398
  %v2400 = vpop.f32.mrb[0].mxu0
  %2401 = vdwg.mxu0
  %v2402 = vsel %vm377, %v2369, -inf
  %2403 = vmax.xlane.f32.xlu0 %v2402
  %v2404 = vpop.xlane.xlu0 %2403
  %v2405 = vsel %vm377, %v2374, -inf
  %2406 = vmax.xlane.f32.xlu0 %v2405
  %v2407 = vpop.xlane.xlu0 %2406
  %v2408 = vsel %vm377, %v2379, -inf
  %2409 = vmax.xlane.f32.xlu0 %v2408
  %v2410 = vpop.xlane.xlu0 %2409
  %v2411 = vsel %vm377, %v2384, -inf
  %2412 = vmax.xlane.f32.xlu0 %v2411
  %v2413 = vpop.xlane.xlu0 %2412
  %v2414 = vsel %vm377, %v2389, -inf
  %2415 = vmax.xlane.f32.xlu0 %v2414
  %v2416 = vpop.xlane.xlu0 %2415
  %v2417 = vsel %vm377, %v2394, -inf
  %2418 = vmax.xlane.f32.xlu0 %v2417
  %v2419 = vpop.xlane.xlu0 %2418
  %v2420 = vsel %vm541, %v2399, -inf
  %2421 = vmax.xlane.f32.xlu0 %v2420
  %v2422 = vpop.xlane.xlu0 %2421
  %v2423 = vsub.f32 %v2369, %v2404
  %v2424 = vsub.f32 %v2374, %v2407
  %v2425 = vsub.f32 %v2379, %v2410
  %v2426 = vsub.f32 %v2384, %v2413
  %v2427 = vsub.f32 %v2389, %v2416
  %v2428 = vsub.f32 %v2394, %v2419
  %v2429 = vsub.f32 %v2399, %v2422
  %v2430 = vmul.f32 %v2423, 1.442695
  %v2431 = vpow.pop %v2430
  %v2432 = vmul.f32 %v2424, 1.442695
  %v2433 = vpow.pop %v2432
  %v2434 = vmul.f32 %v2425, 1.442695
  %v2435 = vpow.pop %v2434
  %v2436 = vmul.f32 %v2426, 1.442695
  %v2437 = vpow.pop %v2436
  %v2438 = vmul.f32 %v2427, 1.442695
  %v2439 = vpow.pop %v2438
  %v2440 = vmul.f32 %v2428, 1.442695
  %v2441 = vpow.pop %v2440
  %v2442 = vmul.f32 %v2429, 1.442695
  %v2443 = vpow.pop %v2442
  %v2444 = vsel %vm377, %v2431, 0.0
  %2445 = vadd.xlane.f32.xlu0 %v2444
  %v2446 = vpop.xlane.xlu0 %2445
  %v2447 = vsel %vm377, %v2433, 0.0
  %2448 = vadd.xlane.f32.xlu0 %v2447
  %v2449 = vpop.xlane.xlu0 %2448
  %v2450 = vsel %vm377, %v2435, 0.0
  %2451 = vadd.xlane.f32.xlu0 %v2450
  %v2452 = vpop.xlane.xlu0 %2451
  %v2453 = vsel %vm377, %v2437, 0.0
  %2454 = vadd.xlane.f32.xlu0 %v2453
  %v2455 = vpop.xlane.xlu0 %2454
  %v2456 = vsel %vm377, %v2439, 0.0
  %2457 = vadd.xlane.f32.xlu0 %v2456
  %v2458 = vpop.xlane.xlu0 %2457
  %v2459 = vsel %vm377, %v2441, 0.0
  %2460 = vadd.xlane.f32.xlu0 %v2459
  %v2461 = vpop.xlane.xlu0 %2460
  %v2462 = vsel %vm541, %v2443, 0.0
  %2463 = vadd.xlane.f32.xlu0 %v2462
  %v2464 = vpop.xlane.xlu0 %2463
  %v2465 = vrcp.pop %v2446
  %v2466 = vmul.f32 %v2431, %v2465
  %v2467 = vrcp.pop %v2449
  %v2468 = vmul.f32 %v2433, %v2467
  %v2469 = vrcp.pop %v2452
  %v2470 = vmul.f32 %v2435, %v2469
  %v2471 = vrcp.pop %v2455
  %v2472 = vmul.f32 %v2437, %v2471
  %v2473 = vrcp.pop %v2458
  %v2474 = vmul.f32 %v2439, %v2473
  %v2475 = vrcp.pop %v2461
  %v2476 = vmul.f32 %v2441, %v2475
  %v2477 = vrcp.pop %v2464
  %v2478 = vmul.f32 %v2443, %v2477
  %v2479 = vmul.f32 %v1988, %v56
  %v2480 = vmul.f32 %v1993, %v56
  %v2481 = vmul.f32 %v1998, %v56
  %v2482 = vmul.f32 %v2003, %v56
  %v2483 = vmul.f32 %v2008, %v56
  %v2484 = vmul.f32 %v2013, %v56
  %v2485 = vmul.f32 %v2018, %v56
  %v2486 = vmul.f32 %v2023, %v56
  %v2488 = vsel %vm377, %v2466, 0
  %v2491 = vsel %vm377, %v2468, 0
  %v2494 = vsel %vm377, %v2470, 0
  %v2497 = vsel %vm377, %v2472, 0
  %v2500 = vsel %vm377, %v2474, 0
  %v2503 = vsel %vm377, %v2476, 0
  %v2506 = vsel %vm377, %v2478, 0
  %2508 = vmatprep.subr.mxu0 0.0
  %2509 = vmatpush1.msra.mxu0 %v2479
  %2510 = vmatprep.subr.mxu0 0.0
  %2511 = vmatpush1.msra.mxu0 %v2480
  %2512 = vmatprep.subr.mxu0 0.0
  %2513 = vmatpush1.msra.mxu0 %v2481
  %2514 = vmatprep.subr.mxu0 0.0
  %2515 = vmatpush1.msra.mxu0 %v2482
  %2516 = vmatprep.subr.mxu0 0.0
  %2517 = vmatpush1.msra.mxu0 %v2483
  %2518 = vmatprep.subr.mxu0 0.0
  %2519 = vmatpush1.msra.mxu0 %v2484
  %2520 = vmatprep.subr.mxu0 0.0
  %2521 = vmatpush1.msra.mxu0 %v2485
  %2522 = vmatprep.subr.mxu0 0.0
  %2523 = vmatpush1.msra.mxu0 %v2486
  %2524 = vmatprep.subr.mxu0 0.0
  %2525 = vmatpush1.msra.mxu0 0.0
  %2526 = vmatprep.subr.mxu0 0.0
  %2527 = vmatpush1.msra.mxu0 0.0
  %2528 = vmatprep.subr.mxu0 0.0
  %2529 = vmatpush1.msra.mxu0 0.0
  %2530 = vmatprep.subr.mxu0 0.0
  %2531 = vmatpush1.msra.mxu0 0.0
  %2532 = vmatprep.subr.mxu0 0.0
  %2533 = vmatpush1.msra.mxu0 0.0
  %2534 = vmatprep.subr.mxu0 0.0
  %2535 = vmatpush1.msra.mxu0 0.0
  %2536 = vmatprep.subr.mxu0 0.0
  %2537 = vmatpush1.msra.mxu0 0.0
  %2538 = vmatprep.subr.mxu0 0.0
  %2539 = vmatpush1.msra.mxu0 0.0
  %2540 = vmatprep.subr.mxu0 0.0
  %2541 = vmatpush1.msra.mxu0 0.0
  %2542 = vmatprep.subr.mxu0 0.0
  %2543 = vmatpush1.msra.mxu0 0.0
  %2544 = vmatprep.subr.mxu0 0.0
  %2545 = vmatpush1.msra.mxu0 0.0
  %2546 = vmatprep.subr.mxu0 0.0
  %2547 = vmatpush1.msra.mxu0 0.0
  %2548 = vmatprep.subr.mxu0 0.0
  %2549 = vmatpush1.msra.mxu0 0.0
  %2550 = vmatprep.subr.mxu0 0.0
  %2551 = vmatpush1.msra.mxu0 0.0
  %2552 = vmatprep.subr.mxu0 0.0
  %2553 = vmatpush1.msra.mxu0 0.0
  %2554 = vmatprep.subr.mxu0 0.0
  %2555 = vmatpush1.msra.mxu0 0.0
  %2556 = vmatprep.subr.mxu0 0.0
  %2557 = vmatpush1.msra.mxu0 0.0
  %2558 = vmatprep.subr.mxu0 0.0
  %2559 = vmatpush1.msra.mxu0 0.0
  %2560 = vmatprep.subr.mxu0 0.0
  %2561 = vmatpush1.msra.mxu0 0.0
  %2562 = vmatprep.subr.mxu0 0.0
  %2563 = vmatpush1.msra.mxu0 0.0
  %2564 = vmatprep.subr.mxu0 0.0
  %2565 = vmatpush1.msra.mxu0 0.0
  %2566 = vmatprep.subr.mxu0 0.0
  %2567 = vmatpush1.msra.mxu0 0.0
  %2568 = vmatprep.subr.mxu0 0.0
  %2569 = vmatpush1.msra.mxu0 0.0
  %2570 = vmatprep.subr.mxu0 0.0
  %2571 = vmatpush1.msra.mxu0 0.0
  %2572 = vmatprep.mubr.f32.mxu0 0.0
  %2573 = vmatmul.mubr.f32.gmra.mrb[0].mxu0 %v2488
  %v2574 = vpop.f32.mrb[0].mxu0
  %v2575 = vadd.f32 0.0, %v2574
  %v2576 = vpop.f32.mrb[0].mxu0
  %2577 = vmatprep.mubr.f32.mxu0 0.0
  %2578 = vmatmul.mubr.f32.gmra.mrb[0].mxu0 %v2491
  %v2579 = vpop.f32.mrb[0].mxu0
  %v2580 = vadd.f32 0.0, %v2579
  %v2581 = vpop.f32.mrb[0].mxu0
  %2582 = vmatprep.mubr.f32.mxu0 0.0
  %2583 = vmatmul.mubr.f32.gmra.mrb[0].mxu0 %v2494
  %v2584 = vpop.f32.mrb[0].mxu0
  %v2585 = vadd.f32 0.0, %v2584
  %v2586 = vpop.f32.mrb[0].mxu0
  %2587 = vmatprep.mubr.f32.mxu0 0.0
  %2588 = vmatmul.mubr.f32.gmra.mrb[0].mxu0 %v2497
  %v2589 = vpop.f32.mrb[0].mxu0
  %v2590 = vadd.f32 0.0, %v2589
  %v2591 = vpop.f32.mrb[0].mxu0
  %2592 = vmatprep.mubr.f32.mxu0 0.0
  %2593 = vmatmul.mubr.f32.gmra.mrb[0].mxu0 %v2500
  %v2594 = vpop.f32.mrb[0].mxu0
  %v2595 = vadd.f32 0.0, %v2594
  %v2596 = vpop.f32.mrb[0].mxu0
  %2597 = vmatprep.mubr.f32.mxu0 0.0
  %2598 = vmatmul.mubr.f32.gmra.mrb[0].mxu0 %v2503
  %v2599 = vpop.f32.mrb[0].mxu0
  %v2600 = vadd.f32 0.0, %v2599
  %v2601 = vpop.f32.mrb[0].mxu0
  %2602 = vmatprep.mubr.f32.mxu0 0.0
  %2603 = vmatmul.mubr.f32.gmra.mrb[0].mxu0 %v2506
  %v2604 = vpop.f32.mrb[0].mxu0
  %v2605 = vadd.f32 0.0, %v2604
  %v2606 = vpop.f32.mrb[0].mxu0
  %2607 = vdwg.mxu0
  %v2609 = vsel %vm377, %v2249, 0
  %v2612 = vsel %vm377, %v2251, 0
  %v2615 = vsel %vm377, %v2253, 0
  %v2618 = vsel %vm377, %v2255, 0
  %v2621 = vsel %vm377, %v2257, 0
  %v2624 = vsel %vm377, %v2259, 0
  %v2627 = vsel %vm377, %v2261, 0
  %2629 = vmatprep.subr.mxu0 0.0
  %2630 = vmatpush1.msra.mxu0 %v2262
  %2631 = vmatprep.subr.mxu0 0.0
  %2632 = vmatpush1.msra.mxu0 %v2263
  %2633 = vmatprep.subr.mxu0 0.0
  %2634 = vmatpush1.msra.mxu0 %v2264
  %2635 = vmatprep.subr.mxu0 0.0
  %2636 = vmatpush1.msra.mxu0 %v2265
  %2637 = vmatprep.subr.mxu0 0.0
  %2638 = vmatpush1.msra.mxu0 %v2266
  %2639 = vmatprep.subr.mxu0 0.0
  %2640 = vmatpush1.msra.mxu0 %v2267
  %2641 = vmatprep.subr.mxu0 0.0
  %2642 = vmatpush1.msra.mxu0 %v2268
  %2643 = vmatprep.subr.mxu0 0.0
  %2644 = vmatpush1.msra.mxu0 %v2269
  %2645 = vmatprep.subr.mxu0 0.0
  %2646 = vmatpush1.msra.mxu0 0.0
  %2647 = vmatprep.subr.mxu0 0.0
  %2648 = vmatpush1.msra.mxu0 0.0
  %2649 = vmatprep.subr.mxu0 0.0
  %2650 = vmatpush1.msra.mxu0 0.0
  %2651 = vmatprep.subr.mxu0 0.0
  %2652 = vmatpush1.msra.mxu0 0.0
  %2653 = vmatprep.subr.mxu0 0.0
  %2654 = vmatpush1.msra.mxu0 0.0
  %2655 = vmatprep.subr.mxu0 0.0
  %2656 = vmatpush1.msra.mxu0 0.0
  %2657 = vmatprep.subr.mxu0 0.0
  %2658 = vmatpush1.msra.mxu0 0.0
  %2659 = vmatprep.subr.mxu0 0.0
  %2660 = vmatpush1.msra.mxu0 0.0
  %2661 = vmatprep.subr.mxu0 0.0
  %2662 = vmatpush1.msra.mxu0 0.0
  %2663 = vmatprep.subr.mxu0 0.0
  %2664 = vmatpush1.msra.mxu0 0.0
  %2665 = vmatprep.subr.mxu0 0.0
  %2666 = vmatpush1.msra.mxu0 0.0
  %2667 = vmatprep.subr.mxu0 0.0
  %2668 = vmatpush1.msra.mxu0 0.0
  %2669 = vmatprep.subr.mxu0 0.0
  %2670 = vmatpush1.msra.mxu0 0.0
  %2671 = vmatprep.subr.mxu0 0.0
  %2672 = vmatpush1.msra.mxu0 0.0
  %2673 = vmatprep.subr.mxu0 0.0
  %2674 = vmatpush1.msra.mxu0 0.0
  %2675 = vmatprep.subr.mxu0 0.0
  %2676 = vmatpush1.msra.mxu0 0.0
  %2677 = vmatprep.subr.mxu0 0.0
  %2678 = vmatpush1.msra.mxu0 0.0
  %2679 = vmatprep.subr.mxu0 0.0
  %2680 = vmatpush1.msra.mxu0 0.0
  %2681 = vmatprep.subr.mxu0 0.0
  %2682 = vmatpush1.msra.mxu0 0.0
  %2683 = vmatprep.subr.mxu0 0.0
  %2684 = vmatpush1.msra.mxu0 0.0
  %2685 = vmatprep.subr.mxu0 0.0
  %2686 = vmatpush1.msra.mxu0 0.0
  %2687 = vmatprep.subr.mxu0 0.0
  %2688 = vmatpush1.msra.mxu0 0.0
  %2689 = vmatprep.subr.mxu0 0.0
  %2690 = vmatpush1.msra.mxu0 0.0
  %2691 = vmatprep.subr.mxu0 0.0
  %2692 = vmatpush1.msra.mxu0 0.0
  %2693 = vmatprep.mubr.f32.mxu0 0.0
  %2694 = vmatmul.mubr.f32.gmra.mrb[0].mxu0 %v2609
  %v2695 = vpop.f32.mrb[0].mxu0
  %v2696 = vadd.f32 %v2575, %v2695
  %v2697 = vpop.f32.mrb[0].mxu0
  %2698 = vmatprep.mubr.f32.mxu0 0.0
  %2699 = vmatmul.mubr.f32.gmra.mrb[0].mxu0 %v2612
  %v2700 = vpop.f32.mrb[0].mxu0
  %v2701 = vadd.f32 %v2580, %v2700
  %v2702 = vpop.f32.mrb[0].mxu0
  %2703 = vmatprep.mubr.f32.mxu0 0.0
  %2704 = vmatmul.mubr.f32.gmra.mrb[0].mxu0 %v2615
  %v2705 = vpop.f32.mrb[0].mxu0
  %v2706 = vadd.f32 %v2585, %v2705
  %v2707 = vpop.f32.mrb[0].mxu0
  %2708 = vmatprep.mubr.f32.mxu0 0.0
  %2709 = vmatmul.mubr.f32.gmra.mrb[0].mxu0 %v2618
  %v2710 = vpop.f32.mrb[0].mxu0
  %v2711 = vadd.f32 %v2590, %v2710
  %v2712 = vpop.f32.mrb[0].mxu0
  %2713 = vmatprep.mubr.f32.mxu0 0.0
  %2714 = vmatmul.mubr.f32.gmra.mrb[0].mxu0 %v2621
  %v2715 = vpop.f32.mrb[0].mxu0
  %v2716 = vadd.f32 %v2595, %v2715
  %v2717 = vpop.f32.mrb[0].mxu0
  %2718 = vmatprep.mubr.f32.mxu0 0.0
  %2719 = vmatmul.mubr.f32.gmra.mrb[0].mxu0 %v2624
  %v2720 = vpop.f32.mrb[0].mxu0
  %v2721 = vadd.f32 %v2600, %v2720
  %v2722 = vpop.f32.mrb[0].mxu0
  %2723 = vmatprep.mubr.f32.mxu0 0.0
  %2724 = vmatmul.mubr.f32.gmra.mrb[0].mxu0 %v2627
  %v2725 = vpop.f32.mrb[0].mxu0
  %v2726 = vadd.f32 %v2605, %v2725
  %v2727 = vpop.f32.mrb[0].mxu0
  %2728 = vdwg.mxu0
  %v2730 = vsel %vm108, %v1762, 0
  %2732 = vmatprep.subr.mxu0 0.0
  %2733 = vmatpush1.msra.mxu0 %v66
  %2734 = vmatprep.subr.mxu0 0.0
  %2735 = vmatpush1.msra.mxu0 %v67
  %2736 = vmatprep.subr.mxu0 0.0
  %2737 = vmatpush1.msra.mxu0 %v68
  %2738 = vmatprep.subr.mxu0 0.0
  %2739 = vmatpush1.msra.mxu0 %v69
  %2740 = vmatprep.subr.mxu0 0.0
  %2741 = vmatpush1.msra.mxu0 0.0
  %2742 = vmatprep.subr.mxu0 0.0
  %2743 = vmatpush1.msra.mxu0 0.0
  %2744 = vmatprep.subr.mxu0 0.0
  %2745 = vmatpush1.msra.mxu0 0.0
  %2746 = vmatprep.subr.mxu0 0.0
  %2747 = vmatpush1.msra.mxu0 0.0
  %2748 = vmatprep.subr.mxu0 0.0
  %2749 = vmatpush1.msra.mxu0 0.0
  %2750 = vmatprep.subr.mxu0 0.0
  %2751 = vmatpush1.msra.mxu0 0.0
  %2752 = vmatprep.subr.mxu0 0.0
  %2753 = vmatpush1.msra.mxu0 0.0
  %2754 = vmatprep.subr.mxu0 0.0
  %2755 = vmatpush1.msra.mxu0 0.0
  %2756 = vmatprep.subr.mxu0 0.0
  %2757 = vmatpush1.msra.mxu0 0.0
  %2758 = vmatprep.subr.mxu0 0.0
  %2759 = vmatpush1.msra.mxu0 0.0
  %2760 = vmatprep.subr.mxu0 0.0
  %2761 = vmatpush1.msra.mxu0 0.0
  %2762 = vmatprep.subr.mxu0 0.0
  %2763 = vmatpush1.msra.mxu0 0.0
  %2764 = vmatprep.subr.mxu0 0.0
  %2765 = vmatpush1.msra.mxu0 0.0
  %2766 = vmatprep.subr.mxu0 0.0
  %2767 = vmatpush1.msra.mxu0 0.0
  %2768 = vmatprep.subr.mxu0 0.0
  %2769 = vmatpush1.msra.mxu0 0.0
  %2770 = vmatprep.subr.mxu0 0.0
  %2771 = vmatpush1.msra.mxu0 0.0
  %2772 = vmatprep.subr.mxu0 0.0
  %2773 = vmatpush1.msra.mxu0 0.0
  %2774 = vmatprep.subr.mxu0 0.0
  %2775 = vmatpush1.msra.mxu0 0.0
  %2776 = vmatprep.subr.mxu0 0.0
  %2777 = vmatpush1.msra.mxu0 0.0
  %2778 = vmatprep.subr.mxu0 0.0
  %2779 = vmatpush1.msra.mxu0 0.0
  %2780 = vmatprep.subr.mxu0 0.0
  %2781 = vmatpush1.msra.mxu0 0.0
  %2782 = vmatprep.subr.mxu0 0.0
  %2783 = vmatpush1.msra.mxu0 0.0
  %2784 = vmatprep.subr.mxu0 0.0
  %2785 = vmatpush1.msra.mxu0 0.0
  %2786 = vmatprep.subr.mxu0 0.0
  %2787 = vmatpush1.msra.mxu0 0.0
  %2788 = vmatprep.subr.mxu0 0.0
  %2789 = vmatpush1.msra.mxu0 0.0
  %2790 = vmatprep.subr.mxu0 0.0
  %2791 = vmatpush1.msra.mxu0 0.0
  %2792 = vmatprep.subr.mxu0 0.0
  %2793 = vmatpush1.msra.mxu0 0.0
  %2794 = vmatprep.subr.mxu0 0.0
  %2795 = vmatpush1.msra.mxu0 0.0
  %2796 = vmatprep.mubr.f32.mxu0 0.0
  %2797 = vmatmul.mubr.f32.gmra.mrb[0].mxu0 %v2730
  %v2798 = vpop.f32.mrb[0].mxu0
  %v2799 = vadd.f32 0.0, %v2798
  %v2800 = vpop.f32.mrb[0].mxu0
  %2801 = vdwg.mxu0
  %2802 = vmatprep.subr.mxu0 0.0
  %2803 = vmatpush1.msra.mxu0 %v71
  %2804 = vmatprep.subr.mxu0 0.0
  %2805 = vmatpush1.msra.mxu0 %v72
  %2806 = vmatprep.subr.mxu0 0.0
  %2807 = vmatpush1.msra.mxu0 %v73
  %2808 = vmatprep.subr.mxu0 0.0
  %2809 = vmatpush1.msra.mxu0 %v74
  %2810 = vmatprep.subr.mxu0 0.0
  %2811 = vmatpush1.msra.mxu0 0.0
  %2812 = vmatprep.subr.mxu0 0.0
  %2813 = vmatpush1.msra.mxu0 0.0
  %2814 = vmatprep.subr.mxu0 0.0
  %2815 = vmatpush1.msra.mxu0 0.0
  %2816 = vmatprep.subr.mxu0 0.0
  %2817 = vmatpush1.msra.mxu0 0.0
  %2818 = vmatprep.subr.mxu0 0.0
  %2819 = vmatpush1.msra.mxu0 0.0
  %2820 = vmatprep.subr.mxu0 0.0
  %2821 = vmatpush1.msra.mxu0 0.0
  %2822 = vmatprep.subr.mxu0 0.0
  %2823 = vmatpush1.msra.mxu0 0.0
  %2824 = vmatprep.subr.mxu0 0.0
  %2825 = vmatpush1.msra.mxu0 0.0
  %2826 = vmatprep.subr.mxu0 0.0
  %2827 = vmatpush1.msra.mxu0 0.0
  %2828 = vmatprep.subr.mxu0 0.0
  %2829 = vmatpush1.msra.mxu0 0.0
  %2830 = vmatprep.subr.mxu0 0.0
  %2831 = vmatpush1.msra.mxu0 0.0
  %2832 = vmatprep.subr.mxu0 0.0
  %2833 = vmatpush1.msra.mxu0 0.0
  %2834 = vmatprep.subr.mxu0 0.0
  %2835 = vmatpush1.msra.mxu0 0.0
  %2836 = vmatprep.subr.mxu0 0.0
  %2837 = vmatpush1.msra.mxu0 0.0
  %2838 = vmatprep.subr.mxu0 0.0
  %2839 = vmatpush1.msra.mxu0 0.0
  %2840 = vmatprep.subr.mxu0 0.0
  %2841 = vmatpush1.msra.mxu0 0.0
  %2842 = vmatprep.subr.mxu0 0.0
  %2843 = vmatpush1.msra.mxu0 0.0
  %2844 = vmatprep.subr.mxu0 0.0
  %2845 = vmatpush1.msra.mxu0 0.0
  %2846 = vmatprep.subr.mxu0 0.0
  %2847 = vmatpush1.msra.mxu0 0.0
  %2848 = vmatprep.subr.mxu0 0.0
  %2849 = vmatpush1.msra.mxu0 0.0
  %2850 = vmatprep.subr.mxu0 0.0
  %2851 = vmatpush1.msra.mxu0 0.0
  %2852 = vmatprep.subr.mxu0 0.0
  %2853 = vmatpush1.msra.mxu0 0.0
  %2854 = vmatprep.subr.mxu0 0.0
  %2855 = vmatpush1.msra.mxu0 0.0
  %2856 = vmatprep.subr.mxu0 0.0
  %2857 = vmatpush1.msra.mxu0 0.0
  %2858 = vmatprep.subr.mxu0 0.0
  %2859 = vmatpush1.msra.mxu0 0.0
  %2860 = vmatprep.subr.mxu0 0.0
  %2861 = vmatpush1.msra.mxu0 0.0
  %2862 = vmatprep.subr.mxu0 0.0
  %2863 = vmatpush1.msra.mxu0 0.0
  %2864 = vmatprep.subr.mxu0 0.0
  %2865 = vmatpush1.msra.mxu0 0.0
  %2866 = vmatprep.mubr.f32.mxu0 0.0
  %2867 = vmatmul.mubr.f32.gmra.mrb[0].mxu0 %v1777
  %v2868 = vpop.f32.mrb[0].mxu0
  %v2869 = vadd.f32 0.0, %v2868
  %v2870 = vpop.f32.mrb[0].mxu0
  %2871 = vmatprep.mubr.f32.mxu0 0.0
  %2872 = vmatmul.mubr.f32.gmra.mrb[0].mxu0 %v1780
  %v2873 = vpop.f32.mrb[0].mxu0
  %v2874 = vadd.f32 0.0, %v2873
  %v2875 = vpop.f32.mrb[0].mxu0
  %2876 = vmatprep.mubr.f32.mxu0 0.0
  %2877 = vmatmul.mubr.f32.gmra.mrb[0].mxu0 %v1783
  %v2878 = vpop.f32.mrb[0].mxu0
  %v2879 = vadd.f32 0.0, %v2878
  %v2880 = vpop.f32.mrb[0].mxu0
  %2881 = vmatprep.mubr.f32.mxu0 0.0
  %2882 = vmatmul.mubr.f32.gmra.mrb[0].mxu0 %v1786
  %v2883 = vpop.f32.mrb[0].mxu0
  %v2884 = vadd.f32 0.0, %v2883
  %v2885 = vpop.f32.mrb[0].mxu0
  %2886 = vmatprep.mubr.f32.mxu0 0.0
  %2887 = vmatmul.mubr.f32.gmra.mrb[0].mxu0 %v1789
  %v2888 = vpop.f32.mrb[0].mxu0
  %v2889 = vadd.f32 0.0, %v2888
  %v2890 = vpop.f32.mrb[0].mxu0
  %2891 = vmatprep.mubr.f32.mxu0 0.0
  %2892 = vmatmul.mubr.f32.gmra.mrb[0].mxu0 %v1792
  %v2893 = vpop.f32.mrb[0].mxu0
  %v2894 = vadd.f32 0.0, %v2893
  %v2895 = vpop.f32.mrb[0].mxu0
  %2896 = vmatprep.mubr.f32.mxu0 0.0
  %2897 = vmatmul.mubr.f32.gmra.mrb[0].mxu0 %v1795
  %v2898 = vpop.f32.mrb[0].mxu0
  %v2899 = vadd.f32 0.0, %v2898
  %v2900 = vpop.f32.mrb[0].mxu0
  %2901 = vdwg.mxu0
  %v2902 = vlaneseq
  %v2903 = vshrl.u32 %v2902, 7
  %v2904 = vsub.s32 0, %v2903
  %v2905 = vrot.slane %v2799, %v2904
  %v2906 = vadd.f32 %v2905, %v2869
  %v2907 = vadd.f32 %v2905, %v2874
  %v2908 = vadd.f32 %v2905, %v2879
  %v2909 = vadd.f32 %v2905, %v2884
  %v2910 = vadd.f32 %v2905, %v2889
  %v2911 = vadd.f32 %v2905, %v2894
  %v2912 = vadd.f32 %v2905, %v2899
  %v2914 = vsel %vm377, %v2696, 0
  %v2917 = vsel %vm377, %v2701, 0
  %v2920 = vsel %vm377, %v2706, 0
  %v2923 = vsel %vm377, %v2711, 0
  %v2926 = vsel %vm377, %v2716, 0
  %v2929 = vsel %vm377, %v2721, 0
  %v2932 = vsel %vm377, %v2726, 0
  %2934 = vmatprep.subr.mxu0 0.0
  %2935 = vmatpush1.msra.mxu0 %v75
  %2936 = vmatprep.subr.mxu0 0.0
  %2937 = vmatpush1.msra.mxu0 %v76
  %2938 = vmatprep.subr.mxu0 0.0
  %2939 = vmatpush1.msra.mxu0 %v77
  %2940 = vmatprep.subr.mxu0 0.0
  %2941 = vmatpush1.msra.mxu0 %v78
  %2942 = vmatprep.subr.mxu0 0.0
  %2943 = vmatpush1.msra.mxu0 %v79
  %2944 = vmatprep.subr.mxu0 0.0
  %2945 = vmatpush1.msra.mxu0 %v80
  %2946 = vmatprep.subr.mxu0 0.0
  %2947 = vmatpush1.msra.mxu0 %v81
  %2948 = vmatprep.subr.mxu0 0.0
  %2949 = vmatpush1.msra.mxu0 %v82
  %2950 = vmatprep.subr.mxu0 0.0
  %2951 = vmatpush1.msra.mxu0 0.0
  %2952 = vmatprep.subr.mxu0 0.0
  %2953 = vmatpush1.msra.mxu0 0.0
  %2954 = vmatprep.subr.mxu0 0.0
  %2955 = vmatpush1.msra.mxu0 0.0
  %2956 = vmatprep.subr.mxu0 0.0
  %2957 = vmatpush1.msra.mxu0 0.0
  %2958 = vmatprep.subr.mxu0 0.0
  %2959 = vmatpush1.msra.mxu0 0.0
  %2960 = vmatprep.subr.mxu0 0.0
  %2961 = vmatpush1.msra.mxu0 0.0
  %2962 = vmatprep.subr.mxu0 0.0
  %2963 = vmatpush1.msra.mxu0 0.0
  %2964 = vmatprep.subr.mxu0 0.0
  %2965 = vmatpush1.msra.mxu0 0.0
  %2966 = vmatprep.subr.mxu0 0.0
  %2967 = vmatpush1.msra.mxu0 0.0
  %2968 = vmatprep.subr.mxu0 0.0
  %2969 = vmatpush1.msra.mxu0 0.0
  %2970 = vmatprep.subr.mxu0 0.0
  %2971 = vmatpush1.msra.mxu0 0.0
  %2972 = vmatprep.subr.mxu0 0.0
  %2973 = vmatpush1.msra.mxu0 0.0
  %2974 = vmatprep.subr.mxu0 0.0
  %2975 = vmatpush1.msra.mxu0 0.0
  %2976 = vmatprep.subr.mxu0 0.0
  %2977 = vmatpush1.msra.mxu0 0.0
  %2978 = vmatprep.subr.mxu0 0.0
  %2979 = vmatpush1.msra.mxu0 0.0
  %2980 = vmatprep.subr.mxu0 0.0
  %2981 = vmatpush1.msra.mxu0 0.0
  %2982 = vmatprep.subr.mxu0 0.0
  %2983 = vmatpush1.msra.mxu0 0.0
  %2984 = vmatprep.subr.mxu0 0.0
  %2985 = vmatpush1.msra.mxu0 0.0
  %2986 = vmatprep.subr.mxu0 0.0
  %2987 = vmatpush1.msra.mxu0 0.0
  %2988 = vmatprep.subr.mxu0 0.0
  %2989 = vmatpush1.msra.mxu0 0.0
  %2990 = vmatprep.subr.mxu0 0.0
  %2991 = vmatpush1.msra.mxu0 0.0
  %2992 = vmatprep.subr.mxu0 0.0
  %2993 = vmatpush1.msra.mxu0 0.0
  %2994 = vmatprep.subr.mxu0 0.0
  %2995 = vmatpush1.msra.mxu0 0.0
  %2996 = vmatprep.subr.mxu0 0.0
  %2997 = vmatpush1.msra.mxu0 0.0
  %2998 = vmatprep.mubr.f32.mxu0 0.0
  %2999 = vmatmul.mubr.f32.gmra.mrb[0].mxu0 %v2914
  %v3000 = vpop.f32.mrb[0].mxu0
  %v3001 = vadd.f32 0.0, %v3000
  %v3002 = vpop.f32.mrb[0].mxu0
  %3003 = vmatprep.mubr.f32.mxu0 0.0
  %3004 = vmatmul.mubr.f32.gmra.mrb[0].mxu0 %v2917
  %v3005 = vpop.f32.mrb[0].mxu0
  %v3006 = vadd.f32 0.0, %v3005
  %v3007 = vpop.f32.mrb[0].mxu0
  %3008 = vmatprep.mubr.f32.mxu0 0.0
  %3009 = vmatmul.mubr.f32.gmra.mrb[0].mxu0 %v2920
  %v3010 = vpop.f32.mrb[0].mxu0
  %v3011 = vadd.f32 0.0, %v3010
  %v3012 = vpop.f32.mrb[0].mxu0
  %3013 = vmatprep.mubr.f32.mxu0 0.0
  %3014 = vmatmul.mubr.f32.gmra.mrb[0].mxu0 %v2923
  %v3015 = vpop.f32.mrb[0].mxu0
  %v3016 = vadd.f32 0.0, %v3015
  %v3017 = vpop.f32.mrb[0].mxu0
  %3018 = vmatprep.mubr.f32.mxu0 0.0
  %3019 = vmatmul.mubr.f32.gmra.mrb[0].mxu0 %v2926
  %v3020 = vpop.f32.mrb[0].mxu0
  %v3021 = vadd.f32 0.0, %v3020
  %v3022 = vpop.f32.mrb[0].mxu0
  %3023 = vmatprep.mubr.f32.mxu0 0.0
  %3024 = vmatmul.mubr.f32.gmra.mrb[0].mxu0 %v2929
  %v3025 = vpop.f32.mrb[0].mxu0
  %v3026 = vadd.f32 0.0, %v3025
  %v3027 = vpop.f32.mrb[0].mxu0
  %3028 = vmatprep.mubr.f32.mxu0 0.0
  %3029 = vmatmul.mubr.f32.gmra.mrb[0].mxu0 %v2932
  %v3030 = vpop.f32.mrb[0].mxu0
  %v3031 = vadd.f32 0.0, %v3030
  %v3032 = vpop.f32.mrb[0].mxu0
  %3033 = vdwg.mxu0
  %v3034 = vadd.f32 %v2906, %v3001
  %v3035 = vadd.f32 %v2907, %v3006
  %v3036 = vadd.f32 %v2908, %v3011
  %v3037 = vadd.f32 %v2909, %v3016
  %v3038 = vadd.f32 %v2910, %v3021
  %v3039 = vadd.f32 %v2911, %v3026
  %v3040 = vadd.f32 %v2912, %v3031
  %v3041 = vadd.f32 %v3034, %v1383
  %v3042 = vadd.f32 %v3035, %v1383
  %v3043 = vadd.f32 %v3036, %v1383
  %v3044 = vadd.f32 %v3037, %v1383
  %v3045 = vadd.f32 %v3038, %v1383
  %v3046 = vadd.f32 %v3039, %v1383
  %v3047 = vadd.f32 %v3040, %v1383
  %v3048 = vsel %vm108, %v3041, 0.0
  %3049 = vadd.xlane.f32.xlu0 %v3048
  %v3050 = vpop.xlane.xlu0 %3049
  %v3051 = vsel %vm108, %v3042, 0.0
  %3052 = vadd.xlane.f32.xlu0 %v3051
  %v3053 = vpop.xlane.xlu0 %3052
  %v3054 = vsel %vm108, %v3043, 0.0
  %3055 = vadd.xlane.f32.xlu0 %v3054
  %v3056 = vpop.xlane.xlu0 %3055
  %v3057 = vsel %vm108, %v3044, 0.0
  %3058 = vadd.xlane.f32.xlu0 %v3057
  %v3059 = vpop.xlane.xlu0 %3058
  %v3060 = vsel %vm108, %v3045, 0.0
  %3061 = vadd.xlane.f32.xlu0 %v3060
  %v3062 = vpop.xlane.xlu0 %3061
  %v3063 = vsel %vm108, %v3046, 0.0
  %3064 = vadd.xlane.f32.xlu0 %v3063
  %v3065 = vpop.xlane.xlu0 %3064
  %v3066 = vsel %vm1409, %v3047, 0.0
  %3067 = vadd.xlane.f32.xlu0 %v3066
  %v3068 = vpop.xlane.xlu0 %3067
  %v3069 = vmul.f32 %v3050, %v1413
  %v3070 = vmul.f32 %v3053, %v1413
  %v3071 = vmul.f32 %v3056, %v1413
  %v3072 = vmul.f32 %v3059, %v1413
  %v3073 = vmul.f32 %v3062, %v1413
  %v3074 = vmul.f32 %v3065, %v1413
  %v3075 = vmul.f32 %v3068, %v1413
  %v3076 = vsub.f32 %v3041, %v3069
  %v3077 = vsub.f32 %v3042, %v3070
  %v3078 = vsub.f32 %v3043, %v3071
  %v3079 = vsub.f32 %v3044, %v3072
  %v3080 = vsub.f32 %v3045, %v3073
  %v3081 = vsub.f32 %v3046, %v3074
  %v3082 = vsub.f32 %v3047, %v3075
  %v3083 = vmul.f32 %v3076, %v3076
  %v3084 = vmul.f32 %v3077, %v3077
  %v3085 = vmul.f32 %v3078, %v3078
  %v3086 = vmul.f32 %v3079, %v3079
  %v3087 = vmul.f32 %v3080, %v3080
  %v3088 = vmul.f32 %v3081, %v3081
  %v3089 = vmul.f32 %v3082, %v3082
  %v3090 = vsel %vm108, %v3083, 0.0
  %3091 = vadd.xlane.f32.xlu0 %v3090
  %v3092 = vpop.xlane.xlu0 %3091
  %v3093 = vsel %vm108, %v3084, 0.0
  %3094 = vadd.xlane.f32.xlu0 %v3093
  %v3095 = vpop.xlane.xlu0 %3094
  %v3096 = vsel %vm108, %v3085, 0.0
  %3097 = vadd.xlane.f32.xlu0 %v3096
  %v3098 = vpop.xlane.xlu0 %3097
  %v3099 = vsel %vm108, %v3086, 0.0
  %3100 = vadd.xlane.f32.xlu0 %v3099
  %v3101 = vpop.xlane.xlu0 %3100
  %v3102 = vsel %vm108, %v3087, 0.0
  %3103 = vadd.xlane.f32.xlu0 %v3102
  %v3104 = vpop.xlane.xlu0 %3103
  %v3105 = vsel %vm108, %v3088, 0.0
  %3106 = vadd.xlane.f32.xlu0 %v3105
  %v3107 = vpop.xlane.xlu0 %3106
  %v3108 = vsel %vm1409, %v3089, 0.0
  %3109 = vadd.xlane.f32.xlu0 %v3108
  %v3110 = vpop.xlane.xlu0 %3109
  %v3111 = vmul.f32 %v3092, %v1413
  %v3112 = vmul.f32 %v3095, %v1413
  %v3113 = vmul.f32 %v3098, %v1413
  %v3114 = vmul.f32 %v3101, %v1413
  %v3115 = vmul.f32 %v3104, %v1413
  %v3116 = vmul.f32 %v3107, %v1413
  %v3117 = vmul.f32 %v3110, %v1413
  %v3118 = vadd.f32 %v3111, 1e-05
  %v3119 = vadd.f32 %v3112, 1e-05
  %v3120 = vadd.f32 %v3113, 1e-05
  %v3121 = vadd.f32 %v3114, 1e-05
  %v3122 = vadd.f32 %v3115, 1e-05
  %v3123 = vadd.f32 %v3116, 1e-05
  %v3124 = vadd.f32 %v3117, 1e-05
  %v3125 = vrsqrt.pop %v3118
  %v3126 = vrsqrt.pop %v3119
  %v3127 = vrsqrt.pop %v3120
  %v3128 = vrsqrt.pop %v3121
  %v3129 = vrsqrt.pop %v3122
  %v3130 = vrsqrt.pop %v3123
  %v3131 = vrsqrt.pop %v3124
  %v3132 = vmul.f32 %v3076, %v3125
  %v3133 = vmul.f32 %v3077, %v3126
  %v3134 = vmul.f32 %v3078, %v3127
  %v3135 = vmul.f32 %v3079, %v3128
  %v3136 = vmul.f32 %v3080, %v3129
  %v3137 = vmul.f32 %v3081, %v3130
  %v3138 = vmul.f32 %v3082, %v3131
  %v3139 = vmul.f32 %v3132, %v1487
  %v3140 = vmul.f32 %v3133, %v1487
  %v3141 = vmul.f32 %v3134, %v1487
  %v3142 = vmul.f32 %v3135, %v1487
  %v3143 = vmul.f32 %v3136, %v1487
  %v3144 = vmul.f32 %v3137, %v1487
  %v3145 = vmul.f32 %v3138, %v1487
  %v3146 = vadd.f32 %v3139, %v1498
  %v3147 = vadd.f32 %v3140, %v1498
  %v3148 = vadd.f32 %v3141, %v1498
  %v3149 = vadd.f32 %v3142, %v1498
  %v3150 = vadd.f32 %v3143, %v1498
  %v3151 = vadd.f32 %v3144, %v1498
  %v3152 = vadd.f32 %v3145, %v1498
  %v3153 = vmax.f32 %v3146, 0.0
  %v3154 = vmax.f32 %v3147, 0.0
  %v3155 = vmax.f32 %v3148, 0.0
  %v3156 = vmax.f32 %v3149, 0.0
  %v3157 = vmax.f32 %v3150, 0.0
  %v3158 = vmax.f32 %v3151, 0.0
  %v3159 = vmax.f32 %v3152, 0.0
  %v3160 = vmul.f32 %v1754, %v1516
  %v3161 = vmul.f32 %v1755, %v1516
  %v3162 = vmul.f32 %v1756, %v1516
  %v3163 = vmul.f32 %v1757, %v1516
  %v3164 = vmul.f32 %v1758, %v1516
  %v3165 = vmul.f32 %v1759, %v1516
  %v3166 = vmul.f32 %v1760, %v1516
  %v3167 = vmul.f32 %v3153, %v1527
  %v3168 = vmul.f32 %v3154, %v1527
  %v3169 = vmul.f32 %v3155, %v1527
  %v3170 = vmul.f32 %v3156, %v1527
  %v3171 = vmul.f32 %v3157, %v1527
  %v3172 = vmul.f32 %v3158, %v1527
  %v3173 = vmul.f32 %v3159, %v1527
  %v3174 = vadd.f32 %v3160, %v3167
  %v3175 = vadd.f32 %v3161, %v3168
  %v3176 = vadd.f32 %v3162, %v3169
  %v3177 = vadd.f32 %v3163, %v3170
  %v3178 = vadd.f32 %v3164, %v3171
  %v3179 = vadd.f32 %v3165, %v3172
  %v3180 = vadd.f32 %v3166, %v3173
  %3181 = vmatprep.subr.mxu0 0.0
  %3182 = vmatpush1.xpose.msra.mxu0 %v2914
  %3183 = vmatprep.subr.mxu0 0.0
  %3184 = vmatpush1.xpose.msra.mxu0 %v2917
  %3185 = vmatprep.subr.mxu0 0.0
  %3186 = vmatpush1.xpose.msra.mxu0 %v2920
  %3187 = vmatprep.subr.mxu0 0.0
  %3188 = vmatpush1.xpose.msra.mxu0 %v2923
  %3189 = vmatprep.subr.mxu0 0.0
  %3190 = vmatpush1.xpose.msra.mxu0 %v2926
  %3191 = vmatprep.subr.mxu0 0.0
  %3192 = vmatpush1.xpose.msra.mxu0 %v2929
  %3193 = vmatprep.subr.mxu0 0.0
  %3194 = vmatpush1.xpose.msra.mxu0 %v2932
  %3195 = vmatprep.subr.mxu0 0.0
  %3196 = vmatpush1.xpose.msra.mxu0 0.0
  %3197 = vmatprep.subr.mxu0 0.0
  %3198 = vmatpush1.xpose.msra.mxu0 0.0
  %3199 = vmatprep.subr.mxu0 0.0
  %3200 = vmatpush1.xpose.msra.mxu0 0.0
  %3201 = vmatprep.subr.mxu0 0.0
  %3202 = vmatpush1.xpose.msra.mxu0 0.0
  %3203 = vmatprep.subr.mxu0 0.0
  %3204 = vmatpush1.xpose.msra.mxu0 0.0
  %3205 = vmatprep.subr.mxu0 0.0
  %3206 = vmatpush1.xpose.msra.mxu0 0.0
  %3207 = vmatprep.subr.mxu0 0.0
  %3208 = vmatpush1.xpose.msra.mxu0 0.0
  %3209 = vmatprep.subr.mxu0 0.0
  %3210 = vmatpush1.xpose.msra.mxu0 0.0
  %3211 = vmatprep.subr.mxu0 0.0
  %3212 = vmatpush1.xpose.msra.mxu0 0.0
  %3213 = vmatprep.subr.mxu0 0.0
  %3214 = vmatpush1.xpose.msra.mxu0 0.0
  %3215 = vmatprep.subr.mxu0 0.0
  %3216 = vmatpush1.xpose.msra.mxu0 0.0
  %3217 = vmatprep.subr.mxu0 0.0
  %3218 = vmatpush1.xpose.msra.mxu0 0.0
  %3219 = vmatprep.subr.mxu0 0.0
  %3220 = vmatpush1.xpose.msra.mxu0 0.0
  %3221 = vmatprep.subr.mxu0 0.0
  %3222 = vmatpush1.xpose.msra.mxu0 0.0
  %3223 = vmatprep.subr.mxu0 0.0
  %3224 = vmatpush1.xpose.msra.mxu0 0.0
  %3225 = vmatprep.subr.mxu0 0.0
  %3226 = vmatpush1.xpose.msra.mxu0 0.0
  %3227 = vmatprep.subr.mxu0 0.0
  %3228 = vmatpush1.xpose.msra.mxu0 0.0
  %3229 = vmatprep.subr.mxu0 0.0
  %3230 = vmatpush1.xpose.msra.mxu0 0.0
  %3231 = vmatprep.subr.mxu0 0.0
  %3232 = vmatpush1.xpose.msra.mxu0 0.0
  %3233 = vmatprep.subr.mxu0 0.0
  %3234 = vmatpush1.xpose.msra.mxu0 0.0
  %3235 = vmatprep.subr.mxu0 0.0
  %3236 = vmatpush1.xpose.msra.mxu0 0.0
  %3237 = vmatprep.subr.mxu0 0.0
  %3238 = vmatpush1.xpose.msra.mxu0 0.0
  %3239 = vmatprep.subr.mxu0 0.0
  %3240 = vmatpush1.xpose.msra.mxu0 0.0
  %3241 = vmatprep.subr.mxu0 0.0
  %3242 = vmatpush1.xpose.msra.mxu0 0.0
  %3243 = vmatprep.subr.mxu0 0.0
  %3244 = vmatpush1.xpose.msra.mxu0 0.0
  %3245 = vmatprep.mubr.f32.mxu0 0.0
  %3246 = vmatmul.mubr.f32.gmra.mrb[0].mxu0 %v1544
  %v3247 = vpop.f32.mrb[0].mxu0
  %v3248 = vadd.f32 0.0, %v3247
  %v3249 = vpop.f32.mrb[0].mxu0
  %3250 = vdwg.mxu0
  %v3252 = vsel %vm108, %v3174, 0
  %v3255 = vsel %vm108, %v3175, 0
  %v3258 = vsel %vm108, %v3176, 0
  %v3261 = vsel %vm108, %v3177, 0
  %v3264 = vsel %vm108, %v3178, 0
  %v3267 = vsel %vm108, %v3179, 0
  %v3270 = vsel %vm108, %v3180, 0
  %3272 = vmatprep.subr.mxu0 0.0
  %3273 = vmatpush1.xpose.msra.mxu0 %v3252
  %3274 = vmatprep.subr.mxu0 0.0
  %3275 = vmatpush1.xpose.msra.mxu0 %v3255
  %3276 = vmatprep.subr.mxu0 0.0
  %3277 = vmatpush1.xpose.msra.mxu0 %v3258
  %3278 = vmatprep.subr.mxu0 0.0
  %3279 = vmatpush1.xpose.msra.mxu0 %v3261
  %3280 = vmatprep.subr.mxu0 0.0
  %3281 = vmatpush1.xpose.msra.mxu0 %v3264
  %3282 = vmatprep.subr.mxu0 0.0
  %3283 = vmatpush1.xpose.msra.mxu0 %v3267
  %3284 = vmatprep.subr.mxu0 0.0
  %3285 = vmatpush1.xpose.msra.mxu0 %v3270
  %3286 = vmatprep.subr.mxu0 0.0
  %3287 = vmatpush1.xpose.msra.mxu0 0.0
  %3288 = vmatprep.subr.mxu0 0.0
  %3289 = vmatpush1.xpose.msra.mxu0 0.0
  %3290 = vmatprep.subr.mxu0 0.0
  %3291 = vmatpush1.xpose.msra.mxu0 0.0
  %3292 = vmatprep.subr.mxu0 0.0
  %3293 = vmatpush1.xpose.msra.mxu0 0.0
  %3294 = vmatprep.subr.mxu0 0.0
  %3295 = vmatpush1.xpose.msra.mxu0 0.0
  %3296 = vmatprep.subr.mxu0 0.0
  %3297 = vmatpush1.xpose.msra.mxu0 0.0
  %3298 = vmatprep.subr.mxu0 0.0
  %3299 = vmatpush1.xpose.msra.mxu0 0.0
  %3300 = vmatprep.subr.mxu0 0.0
  %3301 = vmatpush1.xpose.msra.mxu0 0.0
  %3302 = vmatprep.subr.mxu0 0.0
  %3303 = vmatpush1.xpose.msra.mxu0 0.0
  %3304 = vmatprep.subr.mxu0 0.0
  %3305 = vmatpush1.xpose.msra.mxu0 0.0
  %3306 = vmatprep.subr.mxu0 0.0
  %3307 = vmatpush1.xpose.msra.mxu0 0.0
  %3308 = vmatprep.subr.mxu0 0.0
  %3309 = vmatpush1.xpose.msra.mxu0 0.0
  %3310 = vmatprep.subr.mxu0 0.0
  %3311 = vmatpush1.xpose.msra.mxu0 0.0
  %3312 = vmatprep.subr.mxu0 0.0
  %3313 = vmatpush1.xpose.msra.mxu0 0.0
  %3314 = vmatprep.subr.mxu0 0.0
  %3315 = vmatpush1.xpose.msra.mxu0 0.0
  %3316 = vmatprep.subr.mxu0 0.0
  %3317 = vmatpush1.xpose.msra.mxu0 0.0
  %3318 = vmatprep.subr.mxu0 0.0
  %3319 = vmatpush1.xpose.msra.mxu0 0.0
  %3320 = vmatprep.subr.mxu0 0.0
  %3321 = vmatpush1.xpose.msra.mxu0 0.0
  %3322 = vmatprep.subr.mxu0 0.0
  %3323 = vmatpush1.xpose.msra.mxu0 0.0
  %3324 = vmatprep.subr.mxu0 0.0
  %3325 = vmatpush1.xpose.msra.mxu0 0.0
  %3326 = vmatprep.subr.mxu0 0.0
  %3327 = vmatpush1.xpose.msra.mxu0 0.0
  %3328 = vmatprep.subr.mxu0 0.0
  %3329 = vmatpush1.xpose.msra.mxu0 0.0
  %3330 = vmatprep.subr.mxu0 0.0
  %3331 = vmatpush1.xpose.msra.mxu0 0.0
  %3332 = vmatprep.subr.mxu0 0.0
  %3333 = vmatpush1.xpose.msra.mxu0 0.0
  %3334 = vmatprep.subr.mxu0 0.0
  %3335 = vmatpush1.xpose.msra.mxu0 0.0
  %3336 = vmatprep.mubr.f32.mxu0 0.0
  %3337 = vmatmul.mubr.f32.gmra.mrb[0].mxu0 %v1617
  %v3338 = vpop.f32.mrb[0].mxu0
  %v3339 = vadd.f32 %v3248, %v3338
  %v3340 = vpop.f32.mrb[0].mxu0
  %3341 = vdwg.mxu0
  %v3342 = vmul.f32 %v1762, %v1726
  %v3343 = vsel %vm1729, %v3342, 0.0
  %3344 = vadd.xlane.f32.xlu0 %v3343
  %v3345 = vpop.xlane.xlu0 %3344
  %v3346 = vadd.f32 %v3339, %v3345
  %s3347 = scalar_lea.vmem %s4, 1
  %v3348 = vld [vmem:[%s3347] sm:$0x1]
  %v3349 = vsub.f32 1.0, %v3348
  %v3350 = vmul.f32 %v3349, 10000000.0
  %v3351 = vsub.f32 %v3346, %v3350
  %v3352 = vsel %vm1738, %v3351, -inf
  %3353 = vmax.xlane.f32.xlu0 %v3352
  %v3354 = vpop.xlane.xlu0 %3353
  %v3355 = vsub.f32 %v3351, %v3354
  %v3356 = vmul.f32 %v3355, 1.442695
  %v3357 = vpow.pop %v3356
  %v3358 = vsel %vm1738, %v3357, 0.0
  %3359 = vadd.xlane.f32.xlu0 %v3358
  %v3360 = vpop.xlane.xlu0 %3359
  %v3361 = vlog2.pop %v3360
  %v3362 = vmul.f32 %v3361, 0.6931472
  %v3363 = vadd.f32 %v3354, %v3362
  %v3364 = vsub.f32 %v3351, %v3363
  %s3365 = scalar_lea.vmem %s10, 1
  %3366 = vst.msk [vmem:[%s3365] sm:$0x1] %vm1738, %v3364
  // Predicated region
  $region42: #{vector_decoder_forward.2} parent=0 // pred_check
    _
  $region43: #{vector_decoder_forward.2} parent=0 // pred_check_branch
    %3368 = sbr.rel (0) target = $region45
  $region44: #{vector_decoder_forward.2} parent=0 // pred_region
    _
  $region45: #{vector_decoder_forward.2} parent=0 // pred_fallthru
    _
  // Predicated region
  $region46: #{vector_decoder_forward.2} parent=0 // pred_check
    _
  $region47: #{vector_decoder_forward.2} parent=0 // pred_check_branch
    %3370 = sbr.rel (0) target = $region49
  $region48: #{vector_decoder_forward.2} parent=0 // pred_region
    _
  $region49: #{vector_decoder_forward.2} parent=0 // pred_fallthru
    _

// kernel: vector_decoder_forward.3
$region0: #{vector_decoder_forward.3}
  #allocation0 [shape = 'u32[]', space=smem, size = 0x4, offset = 0x4, fixed_abs, tag = 'smem constant byte address 0x4 - core index']
  #allocation1 [shape = 'u32[144,128]{1,0:T(1,128)}', space=vmem, size = 0x12000, scoped, tag = 'internal scratch']
  %s0 = inlined_call_operand.vmem [shape: f32[2,55,32], index: 0, kind: input, shape index: {}]
  %s1 = inlined_call_operand.vmem [shape: f32[2,64,32], index: 1, kind: input, shape index: {}]
  %s2 = inlined_call_operand.vmem [shape: f32[2,1,32], index: 2, kind: input, shape index: {}]
  %s3 = inlined_call_operand.vmem [shape: f32[64,8], index: 3, kind: input, shape index: {}]
  %s4 = inlined_call_operand.vmem [shape: f32[2,1,64], index: 4, kind: input, shape index: {}]
  %s5 = inlined_call_operand.vmem [shape: f32[2,1,55], index: 5, kind: input, shape index: {}]
  %s6 = inlined_call_operand.vmem [shape: f32[8,32], index: 6, kind: input, shape index: {}]
  %s7 = inlined_call_operand.vmem [shape: f32[4,32,64], index: 7, kind: input, shape index: {}]
  %s8 = inlined_call_operand.vmem [shape: f32[3,32,32], index: 8, kind: input, shape index: {}]
  %s9 = inlined_call_operand.vmem [shape: f32[2,64,32], index: 9, kind: input, shape index: {}]
  %s10 = inlined_call_operand.vmem [shape: f32[6,64], index: 10, kind: input, shape index: {}]
  %s11 = inlined_call_operand.vmem [shape: f32[9,32], index: 11, kind: input, shape index: {}]
  %s12 = inlined_call_operand.hbm [shape: f32[2,1,64], index: 12, kind: output, shape index: {}]
  %s13 = sld [smem:[#allocation0]]
  $region58: #{vector_decoder_forward.3} parent=0
    _
  %s15 = ssub.s32 1, %s13
  %s16 = scalar_select 0, %s15, %s13
  $region1: #{vector_decoder_forward.3} parent=0
    #allocation2 [shape = 'u8[1024]{0}', space=vmem, size = 0x400, scoped, tag = 'output window, operand 0, single buffered']
    #allocation3 [shape = 's32[1]{0}', space=sflag, size = 0x4, scoped, tag = 'scoped memory for vector_decoder_forward.3']
    %17 = vsyncpa [#allocation3], 0
    // Predicated region
    $region2: #{vector_decoder_forward.3} parent=1 // pred_check
      _
    $region3: #{vector_decoder_forward.3} parent=1 // pred_check_branch
      %19 = sbr.rel (0) target = $region5
    $region4: #{vector_decoder_forward.3} parent=1 // pred_region
      _
    $region5: #{vector_decoder_forward.3} parent=1 // pred_fallthru
      _
    // Predicated region
    $region6: #{vector_decoder_forward.3} parent=1 // pred_check
      _
    $region7: #{vector_decoder_forward.3} parent=1 // pred_check_branch
      %21 = sbr.rel (0) target = $region9
    $region8: #{vector_decoder_forward.3} parent=1 // pred_region
      _
    $region9: #{vector_decoder_forward.3} parent=1 // pred_fallthru
      _
    // Predicated region
    $region10: #{vector_decoder_forward.3} parent=1 // pred_check
      _
    $region11: #{vector_decoder_forward.3} parent=1 // pred_check_branch
      %23 = sbr.rel (0) target = $region13
    $region12: #{vector_decoder_forward.3} parent=1 // pred_region
      _
    $region13: #{vector_decoder_forward.3} parent=1 // pred_fallthru
      _
    // Predicated region
    $region14: #{vector_decoder_forward.3} parent=1 // pred_check
      _
    $region15: #{vector_decoder_forward.3} parent=1 // pred_check_branch
      %25 = sbr.rel (0) target = $region17
    $region16: #{vector_decoder_forward.3} parent=1 // pred_region
      _
    $region17: #{vector_decoder_forward.3} parent=1 // pred_fallthru
      _
    // Predicated region
    $region18: #{vector_decoder_forward.3} parent=1 // pred_check
      _
    $region19: #{vector_decoder_forward.3} parent=1 // pred_check_branch
      %27 = sbr.rel (0) target = $region21
    $region20: #{vector_decoder_forward.3} parent=1 // pred_region
      _
    $region21: #{vector_decoder_forward.3} parent=1 // pred_fallthru
      _
    // Predicated region
    $region22: #{vector_decoder_forward.3} parent=1 // pred_check
      _
    $region23: #{vector_decoder_forward.3} parent=1 // pred_check_branch
      %29 = sbr.rel (0) target = $region25
    $region24: #{vector_decoder_forward.3} parent=1 // pred_region
      _
    $region25: #{vector_decoder_forward.3} parent=1 // pred_fallthru
      _
    // Predicated region
    $region26: #{vector_decoder_forward.3} parent=1 // pred_check
      _
    $region27: #{vector_decoder_forward.3} parent=1 // pred_check_branch
      %31 = sbr.rel (0) target = $region29
    $region28: #{vector_decoder_forward.3} parent=1 // pred_region
      _
    $region29: #{vector_decoder_forward.3} parent=1 // pred_fallthru
      _
    // Predicated region
    $region30: #{vector_decoder_forward.3} parent=1 // pred_check
      _
    $region31: #{vector_decoder_forward.3} parent=1 // pred_check_branch
      %33 = sbr.rel (0) target = $region33
    $region32: #{vector_decoder_forward.3} parent=1 // pred_region
      _
    $region33: #{vector_decoder_forward.3} parent=1 // pred_fallthru
      _
    // Predicated region
    $region34: #{vector_decoder_forward.3} parent=1 // pred_check
      _
    $region35: #{vector_decoder_forward.3} parent=1 // pred_check_branch
      %35 = sbr.rel (0) target = $region37
    $region36: #{vector_decoder_forward.3} parent=1 // pred_region
      _
    $region37: #{vector_decoder_forward.3} parent=1 // pred_fallthru
      _
    // Predicated region
    $region38: #{vector_decoder_forward.3} parent=1 // pred_check
      _
    $region39: #{vector_decoder_forward.3} parent=1 // pred_check_branch
      %37 = sbr.rel (0) target = $region41
    $region40: #{vector_decoder_forward.3} parent=1 // pred_region
      _
    $region41: #{vector_decoder_forward.3} parent=1 // pred_fallthru
      _
    // Predicated region
    $region42: #{vector_decoder_forward.3} parent=1 // pred_check
      _
    $region43: #{vector_decoder_forward.3} parent=1 // pred_check_branch
      %39 = sbr.rel (0) target = $region45
    $region44: #{vector_decoder_forward.3} parent=1 // pred_region
      _
    $region45: #{vector_decoder_forward.3} parent=1 // pred_fallthru
      _
    // Predicated region
    $region46: #{vector_decoder_forward.3} parent=1 // pred_check
      _
    $region47: #{vector_decoder_forward.3} parent=1 // pred_check_branch
      %41 = sbr.rel (0) target = $region49
    $region48: #{vector_decoder_forward.3} parent=1 // pred_region
      _
    $region49: #{vector_decoder_forward.3} parent=1 // pred_fallthru
      _
    %v42 = vlaneseq
    %v43 = vand.u32 %v42, 127
    %vm44 = vcmp.ge.s32.totalorder %v43, 0
    %vm45 = vcmp.lt.s32.totalorder %v43, 16
    %vm46 = vmand %vm44, %vm45
    %v47 = vsel %vm46, 1, 0
    %v48 = vcvt.s32.f32 %v47
    %vm49 = vcmp.ge.s32.totalorder %v43, 16
    %vm50 = vcmp.lt.s32.totalorder %v43, 32
    %vm51 = vmand %vm49, %vm50
    %v52 = vsel %vm51, 1, 0
    %v53 = vcvt.s32.f32 %v52
    %vm54 = vcmp.ge.s32.totalorder %v43, 32
    %vm55 = vcmp.lt.s32.totalorder %v43, 48
    %vm56 = vmand %vm54, %vm55
    %v57 = vsel %vm56, 1, 0
    %v58 = vcvt.s32.f32 %v57
    %vm59 = vcmp.ge.s32.totalorder %v43, 48
    %vm60 = vcmp.lt.s32.totalorder %v43, 64
    %vm61 = vmand %vm59, %vm60
    %v62 = vsel %vm61, 1, 0
    %v63 = vcvt.s32.f32 %v62
    %v64 = vld [vmem:[%s8] sm:$0xff]
    %v65 = vld [vmem:[%s8 + $0x8] sm:$0xff]
    %v66 = vld [vmem:[%s8 + $0x10] sm:$0xff]
    %v67 = vld [vmem:[%s8 + $0x18] sm:$0xff]
    %s68 = scalar_lea.vmem %s8, 32
    %v69 = vld [vmem:[%s68] sm:$0xff]
    %v70 = vld [vmem:[%s68 + $0x8] sm:$0xff]
    %v71 = vld [vmem:[%s68 + $0x10] sm:$0xff]
    %v72 = vld [vmem:[%s68 + $0x18] sm:$0xff]
    %s73 = scalar_lea.vmem %s8, 64
    %v74 = vld [vmem:[%s73] sm:$0xff]
    %v75 = vld [vmem:[%s73 + $0x8] sm:$0xff]
    %v76 = vld [vmem:[%s73 + $0x10] sm:$0xff]
    %v77 = vld [vmem:[%s73 + $0x18] sm:$0xff]
    %v78 = vld [vmem:[%s9] sm:$0xff]
    %v79 = vld [vmem:[%s9 + $0x8] sm:$0xff]
    %v80 = vld [vmem:[%s9 + $0x10] sm:$0xff]
    %v81 = vld [vmem:[%s9 + $0x18] sm:$0xff]
    %v82 = vld [vmem:[%s9 + $0x20] sm:$0xff]
    %v83 = vld [vmem:[%s9 + $0x28] sm:$0xff]
    %v84 = vld [vmem:[%s9 + $0x30] sm:$0xff]
    %v85 = vld [vmem:[%s9 + $0x38] sm:$0xff]
    %s86 = scalar_lea.vmem %s9, 64
    %v87 = vld [vmem:[%s86] sm:$0xff]
    %v88 = vld [vmem:[%s86 + $0x8] sm:$0xff]
    %v89 = vld [vmem:[%s86 + $0x10] sm:$0xff]
    %v90 = vld [vmem:[%s86 + $0x18] sm:$0xff]
    %v91 = vld [vmem:[%s86 + $0x20] sm:$0xff]
    %v92 = vld [vmem:[%s86 + $0x28] sm:$0xff]
    %v93 = vld [vmem:[%s86 + $0x30] sm:$0xff]
    %v94 = vld [vmem:[%s86 + $0x38] sm:$0xff]
    %v95 = vld [vmem:[%s10] sm:$0x3f]
    %v96 = vld [vmem:[%s11] sm:$0xff]
    %v97 = vld [vmem:[%s11 + $0x8] sm:$0x1]
    %v98 = vld [vmem:[%s3] sm:$0xff]
    %v99 = vld [vmem:[%s3 + $0x8] sm:$0xff]
    %v100 = vld [vmem:[%s3 + $0x10] sm:$0xff]
    %v101 = vld [vmem:[%s3 + $0x18] sm:$0xff]
    %v102 = vld [vmem:[%s3 + $0x20] sm:$0xff]
    %v103 = vld [vmem:[%s3 + $0x28] sm:$0xff]
    %v104 = vld [vmem:[%s3 + $0x30] sm:$0xff]
    %v105 = vld [vmem:[%s3 + $0x38] sm:$0xff]
    %v106 = vld [vmem:[%s6] sm:$0xff]
    %vm107 = vcmask 64512
    %v109 = vsel %vm107, %v98, 0
    %v112 = vsel %vm107, %v99, 0
    %v115 = vsel %vm107, %v100, 0
    %v118 = vsel %vm107, %v101, 0
    %v121 = vsel %vm107, %v102, 0
    %v124 = vsel %vm107, %v103, 0
    %v127 = vsel %vm107, %v104, 0
    %v130 = vsel %vm107, %v105, 0
    %132 = vmatprep.subr.mxu0 0.0
    %133 = vmatpush1.msra.mxu0 %v106
    %134 = vmatprep.subr.mxu0 0.0
    %135 = vmatpush1.msra.mxu0 0.0
    %136 = vmatprep.subr.mxu0 0.0
    %137 = vmatpush1.msra.mxu0 0.0
    %138 = vmatprep.subr.mxu0 0.0
    %139 = vmatpush1.msra.mxu0 0.0
    %140 = vmatprep.subr.mxu0 0.0
    %141 = vmatpush1.msra.mxu0 0.0
    %142 = vmatprep.subr.mxu0 0.0
    %143 = vmatpush1.msra.mxu0 0.0
    %144 = vmatprep.subr.mxu0 0.0
    %145 = vmatpush1.msra.mxu0 0.0
    %146 = vmatprep.subr.mxu0 0.0
    %147 = vmatpush1.msra.mxu0 0.0
    %148 = vmatprep.subr.mxu0 0.0
    %149 = vmatpush1.msra.mxu0 0.0
    %150 = vmatprep.subr.mxu0 0.0
    %151 = vmatpush1.msra.mxu0 0.0
    %152 = vmatprep.subr.mxu0 0.0
    %153 = vmatpush1.msra.mxu0 0.0
    %154 = vmatprep.subr.mxu0 0.0
    %155 = vmatpush1.msra.mxu0 0.0
    %156 = vmatprep.subr.mxu0 0.0
    %157 = vmatpush1.msra.mxu0 0.0
    %158 = vmatprep.subr.mxu0 0.0
    %159 = vmatpush1.msra.mxu0 0.0
    %160 = vmatprep.subr.mxu0 0.0
    %161 = vmatpush1.msra.mxu0 0.0
    %162 = vmatprep.subr.mxu0 0.0
    %163 = vmatpush1.msra.mxu0 0.0
    %164 = vmatprep.subr.mxu0 0.0
    %165 = vmatpush1.msra.mxu0 0.0
    %166 = vmatprep.subr.mxu0 0.0
    %167 = vmatpush1.msra.mxu0 0.0
    %168 = vmatprep.subr.mxu0 0.0
    %169 = vmatpush1.msra.mxu0 0.0
    %170 = vmatprep.subr.mxu0 0.0
    %171 = vmatpush1.msra.mxu0 0.0
    %172 = vmatprep.subr.mxu0 0.0
    %173 = vmatpush1.msra.mxu0 0.0
    %174 = vmatprep.subr.mxu0 0.0
    %175 = vmatpush1.msra.mxu0 0.0
    %176 = vmatprep.subr.mxu0 0.0
    %177 = vmatpush1.msra.mxu0 0.0
    %178 = vmatprep.subr.mxu0 0.0
    %179 = vmatpush1.msra.mxu0 0.0
    %180 = vmatprep.subr.mxu0 0.0
    %181 = vmatpush1.msra.mxu0 0.0
    %182 = vmatprep.subr.mxu0 0.0
    %183 = vmatpush1.msra.mxu0 0.0
    %184 = vmatprep.subr.mxu0 0.0
    %185 = vmatpush1.msra.mxu0 0.0
    %186 = vmatprep.subr.mxu0 0.0
    %187 = vmatpush1.msra.mxu0 0.0
    %188 = vmatprep.subr.mxu0 0.0
    %189 = vmatpush1.msra.mxu0 0.0
    %190 = vmatprep.subr.mxu0 0.0
    %191 = vmatpush1.msra.mxu0 0.0
    %192 = vmatprep.subr.mxu0 0.0
    %193 = vmatpush1.msra.mxu0 0.0
    %194 = vmatprep.subr.mxu0 0.0
    %195 = vmatpush1.msra.mxu0 0.0
    %196 = vmatprep.mubr.f32.mxu0 0.0
    %197 = vmatmul.mubr.f32.gmra.mrb[0].mxu0 %v109
    %v198 = vpop.f32.mrb[0].mxu0
    %v199 = vadd.f32 0.0, %v198
    %v200 = vpop.f32.mrb[0].mxu0
    %201 = vmatprep.mubr.f32.mxu0 0.0
    %202 = vmatmul.mubr.f32.gmra.mrb[0].mxu0 %v112
    %v203 = vpop.f32.mrb[0].mxu0
    %v204 = vadd.f32 0.0, %v203
    %v205 = vpop.f32.mrb[0].mxu0
    %206 = vmatprep.mubr.f32.mxu0 0.0
    %207 = vmatmul.mubr.f32.gmra.mrb[0].mxu0 %v115
    %v208 = vpop.f32.mrb[0].mxu0
    %v209 = vadd.f32 0.0, %v208
    %v210 = vpop.f32.mrb[0].mxu0
    %211 = vmatprep.mubr.f32.mxu0 0.0
    %212 = vmatmul.mubr.f32.gmra.mrb[0].mxu0 %v118
    %v213 = vpop.f32.mrb[0].mxu0
    %v214 = vadd.f32 0.0, %v213
    %v215 = vpop.f32.mrb[0].mxu0
    %216 = vmatprep.mubr.f32.mxu0 0.0
    %217 = vmatmul.mubr.f32.gmra.mrb[0].mxu0 %v121
    %v218 = vpop.f32.mrb[0].mxu0
    %v219 = vadd.f32 0.0, %v218
    %v220 = vpop.f32.mrb[0].mxu0
    %221 = vmatprep.mubr.f32.mxu0 0.0
    %222 = vmatmul.mubr.f32.gmra.mrb[0].mxu0 %v124
    %v223 = vpop.f32.mrb[0].mxu0
    %v224 = vadd.f32 0.0, %v223
    %v225 = vpop.f32.mrb[0].mxu0
    %226 = vmatprep.mubr.f32.mxu0 0.0
    %227 = vmatmul.mubr.f32.gmra.mrb[0].mxu0 %v127
    %v228 = vpop.f32.mrb[0].mxu0
    %v229 = vadd.f32 0.0, %v228
    %v230 = vpop.f32.mrb[0].mxu0
    %231 = vmatprep.mubr.f32.mxu0 0.0
    %232 = vmatmul.mubr.f32.gmra.mrb[0].mxu0 %v130
    %v233 = vpop.f32.mrb[0].mxu0
    %v234 = vadd.f32 0.0, %v233
    %v235 = vpop.f32.mrb[0].mxu0
    %236 = vdwg.mxu0
    %v237 = vld [vmem:[%s2] sm:$0x1]
    %vm238 = vcmask 261120
    %v240 = vsel %vm238, %v237, 0
    %242 = vmatprep.subr.mxu0 0.0
    %243 = vmatpush1.msra.mxu0 %v64
    %244 = vmatprep.subr.mxu0 0.0
    %245 = vmatpush1.msra.mxu0 %v65
    %246 = vmatprep.subr.mxu0 0.0
    %247 = vmatpush1.msra.mxu0 %v66
    %248 = vmatprep.subr.mxu0 0.0
    %249 = vmatpush1.msra.mxu0 %v67
    %250 = vmatprep.subr.mxu0 0.0
    %251 = vmatpush1.msra.mxu0 0.0
    %252 = vmatprep.subr.mxu0 0.0
    %253 = vmatpush1.msra.mxu0 0.0
    %254 = vmatprep.subr.mxu0 0.0
    %255 = vmatpush1.msra.mxu0 0.0
    %256 = vmatprep.subr.mxu0 0.0
    %257 = vmatpush1.msra.mxu0 0.0
    %258 = vmatprep.subr.mxu0 0.0
    %259 = vmatpush1.msra.mxu0 0.0
    %260 = vmatprep.subr.mxu0 0.0
    %261 = vmatpush1.msra.mxu0 0.0
    %262 = vmatprep.subr.mxu0 0.0
    %263 = vmatpush1.msra.mxu0 0.0
    %264 = vmatprep.subr.mxu0 0.0
    %265 = vmatpush1.msra.mxu0 0.0
    %266 = vmatprep.subr.mxu0 0.0
    %267 = vmatpush1.msra.mxu0 0.0
    %268 = vmatprep.subr.mxu0 0.0
    %269 = vmatpush1.msra.mxu0 0.0
    %270 = vmatprep.subr.mxu0 0.0
    %271 = vmatpush1.msra.mxu0 0.0
    %272 = vmatprep.subr.mxu0 0.0
    %273 = vmatpush1.msra.mxu0 0.0
    %274 = vmatprep.subr.mxu0 0.0
    %275 = vmatpush1.msra.mxu0 0.0
    %276 = vmatprep.subr.mxu0 0.0
    %277 = vmatpush1.msra.mxu0 0.0
    %278 = vmatprep.subr.mxu0 0.0
    %279 = vmatpush1.msra.mxu0 0.0
    %280 = vmatprep.subr.mxu0 0.0
    %281 = vmatpush1.msra.mxu0 0.0
    %282 = vmatprep.subr.mxu0 0.0
    %283 = vmatpush1.msra.mxu0 0.0
    %284 = vmatprep.subr.mxu0 0.0
    %285 = vmatpush1.msra.mxu0 0.0
    %286 = vmatprep.subr.mxu0 0.0
    %287 = vmatpush1.msra.mxu0 0.0
    %288 = vmatprep.subr.mxu0 0.0
    %289 = vmatpush1.msra.mxu0 0.0
    %290 = vmatprep.subr.mxu0 0.0
    %291 = vmatpush1.msra.mxu0 0.0
    %292 = vmatprep.subr.mxu0 0.0
    %293 = vmatpush1.msra.mxu0 0.0
    %294 = vmatprep.subr.mxu0 0.0
    %295 = vmatpush1.msra.mxu0 0.0
    %296 = vmatprep.subr.mxu0 0.0
    %297 = vmatpush1.msra.mxu0 0.0
    %298 = vmatprep.subr.mxu0 0.0
    %299 = vmatpush1.msra.mxu0 0.0
    %300 = vmatprep.subr.mxu0 0.0
    %301 = vmatpush1.msra.mxu0 0.0
    %302 = vmatprep.subr.mxu0 0.0
    %303 = vmatpush1.msra.mxu0 0.0
    %304 = vmatprep.subr.mxu0 0.0
    %305 = vmatpush1.msra.mxu0 0.0
    %306 = vmatprep.mubr.f32.mxu0 0.0
    %307 = vmatmul.mubr.f32.gmra.mrb[0].mxu0 %v240
    %v308 = vpop.f32.mrb[0].mxu0
    %v309 = vadd.f32 0.0, %v308
    %v310 = vpop.f32.mrb[0].mxu0
    %311 = vdwg.mxu0
    %v312 = vlaneseq
    %v313 = vshrl.u32 %v312, 7
    %v314 = vsub.s32 0, %v313
    %v315 = vrot.slane %v309, %v314
    %v316 = vadd.f32 %v199, %v315
    %v317 = vadd.f32 %v204, %v315
    %v318 = vadd.f32 %v209, %v315
    %v319 = vadd.f32 %v214, %v315
    %v320 = vadd.f32 %v219, %v315
    %v321 = vadd.f32 %v224, %v315
    %v322 = vadd.f32 %v229, %v315
    %v323 = vadd.f32 %v234, %v315
    %v324 = vlaneseq
    %v325 = vshrl.u32 %v324, 7
    %v326 = vsub.s32 0, %v325
    %v327 = vrot.slane %v96, %v326
    %v328 = vadd.f32 %v316, %v327
    %v329 = vadd.f32 %v317, %v327
    %v330 = vadd.f32 %v318, %v327
    %v331 = vadd.f32 %v319, %v327
    %v332 = vadd.f32 %v320, %v327
    %v333 = vadd.f32 %v321, %v327
    %v334 = vadd.f32 %v322, %v327
    %v335 = vadd.f32 %v323, %v327
    %v336 = vsel %vm238, %v328, 0.0
    %337 = vadd.xlane.f32.xlu0 %v336
    %v338 = vpop.xlane.xlu0 %337
    %v339 = vsel %vm238, %v329, 0.0
    %340 = vadd.xlane.f32.xlu0 %v339
    %v341 = vpop.xlane.xlu0 %340
    %v342 = vsel %vm238, %v330, 0.0
    %343 = vadd.xlane.f32.xlu0 %v342
    %v344 = vpop.xlane.xlu0 %343
    %v345 = vsel %vm238, %v331, 0.0
    %346 = vadd.xlane.f32.xlu0 %v345
    %v347 = vpop.xlane.xlu0 %346
    %v348 = vsel %vm238, %v332, 0.0
    %349 = vadd.xlane.f32.xlu0 %v348
    %v350 = vpop.xlane.xlu0 %349
    %v351 = vsel %vm238, %v333, 0.0
    %352 = vadd.xlane.f32.xlu0 %v351
    %v353 = vpop.xlane.xlu0 %352
    %v354 = vsel %vm238, %v334, 0.0
    %355 = vadd.xlane.f32.xlu0 %v354
    %v356 = vpop.xlane.xlu0 %355
    %v357 = vsel %vm238, %v335, 0.0
    %358 = vadd.xlane.f32.xlu0 %v357
    %v359 = vpop.xlane.xlu0 %358
    %v360 = vrcp.pop 32.0
    %v361 = vmul.f32 %v338, %v360
    %v362 = vmul.f32 %v341, %v360
    %v363 = vmul.f32 %v344, %v360
    %v364 = vmul.f32 %v347, %v360
    %v365 = vmul.f32 %v350, %v360
    %v366 = vmul.f32 %v353, %v360
    %v367 = vmul.f32 %v356, %v360
    %v368 = vmul.f32 %v359, %v360
    %v369 = vsub.f32 %v328, %v361
    %v370 = vsub.f32 %v329, %v362
    %v371 = vsub.f32 %v330, %v363
    %v372 = vsub.f32 %v331, %v364
    %v373 = vsub.f32 %v332, %v365
    %v374 = vsub.f32 %v333, %v366
    %v375 = vsub.f32 %v334, %v367
    %v376 = vsub.f32 %v335, %v368
    %v377 = vmul.f32 %v369, %v369
    %v378 = vmul.f32 %v370, %v370
    %v379 = vmul.f32 %v371, %v371
    %v380 = vmul.f32 %v372, %v372
    %v381 = vmul.f32 %v373, %v373
    %v382 = vmul.f32 %v374, %v374
    %v383 = vmul.f32 %v375, %v375
    %v384 = vmul.f32 %v376, %v376
    %v385 = vsel %vm238, %v377, 0.0
    %386 = vadd.xlane.f32.xlu0 %v385
    %v387 = vpop.xlane.xlu0 %386
    %v388 = vsel %vm238, %v378, 0.0
    %389 = vadd.xlane.f32.xlu0 %v388
    %v390 = vpop.xlane.xlu0 %389
    %v391 = vsel %vm238, %v379, 0.0
    %392 = vadd.xlane.f32.xlu0 %v391
    %v393 = vpop.xlane.xlu0 %392
    %v394 = vsel %vm238, %v380, 0.0
    %395 = vadd.xlane.f32.xlu0 %v394
    %v396 = vpop.xlane.xlu0 %395
    %v397 = vsel %vm238, %v381, 0.0
    %398 = vadd.xlane.f32.xlu0 %v397
    %v399 = vpop.xlane.xlu0 %398
    %v400 = vsel %vm238, %v382, 0.0
    %401 = vadd.xlane.f32.xlu0 %v400
    %v402 = vpop.xlane.xlu0 %401
    %v403 = vsel %vm238, %v383, 0.0
    %404 = vadd.xlane.f32.xlu0 %v403
    %v405 = vpop.xlane.xlu0 %404
    %v406 = vsel %vm238, %v384, 0.0
    %407 = vadd.xlane.f32.xlu0 %v406
    %v408 = vpop.xlane.xlu0 %407
    %v409 = vmul.f32 %v387, %v360
    %v410 = vmul.f32 %v390, %v360
    %v411 = vmul.f32 %v393, %v360
    %v412 = vmul.f32 %v396, %v360
    %v413 = vmul.f32 %v399, %v360
    %v414 = vmul.f32 %v402, %v360
    %v415 = vmul.f32 %v405, %v360
    %v416 = vmul.f32 %v408, %v360
    %v417 = vadd.f32 %v409, 1e-05
    %v418 = vadd.f32 %v410, 1e-05
    %v419 = vadd.f32 %v411, 1e-05
    %v420 = vadd.f32 %v412, 1e-05
    %v421 = vadd.f32 %v413, 1e-05
    %v422 = vadd.f32 %v414, 1e-05
    %v423 = vadd.f32 %v415, 1e-05
    %v424 = vadd.f32 %v416, 1e-05
    %v425 = vrsqrt.pop %v417
    %v426 = vrsqrt.pop %v418
    %v427 = vrsqrt.pop %v419
    %v428 = vrsqrt.pop %v420
    %v429 = vrsqrt.pop %v421
    %v430 = vrsqrt.pop %v422
    %v431 = vrsqrt.pop %v423
    %v432 = vrsqrt.pop %v424
    %v433 = vmul.f32 %v369, %v425
    %v434 = vmul.f32 %v370, %v426
    %v435 = vmul.f32 %v371, %v427
    %v436 = vmul.f32 %v372, %v428
    %v437 = vmul.f32 %v373, %v429
    %v438 = vmul.f32 %v374, %v430
    %v439 = vmul.f32 %v375, %v431
    %v440 = vmul.f32 %v376, %v432
    %v441 = vlaneseq
    %v442 = vshrl.u32 %v441, 7
    %v443 = vsub.s32 1, %v442
    %v444 = vrot.slane %v96, %v443
    %v445 = vmul.f32 %v433, %v444
    %v446 = vmul.f32 %v434, %v444
    %v447 = vmul.f32 %v435, %v444
    %v448 = vmul.f32 %v436, %v444
    %v449 = vmul.f32 %v437, %v444
    %v450 = vmul.f32 %v438, %v444
    %v451 = vmul.f32 %v439, %v444
    %v452 = vmul.f32 %v440, %v444
    %v453 = vlaneseq
    %v454 = vshrl.u32 %v453, 7
    %v455 = vsub.s32 2, %v454
    %v456 = vrot.slane %v96, %v455
    %v457 = vadd.f32 %v445, %v456
    %v458 = vadd.f32 %v446, %v456
    %v459 = vadd.f32 %v447, %v456
    %v460 = vadd.f32 %v448, %v456
    %v461 = vadd.f32 %v449, %v456
    %v462 = vadd.f32 %v450, %v456
    %v463 = vadd.f32 %v451, %v456
    %v464 = vadd.f32 %v452, %v456
    %v465 = vmax.f32 %v457, 0.0
    %v466 = vmax.f32 %v458, 0.0
    %v467 = vmax.f32 %v459, 0.0
    %v468 = vmax.f32 %v460, 0.0
    %v469 = vmax.f32 %v461, 0.0
    %v470 = vmax.f32 %v462, 0.0
    %v471 = vmax.f32 %v463, 0.0
    %v472 = vmax.f32 %v464, 0.0
    %v473 = vld [vmem:[%s4] sm:$0x1]
    %v474 = vsub.f32 1.0, %v473
    %v475 = vmul.f32 %v474, -1e+09
    %v476 = vld [vmem:[%s5] sm:$0x1]
    %v477 = vsub.f32 1.0, %v476
    %v478 = vmul.f32 %v477, -1e+09
    %v479 = vld [vmem:[%s1] sm:$0xff]
    %v480 = vld [vmem:[%s1 + $0x8] sm:$0xff]
    %v481 = vld [vmem:[%s1 + $0x10] sm:$0xff]
    %v482 = vld [vmem:[%s1 + $0x18] sm:$0xff]
    %v483 = vld [vmem:[%s1 + $0x20] sm:$0xff]
    %v484 = vld [vmem:[%s1 + $0x28] sm:$0xff]
    %v485 = vld [vmem:[%s1 + $0x30] sm:$0xff]
    %v486 = vld [vmem:[%s1 + $0x38] sm:$0xff]
    %v487 = vld [vmem:[%s7] sm:$0xff]
    %v488 = vld [vmem:[%s7 + $0x8] sm:$0xff]
    %v489 = vld [vmem:[%s7 + $0x10] sm:$0xff]
    %v490 = vld [vmem:[%s7 + $0x18] sm:$0xff]
    %s491 = scalar_lea.vmem %s7, 32
    %v492 = vld [vmem:[%s491] sm:$0xff]
    %v493 = vld [vmem:[%s491 + $0x8] sm:$0xff]
    %v494 = vld [vmem:[%s491 + $0x10] sm:$0xff]
    %v495 = vld [vmem:[%s491 + $0x18] sm:$0xff]
    %v496 = vlaneseq
    %v497 = vshrl.u32 %v496, 7
    %v498 = vsub.s32 0, %v497
    %v499 = vrot.slane %v95, %v498
    %v501 = vsel %vm238, %v465, 0
    %v504 = vsel %vm238, %v466, 0
    %v507 = vsel %vm238, %v467, 0
    %v510 = vsel %vm238, %v468, 0
    %v513 = vsel %vm238, %v469, 0
    %v516 = vsel %vm238, %v470, 0
    %v519 = vsel %vm238, %v471, 0
    %v522 = vsel %vm238, %v472, 0
    %524 = vmatprep.subr.mxu0 0.0
    %525 = vmatpush1.msra.mxu0 %v487
    %526 = vmatprep.subr.mxu0 0.0
    %527 = vmatpush1.msra.mxu0 %v488
    %528 = vmatprep.subr.mxu0 0.0
    %529 = vmatpush1.msra.mxu0 %v489
    %530 = vmatprep.subr.mxu0 0.0
    %531 = vmatpush1.msra.mxu0 %v490
    %532 = vmatprep.subr.mxu0 0.0
    %533 = vmatpush1.msra.mxu0 0.0
    %534 = vmatprep.subr.mxu0 0.0
    %535 = vmatpush1.msra.mxu0 0.0
    %536 = vmatprep.subr.mxu0 0.0
    %537 = vmatpush1.msra.mxu0 0.0
    %538 = vmatprep.subr.mxu0 0.0
    %539 = vmatpush1.msra.mxu0 0.0
    %540 = vmatprep.subr.mxu0 0.0
    %541 = vmatpush1.msra.mxu0 0.0
    %542 = vmatprep.subr.mxu0 0.0
    %543 = vmatpush1.msra.mxu0 0.0
    %544 = vmatprep.subr.mxu0 0.0
    %545 = vmatpush1.msra.mxu0 0.0
    %546 = vmatprep.subr.mxu0 0.0
    %547 = vmatpush1.msra.mxu0 0.0
    %548 = vmatprep.subr.mxu0 0.0
    %549 = vmatpush1.msra.mxu0 0.0
    %550 = vmatprep.subr.mxu0 0.0
    %551 = vmatpush1.msra.mxu0 0.0
    %552 = vmatprep.subr.mxu0 0.0
    %553 = vmatpush1.msra.mxu0 0.0
    %554 = vmatprep.subr.mxu0 0.0
    %555 = vmatpush1.msra.mxu0 0.0
    %556 = vmatprep.subr.mxu0 0.0
    %557 = vmatpush1.msra.mxu0 0.0
    %558 = vmatprep.subr.mxu0 0.0
    %559 = vmatpush1.msra.mxu0 0.0
    %560 = vmatprep.subr.mxu0 0.0
    %561 = vmatpush1.msra.mxu0 0.0
    %562 = vmatprep.subr.mxu0 0.0
    %563 = vmatpush1.msra.mxu0 0.0
    %564 = vmatprep.subr.mxu0 0.0
    %565 = vmatpush1.msra.mxu0 0.0
    %566 = vmatprep.subr.mxu0 0.0
    %567 = vmatpush1.msra.mxu0 0.0
    %568 = vmatprep.subr.mxu0 0.0
    %569 = vmatpush1.msra.mxu0 0.0
    %570 = vmatprep.subr.mxu0 0.0
    %571 = vmatpush1.msra.mxu0 0.0
    %572 = vmatprep.subr.mxu0 0.0
    %573 = vmatpush1.msra.mxu0 0.0
    %574 = vmatprep.subr.mxu0 0.0
    %575 = vmatpush1.msra.mxu0 0.0
    %576 = vmatprep.subr.mxu0 0.0
    %577 = vmatpush1.msra.mxu0 0.0
    %578 = vmatprep.subr.mxu0 0.0
    %579 = vmatpush1.msra.mxu0 0.0
    %580 = vmatprep.subr.mxu0 0.0
    %581 = vmatpush1.msra.mxu0 0.0
    %582 = vmatprep.subr.mxu0 0.0
    %583 = vmatpush1.msra.mxu0 0.0
    %584 = vmatprep.subr.mxu0 0.0
    %585 = vmatpush1.msra.mxu0 0.0
    %586 = vmatprep.subr.mxu0 0.0
    %587 = vmatpush1.msra.mxu0 0.0
    %588 = vmatprep.mubr.f32.mxu0 0.0
    %589 = vmatmul.mubr.f32.gmra.mrb[0].mxu0 %v501
    %v590 = vpop.f32.mrb[0].mxu0
    %v591 = vadd.f32 %v499, %v590
    %v592 = vpop.f32.mrb[0].mxu0
    %593 = vmatprep.mubr.f32.mxu0 0.0
    %594 = vmatmul.mubr.f32.gmra.mrb[0].mxu0 %v504
    %v595 = vpop.f32.mrb[0].mxu0
    %v596 = vadd.f32 %v499, %v595
    %v597 = vpop.f32.mrb[0].mxu0
    %598 = vmatprep.mubr.f32.mxu0 0.0
    %599 = vmatmul.mubr.f32.gmra.mrb[0].mxu0 %v507
    %v600 = vpop.f32.mrb[0].mxu0
    %v601 = vadd.f32 %v499, %v600
    %v602 = vpop.f32.mrb[0].mxu0
    %603 = vmatprep.mubr.f32.mxu0 0.0
    %604 = vmatmul.mubr.f32.gmra.mrb[0].mxu0 %v510
    %v605 = vpop.f32.mrb[0].mxu0
    %v606 = vadd.f32 %v499, %v605
    %v607 = vpop.f32.mrb[0].mxu0
    %608 = vmatprep.mubr.f32.mxu0 0.0
    %609 = vmatmul.mubr.f32.gmra.mrb[0].mxu0 %v513
    %v610 = vpop.f32.mrb[0].mxu0
    %v611 = vadd.f32 %v499, %v610
    %v612 = vpop.f32.mrb[0].mxu0
    %613 = vmatprep.mubr.f32.mxu0 0.0
    %614 = vmatmul.mubr.f32.gmra.mrb[0].mxu0 %v516
    %v615 = vpop.f32.mrb[0].mxu0
    %v616 = vadd.f32 %v499, %v615
    %v617 = vpop.f32.mrb[0].mxu0
    %618 = vmatprep.mubr.f32.mxu0 0.0
    %619 = vmatmul.mubr.f32.gmra.mrb[0].mxu0 %v519
    %v620 = vpop.f32.mrb[0].mxu0
    %v621 = vadd.f32 %v499, %v620
    %v622 = vpop.f32.mrb[0].mxu0
    %623 = vmatprep.mubr.f32.mxu0 0.0
    %624 = vmatmul.mubr.f32.gmra.mrb[0].mxu0 %v522
    %v625 = vpop.f32.mrb[0].mxu0
    %v626 = vadd.f32 %v499, %v625
    %v627 = vpop.f32.mrb[0].mxu0
    %628 = vdwg.mxu0
    %v629 = vlaneseq
    %v630 = vshrl.u32 %v629, 7
    %v631 = vsub.s32 1, %v630
    %v632 = vrot.slane %v95, %v631
    %v634 = vsel %vm238, %v479, 0
    %v637 = vsel %vm238, %v480, 0
    %v640 = vsel %vm238, %v481, 0
    %v643 = vsel %vm238, %v482, 0
    %v646 = vsel %vm238, %v483, 0
    %v649 = vsel %vm238, %v484, 0
    %v652 = vsel %vm238, %v485, 0
    %v655 = vsel %vm238, %v486, 0
    %657 = vmatprep.subr.mxu0 0.0
    %658 = vmatpush1.msra.mxu0 %v492
    %659 = vmatprep.subr.mxu0 0.0
    %660 = vmatpush1.msra.mxu0 %v493
    %661 = vmatprep.subr.mxu0 0.0
    %662 = vmatpush1.msra.mxu0 %v494
    %663 = vmatprep.subr.mxu0 0.0
    %664 = vmatpush1.msra.mxu0 %v495
    %665 = vmatprep.subr.mxu0 0.0
    %666 = vmatpush1.msra.mxu0 0.0
    %667 = vmatprep.subr.mxu0 0.0
    %668 = vmatpush1.msra.mxu0 0.0
    %669 = vmatprep.subr.mxu0 0.0
    %670 = vmatpush1.msra.mxu0 0.0
    %671 = vmatprep.subr.mxu0 0.0
    %672 = vmatpush1.msra.mxu0 0.0
    %673 = vmatprep.subr.mxu0 0.0
    %674 = vmatpush1.msra.mxu0 0.0
    %675 = vmatprep.subr.mxu0 0.0
    %676 = vmatpush1.msra.mxu0 0.0
    %677 = vmatprep.subr.mxu0 0.0
    %678 = vmatpush1.msra.mxu0 0.0
    %679 = vmatprep.subr.mxu0 0.0
    %680 = vmatpush1.msra.mxu0 0.0
    %681 = vmatprep.subr.mxu0 0.0
    %682 = vmatpush1.msra.mxu0 0.0
    %683 = vmatprep.subr.mxu0 0.0
    %684 = vmatpush1.msra.mxu0 0.0
    %685 = vmatprep.subr.mxu0 0.0
    %686 = vmatpush1.msra.mxu0 0.0
    %687 = vmatprep.subr.mxu0 0.0
    %688 = vmatpush1.msra.mxu0 0.0
    %689 = vmatprep.subr.mxu0 0.0
    %690 = vmatpush1.msra.mxu0 0.0
    %691 = vmatprep.subr.mxu0 0.0
    %692 = vmatpush1.msra.mxu0 0.0
    %693 = vmatprep.subr.mxu0 0.0
    %694 = vmatpush1.msra.mxu0 0.0
    %695 = vmatprep.subr.mxu0 0.0
    %696 = vmatpush1.msra.mxu0 0.0
    %697 = vmatprep.subr.mxu0 0.0
    %698 = vmatpush1.msra.mxu0 0.0
    %699 = vmatprep.subr.mxu0 0.0
    %700 = vmatpush1.msra.mxu0 0.0
    %701 = vmatprep.subr.mxu0 0.0
    %702 = vmatpush1.msra.mxu0 0.0
    %703 = vmatprep.subr.mxu0 0.0
    %704 = vmatpush1.msra.mxu0 0.0
    %705 = vmatprep.subr.mxu0 0.0
    %706 = vmatpush1.msra.mxu0 0.0
    %707 = vmatprep.subr.mxu0 0.0
    %708 = vmatpush1.msra.mxu0 0.0
    %709 = vmatprep.subr.mxu0 0.0
    %710 = vmatpush1.msra.mxu0 0.0
    %711 = vmatprep.subr.mxu0 0.0
    %712 = vmatpush1.msra.mxu0 0.0
    %713 = vmatprep.subr.mxu0 0.0
    %714 = vmatpush1.msra.mxu0 0.0
    %715 = vmatprep.subr.mxu0 0.0
    %716 = vmatpush1.msra.mxu0 0.0
    %717 = vmatprep.subr.mxu0 0.0
    %718 = vmatpush1.msra.mxu0 0.0
    %719 = vmatprep.subr.mxu0 0.0
    %720 = vmatpush1.msra.mxu0 0.0
    %721 = vmatprep.mubr.f32.mxu0 0.0
    %722 = vmatmul.mubr.f32.gmra.mrb[0].mxu0 %v634
    %v723 = vpop.f32.mrb[0].mxu0
    %v724 = vadd.f32 %v632, %v723
    %v725 = vpop.f32.mrb[0].mxu0
    %726 = vmatprep.mubr.f32.mxu0 0.0
    %727 = vmatmul.mubr.f32.gmra.mrb[0].mxu0 %v637
    %v728 = vpop.f32.mrb[0].mxu0
    %v729 = vadd.f32 %v632, %v728
    %v730 = vpop.f32.mrb[0].mxu0
    %731 = vmatprep.mubr.f32.mxu0 0.0
    %732 = vmatmul.mubr.f32.gmra.mrb[0].mxu0 %v640
    %v733 = vpop.f32.mrb[0].mxu0
    %v734 = vadd.f32 %v632, %v733
    %v735 = vpop.f32.mrb[0].mxu0
    %736 = vmatprep.mubr.f32.mxu0 0.0
    %737 = vmatmul.mubr.f32.gmra.mrb[0].mxu0 %v643
    %v738 = vpop.f32.mrb[0].mxu0
    %v739 = vadd.f32 %v632, %v738
    %v740 = vpop.f32.mrb[0].mxu0
    %741 = vmatprep.mubr.f32.mxu0 0.0
    %742 = vmatmul.mubr.f32.gmra.mrb[0].mxu0 %v646
    %v743 = vpop.f32.mrb[0].mxu0
    %v744 = vadd.f32 %v632, %v743
    %v745 = vpop.f32.mrb[0].mxu0
    %746 = vmatprep.mubr.f32.mxu0 0.0
    %747 = vmatmul.mubr.f32.gmra.mrb[0].mxu0 %v649
    %v748 = vpop.f32.mrb[0].mxu0
    %v749 = vadd.f32 %v632, %v748
    %v750 = vpop.f32.mrb[0].mxu0
    %751 = vmatprep.mubr.f32.mxu0 0.0
    %752 = vmatmul.mubr.f32.gmra.mrb[0].mxu0 %v652
    %v753 = vpop.f32.mrb[0].mxu0
    %v754 = vadd.f32 %v632, %v753
    %v755 = vpop.f32.mrb[0].mxu0
    %756 = vmatprep.mubr.f32.mxu0 0.0
    %757 = vmatmul.mubr.f32.gmra.mrb[0].mxu0 %v655
    %v758 = vpop.f32.mrb[0].mxu0
    %v759 = vadd.f32 %v632, %v758
    %v760 = vpop.f32.mrb[0].mxu0
    %761 = vdwg.mxu0
    %v762 = vmul.f32 %v724, %v48
    %v763 = vmul.f32 %v729, %v48
    %v764 = vmul.f32 %v734, %v48
    %v765 = vmul.f32 %v739, %v48
    %v766 = vmul.f32 %v744, %v48
    %v767 = vmul.f32 %v749, %v48
    %v768 = vmul.f32 %v754, %v48
    %v769 = vmul.f32 %v759, %v48
    %v771 = vlaneseq
    %v772 = vshrl.u32 %v771, 7
    %v773 = vsub.s32 0, %v772
    %v774 = vrot.slane %v475, %v773
    %vm776 = vcmask 523264
    %v778 = vsel %vm776, %v591, 0
    %v781 = vsel %vm776, %v596, 0
    %v784 = vsel %vm776, %v601, 0
    %v787 = vsel %vm776, %v606, 0
    %v790 = vsel %vm776, %v611, 0
    %v793 = vsel %vm776, %v616, 0
    %v796 = vsel %vm776, %v621, 0
    %v799 = vsel %vm776, %v626, 0
    %v802 = vsel %vm776, %v762, 0
    %v805 = vsel %vm776, %v763, 0
    %v808 = vsel %vm776, %v764, 0
    %v811 = vsel %vm776, %v765, 0
    %v814 = vsel %vm776, %v766, 0
    %v817 = vsel %vm776, %v767, 0
    %v820 = vsel %vm776, %v768, 0
    %v823 = vsel %vm776, %v769, 0
    %825 = vmatprep.subr.mxu0 0.0
    %826 = vmatpush1.xpose.msra.mxu0 %v802
    %827 = vmatprep.subr.mxu0 0.0
    %828 = vmatpush1.xpose.msra.mxu0 %v805
    %829 = vmatprep.subr.mxu0 0.0
    %830 = vmatpush1.xpose.msra.mxu0 %v808
    %831 = vmatprep.subr.mxu0 0.0
    %832 = vmatpush1.xpose.msra.mxu0 %v811
    %833 = vmatprep.subr.mxu0 0.0
    %834 = vmatpush1.xpose.msra.mxu0 %v814
    %835 = vmatprep.subr.mxu0 0.0
    %836 = vmatpush1.xpose.msra.mxu0 %v817
    %837 = vmatprep.subr.mxu0 0.0
    %838 = vmatpush1.xpose.msra.mxu0 %v820
    %839 = vmatprep.subr.mxu0 0.0
    %840 = vmatpush1.xpose.msra.mxu0 %v823
    %841 = vmatprep.subr.mxu0 0.0
    %842 = vmatpush1.xpose.msra.mxu0 0.0
    %843 = vmatprep.subr.mxu0 0.0
    %844 = vmatpush1.xpose.msra.mxu0 0.0
    %845 = vmatprep.subr.mxu0 0.0
    %846 = vmatpush1.xpose.msra.mxu0 0.0
    %847 = vmatprep.subr.mxu0 0.0
    %848 = vmatpush1.xpose.msra.mxu0 0.0
    %849 = vmatprep.subr.mxu0 0.0
    %850 = vmatpush1.xpose.msra.mxu0 0.0
    %851 = vmatprep.subr.mxu0 0.0
    %852 = vmatpush1.xpose.msra.mxu0 0.0
    %853 = vmatprep.subr.mxu0 0.0
    %854 = vmatpush1.xpose.msra.mxu0 0.0
    %855 = vmatprep.subr.mxu0 0.0
    %856 = vmatpush1.xpose.msra.mxu0 0.0
    %857 = vmatprep.subr.mxu0 0.0
    %858 = vmatpush1.xpose.msra.mxu0 0.0
    %859 = vmatprep.subr.mxu0 0.0
    %860 = vmatpush1.xpose.msra.mxu0 0.0
    %861 = vmatprep.subr.mxu0 0.0
    %862 = vmatpush1.xpose.msra.mxu0 0.0
    %863 = vmatprep.subr.mxu0 0.0
    %864 = vmatpush1.xpose.msra.mxu0 0.0
    %865 = vmatprep.subr.mxu0 0.0
    %866 = vmatpush1.xpose.msra.mxu0 0.0
    %867 = vmatprep.subr.mxu0 0.0
    %868 = vmatpush1.xpose.msra.mxu0 0.0
    %869 = vmatprep.subr.mxu0 0.0
    %870 = vmatpush1.xpose.msra.mxu0 0.0
    %871 = vmatprep.subr.mxu0 0.0
    %872 = vmatpush1.xpose.msra.mxu0 0.0
    %873 = vmatprep.subr.mxu0 0.0
    %874 = vmatpush1.xpose.msra.mxu0 0.0
    %875 = vmatprep.subr.mxu0 0.0
    %876 = vmatpush1.xpose.msra.mxu0 0.0
    %877 = vmatprep.subr.mxu0 0.0
    %878 = vmatpush1.xpose.msra.mxu0 0.0
    %879 = vmatprep.subr.mxu0 0.0
    %880 = vmatpush1.xpose.msra.mxu0 0.0
    %881 = vmatprep.subr.mxu0 0.0
    %882 = vmatpush1.xpose.msra.mxu0 0.0
    %883 = vmatprep.subr.mxu0 0.0
    %884 = vmatpush1.xpose.msra.mxu0 0.0
    %885 = vmatprep.subr.mxu0 0.0
    %886 = vmatpush1.xpose.msra.mxu0 0.0
    %887 = vmatprep.subr.mxu0 0.0
    %888 = vmatpush1.xpose.msra.mxu0 0.0
    %889 = vmatprep.mubr.f32.mxu0 0.0
    %890 = vmatmul.mubr.f32.gmra.mrb[0].mxu0 %v778
    %v891 = vpop.f32.mrb[0].mxu0
    %v892 = vadd.f32 %v774, %v891
    %v893 = vpop.f32.mrb[0].mxu0
    %894 = vmatprep.mubr.f32.mxu0 0.0
    %895 = vmatmul.mubr.f32.gmra.mrb[0].mxu0 %v781
    %v896 = vpop.f32.mrb[0].mxu0
    %v897 = vadd.f32 %v774, %v896
    %v898 = vpop.f32.mrb[0].mxu0
    %899 = vmatprep.mubr.f32.mxu0 0.0
    %900 = vmatmul.mubr.f32.gmra.mrb[0].mxu0 %v784
    %v901 = vpop.f32.mrb[0].mxu0
    %v902 = vadd.f32 %v774, %v901
    %v903 = vpop.f32.mrb[0].mxu0
    %904 = vmatprep.mubr.f32.mxu0 0.0
    %905 = vmatmul.mubr.f32.gmra.mrb[0].mxu0 %v787
    %v906 = vpop.f32.mrb[0].mxu0
    %v907 = vadd.f32 %v774, %v906
    %v908 = vpop.f32.mrb[0].mxu0
    %909 = vmatprep.mubr.f32.mxu0 0.0
    %910 = vmatmul.mubr.f32.gmra.mrb[0].mxu0 %v790
    %v911 = vpop.f32.mrb[0].mxu0
    %v912 = vadd.f32 %v774, %v911
    %v913 = vpop.f32.mrb[0].mxu0
    %914 = vmatprep.mubr.f32.mxu0 0.0
    %915 = vmatmul.mubr.f32.gmra.mrb[0].mxu0 %v793
    %v916 = vpop.f32.mrb[0].mxu0
    %v917 = vadd.f32 %v774, %v916
    %v918 = vpop.f32.mrb[0].mxu0
    %919 = vmatprep.mubr.f32.mxu0 0.0
    %920 = vmatmul.mubr.f32.gmra.mrb[0].mxu0 %v796
    %v921 = vpop.f32.mrb[0].mxu0
    %v922 = vadd.f32 %v774, %v921
    %v923 = vpop.f32.mrb[0].mxu0
    %924 = vmatprep.mubr.f32.mxu0 0.0
    %925 = vmatmul.mubr.f32.gmra.mrb[0].mxu0 %v799
    %v926 = vpop.f32.mrb[0].mxu0
    %v927 = vadd.f32 %v774, %v926
    %v928 = vpop.f32.mrb[0].mxu0
    %929 = vdwg.mxu0
    %v930 = vsel %vm776, %v892, -inf
    %931 = vmax.xlane.f32.xlu0 %v930
    %v932 = vpop.xlane.xlu0 %931
    %v933 = vsel %vm776, %v897, -inf
    %934 = vmax.xlane.f32.xlu0 %v933
    %v935 = vpop.xlane.xlu0 %934
    %v936 = vsel %vm776, %v902, -inf
    %937 = vmax.xlane.f32.xlu0 %v936
    %v938 = vpop.xlane.xlu0 %937
    %v939 = vsel %vm776, %v907, -inf
    %940 = vmax.xlane.f32.xlu0 %v939
    %v941 = vpop.xlane.xlu0 %940
    %v942 = vsel %vm776, %v912, -inf
    %943 = vmax.xlane.f32.xlu0 %v942
    %v944 = vpop.xlane.xlu0 %943
    %v945 = vsel %vm776, %v917, -inf
    %946 = vmax.xlane.f32.xlu0 %v945
    %v947 = vpop.xlane.xlu0 %946
    %v948 = vsel %vm776, %v922, -inf
    %949 = vmax.xlane.f32.xlu0 %v948
    %v950 = vpop.xlane.xlu0 %949
    %v951 = vsel %vm776, %v927, -inf
    %952 = vmax.xlane.f32.xlu0 %v951
    %v953 = vpop.xlane.xlu0 %952
    %v954 = vsub.f32 %v892, %v932
    %v955 = vsub.f32 %v897, %v935
    %v956 = vsub.f32 %v902, %v938
    %v957 = vsub.f32 %v907, %v941
    %v958 = vsub.f32 %v912, %v944
    %v959 = vsub.f32 %v917, %v947
    %v960 = vsub.f32 %v922, %v950
    %v961 = vsub.f32 %v927, %v953
    %v962 = vmul.f32 %v954, 1.442695
    %v963 = vpow.pop %v962
    %v964 = vmul.f32 %v955, 1.442695
    %v965 = vpow.pop %v964
    %v966 = vmul.f32 %v956, 1.442695
    %v967 = vpow.pop %v966
    %v968 = vmul.f32 %v957, 1.442695
    %v969 = vpow.pop %v968
    %v970 = vmul.f32 %v958, 1.442695
    %v971 = vpow.pop %v970
    %v972 = vmul.f32 %v959, 1.442695
    %v973 = vpow.pop %v972
    %v974 = vmul.f32 %v960, 1.442695
    %v975 = vpow.pop %v974
    %v976 = vmul.f32 %v961, 1.442695
    %v977 = vpow.pop %v976
    %v978 = vsel %vm776, %v963, 0.0
    %979 = vadd.xlane.f32.xlu0 %v978
    %v980 = vpop.xlane.xlu0 %979
    %v981 = vsel %vm776, %v965, 0.0
    %982 = vadd.xlane.f32.xlu0 %v981
    %v983 = vpop.xlane.xlu0 %982
    %v984 = vsel %vm776, %v967, 0.0
    %985 = vadd.xlane.f32.xlu0 %v984
    %v986 = vpop.xlane.xlu0 %985
    %v987 = vsel %vm776, %v969, 0.0
    %988 = vadd.xlane.f32.xlu0 %v987
    %v989 = vpop.xlane.xlu0 %988
    %v990 = vsel %vm776, %v971, 0.0
    %991 = vadd.xlane.f32.xlu0 %v990
    %v992 = vpop.xlane.xlu0 %991
    %v993 = vsel %vm776, %v973, 0.0
    %994 = vadd.xlane.f32.xlu0 %v993
    %v995 = vpop.xlane.xlu0 %994
    %v996 = vsel %vm776, %v975, 0.0
    %997 = vadd.xlane.f32.xlu0 %v996
    %v998 = vpop.xlane.xlu0 %997
    %v999 = vsel %vm776, %v977, 0.0
    %1000 = vadd.xlane.f32.xlu0 %v999
    %v1001 = vpop.xlane.xlu0 %1000
    %v1002 = vrcp.pop %v980
    %v1003 = vmul.f32 %v963, %v1002
    %v1004 = vrcp.pop %v983
    %v1005 = vmul.f32 %v965, %v1004
    %v1006 = vrcp.pop %v986
    %v1007 = vmul.f32 %v967, %v1006
    %v1008 = vrcp.pop %v989
    %v1009 = vmul.f32 %v969, %v1008
    %v1010 = vrcp.pop %v992
    %v1011 = vmul.f32 %v971, %v1010
    %v1012 = vrcp.pop %v995
    %v1013 = vmul.f32 %v973, %v1012
    %v1014 = vrcp.pop %v998
    %v1015 = vmul.f32 %v975, %v1014
    %v1016 = vrcp.pop %v1001
    %v1017 = vmul.f32 %v977, %v1016
    %v1018 = vmul.f32 %v724, %v58
    %v1019 = vmul.f32 %v729, %v58
    %v1020 = vmul.f32 %v734, %v58
    %v1021 = vmul.f32 %v739, %v58
    %v1022 = vmul.f32 %v744, %v58
    %v1023 = vmul.f32 %v749, %v58
    %v1024 = vmul.f32 %v754, %v58
    %v1025 = vmul.f32 %v759, %v58
    %v1026 = vmul.f32 %v724, %v53
    %v1027 = vmul.f32 %v729, %v53
    %v1028 = vmul.f32 %v734, %v53
    %v1029 = vmul.f32 %v739, %v53
    %v1030 = vmul.f32 %v744, %v53
    %v1031 = vmul.f32 %v749, %v53
    %v1032 = vmul.f32 %v754, %v53
    %v1033 = vmul.f32 %v759, %v53
    %v1035 = vsel %vm776, %v1026, 0
    %v1038 = vsel %vm776, %v1027, 0
    %v1041 = vsel %vm776, %v1028, 0
    %v1044 = vsel %vm776, %v1029, 0
    %v1047 = vsel %vm776, %v1030, 0
    %v1050 = vsel %vm776, %v1031, 0
    %v1053 = vsel %vm776, %v1032, 0
    %v1056 = vsel %vm776, %v1033, 0
    %1058 = vmatprep.subr.mxu0 0.0
    %1059 = vmatpush1.xpose.msra.mxu0 %v1035
    %1060 = vmatprep.subr.mxu0 0.0
    %1061 = vmatpush1.xpose.msra.mxu0 %v1038
    %1062 = vmatprep.subr.mxu0 0.0
    %1063 = vmatpush1.xpose.msra.mxu0 %v1041
    %1064 = vmatprep.subr.mxu0 0.0
    %1065 = vmatpush1.xpose.msra.mxu0 %v1044
    %1066 = vmatprep.subr.mxu0 0.0
    %1067 = vmatpush1.xpose.msra.mxu0 %v1047
    %1068 = vmatprep.subr.mxu0 0.0
    %1069 = vmatpush1.xpose.msra.mxu0 %v1050
    %1070 = vmatprep.subr.mxu0 0.0
    %1071 = vmatpush1.xpose.msra.mxu0 %v1053
    %1072 = vmatprep.subr.mxu0 0.0
    %1073 = vmatpush1.xpose.msra.mxu0 %v1056
    %1074 = vmatprep.subr.mxu0 0.0
    %1075 = vmatpush1.xpose.msra.mxu0 0.0
    %1076 = vmatprep.subr.mxu0 0.0
    %1077 = vmatpush1.xpose.msra.mxu0 0.0
    %1078 = vmatprep.subr.mxu0 0.0
    %1079 = vmatpush1.xpose.msra.mxu0 0.0
    %1080 = vmatprep.subr.mxu0 0.0
    %1081 = vmatpush1.xpose.msra.mxu0 0.0
    %1082 = vmatprep.subr.mxu0 0.0
    %1083 = vmatpush1.xpose.msra.mxu0 0.0
    %1084 = vmatprep.subr.mxu0 0.0
    %1085 = vmatpush1.xpose.msra.mxu0 0.0
    %1086 = vmatprep.subr.mxu0 0.0
    %1087 = vmatpush1.xpose.msra.mxu0 0.0
    %1088 = vmatprep.subr.mxu0 0.0
    %1089 = vmatpush1.xpose.msra.mxu0 0.0
    %1090 = vmatprep.subr.mxu0 0.0
    %1091 = vmatpush1.xpose.msra.mxu0 0.0
    %1092 = vmatprep.subr.mxu0 0.0
    %1093 = vmatpush1.xpose.msra.mxu0 0.0
    %1094 = vmatprep.subr.mxu0 0.0
    %1095 = vmatpush1.xpose.msra.mxu0 0.0
    %1096 = vmatprep.subr.mxu0 0.0
    %1097 = vmatpush1.xpose.msra.mxu0 0.0
    %1098 = vmatprep.subr.mxu0 0.0
    %1099 = vmatpush1.xpose.msra.mxu0 0.0
    %1100 = vmatprep.subr.mxu0 0.0
    %1101 = vmatpush1.xpose.msra.mxu0 0.0
    %1102 = vmatprep.subr.mxu0 0.0
    %1103 = vmatpush1.xpose.msra.mxu0 0.0
    %1104 = vmatprep.subr.mxu0 0.0
    %1105 = vmatpush1.xpose.msra.mxu0 0.0
    %1106 = vmatprep.subr.mxu0 0.0
    %1107 = vmatpush1.xpose.msra.mxu0 0.0
    %1108 = vmatprep.subr.mxu0 0.0
    %1109 = vmatpush1.xpose.msra.mxu0 0.0
    %1110 = vmatprep.subr.mxu0 0.0
    %1111 = vmatpush1.xpose.msra.mxu0 0.0
    %1112 = vmatprep.subr.mxu0 0.0
    %1113 = vmatpush1.xpose.msra.mxu0 0.0
    %1114 = vmatprep.subr.mxu0 0.0
    %1115 = vmatpush1.xpose.msra.mxu0 0.0
    %1116 = vmatprep.subr.mxu0 0.0
    %1117 = vmatpush1.xpose.msra.mxu0 0.0
    %1118 = vmatprep.subr.mxu0 0.0
    %1119 = vmatpush1.xpose.msra.mxu0 0.0
    %1120 = vmatprep.subr.mxu0 0.0
    %1121 = vmatpush1.xpose.msra.mxu0 0.0
    %1122 = vmatprep.mubr.f32.mxu0 0.0
    %1123 = vmatmul.mubr.f32.gmra.mrb[0].mxu0 %v778
    %v1124 = vpop.f32.mrb[0].mxu0
    %v1125 = vadd.f32 %v774, %v1124
    %v1126 = vpop.f32.mrb[0].mxu0
    %1127 = vmatprep.mubr.f32.mxu0 0.0
    %1128 = vmatmul.mubr.f32.gmra.mrb[0].mxu0 %v781
    %v1129 = vpop.f32.mrb[0].mxu0
    %v1130 = vadd.f32 %v774, %v1129
    %v1131 = vpop.f32.mrb[0].mxu0
    %1132 = vmatprep.mubr.f32.mxu0 0.0
    %1133 = vmatmul.mubr.f32.gmra.mrb[0].mxu0 %v784
    %v1134 = vpop.f32.mrb[0].mxu0
    %v1135 = vadd.f32 %v774, %v1134
    %v1136 = vpop.f32.mrb[0].mxu0
    %1137 = vmatprep.mubr.f32.mxu0 0.0
    %1138 = vmatmul.mubr.f32.gmra.mrb[0].mxu0 %v787
    %v1139 = vpop.f32.mrb[0].mxu0
    %v1140 = vadd.f32 %v774, %v1139
    %v1141 = vpop.f32.mrb[0].mxu0
    %1142 = vmatprep.mubr.f32.mxu0 0.0
    %1143 = vmatmul.mubr.f32.gmra.mrb[0].mxu0 %v790
    %v1144 = vpop.f32.mrb[0].mxu0
    %v1145 = vadd.f32 %v774, %v1144
    %v1146 = vpop.f32.mrb[0].mxu0
    %1147 = vmatprep.mubr.f32.mxu0 0.0
    %1148 = vmatmul.mubr.f32.gmra.mrb[0].mxu0 %v793
    %v1149 = vpop.f32.mrb[0].mxu0
    %v1150 = vadd.f32 %v774, %v1149
    %v1151 = vpop.f32.mrb[0].mxu0
    %1152 = vmatprep.mubr.f32.mxu0 0.0
    %1153 = vmatmul.mubr.f32.gmra.mrb[0].mxu0 %v796
    %v1154 = vpop.f32.mrb[0].mxu0
    %v1155 = vadd.f32 %v774, %v1154
    %v1156 = vpop.f32.mrb[0].mxu0
    %1157 = vmatprep.mubr.f32.mxu0 0.0
    %1158 = vmatmul.mubr.f32.gmra.mrb[0].mxu0 %v799
    %v1159 = vpop.f32.mrb[0].mxu0
    %v1160 = vadd.f32 %v774, %v1159
    %v1161 = vpop.f32.mrb[0].mxu0
    %1162 = vdwg.mxu0
    %v1163 = vsel %vm776, %v1125, -inf
    %1164 = vmax.xlane.f32.xlu0 %v1163
    %v1165 = vpop.xlane.xlu0 %1164
    %v1166 = vsel %vm776, %v1130, -inf
    %1167 = vmax.xlane.f32.xlu0 %v1166
    %v1168 = vpop.xlane.xlu0 %1167
    %v1169 = vsel %vm776, %v1135, -inf
    %1170 = vmax.xlane.f32.xlu0 %v1169
    %v1171 = vpop.xlane.xlu0 %1170
    %v1172 = vsel %vm776, %v1140, -inf
    %1173 = vmax.xlane.f32.xlu0 %v1172
    %v1174 = vpop.xlane.xlu0 %1173
    %v1175 = vsel %vm776, %v1145, -inf
    %1176 = vmax.xlane.f32.xlu0 %v1175
    %v1177 = vpop.xlane.xlu0 %1176
    %v1178 = vsel %vm776, %v1150, -inf
    %1179 = vmax.xlane.f32.xlu0 %v1178
    %v1180 = vpop.xlane.xlu0 %1179
    %v1181 = vsel %vm776, %v1155, -inf
    %1182 = vmax.xlane.f32.xlu0 %v1181
    %v1183 = vpop.xlane.xlu0 %1182
    %v1184 = vsel %vm776, %v1160, -inf
    %1185 = vmax.xlane.f32.xlu0 %v1184
    %v1186 = vpop.xlane.xlu0 %1185
    %v1187 = vsub.f32 %v1125, %v1165
    %v1188 = vsub.f32 %v1130, %v1168
    %v1189 = vsub.f32 %v1135, %v1171
    %v1190 = vsub.f32 %v1140, %v1174
    %v1191 = vsub.f32 %v1145, %v1177
    %v1192 = vsub.f32 %v1150, %v1180
    %v1193 = vsub.f32 %v1155, %v1183
    %v1194 = vsub.f32 %v1160, %v1186
    %v1195 = vmul.f32 %v1187, 1.442695
    %v1196 = vpow.pop %v1195
    %v1197 = vmul.f32 %v1188, 1.442695
    %v1198 = vpow.pop %v1197
    %v1199 = vmul.f32 %v1189, 1.442695
    %v1200 = vpow.pop %v1199
    %v1201 = vmul.f32 %v1190, 1.442695
    %v1202 = vpow.pop %v1201
    %v1203 = vmul.f32 %v1191, 1.442695
    %v1204 = vpow.pop %v1203
    %v1205 = vmul.f32 %v1192, 1.442695
    %v1206 = vpow.pop %v1205
    %v1207 = vmul.f32 %v1193, 1.442695
    %v1208 = vpow.pop %v1207
    %v1209 = vmul.f32 %v1194, 1.442695
    %v1210 = vpow.pop %v1209
    %v1211 = vsel %vm776, %v1196, 0.0
    %1212 = vadd.xlane.f32.xlu0 %v1211
    %v1213 = vpop.xlane.xlu0 %1212
    %v1214 = vsel %vm776, %v1198, 0.0
    %1215 = vadd.xlane.f32.xlu0 %v1214
    %v1216 = vpop.xlane.xlu0 %1215
    %v1217 = vsel %vm776, %v1200, 0.0
    %1218 = vadd.xlane.f32.xlu0 %v1217
    %v1219 = vpop.xlane.xlu0 %1218
    %v1220 = vsel %vm776, %v1202, 0.0
    %1221 = vadd.xlane.f32.xlu0 %v1220
    %v1222 = vpop.xlane.xlu0 %1221
    %v1223 = vsel %vm776, %v1204, 0.0
    %1224 = vadd.xlane.f32.xlu0 %v1223
    %v1225 = vpop.xlane.xlu0 %1224
    %v1226 = vsel %vm776, %v1206, 0.0
    %1227 = vadd.xlane.f32.xlu0 %v1226
    %v1228 = vpop.xlane.xlu0 %1227
    %v1229 = vsel %vm776, %v1208, 0.0
    %1230 = vadd.xlane.f32.xlu0 %v1229
    %v1231 = vpop.xlane.xlu0 %1230
    %v1232 = vsel %vm776, %v1210, 0.0
    %1233 = vadd.xlane.f32.xlu0 %v1232
    %v1234 = vpop.xlane.xlu0 %1233
    %v1235 = vrcp.pop %v1213
    %v1236 = vmul.f32 %v1196, %v1235
    %v1237 = vrcp.pop %v1216
    %v1238 = vmul.f32 %v1198, %v1237
    %v1239 = vrcp.pop %v1219
    %v1240 = vmul.f32 %v1200, %v1239
    %v1241 = vrcp.pop %v1222
    %v1242 = vmul.f32 %v1202, %v1241
    %v1243 = vrcp.pop %v1225
    %v1244 = vmul.f32 %v1204, %v1243
    %v1245 = vrcp.pop %v1228
    %v1246 = vmul.f32 %v1206, %v1245
    %v1247 = vrcp.pop %v1231
    %v1248 = vmul.f32 %v1208, %v1247
    %v1249 = vrcp.pop %v1234
    %v1250 = vmul.f32 %v1210, %v1249
    %v1251 = vmul.f32 %v724, %v63
    %v1252 = vmul.f32 %v729, %v63
    %v1253 = vmul.f32 %v734, %v63
    %v1254 = vmul.f32 %v739, %v63
    %v1255 = vmul.f32 %v744, %v63
    %v1256 = vmul.f32 %v749, %v63
    %v1257 = vmul.f32 %v754, %v63
    %v1258 = vmul.f32 %v759, %v63
    %v1260 = vsel %vm776, %v1236, 0
    %v1263 = vsel %vm776, %v1238, 0
    %v1266 = vsel %vm776, %v1240, 0
    %v1269 = vsel %vm776, %v1242, 0
    %v1272 = vsel %vm776, %v1244, 0
    %v1275 = vsel %vm776, %v1246, 0
    %v1278 = vsel %vm776, %v1248, 0
    %v1281 = vsel %vm776, %v1250, 0
    %1283 = vmatprep.subr.mxu0 0.0
    %1284 = vmatpush1.msra.mxu0 %v1251
    %1285 = vmatprep.subr.mxu0 0.0
    %1286 = vmatpush1.msra.mxu0 %v1252
    %1287 = vmatprep.subr.mxu0 0.0
    %1288 = vmatpush1.msra.mxu0 %v1253
    %1289 = vmatprep.subr.mxu0 0.0
    %1290 = vmatpush1.msra.mxu0 %v1254
    %1291 = vmatprep.subr.mxu0 0.0
    %1292 = vmatpush1.msra.mxu0 %v1255
    %1293 = vmatprep.subr.mxu0 0.0
    %1294 = vmatpush1.msra.mxu0 %v1256
    %1295 = vmatprep.subr.mxu0 0.0
    %1296 = vmatpush1.msra.mxu0 %v1257
    %1297 = vmatprep.subr.mxu0 0.0
    %1298 = vmatpush1.msra.mxu0 %v1258
    %1299 = vmatprep.subr.mxu0 0.0
    %1300 = vmatpush1.msra.mxu0 0.0
    %1301 = vmatprep.subr.mxu0 0.0
    %1302 = vmatpush1.msra.mxu0 0.0
    %1303 = vmatprep.subr.mxu0 0.0
    %1304 = vmatpush1.msra.mxu0 0.0
    %1305 = vmatprep.subr.mxu0 0.0
    %1306 = vmatpush1.msra.mxu0 0.0
    %1307 = vmatprep.subr.mxu0 0.0
    %1308 = vmatpush1.msra.mxu0 0.0
    %1309 = vmatprep.subr.mxu0 0.0
    %1310 = vmatpush1.msra.mxu0 0.0
    %1311 = vmatprep.subr.mxu0 0.0
    %1312 = vmatpush1.msra.mxu0 0.0
    %1313 = vmatprep.subr.mxu0 0.0
    %1314 = vmatpush1.msra.mxu0 0.0
    %1315 = vmatprep.subr.mxu0 0.0
    %1316 = vmatpush1.msra.mxu0 0.0
    %1317 = vmatprep.subr.mxu0 0.0
    %1318 = vmatpush1.msra.mxu0 0.0
    %1319 = vmatprep.subr.mxu0 0.0
    %1320 = vmatpush1.msra.mxu0 0.0
    %1321 = vmatprep.subr.mxu0 0.0
    %1322 = vmatpush1.msra.mxu0 0.0
    %1323 = vmatprep.subr.mxu0 0.0
    %1324 = vmatpush1.msra.mxu0 0.0
    %1325 = vmatprep.subr.mxu0 0.0
    %1326 = vmatpush1.msra.mxu0 0.0
    %1327 = vmatprep.subr.mxu0 0.0
    %1328 = vmatpush1.msra.mxu0 0.0
    %1329 = vmatprep.subr.mxu0 0.0
    %1330 = vmatpush1.msra.mxu0 0.0
    %1331 = vmatprep.subr.mxu0 0.0
    %1332 = vmatpush1.msra.mxu0 0.0
    %1333 = vmatprep.subr.mxu0 0.0
    %1334 = vmatpush1.msra.mxu0 0.0
    %1335 = vmatprep.subr.mxu0 0.0
    %1336 = vmatpush1.msra.mxu0 0.0
    %1337 = vmatprep.subr.mxu0 0.0
    %1338 = vmatpush1.msra.mxu0 0.0
    %1339 = vmatprep.subr.mxu0 0.0
    %1340 = vmatpush1.msra.mxu0 0.0
    %1341 = vmatprep.subr.mxu0 0.0
    %1342 = vmatpush1.msra.mxu0 0.0
    %1343 = vmatprep.subr.mxu0 0.0
    %1344 = vmatpush1.msra.mxu0 0.0
    %1345 = vmatprep.subr.mxu0 0.0
    %1346 = vmatpush1.msra.mxu0 0.0
    %1347 = vmatprep.mubr.f32.mxu0 0.0
    %1348 = vmatmul.mubr.f32.gmra.mrb[0].mxu0 %v1260
    %v1349 = vpop.f32.mrb[0].mxu0
    %v1350 = vadd.f32 0.0, %v1349
    %v1351 = vpop.f32.mrb[0].mxu0
    %1352 = vmatprep.mubr.f32.mxu0 0.0
    %1353 = vmatmul.mubr.f32.gmra.mrb[0].mxu0 %v1263
    %v1354 = vpop.f32.mrb[0].mxu0
    %v1355 = vadd.f32 0.0, %v1354
    %v1356 = vpop.f32.mrb[0].mxu0
    %1357 = vmatprep.mubr.f32.mxu0 0.0
    %1358 = vmatmul.mubr.f32.gmra.mrb[0].mxu0 %v1266
    %v1359 = vpop.f32.mrb[0].mxu0
    %v1360 = vadd.f32 0.0, %v1359
    %v1361 = vpop.f32.mrb[0].mxu0
    %1362 = vmatprep.mubr.f32.mxu0 0.0
    %1363 = vmatmul.mubr.f32.gmra.mrb[0].mxu0 %v1269
    %v1364 = vpop.f32.mrb[0].mxu0
    %v1365 = vadd.f32 0.0, %v1364
    %v1366 = vpop.f32.mrb[0].mxu0
    %1367 = vmatprep.mubr.f32.mxu0 0.0
    %1368 = vmatmul.mubr.f32.gmra.mrb[0].mxu0 %v1272
    %v1369 = vpop.f32.mrb[0].mxu0
    %v1370 = vadd.f32 0.0, %v1369
    %v1371 = vpop.f32.mrb[0].mxu0
    %1372 = vmatprep.mubr.f32.mxu0 0.0
    %1373 = vmatmul.mubr.f32.gmra.mrb[0].mxu0 %v1275
    %v1374 = vpop.f32.mrb[0].mxu0
    %v1375 = vadd.f32 0.0, %v1374
    %v1376 = vpop.f32.mrb[0].mxu0
    %1377 = vmatprep.mubr.f32.mxu0 0.0
    %1378 = vmatmul.mubr.f32.gmra.mrb[0].mxu0 %v1278
    %v1379 = vpop.f32.mrb[0].mxu0
    %v1380 = vadd.f32 0.0, %v1379
    %v1381 = vpop.f32.mrb[0].mxu0
    %1382 = vmatprep.mubr.f32.mxu0 0.0
    %1383 = vmatmul.mubr.f32.gmra.mrb[0].mxu0 %v1281
    %v1384 = vpop.f32.mrb[0].mxu0
    %v1385 = vadd.f32 0.0, %v1384
    %v1386 = vpop.f32.mrb[0].mxu0
    %1387 = vdwg.mxu0
    %v1389 = vsel %vm776, %v1003, 0
    %v1392 = vsel %vm776, %v1005, 0
    %v1395 = vsel %vm776, %v1007, 0
    %v1398 = vsel %vm776, %v1009, 0
    %v1401 = vsel %vm776, %v1011, 0
    %v1404 = vsel %vm776, %v1013, 0
    %v1407 = vsel %vm776, %v1015, 0
    %v1410 = vsel %vm776, %v1017, 0
    %1412 = vmatprep.subr.mxu0 0.0
    %1413 = vmatpush1.msra.mxu0 %v1018
    %1414 = vmatprep.subr.mxu0 0.0
    %1415 = vmatpush1.msra.mxu0 %v1019
    %1416 = vmatprep.subr.mxu0 0.0
    %1417 = vmatpush1.msra.mxu0 %v1020
    %1418 = vmatprep.subr.mxu0 0.0
    %1419 = vmatpush1.msra.mxu0 %v1021
    %1420 = vmatprep.subr.mxu0 0.0
    %1421 = vmatpush1.msra.mxu0 %v1022
    %1422 = vmatprep.subr.mxu0 0.0
    %1423 = vmatpush1.msra.mxu0 %v1023
    %1424 = vmatprep.subr.mxu0 0.0
    %1425 = vmatpush1.msra.mxu0 %v1024
    %1426 = vmatprep.subr.mxu0 0.0
    %1427 = vmatpush1.msra.mxu0 %v1025
    %1428 = vmatprep.subr.mxu0 0.0
    %1429 = vmatpush1.msra.mxu0 0.0
    %1430 = vmatprep.subr.mxu0 0.0
    %1431 = vmatpush1.msra.mxu0 0.0
    %1432 = vmatprep.subr.mxu0 0.0
    %1433 = vmatpush1.msra.mxu0 0.0
    %1434 = vmatprep.subr.mxu0 0.0
    %1435 = vmatpush1.msra.mxu0 0.0
    %1436 = vmatprep.subr.mxu0 0.0
    %1437 = vmatpush1.msra.mxu0 0.0
    %1438 = vmatprep.subr.mxu0 0.0
    %1439 = vmatpush1.msra.mxu0 0.0
    %1440 = vmatprep.subr.mxu0 0.0
    %1441 = vmatpush1.msra.mxu0 0.0
    %1442 = vmatprep.subr.mxu0 0.0
    %1443 = vmatpush1.msra.mxu0 0.0
    %1444 = vmatprep.subr.mxu0 0.0
    %1445 = vmatpush1.msra.mxu0 0.0
    %1446 = vmatprep.subr.mxu0 0.0
    %1447 = vmatpush1.msra.mxu0 0.0
    %1448 = vmatprep.subr.mxu0 0.0
    %1449 = vmatpush1.msra.mxu0 0.0
    %1450 = vmatprep.subr.mxu0 0.0
    %1451 = vmatpush1.msra.mxu0 0.0
    %1452 = vmatprep.subr.mxu0 0.0
    %1453 = vmatpush1.msra.mxu0 0.0
    %1454 = vmatprep.subr.mxu0 0.0
    %1455 = vmatpush1.msra.mxu0 0.0
    %1456 = vmatprep.subr.mxu0 0.0
    %1457 = vmatpush1.msra.mxu0 0.0
    %1458 = vmatprep.subr.mxu0 0.0
    %1459 = vmatpush1.msra.mxu0 0.0
    %1460 = vmatprep.subr.mxu0 0.0
    %1461 = vmatpush1.msra.mxu0 0.0
    %1462 = vmatprep.subr.mxu0 0.0
    %1463 = vmatpush1.msra.mxu0 0.0
    %1464 = vmatprep.subr.mxu0 0.0
    %1465 = vmatpush1.msra.mxu0 0.0
    %1466 = vmatprep.subr.mxu0 0.0
    %1467 = vmatpush1.msra.mxu0 0.0
    %1468 = vmatprep.subr.mxu0 0.0
    %1469 = vmatpush1.msra.mxu0 0.0
    %1470 = vmatprep.subr.mxu0 0.0
    %1471 = vmatpush1.msra.mxu0 0.0
    %1472 = vmatprep.subr.mxu0 0.0
    %1473 = vmatpush1.msra.mxu0 0.0
    %1474 = vmatprep.subr.mxu0 0.0
    %1475 = vmatpush1.msra.mxu0 0.0
    %1476 = vmatprep.mubr.f32.mxu0 0.0
    %1477 = vmatmul.mubr.f32.gmra.mrb[0].mxu0 %v1389
    %v1478 = vpop.f32.mrb[0].mxu0
    %v1479 = vadd.f32 %v1350, %v1478
    %v1480 = vpop.f32.mrb[0].mxu0
    %1481 = vmatprep.mubr.f32.mxu0 0.0
    %1482 = vmatmul.mubr.f32.gmra.mrb[0].mxu0 %v1392
    %v1483 = vpop.f32.mrb[0].mxu0
    %v1484 = vadd.f32 %v1355, %v1483
    %v1485 = vpop.f32.mrb[0].mxu0
    %1486 = vmatprep.mubr.f32.mxu0 0.0
    %1487 = vmatmul.mubr.f32.gmra.mrb[0].mxu0 %v1395
    %v1488 = vpop.f32.mrb[0].mxu0
    %v1489 = vadd.f32 %v1360, %v1488
    %v1490 = vpop.f32.mrb[0].mxu0
    %1491 = vmatprep.mubr.f32.mxu0 0.0
    %1492 = vmatmul.mubr.f32.gmra.mrb[0].mxu0 %v1398
    %v1493 = vpop.f32.mrb[0].mxu0
    %v1494 = vadd.f32 %v1365, %v1493
    %v1495 = vpop.f32.mrb[0].mxu0
    %1496 = vmatprep.mubr.f32.mxu0 0.0
    %1497 = vmatmul.mubr.f32.gmra.mrb[0].mxu0 %v1401
    %v1498 = vpop.f32.mrb[0].mxu0
    %v1499 = vadd.f32 %v1370, %v1498
    %v1500 = vpop.f32.mrb[0].mxu0
    %1501 = vmatprep.mubr.f32.mxu0 0.0
    %1502 = vmatmul.mubr.f32.gmra.mrb[0].mxu0 %v1404
    %v1503 = vpop.f32.mrb[0].mxu0
    %v1504 = vadd.f32 %v1375, %v1503
    %v1505 = vpop.f32.mrb[0].mxu0
    %1506 = vmatprep.mubr.f32.mxu0 0.0
    %1507 = vmatmul.mubr.f32.gmra.mrb[0].mxu0 %v1407
    %v1508 = vpop.f32.mrb[0].mxu0
    %v1509 = vadd.f32 %v1380, %v1508
    %v1510 = vpop.f32.mrb[0].mxu0
    %1511 = vmatprep.mubr.f32.mxu0 0.0
    %1512 = vmatmul.mubr.f32.gmra.mrb[0].mxu0 %v1410
    %v1513 = vpop.f32.mrb[0].mxu0
    %v1514 = vadd.f32 %v1385, %v1513
    %v1515 = vpop.f32.mrb[0].mxu0
    %1516 = vdwg.mxu0
    %v1517 = vld [vmem:[%s0] sm:$0xff]
    %v1518 = vld [vmem:[%s0 + $0x8] sm:$0xff]
    %v1519 = vld [vmem:[%s0 + $0x10] sm:$0xff]
    %v1520 = vld [vmem:[%s0 + $0x18] sm:$0xff]
    %v1521 = vld [vmem:[%s0 + $0x20] sm:$0xff]
    %v1522 = vld [vmem:[%s0 + $0x28] sm:$0xff]
    %v1523 = vld [vmem:[%s0 + $0x30] sm:$0x7f]
    %s1524 = scalar_lea.vmem %s7, 64
    %v1525 = vld [vmem:[%s1524] sm:$0xff]
    %v1526 = vld [vmem:[%s1524 + $0x8] sm:$0xff]
    %v1527 = vld [vmem:[%s1524 + $0x10] sm:$0xff]
    %v1528 = vld [vmem:[%s1524 + $0x18] sm:$0xff]
    %s1529 = scalar_lea.vmem %s7, 96
    %v1530 = vld [vmem:[%s1529] sm:$0xff]
    %v1531 = vld [vmem:[%s1529 + $0x8] sm:$0xff]
    %v1532 = vld [vmem:[%s1529 + $0x10] sm:$0xff]
    %v1533 = vld [vmem:[%s1529 + $0x18] sm:$0xff]
    %v1534 = vlaneseq
    %v1535 = vshrl.u32 %v1534, 7
    %v1536 = vsub.s32 2, %v1535
    %v1537 = vrot.slane %v95, %v1536
    %1538 = vmatprep.subr.mxu0 0.0
    %1539 = vmatpush1.msra.mxu0 %v1525
    %1540 = vmatprep.subr.mxu0 0.0
    %1541 = vmatpush1.msra.mxu0 %v1526
    %1542 = vmatprep.subr.mxu0 0.0
    %1543 = vmatpush1.msra.mxu0 %v1527
    %1544 = vmatprep.subr.mxu0 0.0
    %1545 = vmatpush1.msra.mxu0 %v1528
    %1546 = vmatprep.subr.mxu0 0.0
    %1547 = vmatpush1.msra.mxu0 0.0
    %1548 = vmatprep.subr.mxu0 0.0
    %1549 = vmatpush1.msra.mxu0 0.0
    %1550 = vmatprep.subr.mxu0 0.0
    %1551 = vmatpush1.msra.mxu0 0.0
    %1552 = vmatprep.subr.mxu0 0.0
    %1553 = vmatpush1.msra.mxu0 0.0
    %1554 = vmatprep.subr.mxu0 0.0
    %1555 = vmatpush1.msra.mxu0 0.0
    %1556 = vmatprep.subr.mxu0 0.0
    %1557 = vmatpush1.msra.mxu0 0.0
    %1558 = vmatprep.subr.mxu0 0.0
    %1559 = vmatpush1.msra.mxu0 0.0
    %1560 = vmatprep.subr.mxu0 0.0
    %1561 = vmatpush1.msra.mxu0 0.0
    %1562 = vmatprep.subr.mxu0 0.0
    %1563 = vmatpush1.msra.mxu0 0.0
    %1564 = vmatprep.subr.mxu0 0.0
    %1565 = vmatpush1.msra.mxu0 0.0
    %1566 = vmatprep.subr.mxu0 0.0
    %1567 = vmatpush1.msra.mxu0 0.0
    %1568 = vmatprep.subr.mxu0 0.0
    %1569 = vmatpush1.msra.mxu0 0.0
    %1570 = vmatprep.subr.mxu0 0.0
    %1571 = vmatpush1.msra.mxu0 0.0
    %1572 = vmatprep.subr.mxu0 0.0
    %1573 = vmatpush1.msra.mxu0 0.0
    %1574 = vmatprep.subr.mxu0 0.0
    %1575 = vmatpush1.msra.mxu0 0.0
    %1576 = vmatprep.subr.mxu0 0.0
    %1577 = vmatpush1.msra.mxu0 0.0
    %1578 = vmatprep.subr.mxu0 0.0
    %1579 = vmatpush1.msra.mxu0 0.0
    %1580 = vmatprep.subr.mxu0 0.0
    %1581 = vmatpush1.msra.mxu0 0.0
    %1582 = vmatprep.subr.mxu0 0.0
    %1583 = vmatpush1.msra.mxu0 0.0
    %1584 = vmatprep.subr.mxu0 0.0
    %1585 = vmatpush1.msra.mxu0 0.0
    %1586 = vmatprep.subr.mxu0 0.0
    %1587 = vmatpush1.msra.mxu0 0.0
    %1588 = vmatprep.subr.mxu0 0.0
    %1589 = vmatpush1.msra.mxu0 0.0
    %1590 = vmatprep.subr.mxu0 0.0
    %1591 = vmatpush1.msra.mxu0 0.0
    %1592 = vmatprep.subr.mxu0 0.0
    %1593 = vmatpush1.msra.mxu0 0.0
    %1594 = vmatprep.subr.mxu0 0.0
    %1595 = vmatpush1.msra.mxu0 0.0
    %1596 = vmatprep.subr.mxu0 0.0
    %1597 = vmatpush1.msra.mxu0 0.0
    %1598 = vmatprep.subr.mxu0 0.0
    %1599 = vmatpush1.msra.mxu0 0.0
    %1600 = vmatprep.subr.mxu0 0.0
    %1601 = vmatpush1.msra.mxu0 0.0
    %1602 = vmatprep.mubr.f32.mxu0 0.0
    %1603 = vmatmul.mubr.f32.gmra.mrb[0].mxu0 %v501
    %v1604 = vpop.f32.mrb[0].mxu0
    %v1605 = vadd.f32 %v1537, %v1604
    %v1606 = vpop.f32.mrb[0].mxu0
    %1607 = vmatprep.mubr.f32.mxu0 0.0
    %1608 = vmatmul.mubr.f32.gmra.mrb[0].mxu0 %v504
    %v1609 = vpop.f32.mrb[0].mxu0
    %v1610 = vadd.f32 %v1537, %v1609
    %v1611 = vpop.f32.mrb[0].mxu0
    %1612 = vmatprep.mubr.f32.mxu0 0.0
    %1613 = vmatmul.mubr.f32.gmra.mrb[0].mxu0 %v507
    %v1614 = vpop.f32.mrb[0].mxu0
    %v1615 = vadd.f32 %v1537, %v1614
    %v1616 = vpop.f32.mrb[0].mxu0
    %1617 = vmatprep.mubr.f32.mxu0 0.0
    %1618 = vmatmul.mubr.f32.gmra.mrb[0].mxu0 %v510
    %v1619 = vpop.f32.mrb[0].mxu0
    %v1620 = vadd.f32 %v1537, %v1619
    %v1621 = vpop.f32.mrb[0].mxu0
    %1622 = vmatprep.mubr.f32.mxu0 0.0
    %1623 = vmatmul.mubr.f32.gmra.mrb[0].mxu0 %v513
    %v1624 = vpop.f32.mrb[0].mxu0
    %v1625 = vadd.f32 %v1537, %v1624
    %v1626 = vpop.f32.mrb[0].mxu0
    %1627 = vmatprep.mubr.f32.mxu0 0.0
    %1628 = vmatmul.mubr.f32.gmra.mrb[0].mxu0 %v516
    %v1629 = vpop.f32.mrb[0].mxu0
    %v1630 = vadd.f32 %v1537, %v1629
    %v1631 = vpop.f32.mrb[0].mxu0
    %1632 = vmatprep.mubr.f32.mxu0 0.0
    %1633 = vmatmul.mubr.f32.gmra.mrb[0].mxu0 %v519
    %v1634 = vpop.f32.mrb[0].mxu0
    %v1635 = vadd.f32 %v1537, %v1634
    %v1636 = vpop.f32.mrb[0].mxu0
    %1637 = vmatprep.mubr.f32.mxu0 0.0
    %1638 = vmatmul.mubr.f32.gmra.mrb[0].mxu0 %v522
    %v1639 = vpop.f32.mrb[0].mxu0
    %v1640 = vadd.f32 %v1537, %v1639
    %v1641 = vpop.f32.mrb[0].mxu0
    %1642 = vdwg.mxu0
    %v1643 = vlaneseq
    %v1644 = vshrl.u32 %v1643, 7
    %v1645 = vsub.s32 3, %v1644
    %v1646 = vrot.slane %v95, %v1645
    %v1648 = vsel %vm238, %v1517, 0
    %v1651 = vsel %vm238, %v1518, 0
    %v1654 = vsel %vm238, %v1519, 0
    %v1657 = vsel %vm238, %v1520, 0
    %v1660 = vsel %vm238, %v1521, 0
    %v1663 = vsel %vm238, %v1522, 0
    %v1666 = vsel %vm238, %v1523, 0
    %1668 = vmatprep.subr.mxu0 0.0
    %1669 = vmatpush1.msra.mxu0 %v1530
    %1670 = vmatprep.subr.mxu0 0.0
    %1671 = vmatpush1.msra.mxu0 %v1531
    %1672 = vmatprep.subr.mxu0 0.0
    %1673 = vmatpush1.msra.mxu0 %v1532
    %1674 = vmatprep.subr.mxu0 0.0
    %1675 = vmatpush1.msra.mxu0 %v1533
    %1676 = vmatprep.subr.mxu0 0.0
    %1677 = vmatpush1.msra.mxu0 0.0
    %1678 = vmatprep.subr.mxu0 0.0
    %1679 = vmatpush1.msra.mxu0 0.0
    %1680 = vmatprep.subr.mxu0 0.0
    %1681 = vmatpush1.msra.mxu0 0.0
    %1682 = vmatprep.subr.mxu0 0.0
    %1683 = vmatpush1.msra.mxu0 0.0
    %1684 = vmatprep.subr.mxu0 0.0
    %1685 = vmatpush1.msra.mxu0 0.0
    %1686 = vmatprep.subr.mxu0 0.0
    %1687 = vmatpush1.msra.mxu0 0.0
    %1688 = vmatprep.subr.mxu0 0.0
    %1689 = vmatpush1.msra.mxu0 0.0
    %1690 = vmatprep.subr.mxu0 0.0
    %1691 = vmatpush1.msra.mxu0 0.0
    %1692 = vmatprep.subr.mxu0 0.0
    %1693 = vmatpush1.msra.mxu0 0.0
    %1694 = vmatprep.subr.mxu0 0.0
    %1695 = vmatpush1.msra.mxu0 0.0
    %1696 = vmatprep.subr.mxu0 0.0
    %1697 = vmatpush1.msra.mxu0 0.0
    %1698 = vmatprep.subr.mxu0 0.0
    %1699 = vmatpush1.msra.mxu0 0.0
    %1700 = vmatprep.subr.mxu0 0.0
    %1701 = vmatpush1.msra.mxu0 0.0
    %1702 = vmatprep.subr.mxu0 0.0
    %1703 = vmatpush1.msra.mxu0 0.0
    %1704 = vmatprep.subr.mxu0 0.0
    %1705 = vmatpush1.msra.mxu0 0.0
    %1706 = vmatprep.subr.mxu0 0.0
    %1707 = vmatpush1.msra.mxu0 0.0
    %1708 = vmatprep.subr.mxu0 0.0
    %1709 = vmatpush1.msra.mxu0 0.0
    %1710 = vmatprep.subr.mxu0 0.0
    %1711 = vmatpush1.msra.mxu0 0.0
    %1712 = vmatprep.subr.mxu0 0.0
    %1713 = vmatpush1.msra.mxu0 0.0
    %1714 = vmatprep.subr.mxu0 0.0
    %1715 = vmatpush1.msra.mxu0 0.0
    %1716 = vmatprep.subr.mxu0 0.0
    %1717 = vmatpush1.msra.mxu0 0.0
    %1718 = vmatprep.subr.mxu0 0.0
    %1719 = vmatpush1.msra.mxu0 0.0
    %1720 = vmatprep.subr.mxu0 0.0
    %1721 = vmatpush1.msra.mxu0 0.0
    %1722 = vmatprep.subr.mxu0 0.0
    %1723 = vmatpush1.msra.mxu0 0.0
    %1724 = vmatprep.subr.mxu0 0.0
    %1725 = vmatpush1.msra.mxu0 0.0
    %1726 = vmatprep.subr.mxu0 0.0
    %1727 = vmatpush1.msra.mxu0 0.0
    %1728 = vmatprep.subr.mxu0 0.0
    %1729 = vmatpush1.msra.mxu0 0.0
    %1730 = vmatprep.subr.mxu0 0.0
    %1731 = vmatpush1.msra.mxu0 0.0
    %1732 = vmatprep.mubr.f32.mxu0 0.0
    %1733 = vmatmul.mubr.f32.gmra.mrb[0].mxu0 %v1648
    %v1734 = vpop.f32.mrb[0].mxu0
    %v1735 = vadd.f32 %v1646, %v1734
    %v1736 = vpop.f32.mrb[0].mxu0
    %1737 = vmatprep.mubr.f32.mxu0 0.0
    %1738 = vmatmul.mubr.f32.gmra.mrb[0].mxu0 %v1651
    %v1739 = vpop.f32.mrb[0].mxu0
    %v1740 = vadd.f32 %v1646, %v1739
    %v1741 = vpop.f32.mrb[0].mxu0
    %1742 = vmatprep.mubr.f32.mxu0 0.0
    %1743 = vmatmul.mubr.f32.gmra.mrb[0].mxu0 %v1654
    %v1744 = vpop.f32.mrb[0].mxu0
    %v1745 = vadd.f32 %v1646, %v1744
    %v1746 = vpop.f32.mrb[0].mxu0
    %1747 = vmatprep.mubr.f32.mxu0 0.0
    %1748 = vmatmul.mubr.f32.gmra.mrb[0].mxu0 %v1657
    %v1749 = vpop.f32.mrb[0].mxu0
    %v1750 = vadd.f32 %v1646, %v1749
    %v1751 = vpop.f32.mrb[0].mxu0
    %1752 = vmatprep.mubr.f32.mxu0 0.0
    %1753 = vmatmul.mubr.f32.gmra.mrb[0].mxu0 %v1660
    %v1754 = vpop.f32.mrb[0].mxu0
    %v1755 = vadd.f32 %v1646, %v1754
    %v1756 = vpop.f32.mrb[0].mxu0
    %1757 = vmatprep.mubr.f32.mxu0 0.0
    %1758 = vmatmul.mubr.f32.gmra.mrb[0].mxu0 %v1663
    %v1759 = vpop.f32.mrb[0].mxu0
    %v1760 = vadd.f32 %v1646, %v1759
    %v1761 = vpop.f32.mrb[0].mxu0
    %1762 = vmatprep.mubr.f32.mxu0 0.0
    %1763 = vmatmul.mubr.f32.gmra.mrb[0].mxu0 %v1666
    %v1764 = vpop.f32.mrb[0].mxu0
    %v1765 = vadd.f32 %v1646, %v1764
    %v1766 = vpop.f32.mrb[0].mxu0
    %1767 = vdwg.mxu0
    %v1768 = vmul.f32 %v1735, %v48
    %v1769 = vmul.f32 %v1740, %v48
    %v1770 = vmul.f32 %v1745, %v48
    %v1771 = vmul.f32 %v1750, %v48
    %v1772 = vmul.f32 %v1755, %v48
    %v1773 = vmul.f32 %v1760, %v48
    %v1774 = vmul.f32 %v1765, %v48
    %v1776 = vlaneseq
    %v1777 = vshrl.u32 %v1776, 7
    %v1778 = vsub.s32 0, %v1777
    %v1779 = vrot.slane %v478, %v1778
    %v1782 = vsel %vm776, %v1605, 0
    %v1785 = vsel %vm776, %v1610, 0
    %v1788 = vsel %vm776, %v1615, 0
    %v1791 = vsel %vm776, %v1620, 0
    %v1794 = vsel %vm776, %v1625, 0
    %v1797 = vsel %vm776, %v1630, 0
    %v1800 = vsel %vm776, %v1635, 0
    %v1803 = vsel %vm776, %v1640, 0
    %v1806 = vsel %vm776, %v1768, 0
    %v1809 = vsel %vm776, %v1769, 0
    %v1812 = vsel %vm776, %v1770, 0
    %v1815 = vsel %vm776, %v1771, 0
    %v1818 = vsel %vm776, %v1772, 0
    %v1821 = vsel %vm776, %v1773, 0
    %v1824 = vsel %vm776, %v1774, 0
    %1826 = vmatprep.subr.mxu0 0.0
    %1827 = vmatpush1.xpose.msra.mxu0 %v1806
    %1828 = vmatprep.subr.mxu0 0.0
    %1829 = vmatpush1.xpose.msra.mxu0 %v1809
    %1830 = vmatprep.subr.mxu0 0.0
    %1831 = vmatpush1.xpose.msra.mxu0 %v1812
    %1832 = vmatprep.subr.mxu0 0.0
    %1833 = vmatpush1.xpose.msra.mxu0 %v1815
    %1834 = vmatprep.subr.mxu0 0.0
    %1835 = vmatpush1.xpose.msra.mxu0 %v1818
    %1836 = vmatprep.subr.mxu0 0.0
    %1837 = vmatpush1.xpose.msra.mxu0 %v1821
    %1838 = vmatprep.subr.mxu0 0.0
    %1839 = vmatpush1.xpose.msra.mxu0 %v1824
    %1840 = vmatprep.subr.mxu0 0.0
    %1841 = vmatpush1.xpose.msra.mxu0 0.0
    %1842 = vmatprep.subr.mxu0 0.0
    %1843 = vmatpush1.xpose.msra.mxu0 0.0
    %1844 = vmatprep.subr.mxu0 0.0
    %1845 = vmatpush1.xpose.msra.mxu0 0.0
    %1846 = vmatprep.subr.mxu0 0.0
    %1847 = vmatpush1.xpose.msra.mxu0 0.0
    %1848 = vmatprep.subr.mxu0 0.0
    %1849 = vmatpush1.xpose.msra.mxu0 0.0
    %1850 = vmatprep.subr.mxu0 0.0
    %1851 = vmatpush1.xpose.msra.mxu0 0.0
    %1852 = vmatprep.subr.mxu0 0.0
    %1853 = vmatpush1.xpose.msra.mxu0 0.0
    %1854 = vmatprep.subr.mxu0 0.0
    %1855 = vmatpush1.xpose.msra.mxu0 0.0
    %1856 = vmatprep.subr.mxu0 0.0
    %1857 = vmatpush1.xpose.msra.mxu0 0.0
    %1858 = vmatprep.subr.mxu0 0.0
    %1859 = vmatpush1.xpose.msra.mxu0 0.0
    %1860 = vmatprep.subr.mxu0 0.0
    %1861 = vmatpush1.xpose.msra.mxu0 0.0
    %1862 = vmatprep.subr.mxu0 0.0
    %1863 = vmatpush1.xpose.msra.mxu0 0.0
    %1864 = vmatprep.subr.mxu0 0.0
    %1865 = vmatpush1.xpose.msra.mxu0 0.0
    %1866 = vmatprep.subr.mxu0 0.0
    %1867 = vmatpush1.xpose.msra.mxu0 0.0
    %1868 = vmatprep.subr.mxu0 0.0
    %1869 = vmatpush1.xpose.msra.mxu0 0.0
    %1870 = vmatprep.subr.mxu0 0.0
    %1871 = vmatpush1.xpose.msra.mxu0 0.0
    %1872 = vmatprep.subr.mxu0 0.0
    %1873 = vmatpush1.xpose.msra.mxu0 0.0
    %1874 = vmatprep.subr.mxu0 0.0
    %1875 = vmatpush1.xpose.msra.mxu0 0.0
    %1876 = vmatprep.subr.mxu0 0.0
    %1877 = vmatpush1.xpose.msra.mxu0 0.0
    %1878 = vmatprep.subr.mxu0 0.0
    %1879 = vmatpush1.xpose.msra.mxu0 0.0
    %1880 = vmatprep.subr.mxu0 0.0
    %1881 = vmatpush1.xpose.msra.mxu0 0.0
    %1882 = vmatprep.subr.mxu0 0.0
    %1883 = vmatpush1.xpose.msra.mxu0 0.0
    %1884 = vmatprep.subr.mxu0 0.0
    %1885 = vmatpush1.xpose.msra.mxu0 0.0
    %1886 = vmatprep.subr.mxu0 0.0
    %1887 = vmatpush1.xpose.msra.mxu0 0.0
    %1888 = vmatprep.subr.mxu0 0.0
    %1889 = vmatpush1.xpose.msra.mxu0 0.0
    %1890 = vmatprep.mubr.f32.mxu0 0.0
    %1891 = vmatmul.mubr.f32.gmra.mrb[0].mxu0 %v1782
    %v1892 = vpop.f32.mrb[0].mxu0
    %v1893 = vadd.f32 %v1779, %v1892
    %v1894 = vpop.f32.mrb[0].mxu0
    %1895 = vmatprep.mubr.f32.mxu0 0.0
    %1896 = vmatmul.mubr.f32.gmra.mrb[0].mxu0 %v1785
    %v1897 = vpop.f32.mrb[0].mxu0
    %v1898 = vadd.f32 %v1779, %v1897
    %v1899 = vpop.f32.mrb[0].mxu0
    %1900 = vmatprep.mubr.f32.mxu0 0.0
    %1901 = vmatmul.mubr.f32.gmra.mrb[0].mxu0 %v1788
    %v1902 = vpop.f32.mrb[0].mxu0
    %v1903 = vadd.f32 %v1779, %v1902
    %v1904 = vpop.f32.mrb[0].mxu0
    %1905 = vmatprep.mubr.f32.mxu0 0.0
    %1906 = vmatmul.mubr.f32.gmra.mrb[0].mxu0 %v1791
    %v1907 = vpop.f32.mrb[0].mxu0
    %v1908 = vadd.f32 %v1779, %v1907
    %v1909 = vpop.f32.mrb[0].mxu0
    %1910 = vmatprep.mubr.f32.mxu0 0.0
    %1911 = vmatmul.mubr.f32.gmra.mrb[0].mxu0 %v1794
    %v1912 = vpop.f32.mrb[0].mxu0
    %v1913 = vadd.f32 %v1779, %v1912
    %v1914 = vpop.f32.mrb[0].mxu0
    %1915 = vmatprep.mubr.f32.mxu0 0.0
    %1916 = vmatmul.mubr.f32.gmra.mrb[0].mxu0 %v1797
    %v1917 = vpop.f32.mrb[0].mxu0
    %v1918 = vadd.f32 %v1779, %v1917
    %v1919 = vpop.f32.mrb[0].mxu0
    %1920 = vmatprep.mubr.f32.mxu0 0.0
    %1921 = vmatmul.mubr.f32.gmra.mrb[0].mxu0 %v1800
    %v1922 = vpop.f32.mrb[0].mxu0
    %v1923 = vadd.f32 %v1779, %v1922
    %v1924 = vpop.f32.mrb[0].mxu0
    %1925 = vmatprep.mubr.f32.mxu0 0.0
    %1926 = vmatmul.mubr.f32.gmra.mrb[0].mxu0 %v1803
    %v1927 = vpop.f32.mrb[0].mxu0
    %v1928 = vadd.f32 %v1779, %v1927
    %v1929 = vpop.f32.mrb[0].mxu0
    %1930 = vdwg.mxu0
    %vm1931 = vcmask 449536
    %v1932 = vsel %vm1931, %v1893, -inf
    %1933 = vmax.xlane.f32.xlu0 %v1932
    %v1934 = vpop.xlane.xlu0 %1933
    %v1935 = vsel %vm1931, %v1898, -inf
    %1936 = vmax.xlane.f32.xlu0 %v1935
    %v1937 = vpop.xlane.xlu0 %1936
    %v1938 = vsel %vm1931, %v1903, -inf
    %1939 = vmax.xlane.f32.xlu0 %v1938
    %v1940 = vpop.xlane.xlu0 %1939
    %v1941 = vsel %vm1931, %v1908, -inf
    %1942 = vmax.xlane.f32.xlu0 %v1941
    %v1943 = vpop.xlane.xlu0 %1942
    %v1944 = vsel %vm1931, %v1913, -inf
    %1945 = vmax.xlane.f32.xlu0 %v1944
    %v1946 = vpop.xlane.xlu0 %1945
    %v1947 = vsel %vm1931, %v1918, -inf
    %1948 = vmax.xlane.f32.xlu0 %v1947
    %v1949 = vpop.xlane.xlu0 %1948
    %v1950 = vsel %vm1931, %v1923, -inf
    %1951 = vmax.xlane.f32.xlu0 %v1950
    %v1952 = vpop.xlane.xlu0 %1951
    %v1953 = vsel %vm1931, %v1928, -inf
    %1954 = vmax.xlane.f32.xlu0 %v1953
    %v1955 = vpop.xlane.xlu0 %1954
    %v1956 = vsub.f32 %v1893, %v1934
    %v1957 = vsub.f32 %v1898, %v1937
    %v1958 = vsub.f32 %v1903, %v1940
    %v1959 = vsub.f32 %v1908, %v1943
    %v1960 = vsub.f32 %v1913, %v1946
    %v1961 = vsub.f32 %v1918, %v1949
    %v1962 = vsub.f32 %v1923, %v1952
    %v1963 = vsub.f32 %v1928, %v1955
    %v1964 = vmul.f32 %v1956, 1.442695
    %v1965 = vpow.pop %v1964
    %v1966 = vmul.f32 %v1957, 1.442695
    %v1967 = vpow.pop %v1966
    %v1968 = vmul.f32 %v1958, 1.442695
    %v1969 = vpow.pop %v1968
    %v1970 = vmul.f32 %v1959, 1.442695
    %v1971 = vpow.pop %v1970
    %v1972 = vmul.f32 %v1960, 1.442695
    %v1973 = vpow.pop %v1972
    %v1974 = vmul.f32 %v1961, 1.442695
    %v1975 = vpow.pop %v1974
    %v1976 = vmul.f32 %v1962, 1.442695
    %v1977 = vpow.pop %v1976
    %v1978 = vmul.f32 %v1963, 1.442695
    %v1979 = vpow.pop %v1978
    %v1980 = vsel %vm1931, %v1965, 0.0
    %1981 = vadd.xlane.f32.xlu0 %v1980
    %v1982 = vpop.xlane.xlu0 %1981
    %v1983 = vsel %vm1931, %v1967, 0.0
    %1984 = vadd.xlane.f32.xlu0 %v1983
    %v1985 = vpop.xlane.xlu0 %1984
    %v1986 = vsel %vm1931, %v1969, 0.0
    %1987 = vadd.xlane.f32.xlu0 %v1986
    %v1988 = vpop.xlane.xlu0 %1987
    %v1989 = vsel %vm1931, %v1971, 0.0
    %1990 = vadd.xlane.f32.xlu0 %v1989
    %v1991 = vpop.xlane.xlu0 %1990
    %v1992 = vsel %vm1931, %v1973, 0.0
    %1993 = vadd.xlane.f32.xlu0 %v1992
    %v1994 = vpop.xlane.xlu0 %1993
    %v1995 = vsel %vm1931, %v1975, 0.0
    %1996 = vadd.xlane.f32.xlu0 %v1995
    %v1997 = vpop.xlane.xlu0 %1996
    %v1998 = vsel %vm1931, %v1977, 0.0
    %1999 = vadd.xlane.f32.xlu0 %v1998
    %v2000 = vpop.xlane.xlu0 %1999
    %v2001 = vsel %vm1931, %v1979, 0.0
    %2002 = vadd.xlane.f32.xlu0 %v2001
    %v2003 = vpop.xlane.xlu0 %2002
    %v2004 = vrcp.pop %v1982
    %v2005 = vmul.f32 %v1965, %v2004
    %v2006 = vrcp.pop %v1985
    %v2007 = vmul.f32 %v1967, %v2006
    %v2008 = vrcp.pop %v1988
    %v2009 = vmul.f32 %v1969, %v2008
    %v2010 = vrcp.pop %v1991
    %v2011 = vmul.f32 %v1971, %v2010
    %v2012 = vrcp.pop %v1994
    %v2013 = vmul.f32 %v1973, %v2012
    %v2014 = vrcp.pop %v1997
    %v2015 = vmul.f32 %v1975, %v2014
    %v2016 = vrcp.pop %v2000
    %v2017 = vmul.f32 %v1977, %v2016
    %v2018 = vrcp.pop %v2003
    %v2019 = vmul.f32 %v1979, %v2018
    %v2020 = vmul.f32 %v1735, %v58
    %v2021 = vmul.f32 %v1740, %v58
    %v2022 = vmul.f32 %v1745, %v58
    %v2023 = vmul.f32 %v1750, %v58
    %v2024 = vmul.f32 %v1755, %v58
    %v2025 = vmul.f32 %v1760, %v58
    %v2026 = vmul.f32 %v1765, %v58
    %v2027 = vmul.f32 %v1735, %v53
    %v2028 = vmul.f32 %v1740, %v53
    %v2029 = vmul.f32 %v1745, %v53
    %v2030 = vmul.f32 %v1750, %v53
    %v2031 = vmul.f32 %v1755, %v53
    %v2032 = vmul.f32 %v1760, %v53
    %v2033 = vmul.f32 %v1765, %v53
    %v2035 = vsel %vm776, %v2027, 0
    %v2038 = vsel %vm776, %v2028, 0
    %v2041 = vsel %vm776, %v2029, 0
    %v2044 = vsel %vm776, %v2030, 0
    %v2047 = vsel %vm776, %v2031, 0
    %v2050 = vsel %vm776, %v2032, 0
    %v2053 = vsel %vm776, %v2033, 0
    %2055 = vmatprep.subr.mxu0 0.0
    %2056 = vmatpush1.xpose.msra.mxu0 %v2035
    %2057 = vmatprep.subr.mxu0 0.0
    %2058 = vmatpush1.xpose.msra.mxu0 %v2038
    %2059 = vmatprep.subr.mxu0 0.0
    %2060 = vmatpush1.xpose.msra.mxu0 %v2041
    %2061 = vmatprep.subr.mxu0 0.0
    %2062 = vmatpush1.xpose.msra.mxu0 %v2044
    %2063 = vmatprep.subr.mxu0 0.0
    %2064 = vmatpush1.xpose.msra.mxu0 %v2047
    %2065 = vmatprep.subr.mxu0 0.0
    %2066 = vmatpush1.xpose.msra.mxu0 %v2050
    %2067 = vmatprep.subr.mxu0 0.0
    %2068 = vmatpush1.xpose.msra.mxu0 %v2053
    %2069 = vmatprep.subr.mxu0 0.0
    %2070 = vmatpush1.xpose.msra.mxu0 0.0
    %2071 = vmatprep.subr.mxu0 0.0
    %2072 = vmatpush1.xpose.msra.mxu0 0.0
    %2073 = vmatprep.subr.mxu0 0.0
    %2074 = vmatpush1.xpose.msra.mxu0 0.0
    %2075 = vmatprep.subr.mxu0 0.0
    %2076 = vmatpush1.xpose.msra.mxu0 0.0
    %2077 = vmatprep.subr.mxu0 0.0
    %2078 = vmatpush1.xpose.msra.mxu0 0.0
    %2079 = vmatprep.subr.mxu0 0.0
    %2080 = vmatpush1.xpose.msra.mxu0 0.0
    %2081 = vmatprep.subr.mxu0 0.0
    %2082 = vmatpush1.xpose.msra.mxu0 0.0
    %2083 = vmatprep.subr.mxu0 0.0
    %2084 = vmatpush1.xpose.msra.mxu0 0.0
    %2085 = vmatprep.subr.mxu0 0.0
    %2086 = vmatpush1.xpose.msra.mxu0 0.0
    %2087 = vmatprep.subr.mxu0 0.0
    %2088 = vmatpush1.xpose.msra.mxu0 0.0
    %2089 = vmatprep.subr.mxu0 0.0
    %2090 = vmatpush1.xpose.msra.mxu0 0.0
    %2091 = vmatprep.subr.mxu0 0.0
    %2092 = vmatpush1.xpose.msra.mxu0 0.0
    %2093 = vmatprep.subr.mxu0 0.0
    %2094 = vmatpush1.xpose.msra.mxu0 0.0
    %2095 = vmatprep.subr.mxu0 0.0
    %2096 = vmatpush1.xpose.msra.mxu0 0.0
    %2097 = vmatprep.subr.mxu0 0.0
    %2098 = vmatpush1.xpose.msra.mxu0 0.0
    %2099 = vmatprep.subr.mxu0 0.0
    %2100 = vmatpush1.xpose.msra.mxu0 0.0
    %2101 = vmatprep.subr.mxu0 0.0
    %2102 = vmatpush1.xpose.msra.mxu0 0.0
    %2103 = vmatprep.subr.mxu0 0.0
    %2104 = vmatpush1.xpose.msra.mxu0 0.0
    %2105 = vmatprep.subr.mxu0 0.0
    %2106 = vmatpush1.xpose.msra.mxu0 0.0
    %2107 = vmatprep.subr.mxu0 0.0
    %2108 = vmatpush1.xpose.msra.mxu0 0.0
    %2109 = vmatprep.subr.mxu0 0.0
    %2110 = vmatpush1.xpose.msra.mxu0 0.0
    %2111 = vmatprep.subr.mxu0 0.0
    %2112 = vmatpush1.xpose.msra.mxu0 0.0
    %2113 = vmatprep.subr.mxu0 0.0
    %2114 = vmatpush1.xpose.msra.mxu0 0.0
    %2115 = vmatprep.subr.mxu0 0.0
    %2116 = vmatpush1.xpose.msra.mxu0 0.0
    %2117 = vmatprep.subr.mxu0 0.0
    %2118 = vmatpush1.xpose.msra.mxu0 0.0
    %2119 = vmatprep.mubr.f32.mxu0 0.0
    %2120 = vmatmul.mubr.f32.gmra.mrb[0].mxu0 %v1782
    %v2121 = vpop.f32.mrb[0].mxu0
    %v2122 = vadd.f32 %v1779, %v2121
    %v2123 = vpop.f32.mrb[0].mxu0
    %2124 = vmatprep.mubr.f32.mxu0 0.0
    %2125 = vmatmul.mubr.f32.gmra.mrb[0].mxu0 %v1785
    %v2126 = vpop.f32.mrb[0].mxu0
    %v2127 = vadd.f32 %v1779, %v2126
    %v2128 = vpop.f32.mrb[0].mxu0
    %2129 = vmatprep.mubr.f32.mxu0 0.0
    %2130 = vmatmul.mubr.f32.gmra.mrb[0].mxu0 %v1788
    %v2131 = vpop.f32.mrb[0].mxu0
    %v2132 = vadd.f32 %v1779, %v2131
    %v2133 = vpop.f32.mrb[0].mxu0
    %2134 = vmatprep.mubr.f32.mxu0 0.0
    %2135 = vmatmul.mubr.f32.gmra.mrb[0].mxu0 %v1791
    %v2136 = vpop.f32.mrb[0].mxu0
    %v2137 = vadd.f32 %v1779, %v2136
    %v2138 = vpop.f32.mrb[0].mxu0
    %2139 = vmatprep.mubr.f32.mxu0 0.0
    %2140 = vmatmul.mubr.f32.gmra.mrb[0].mxu0 %v1794
    %v2141 = vpop.f32.mrb[0].mxu0
    %v2142 = vadd.f32 %v1779, %v2141
    %v2143 = vpop.f32.mrb[0].mxu0
    %2144 = vmatprep.mubr.f32.mxu0 0.0
    %2145 = vmatmul.mubr.f32.gmra.mrb[0].mxu0 %v1797
    %v2146 = vpop.f32.mrb[0].mxu0
    %v2147 = vadd.f32 %v1779, %v2146
    %v2148 = vpop.f32.mrb[0].mxu0
    %2149 = vmatprep.mubr.f32.mxu0 0.0
    %2150 = vmatmul.mubr.f32.gmra.mrb[0].mxu0 %v1800
    %v2151 = vpop.f32.mrb[0].mxu0
    %v2152 = vadd.f32 %v1779, %v2151
    %v2153 = vpop.f32.mrb[0].mxu0
    %2154 = vmatprep.mubr.f32.mxu0 0.0
    %2155 = vmatmul.mubr.f32.gmra.mrb[0].mxu0 %v1803
    %v2156 = vpop.f32.mrb[0].mxu0
    %v2157 = vadd.f32 %v1779, %v2156
    %v2158 = vpop.f32.mrb[0].mxu0
    %2159 = vdwg.mxu0
    %v2160 = vsel %vm1931, %v2122, -inf
    %2161 = vmax.xlane.f32.xlu0 %v2160
    %v2162 = vpop.xlane.xlu0 %2161
    %v2163 = vsel %vm1931, %v2127, -inf
    %2164 = vmax.xlane.f32.xlu0 %v2163
    %v2165 = vpop.xlane.xlu0 %2164
    %v2166 = vsel %vm1931, %v2132, -inf
    %2167 = vmax.xlane.f32.xlu0 %v2166
    %v2168 = vpop.xlane.xlu0 %2167
    %v2169 = vsel %vm1931, %v2137, -inf
    %2170 = vmax.xlane.f32.xlu0 %v2169
    %v2171 = vpop.xlane.xlu0 %2170
    %v2172 = vsel %vm1931, %v2142, -inf
    %2173 = vmax.xlane.f32.xlu0 %v2172
    %v2174 = vpop.xlane.xlu0 %2173
    %v2175 = vsel %vm1931, %v2147, -inf
    %2176 = vmax.xlane.f32.xlu0 %v2175
    %v2177 = vpop.xlane.xlu0 %2176
    %v2178 = vsel %vm1931, %v2152, -inf
    %2179 = vmax.xlane.f32.xlu0 %v2178
    %v2180 = vpop.xlane.xlu0 %2179
    %v2181 = vsel %vm1931, %v2157, -inf
    %2182 = vmax.xlane.f32.xlu0 %v2181
    %v2183 = vpop.xlane.xlu0 %2182
    %v2184 = vsub.f32 %v2122, %v2162
    %v2185 = vsub.f32 %v2127, %v2165
    %v2186 = vsub.f32 %v2132, %v2168
    %v2187 = vsub.f32 %v2137, %v2171
    %v2188 = vsub.f32 %v2142, %v2174
    %v2189 = vsub.f32 %v2147, %v2177
    %v2190 = vsub.f32 %v2152, %v2180
    %v2191 = vsub.f32 %v2157, %v2183
    %v2192 = vmul.f32 %v2184, 1.442695
    %v2193 = vpow.pop %v2192
    %v2194 = vmul.f32 %v2185, 1.442695
    %v2195 = vpow.pop %v2194
    %v2196 = vmul.f32 %v2186, 1.442695
    %v2197 = vpow.pop %v2196
    %v2198 = vmul.f32 %v2187, 1.442695
    %v2199 = vpow.pop %v2198
    %v2200 = vmul.f32 %v2188, 1.442695
    %v2201 = vpow.pop %v2200
    %v2202 = vmul.f32 %v2189, 1.442695
    %v2203 = vpow.pop %v2202
    %v2204 = vmul.f32 %v2190, 1.442695
    %v2205 = vpow.pop %v2204
    %v2206 = vmul.f32 %v2191, 1.442695
    %v2207 = vpow.pop %v2206
    %v2208 = vsel %vm1931, %v2193, 0.0
    %2209 = vadd.xlane.f32.xlu0 %v2208
    %v2210 = vpop.xlane.xlu0 %2209
    %v2211 = vsel %vm1931, %v2195, 0.0
    %2212 = vadd.xlane.f32.xlu0 %v2211
    %v2213 = vpop.xlane.xlu0 %2212
    %v2214 = vsel %vm1931, %v2197, 0.0
    %2215 = vadd.xlane.f32.xlu0 %v2214
    %v2216 = vpop.xlane.xlu0 %2215
    %v2217 = vsel %vm1931, %v2199, 0.0
    %2218 = vadd.xlane.f32.xlu0 %v2217
    %v2219 = vpop.xlane.xlu0 %2218
    %v2220 = vsel %vm1931, %v2201, 0.0
    %2221 = vadd.xlane.f32.xlu0 %v2220
    %v2222 = vpop.xlane.xlu0 %2221
    %v2223 = vsel %vm1931, %v2203, 0.0
    %2224 = vadd.xlane.f32.xlu0 %v2223
    %v2225 = vpop.xlane.xlu0 %2224
    %v2226 = vsel %vm1931, %v2205, 0.0
    %2227 = vadd.xlane.f32.xlu0 %v2226
    %v2228 = vpop.xlane.xlu0 %2227
    %v2229 = vsel %vm1931, %v2207, 0.0
    %2230 = vadd.xlane.f32.xlu0 %v2229
    %v2231 = vpop.xlane.xlu0 %2230
    %v2232 = vrcp.pop %v2210
    %v2233 = vmul.f32 %v2193, %v2232
    %v2234 = vrcp.pop %v2213
    %v2235 = vmul.f32 %v2195, %v2234
    %v2236 = vrcp.pop %v2216
    %v2237 = vmul.f32 %v2197, %v2236
    %v2238 = vrcp.pop %v2219
    %v2239 = vmul.f32 %v2199, %v2238
    %v2240 = vrcp.pop %v2222
    %v2241 = vmul.f32 %v2201, %v2240
    %v2242 = vrcp.pop %v2225
    %v2243 = vmul.f32 %v2203, %v2242
    %v2244 = vrcp.pop %v2228
    %v2245 = vmul.f32 %v2205, %v2244
    %v2246 = vrcp.pop %v2231
    %v2247 = vmul.f32 %v2207, %v2246
    %v2248 = vmul.f32 %v1735, %v63
    %v2249 = vmul.f32 %v1740, %v63
    %v2250 = vmul.f32 %v1745, %v63
    %v2251 = vmul.f32 %v1750, %v63
    %v2252 = vmul.f32 %v1755, %v63
    %v2253 = vmul.f32 %v1760, %v63
    %v2254 = vmul.f32 %v1765, %v63
    %v2256 = vsel %vm1931, %v2233, 0
    %v2259 = vsel %vm1931, %v2235, 0
    %v2262 = vsel %vm1931, %v2237, 0
    %v2265 = vsel %vm1931, %v2239, 0
    %v2268 = vsel %vm1931, %v2241, 0
    %v2271 = vsel %vm1931, %v2243, 0
    %v2274 = vsel %vm1931, %v2245, 0
    %v2277 = vsel %vm1931, %v2247, 0
    %vm2279 = vcmask 1046528
    %v2281 = vsel %vm2279, %v2254, 0
    %2283 = vmatprep.subr.mxu0 0.0
    %2284 = vmatpush1.msra.mxu0 %v2248
    %2285 = vmatprep.subr.mxu0 0.0
    %2286 = vmatpush1.msra.mxu0 %v2249
    %2287 = vmatprep.subr.mxu0 0.0
    %2288 = vmatpush1.msra.mxu0 %v2250
    %2289 = vmatprep.subr.mxu0 0.0
    %2290 = vmatpush1.msra.mxu0 %v2251
    %2291 = vmatprep.subr.mxu0 0.0
    %2292 = vmatpush1.msra.mxu0 %v2252
    %2293 = vmatprep.subr.mxu0 0.0
    %2294 = vmatpush1.msra.mxu0 %v2253
    %2295 = vmatprep.subr.mxu0 0.0
    %2296 = vmatpush1.msra.mxu0 %v2281
    %2297 = vmatprep.subr.mxu0 0.0
    %2298 = vmatpush1.msra.mxu0 0.0
    %2299 = vmatprep.subr.mxu0 0.0
    %2300 = vmatpush1.msra.mxu0 0.0
    %2301 = vmatprep.subr.mxu0 0.0
    %2302 = vmatpush1.msra.mxu0 0.0
    %2303 = vmatprep.subr.mxu0 0.0
    %2304 = vmatpush1.msra.mxu0 0.0
    %2305 = vmatprep.subr.mxu0 0.0
    %2306 = vmatpush1.msra.mxu0 0.0
    %2307 = vmatprep.subr.mxu0 0.0
    %2308 = vmatpush1.msra.mxu0 0.0
    %2309 = vmatprep.subr.mxu0 0.0
    %2310 = vmatpush1.msra.mxu0 0.0
    %2311 = vmatprep.subr.mxu0 0.0
    %2312 = vmatpush1.msra.mxu0 0.0
    %2313 = vmatprep.subr.mxu0 0.0
    %2314 = vmatpush1.msra.mxu0 0.0
    %2315 = vmatprep.subr.mxu0 0.0
    %2316 = vmatpush1.msra.mxu0 0.0
    %2317 = vmatprep.subr.mxu0 0.0
    %2318 = vmatpush1.msra.mxu0 0.0
    %2319 = vmatprep.subr.mxu0 0.0
    %2320 = vmatpush1.msra.mxu0 0.0
    %2321 = vmatprep.subr.mxu0 0.0
    %2322 = vmatpush1.msra.mxu0 0.0
    %2323 = vmatprep.subr.mxu0 0.0
    %2324 = vmatpush1.msra.mxu0 0.0
    %2325 = vmatprep.subr.mxu0 0.0
    %2326 = vmatpush1.msra.mxu0 0.0
    %2327 = vmatprep.subr.mxu0 0.0
    %2328 = vmatpush1.msra.mxu0 0.0
    %2329 = vmatprep.subr.mxu0 0.0
    %2330 = vmatpush1.msra.mxu0 0.0
    %2331 = vmatprep.subr.mxu0 0.0
    %2332 = vmatpush1.msra.mxu0 0.0
    %2333 = vmatprep.subr.mxu0 0.0
    %2334 = vmatpush1.msra.mxu0 0.0
    %2335 = vmatprep.subr.mxu0 0.0
    %2336 = vmatpush1.msra.mxu0 0.0
    %2337 = vmatprep.subr.mxu0 0.0
    %2338 = vmatpush1.msra.mxu0 0.0
    %2339 = vmatprep.subr.mxu0 0.0
    %2340 = vmatpush1.msra.mxu0 0.0
    %2341 = vmatprep.subr.mxu0 0.0
    %2342 = vmatpush1.msra.mxu0 0.0
    %2343 = vmatprep.subr.mxu0 0.0
    %2344 = vmatpush1.msra.mxu0 0.0
    %2345 = vmatprep.subr.mxu0 0.0
    %2346 = vmatpush1.msra.mxu0 0.0
    %2347 = vmatprep.mubr.f32.mxu0 0.0
    %2348 = vmatmul.mubr.f32.gmra.mrb[0].mxu0 %v2256
    %v2349 = vpop.f32.mrb[0].mxu0
    %v2350 = vadd.f32 0.0, %v2349
    %v2351 = vpop.f32.mrb[0].mxu0
    %2352 = vmatprep.mubr.f32.mxu0 0.0
    %2353 = vmatmul.mubr.f32.gmra.mrb[0].mxu0 %v2259
    %v2354 = vpop.f32.mrb[0].mxu0
    %v2355 = vadd.f32 0.0, %v2354
    %v2356 = vpop.f32.mrb[0].mxu0
    %2357 = vmatprep.mubr.f32.mxu0 0.0
    %2358 = vmatmul.mubr.f32.gmra.mrb[0].mxu0 %v2262
    %v2359 = vpop.f32.mrb[0].mxu0
    %v2360 = vadd.f32 0.0, %v2359
    %v2361 = vpop.f32.mrb[0].mxu0
    %2362 = vmatprep.mubr.f32.mxu0 0.0
    %2363 = vmatmul.mubr.f32.gmra.mrb[0].mxu0 %v2265
    %v2364 = vpop.f32.mrb[0].mxu0
    %v2365 = vadd.f32 0.0, %v2364
    %v2366 = vpop.f32.mrb[0].mxu0
    %2367 = vmatprep.mubr.f32.mxu0 0.0
    %2368 = vmatmul.mubr.f32.gmra.mrb[0].mxu0 %v2268
    %v2369 = vpop.f32.mrb[0].mxu0
    %v2370 = vadd.f32 0.0, %v2369
    %v2371 = vpop.f32.mrb[0].mxu0
    %2372 = vmatprep.mubr.f32.mxu0 0.0
    %2373 = vmatmul.mubr.f32.gmra.mrb[0].mxu0 %v2271
    %v2374 = vpop.f32.mrb[0].mxu0
    %v2375 = vadd.f32 0.0, %v2374
    %v2376 = vpop.f32.mrb[0].mxu0
    %2377 = vmatprep.mubr.f32.mxu0 0.0
    %2378 = vmatmul.mubr.f32.gmra.mrb[0].mxu0 %v2274
    %v2379 = vpop.f32.mrb[0].mxu0
    %v2380 = vadd.f32 0.0, %v2379
    %v2381 = vpop.f32.mrb[0].mxu0
    %2382 = vmatprep.mubr.f32.mxu0 0.0
    %2383 = vmatmul.mubr.f32.gmra.mrb[0].mxu0 %v2277
    %v2384 = vpop.f32.mrb[0].mxu0
    %v2385 = vadd.f32 0.0, %v2384
    %v2386 = vpop.f32.mrb[0].mxu0
    %2387 = vdwg.mxu0
    %v2389 = vsel %vm1931, %v2005, 0
    %v2392 = vsel %vm1931, %v2007, 0
    %v2395 = vsel %vm1931, %v2009, 0
    %v2398 = vsel %vm1931, %v2011, 0
    %v2401 = vsel %vm1931, %v2013, 0
    %v2404 = vsel %vm1931, %v2015, 0
    %v2407 = vsel %vm1931, %v2017, 0
    %v2410 = vsel %vm1931, %v2019, 0
    %v2413 = vsel %vm2279, %v2026, 0
    %2415 = vmatprep.subr.mxu0 0.0
    %2416 = vmatpush1.msra.mxu0 %v2020
    %2417 = vmatprep.subr.mxu0 0.0
    %2418 = vmatpush1.msra.mxu0 %v2021
    %2419 = vmatprep.subr.mxu0 0.0
    %2420 = vmatpush1.msra.mxu0 %v2022
    %2421 = vmatprep.subr.mxu0 0.0
    %2422 = vmatpush1.msra.mxu0 %v2023
    %2423 = vmatprep.subr.mxu0 0.0
    %2424 = vmatpush1.msra.mxu0 %v2024
    %2425 = vmatprep.subr.mxu0 0.0
    %2426 = vmatpush1.msra.mxu0 %v2025
    %2427 = vmatprep.subr.mxu0 0.0
    %2428 = vmatpush1.msra.mxu0 %v2413
    %2429 = vmatprep.subr.mxu0 0.0
    %2430 = vmatpush1.msra.mxu0 0.0
    %2431 = vmatprep.subr.mxu0 0.0
    %2432 = vmatpush1.msra.mxu0 0.0
    %2433 = vmatprep.subr.mxu0 0.0
    %2434 = vmatpush1.msra.mxu0 0.0
    %2435 = vmatprep.subr.mxu0 0.0
    %2436 = vmatpush1.msra.mxu0 0.0
    %2437 = vmatprep.subr.mxu0 0.0
    %2438 = vmatpush1.msra.mxu0 0.0
    %2439 = vmatprep.subr.mxu0 0.0
    %2440 = vmatpush1.msra.mxu0 0.0
    %2441 = vmatprep.subr.mxu0 0.0
    %2442 = vmatpush1.msra.mxu0 0.0
    %2443 = vmatprep.subr.mxu0 0.0
    %2444 = vmatpush1.msra.mxu0 0.0
    %2445 = vmatprep.subr.mxu0 0.0
    %2446 = vmatpush1.msra.mxu0 0.0
    %2447 = vmatprep.subr.mxu0 0.0
    %2448 = vmatpush1.msra.mxu0 0.0
    %2449 = vmatprep.subr.mxu0 0.0
    %2450 = vmatpush1.msra.mxu0 0.0
    %2451 = vmatprep.subr.mxu0 0.0
    %2452 = vmatpush1.msra.mxu0 0.0
    %2453 = vmatprep.subr.mxu0 0.0
    %2454 = vmatpush1.msra.mxu0 0.0
    %2455 = vmatprep.subr.mxu0 0.0
    %2456 = vmatpush1.msra.mxu0 0.0
    %2457 = vmatprep.subr.mxu0 0.0
    %2458 = vmatpush1.msra.mxu0 0.0
    %2459 = vmatprep.subr.mxu0 0.0
    %2460 = vmatpush1.msra.mxu0 0.0
    %2461 = vmatprep.subr.mxu0 0.0
    %2462 = vmatpush1.msra.mxu0 0.0
    %2463 = vmatprep.subr.mxu0 0.0
    %2464 = vmatpush1.msra.mxu0 0.0
    %2465 = vmatprep.subr.mxu0 0.0
    %2466 = vmatpush1.msra.mxu0 0.0
    %2467 = vmatprep.subr.mxu0 0.0
    %2468 = vmatpush1.msra.mxu0 0.0
    %2469 = vmatprep.subr.mxu0 0.0
    %2470 = vmatpush1.msra.mxu0 0.0
    %2471 = vmatprep.subr.mxu0 0.0
    %2472 = vmatpush1.msra.mxu0 0.0
    %2473 = vmatprep.subr.mxu0 0.0
    %2474 = vmatpush1.msra.mxu0 0.0
    %2475 = vmatprep.subr.mxu0 0.0
    %2476 = vmatpush1.msra.mxu0 0.0
    %2477 = vmatprep.subr.mxu0 0.0
    %2478 = vmatpush1.msra.mxu0 0.0
    %2479 = vmatprep.mubr.f32.mxu0 0.0
    %2480 = vmatmul.mubr.f32.gmra.mrb[0].mxu0 %v2389
    %v2481 = vpop.f32.mrb[0].mxu0
    %v2482 = vadd.f32 %v2350, %v2481
    %v2483 = vpop.f32.mrb[0].mxu0
    %2484 = vmatprep.mubr.f32.mxu0 0.0
    %2485 = vmatmul.mubr.f32.gmra.mrb[0].mxu0 %v2392
    %v2486 = vpop.f32.mrb[0].mxu0
    %v2487 = vadd.f32 %v2355, %v2486
    %v2488 = vpop.f32.mrb[0].mxu0
    %2489 = vmatprep.mubr.f32.mxu0 0.0
    %2490 = vmatmul.mubr.f32.gmra.mrb[0].mxu0 %v2395
    %v2491 = vpop.f32.mrb[0].mxu0
    %v2492 = vadd.f32 %v2360, %v2491
    %v2493 = vpop.f32.mrb[0].mxu0
    %2494 = vmatprep.mubr.f32.mxu0 0.0
    %2495 = vmatmul.mubr.f32.gmra.mrb[0].mxu0 %v2398
    %v2496 = vpop.f32.mrb[0].mxu0
    %v2497 = vadd.f32 %v2365, %v2496
    %v2498 = vpop.f32.mrb[0].mxu0
    %2499 = vmatprep.mubr.f32.mxu0 0.0
    %2500 = vmatmul.mubr.f32.gmra.mrb[0].mxu0 %v2401
    %v2501 = vpop.f32.mrb[0].mxu0
    %v2502 = vadd.f32 %v2370, %v2501
    %v2503 = vpop.f32.mrb[0].mxu0
    %2504 = vmatprep.mubr.f32.mxu0 0.0
    %2505 = vmatmul.mubr.f32.gmra.mrb[0].mxu0 %v2404
    %v2506 = vpop.f32.mrb[0].mxu0
    %v2507 = vadd.f32 %v2375, %v2506
    %v2508 = vpop.f32.mrb[0].mxu0
    %2509 = vmatprep.mubr.f32.mxu0 0.0
    %2510 = vmatmul.mubr.f32.gmra.mrb[0].mxu0 %v2407
    %v2511 = vpop.f32.mrb[0].mxu0
    %v2512 = vadd.f32 %v2380, %v2511
    %v2513 = vpop.f32.mrb[0].mxu0
    %2514 = vmatprep.mubr.f32.mxu0 0.0
    %2515 = vmatmul.mubr.f32.gmra.mrb[0].mxu0 %v2410
    %v2516 = vpop.f32.mrb[0].mxu0
    %v2517 = vadd.f32 %v2385, %v2516
    %v2518 = vpop.f32.mrb[0].mxu0
    %2519 = vdwg.mxu0
    %2520 = vmatprep.subr.mxu0 0.0
    %2521 = vmatpush1.msra.mxu0 %v69
    %2522 = vmatprep.subr.mxu0 0.0
    %2523 = vmatpush1.msra.mxu0 %v70
    %2524 = vmatprep.subr.mxu0 0.0
    %2525 = vmatpush1.msra.mxu0 %v71
    %2526 = vmatprep.subr.mxu0 0.0
    %2527 = vmatpush1.msra.mxu0 %v72
    %2528 = vmatprep.subr.mxu0 0.0
    %2529 = vmatpush1.msra.mxu0 0.0
    %2530 = vmatprep.subr.mxu0 0.0
    %2531 = vmatpush1.msra.mxu0 0.0
    %2532 = vmatprep.subr.mxu0 0.0
    %2533 = vmatpush1.msra.mxu0 0.0
    %2534 = vmatprep.subr.mxu0 0.0
    %2535 = vmatpush1.msra.mxu0 0.0
    %2536 = vmatprep.subr.mxu0 0.0
    %2537 = vmatpush1.msra.mxu0 0.0
    %2538 = vmatprep.subr.mxu0 0.0
    %2539 = vmatpush1.msra.mxu0 0.0
    %2540 = vmatprep.subr.mxu0 0.0
    %2541 = vmatpush1.msra.mxu0 0.0
    %2542 = vmatprep.subr.mxu0 0.0
    %2543 = vmatpush1.msra.mxu0 0.0
    %2544 = vmatprep.subr.mxu0 0.0
    %2545 = vmatpush1.msra.mxu0 0.0
    %2546 = vmatprep.subr.mxu0 0.0
    %2547 = vmatpush1.msra.mxu0 0.0
    %2548 = vmatprep.subr.mxu0 0.0
    %2549 = vmatpush1.msra.mxu0 0.0
    %2550 = vmatprep.subr.mxu0 0.0
    %2551 = vmatpush1.msra.mxu0 0.0
    %2552 = vmatprep.subr.mxu0 0.0
    %2553 = vmatpush1.msra.mxu0 0.0
    %2554 = vmatprep.subr.mxu0 0.0
    %2555 = vmatpush1.msra.mxu0 0.0
    %2556 = vmatprep.subr.mxu0 0.0
    %2557 = vmatpush1.msra.mxu0 0.0
    %2558 = vmatprep.subr.mxu0 0.0
    %2559 = vmatpush1.msra.mxu0 0.0
    %2560 = vmatprep.subr.mxu0 0.0
    %2561 = vmatpush1.msra.mxu0 0.0
    %2562 = vmatprep.subr.mxu0 0.0
    %2563 = vmatpush1.msra.mxu0 0.0
    %2564 = vmatprep.subr.mxu0 0.0
    %2565 = vmatpush1.msra.mxu0 0.0
    %2566 = vmatprep.subr.mxu0 0.0
    %2567 = vmatpush1.msra.mxu0 0.0
    %2568 = vmatprep.subr.mxu0 0.0
    %2569 = vmatpush1.msra.mxu0 0.0
    %2570 = vmatprep.subr.mxu0 0.0
    %2571 = vmatpush1.msra.mxu0 0.0
    %2572 = vmatprep.subr.mxu0 0.0
    %2573 = vmatpush1.msra.mxu0 0.0
    %2574 = vmatprep.subr.mxu0 0.0
    %2575 = vmatpush1.msra.mxu0 0.0
    %2576 = vmatprep.subr.mxu0 0.0
    %2577 = vmatpush1.msra.mxu0 0.0
    %2578 = vmatprep.subr.mxu0 0.0
    %2579 = vmatpush1.msra.mxu0 0.0
    %2580 = vmatprep.subr.mxu0 0.0
    %2581 = vmatpush1.msra.mxu0 0.0
    %2582 = vmatprep.subr.mxu0 0.0
    %2583 = vmatpush1.msra.mxu0 0.0
    %2584 = vmatprep.mubr.f32.mxu0 0.0
    %2585 = vmatmul.mubr.f32.gmra.mrb[0].mxu0 %v240
    %v2586 = vpop.f32.mrb[0].mxu0
    %v2587 = vadd.f32 0.0, %v2586
    %v2588 = vpop.f32.mrb[0].mxu0
    %2589 = vdwg.mxu0
    %2590 = vmatprep.subr.mxu0 0.0
    %2591 = vmatpush1.msra.mxu0 %v74
    %2592 = vmatprep.subr.mxu0 0.0
    %2593 = vmatpush1.msra.mxu0 %v75
    %2594 = vmatprep.subr.mxu0 0.0
    %2595 = vmatpush1.msra.mxu0 %v76
    %2596 = vmatprep.subr.mxu0 0.0
    %2597 = vmatpush1.msra.mxu0 %v77
    %2598 = vmatprep.subr.mxu0 0.0
    %2599 = vmatpush1.msra.mxu0 0.0
    %2600 = vmatprep.subr.mxu0 0.0
    %2601 = vmatpush1.msra.mxu0 0.0
    %2602 = vmatprep.subr.mxu0 0.0
    %2603 = vmatpush1.msra.mxu0 0.0
    %2604 = vmatprep.subr.mxu0 0.0
    %2605 = vmatpush1.msra.mxu0 0.0
    %2606 = vmatprep.subr.mxu0 0.0
    %2607 = vmatpush1.msra.mxu0 0.0
    %2608 = vmatprep.subr.mxu0 0.0
    %2609 = vmatpush1.msra.mxu0 0.0
    %2610 = vmatprep.subr.mxu0 0.0
    %2611 = vmatpush1.msra.mxu0 0.0
    %2612 = vmatprep.subr.mxu0 0.0
    %2613 = vmatpush1.msra.mxu0 0.0
    %2614 = vmatprep.subr.mxu0 0.0
    %2615 = vmatpush1.msra.mxu0 0.0
    %2616 = vmatprep.subr.mxu0 0.0
    %2617 = vmatpush1.msra.mxu0 0.0
    %2618 = vmatprep.subr.mxu0 0.0
    %2619 = vmatpush1.msra.mxu0 0.0
    %2620 = vmatprep.subr.mxu0 0.0
    %2621 = vmatpush1.msra.mxu0 0.0
    %2622 = vmatprep.subr.mxu0 0.0
    %2623 = vmatpush1.msra.mxu0 0.0
    %2624 = vmatprep.subr.mxu0 0.0
    %2625 = vmatpush1.msra.mxu0 0.0
    %2626 = vmatprep.subr.mxu0 0.0
    %2627 = vmatpush1.msra.mxu0 0.0
    %2628 = vmatprep.subr.mxu0 0.0
    %2629 = vmatpush1.msra.mxu0 0.0
    %2630 = vmatprep.subr.mxu0 0.0
    %2631 = vmatpush1.msra.mxu0 0.0
    %2632 = vmatprep.subr.mxu0 0.0
    %2633 = vmatpush1.msra.mxu0 0.0
    %2634 = vmatprep.subr.mxu0 0.0
    %2635 = vmatpush1.msra.mxu0 0.0
    %2636 = vmatprep.subr.mxu0 0.0
    %2637 = vmatpush1.msra.mxu0 0.0
    %2638 = vmatprep.subr.mxu0 0.0
    %2639 = vmatpush1.msra.mxu0 0.0
    %2640 = vmatprep.subr.mxu0 0.0
    %2641 = vmatpush1.msra.mxu0 0.0
    %2642 = vmatprep.subr.mxu0 0.0
    %2643 = vmatpush1.msra.mxu0 0.0
    %2644 = vmatprep.subr.mxu0 0.0
    %2645 = vmatpush1.msra.mxu0 0.0
    %2646 = vmatprep.subr.mxu0 0.0
    %2647 = vmatpush1.msra.mxu0 0.0
    %2648 = vmatprep.subr.mxu0 0.0
    %2649 = vmatpush1.msra.mxu0 0.0
    %2650 = vmatprep.subr.mxu0 0.0
    %2651 = vmatpush1.msra.mxu0 0.0
    %2652 = vmatprep.subr.mxu0 0.0
    %2653 = vmatpush1.msra.mxu0 0.0
    %2654 = vmatprep.mubr.f32.mxu0 0.0
    %2655 = vmatmul.mubr.f32.gmra.mrb[0].mxu0 %v501
    %v2656 = vpop.f32.mrb[0].mxu0
    %v2657 = vadd.f32 0.0, %v2656
    %v2658 = vpop.f32.mrb[0].mxu0
    %2659 = vmatprep.mubr.f32.mxu0 0.0
    %2660 = vmatmul.mubr.f32.gmra.mrb[0].mxu0 %v504
    %v2661 = vpop.f32.mrb[0].mxu0
    %v2662 = vadd.f32 0.0, %v2661
    %v2663 = vpop.f32.mrb[0].mxu0
    %2664 = vmatprep.mubr.f32.mxu0 0.0
    %2665 = vmatmul.mubr.f32.gmra.mrb[0].mxu0 %v507
    %v2666 = vpop.f32.mrb[0].mxu0
    %v2667 = vadd.f32 0.0, %v2666
    %v2668 = vpop.f32.mrb[0].mxu0
    %2669 = vmatprep.mubr.f32.mxu0 0.0
    %2670 = vmatmul.mubr.f32.gmra.mrb[0].mxu0 %v510
    %v2671 = vpop.f32.mrb[0].mxu0
    %v2672 = vadd.f32 0.0, %v2671
    %v2673 = vpop.f32.mrb[0].mxu0
    %2674 = vmatprep.mubr.f32.mxu0 0.0
    %2675 = vmatmul.mubr.f32.gmra.mrb[0].mxu0 %v513
    %v2676 = vpop.f32.mrb[0].mxu0
    %v2677 = vadd.f32 0.0, %v2676
    %v2678 = vpop.f32.mrb[0].mxu0
    %2679 = vmatprep.mubr.f32.mxu0 0.0
    %2680 = vmatmul.mubr.f32.gmra.mrb[0].mxu0 %v516
    %v2681 = vpop.f32.mrb[0].mxu0
    %v2682 = vadd.f32 0.0, %v2681
    %v2683 = vpop.f32.mrb[0].mxu0
    %2684 = vmatprep.mubr.f32.mxu0 0.0
    %2685 = vmatmul.mubr.f32.gmra.mrb[0].mxu0 %v519
    %v2686 = vpop.f32.mrb[0].mxu0
    %v2687 = vadd.f32 0.0, %v2686
    %v2688 = vpop.f32.mrb[0].mxu0
    %2689 = vmatprep.mubr.f32.mxu0 0.0
    %2690 = vmatmul.mubr.f32.gmra.mrb[0].mxu0 %v522
    %v2691 = vpop.f32.mrb[0].mxu0
    %v2692 = vadd.f32 0.0, %v2691
    %v2693 = vpop.f32.mrb[0].mxu0
    %2694 = vdwg.mxu0
    %v2695 = vlaneseq
    %v2696 = vshrl.u32 %v2695, 7
    %v2697 = vsub.s32 0, %v2696
    %v2698 = vrot.slane %v2587, %v2697
    %v2699 = vadd.f32 %v2698, %v2657
    %v2700 = vadd.f32 %v2698, %v2662
    %v2701 = vadd.f32 %v2698, %v2667
    %v2702 = vadd.f32 %v2698, %v2672
    %v2703 = vadd.f32 %v2698, %v2677
    %v2704 = vadd.f32 %v2698, %v2682
    %v2705 = vadd.f32 %v2698, %v2687
    %v2706 = vadd.f32 %v2698, %v2692
    %v2708 = vsel %vm776, %v1479, 0
    %v2711 = vsel %vm776, %v1484, 0
    %v2714 = vsel %vm776, %v1489, 0
    %v2717 = vsel %vm776, %v1494, 0
    %v2720 = vsel %vm776, %v1499, 0
    %v2723 = vsel %vm776, %v1504, 0
    %v2726 = vsel %vm776, %v1509, 0
    %v2729 = vsel %vm776, %v1514, 0
    %2731 = vmatprep.subr.mxu0 0.0
    %2732 = vmatpush1.msra.mxu0 %v78
    %2733 = vmatprep.subr.mxu0 0.0
    %2734 = vmatpush1.msra.mxu0 %v79
    %2735 = vmatprep.subr.mxu0 0.0
    %2736 = vmatpush1.msra.mxu0 %v80
    %2737 = vmatprep.subr.mxu0 0.0
    %2738 = vmatpush1.msra.mxu0 %v81
    %2739 = vmatprep.subr.mxu0 0.0
    %2740 = vmatpush1.msra.mxu0 %v82
    %2741 = vmatprep.subr.mxu0 0.0
    %2742 = vmatpush1.msra.mxu0 %v83
    %2743 = vmatprep.subr.mxu0 0.0
    %2744 = vmatpush1.msra.mxu0 %v84
    %2745 = vmatprep.subr.mxu0 0.0
    %2746 = vmatpush1.msra.mxu0 %v85
    %2747 = vmatprep.subr.mxu0 0.0
    %2748 = vmatpush1.msra.mxu0 0.0
    %2749 = vmatprep.subr.mxu0 0.0
    %2750 = vmatpush1.msra.mxu0 0.0
    %2751 = vmatprep.subr.mxu0 0.0
    %2752 = vmatpush1.msra.mxu0 0.0
    %2753 = vmatprep.subr.mxu0 0.0
    %2754 = vmatpush1.msra.mxu0 0.0
    %2755 = vmatprep.subr.mxu0 0.0
    %2756 = vmatpush1.msra.mxu0 0.0
    %2757 = vmatprep.subr.mxu0 0.0
    %2758 = vmatpush1.msra.mxu0 0.0
    %2759 = vmatprep.subr.mxu0 0.0
    %2760 = vmatpush1.msra.mxu0 0.0
    %2761 = vmatprep.subr.mxu0 0.0
    %2762 = vmatpush1.msra.mxu0 0.0
    %2763 = vmatprep.subr.mxu0 0.0
    %2764 = vmatpush1.msra.mxu0 0.0
    %2765 = vmatprep.subr.mxu0 0.0
    %2766 = vmatpush1.msra.mxu0 0.0
    %2767 = vmatprep.subr.mxu0 0.0
    %2768 = vmatpush1.msra.mxu0 0.0
    %2769 = vmatprep.subr.mxu0 0.0
    %2770 = vmatpush1.msra.mxu0 0.0
    %2771 = vmatprep.subr.mxu0 0.0
    %2772 = vmatpush1.msra.mxu0 0.0
    %2773 = vmatprep.subr.mxu0 0.0
    %2774 = vmatpush1.msra.mxu0 0.0
    %2775 = vmatprep.subr.mxu0 0.0
    %2776 = vmatpush1.msra.mxu0 0.0
    %2777 = vmatprep.subr.mxu0 0.0
    %2778 = vmatpush1.msra.mxu0 0.0
    %2779 = vmatprep.subr.mxu0 0.0
    %2780 = vmatpush1.msra.mxu0 0.0
    %2781 = vmatprep.subr.mxu0 0.0
    %2782 = vmatpush1.msra.mxu0 0.0
    %2783 = vmatprep.subr.mxu0 0.0
    %2784 = vmatpush1.msra.mxu0 0.0
    %2785 = vmatprep.subr.mxu0 0.0
    %2786 = vmatpush1.msra.mxu0 0.0
    %2787 = vmatprep.subr.mxu0 0.0
    %2788 = vmatpush1.msra.mxu0 0.0
    %2789 = vmatprep.subr.mxu0 0.0
    %2790 = vmatpush1.msra.mxu0 0.0
    %2791 = vmatprep.subr.mxu0 0.0
    %2792 = vmatpush1.msra.mxu0 0.0
    %2793 = vmatprep.subr.mxu0 0.0
    %2794 = vmatpush1.msra.mxu0 0.0
    %2795 = vmatprep.mubr.f32.mxu0 0.0
    %2796 = vmatmul.mubr.f32.gmra.mrb[0].mxu0 %v2708
    %v2797 = vpop.f32.mrb[0].mxu0
    %v2798 = vadd.f32 0.0, %v2797
    %v2799 = vpop.f32.mrb[0].mxu0
    %2800 = vmatprep.mubr.f32.mxu0 0.0
    %2801 = vmatmul.mubr.f32.gmra.mrb[0].mxu0 %v2711
    %v2802 = vpop.f32.mrb[0].mxu0
    %v2803 = vadd.f32 0.0, %v2802
    %v2804 = vpop.f32.mrb[0].mxu0
    %2805 = vmatprep.mubr.f32.mxu0 0.0
    %2806 = vmatmul.mubr.f32.gmra.mrb[0].mxu0 %v2714
    %v2807 = vpop.f32.mrb[0].mxu0
    %v2808 = vadd.f32 0.0, %v2807
    %v2809 = vpop.f32.mrb[0].mxu0
    %2810 = vmatprep.mubr.f32.mxu0 0.0
    %2811 = vmatmul.mubr.f32.gmra.mrb[0].mxu0 %v2717
    %v2812 = vpop.f32.mrb[0].mxu0
    %v2813 = vadd.f32 0.0, %v2812
    %v2814 = vpop.f32.mrb[0].mxu0
    %2815 = vmatprep.mubr.f32.mxu0 0.0
    %2816 = vmatmul.mubr.f32.gmra.mrb[0].mxu0 %v2720
    %v2817 = vpop.f32.mrb[0].mxu0
    %v2818 = vadd.f32 0.0, %v2817
    %v2819 = vpop.f32.mrb[0].mxu0
    %2820 = vmatprep.mubr.f32.mxu0 0.0
    %2821 = vmatmul.mubr.f32.gmra.mrb[0].mxu0 %v2723
    %v2822 = vpop.f32.mrb[0].mxu0
    %v2823 = vadd.f32 0.0, %v2822
    %v2824 = vpop.f32.mrb[0].mxu0
    %2825 = vmatprep.mubr.f32.mxu0 0.0
    %2826 = vmatmul.mubr.f32.gmra.mrb[0].mxu0 %v2726
    %v2827 = vpop.f32.mrb[0].mxu0
    %v2828 = vadd.f32 0.0, %v2827
    %v2829 = vpop.f32.mrb[0].mxu0
    %2830 = vmatprep.mubr.f32.mxu0 0.0
    %2831 = vmatmul.mubr.f32.gmra.mrb[0].mxu0 %v2729
    %v2832 = vpop.f32.mrb[0].mxu0
    %v2833 = vadd.f32 0.0, %v2832
    %v2834 = vpop.f32.mrb[0].mxu0
    %2835 = vdwg.mxu0
    %v2836 = vadd.f32 %v2699, %v2798
    %v2837 = vadd.f32 %v2700, %v2803
    %v2838 = vadd.f32 %v2701, %v2808
    %v2839 = vadd.f32 %v2702, %v2813
    %v2840 = vadd.f32 %v2703, %v2818
    %v2841 = vadd.f32 %v2704, %v2823
    %v2842 = vadd.f32 %v2705, %v2828
    %v2843 = vadd.f32 %v2706, %v2833
    %v2845 = vsel %vm776, %v2482, 0
    %v2848 = vsel %vm776, %v2487, 0
    %v2851 = vsel %vm776, %v2492, 0
    %v2854 = vsel %vm776, %v2497, 0
    %v2857 = vsel %vm776, %v2502, 0
    %v2860 = vsel %vm776, %v2507, 0
    %v2863 = vsel %vm776, %v2512, 0
    %v2866 = vsel %vm776, %v2517, 0
    %2868 = vmatprep.subr.mxu0 0.0
    %2869 = vmatpush1.msra.mxu0 %v87
    %2870 = vmatprep.subr.mxu0 0.0
    %2871 = vmatpush1.msra.mxu0 %v88
    %2872 = vmatprep.subr.mxu0 0.0
    %2873 = vmatpush1.msra.mxu0 %v89
    %2874 = vmatprep.subr.mxu0 0.0
    %2875 = vmatpush1.msra.mxu0 %v90
    %2876 = vmatprep.subr.mxu0 0.0
    %2877 = vmatpush1.msra.mxu0 %v91
    %2878 = vmatprep.subr.mxu0 0.0
    %2879 = vmatpush1.msra.mxu0 %v92
    %2880 = vmatprep.subr.mxu0 0.0
    %2881 = vmatpush1.msra.mxu0 %v93
    %2882 = vmatprep.subr.mxu0 0.0
    %2883 = vmatpush1.msra.mxu0 %v94
    %2884 = vmatprep.subr.mxu0 0.0
    %2885 = vmatpush1.msra.mxu0 0.0
    %2886 = vmatprep.subr.mxu0 0.0
    %2887 = vmatpush1.msra.mxu0 0.0
    %2888 = vmatprep.subr.mxu0 0.0
    %2889 = vmatpush1.msra.mxu0 0.0
    %2890 = vmatprep.subr.mxu0 0.0
    %2891 = vmatpush1.msra.mxu0 0.0
    %2892 = vmatprep.subr.mxu0 0.0
    %2893 = vmatpush1.msra.mxu0 0.0
    %2894 = vmatprep.subr.mxu0 0.0
    %2895 = vmatpush1.msra.mxu0 0.0
    %2896 = vmatprep.subr.mxu0 0.0
    %2897 = vmatpush1.msra.mxu0 0.0
    %2898 = vmatprep.subr.mxu0 0.0
    %2899 = vmatpush1.msra.mxu0 0.0
    %2900 = vmatprep.subr.mxu0 0.0
    %2901 = vmatpush1.msra.mxu0 0.0
    %2902 = vmatprep.subr.mxu0 0.0
    %2903 = vmatpush1.msra.mxu0 0.0
    %2904 = vmatprep.subr.mxu0 0.0
    %2905 = vmatpush1.msra.mxu0 0.0
    %2906 = vmatprep.subr.mxu0 0.0
    %2907 = vmatpush1.msra.mxu0 0.0
    %2908 = vmatprep.subr.mxu0 0.0
    %2909 = vmatpush1.msra.mxu0 0.0
    %2910 = vmatprep.subr.mxu0 0.0
    %2911 = vmatpush1.msra.mxu0 0.0
    %2912 = vmatprep.subr.mxu0 0.0
    %2913 = vmatpush1.msra.mxu0 0.0
    %2914 = vmatprep.subr.mxu0 0.0
    %2915 = vmatpush1.msra.mxu0 0.0
    %2916 = vmatprep.subr.mxu0 0.0
    %2917 = vmatpush1.msra.mxu0 0.0
    %2918 = vmatprep.subr.mxu0 0.0
    %2919 = vmatpush1.msra.mxu0 0.0
    %2920 = vmatprep.subr.mxu0 0.0
    %2921 = vmatpush1.msra.mxu0 0.0
    %2922 = vmatprep.subr.mxu0 0.0
    %2923 = vmatpush1.msra.mxu0 0.0
    %2924 = vmatprep.subr.mxu0 0.0
    %2925 = vmatpush1.msra.mxu0 0.0
    %2926 = vmatprep.subr.mxu0 0.0
    %2927 = vmatpush1.msra.mxu0 0.0
    %2928 = vmatprep.subr.mxu0 0.0
    %2929 = vmatpush1.msra.mxu0 0.0
    %2930 = vmatprep.subr.mxu0 0.0
    %2931 = vmatpush1.msra.mxu0 0.0
    %2932 = vmatprep.mubr.f32.mxu0 0.0
    %2933 = vmatmul.mubr.f32.gmra.mrb[0].mxu0 %v2845
    %v2934 = vpop.f32.mrb[0].mxu0
    %v2935 = vadd.f32 0.0, %v2934
    %v2936 = vpop.f32.mrb[0].mxu0
    %2937 = vmatprep.mubr.f32.mxu0 0.0
    %2938 = vmatmul.mubr.f32.gmra.mrb[0].mxu0 %v2848
    %v2939 = vpop.f32.mrb[0].mxu0
    %v2940 = vadd.f32 0.0, %v2939
    %v2941 = vpop.f32.mrb[0].mxu0
    %2942 = vmatprep.mubr.f32.mxu0 0.0
    %2943 = vmatmul.mubr.f32.gmra.mrb[0].mxu0 %v2851
    %v2944 = vpop.f32.mrb[0].mxu0
    %v2945 = vadd.f32 0.0, %v2944
    %v2946 = vpop.f32.mrb[0].mxu0
    %2947 = vmatprep.mubr.f32.mxu0 0.0
    %2948 = vmatmul.mubr.f32.gmra.mrb[0].mxu0 %v2854
    %v2949 = vpop.f32.mrb[0].mxu0
    %v2950 = vadd.f32 0.0, %v2949
    %v2951 = vpop.f32.mrb[0].mxu0
    %2952 = vmatprep.mubr.f32.mxu0 0.0
    %2953 = vmatmul.mubr.f32.gmra.mrb[0].mxu0 %v2857
    %v2954 = vpop.f32.mrb[0].mxu0
    %v2955 = vadd.f32 0.0, %v2954
    %v2956 = vpop.f32.mrb[0].mxu0
    %2957 = vmatprep.mubr.f32.mxu0 0.0
    %2958 = vmatmul.mubr.f32.gmra.mrb[0].mxu0 %v2860
    %v2959 = vpop.f32.mrb[0].mxu0
    %v2960 = vadd.f32 0.0, %v2959
    %v2961 = vpop.f32.mrb[0].mxu0
    %2962 = vmatprep.mubr.f32.mxu0 0.0
    %2963 = vmatmul.mubr.f32.gmra.mrb[0].mxu0 %v2863
    %v2964 = vpop.f32.mrb[0].mxu0
    %v2965 = vadd.f32 0.0, %v2964
    %v2966 = vpop.f32.mrb[0].mxu0
    %2967 = vmatprep.mubr.f32.mxu0 0.0
    %2968 = vmatmul.mubr.f32.gmra.mrb[0].mxu0 %v2866
    %v2969 = vpop.f32.mrb[0].mxu0
    %v2970 = vadd.f32 0.0, %v2969
    %v2971 = vpop.f32.mrb[0].mxu0
    %2972 = vdwg.mxu0
    %v2973 = vadd.f32 %v2836, %v2935
    %v2974 = vadd.f32 %v2837, %v2940
    %v2975 = vadd.f32 %v2838, %v2945
    %v2976 = vadd.f32 %v2839, %v2950
    %v2977 = vadd.f32 %v2840, %v2955
    %v2978 = vadd.f32 %v2841, %v2960
    %v2979 = vadd.f32 %v2842, %v2965
    %v2980 = vadd.f32 %v2843, %v2970
    %v2981 = vlaneseq
    %v2982 = vshrl.u32 %v2981, 7
    %v2983 = vsub.s32 3, %v2982
    %v2984 = vrot.slane %v96, %v2983
    %v2985 = vadd.f32 %v2973, %v2984
    %v2986 = vadd.f32 %v2974, %v2984
    %v2987 = vadd.f32 %v2975, %v2984
    %v2988 = vadd.f32 %v2976, %v2984
    %v2989 = vadd.f32 %v2977, %v2984
    %v2990 = vadd.f32 %v2978, %v2984
    %v2991 = vadd.f32 %v2979, %v2984
    %v2992 = vadd.f32 %v2980, %v2984
    %v2993 = vsel %vm238, %v2985, 0.0
    %2994 = vadd.xlane.f32.xlu0 %v2993
    %v2995 = vpop.xlane.xlu0 %2994
    %v2996 = vsel %vm238, %v2986, 0.0
    %2997 = vadd.xlane.f32.xlu0 %v2996
    %v2998 = vpop.xlane.xlu0 %2997
    %v2999 = vsel %vm238, %v2987, 0.0
    %3000 = vadd.xlane.f32.xlu0 %v2999
    %v3001 = vpop.xlane.xlu0 %3000
    %v3002 = vsel %vm238, %v2988, 0.0
    %3003 = vadd.xlane.f32.xlu0 %v3002
    %v3004 = vpop.xlane.xlu0 %3003
    %v3005 = vsel %vm238, %v2989, 0.0
    %3006 = vadd.xlane.f32.xlu0 %v3005
    %v3007 = vpop.xlane.xlu0 %3006
    %v3008 = vsel %vm238, %v2990, 0.0
    %3009 = vadd.xlane.f32.xlu0 %v3008
    %v3010 = vpop.xlane.xlu0 %3009
    %v3011 = vsel %vm238, %v2991, 0.0
    %3012 = vadd.xlane.f32.xlu0 %v3011
    %v3013 = vpop.xlane.xlu0 %3012
    %v3014 = vsel %vm238, %v2992, 0.0
    %3015 = vadd.xlane.f32.xlu0 %v3014
    %v3016 = vpop.xlane.xlu0 %3015
    %v3017 = vmul.f32 %v2995, %v360
    %v3018 = vmul.f32 %v2998, %v360
    %v3019 = vmul.f32 %v3001, %v360
    %v3020 = vmul.f32 %v3004, %v360
    %v3021 = vmul.f32 %v3007, %v360
    %v3022 = vmul.f32 %v3010, %v360
    %v3023 = vmul.f32 %v3013, %v360
    %v3024 = vmul.f32 %v3016, %v360
    %v3025 = vsub.f32 %v2985, %v3017
    %v3026 = vsub.f32 %v2986, %v3018
    %v3027 = vsub.f32 %v2987, %v3019
    %v3028 = vsub.f32 %v2988, %v3020
    %v3029 = vsub.f32 %v2989, %v3021
    %v3030 = vsub.f32 %v2990, %v3022
    %v3031 = vsub.f32 %v2991, %v3023
    %v3032 = vsub.f32 %v2992, %v3024
    %v3033 = vmul.f32 %v3025, %v3025
    %v3034 = vmul.f32 %v3026, %v3026
    %v3035 = vmul.f32 %v3027, %v3027
    %v3036 = vmul.f32 %v3028, %v3028
    %v3037 = vmul.f32 %v3029, %v3029
    %v3038 = vmul.f32 %v3030, %v3030
    %v3039 = vmul.f32 %v3031, %v3031
    %v3040 = vmul.f32 %v3032, %v3032
    %v3041 = vsel %vm238, %v3033, 0.0
    %3042 = vadd.xlane.f32.xlu0 %v3041
    %v3043 = vpop.xlane.xlu0 %3042
    %v3044 = vsel %vm238, %v3034, 0.0
    %3045 = vadd.xlane.f32.xlu0 %v3044
    %v3046 = vpop.xlane.xlu0 %3045
    %v3047 = vsel %vm238, %v3035, 0.0
    %3048 = vadd.xlane.f32.xlu0 %v3047
    %v3049 = vpop.xlane.xlu0 %3048
    %v3050 = vsel %vm238, %v3036, 0.0
    %3051 = vadd.xlane.f32.xlu0 %v3050
    %v3052 = vpop.xlane.xlu0 %3051
    %v3053 = vsel %vm238, %v3037, 0.0
    %3054 = vadd.xlane.f32.xlu0 %v3053
    %v3055 = vpop.xlane.xlu0 %3054
    %v3056 = vsel %vm238, %v3038, 0.0
    %3057 = vadd.xlane.f32.xlu0 %v3056
    %v3058 = vpop.xlane.xlu0 %3057
    %v3059 = vsel %vm238, %v3039, 0.0
    %3060 = vadd.xlane.f32.xlu0 %v3059
    %v3061 = vpop.xlane.xlu0 %3060
    %v3062 = vsel %vm238, %v3040, 0.0
    %3063 = vadd.xlane.f32.xlu0 %v3062
    %v3064 = vpop.xlane.xlu0 %3063
    %v3065 = vmul.f32 %v3043, %v360
    %v3066 = vmul.f32 %v3046, %v360
    %v3067 = vmul.f32 %v3049, %v360
    %v3068 = vmul.f32 %v3052, %v360
    %v3069 = vmul.f32 %v3055, %v360
    %v3070 = vmul.f32 %v3058, %v360
    %v3071 = vmul.f32 %v3061, %v360
    %v3072 = vmul.f32 %v3064, %v360
    %v3073 = vadd.f32 %v3065, 1e-05
    %v3074 = vadd.f32 %v3066, 1e-05
    %v3075 = vadd.f32 %v3067, 1e-05
    %v3076 = vadd.f32 %v3068, 1e-05
    %v3077 = vadd.f32 %v3069, 1e-05
    %v3078 = vadd.f32 %v3070, 1e-05
    %v3079 = vadd.f32 %v3071, 1e-05
    %v3080 = vadd.f32 %v3072, 1e-05
    %v3081 = vrsqrt.pop %v3073
    %v3082 = vrsqrt.pop %v3074
    %v3083 = vrsqrt.pop %v3075
    %v3084 = vrsqrt.pop %v3076
    %v3085 = vrsqrt.pop %v3077
    %v3086 = vrsqrt.pop %v3078
    %v3087 = vrsqrt.pop %v3079
    %v3088 = vrsqrt.pop %v3080
    %v3089 = vmul.f32 %v3025, %v3081
    %v3090 = vmul.f32 %v3026, %v3082
    %v3091 = vmul.f32 %v3027, %v3083
    %v3092 = vmul.f32 %v3028, %v3084
    %v3093 = vmul.f32 %v3029, %v3085
    %v3094 = vmul.f32 %v3030, %v3086
    %v3095 = vmul.f32 %v3031, %v3087
    %v3096 = vmul.f32 %v3032, %v3088
    %v3097 = vlaneseq
    %v3098 = vshrl.u32 %v3097, 7
    %v3099 = vsub.s32 4, %v3098
    %v3100 = vrot.slane %v96, %v3099
    %v3101 = vmul.f32 %v3089, %v3100
    %v3102 = vmul.f32 %v3090, %v3100
    %v3103 = vmul.f32 %v3091, %v3100
    %v3104 = vmul.f32 %v3092, %v3100
    %v3105 = vmul.f32 %v3093, %v3100
    %v3106 = vmul.f32 %v3094, %v3100
    %v3107 = vmul.f32 %v3095, %v3100
    %v3108 = vmul.f32 %v3096, %v3100
    %v3109 = vlaneseq
    %v3110 = vshrl.u32 %v3109, 7
    %v3111 = vsub.s32 5, %v3110
    %v3112 = vrot.slane %v96, %v3111
    %v3113 = vadd.f32 %v3101, %v3112
    %v3114 = vadd.f32 %v3102, %v3112
    %v3115 = vadd.f32 %v3103, %v3112
    %v3116 = vadd.f32 %v3104, %v3112
    %v3117 = vadd.f32 %v3105, %v3112
    %v3118 = vadd.f32 %v3106, %v3112
    %v3119 = vadd.f32 %v3107, %v3112
    %v3120 = vadd.f32 %v3108, %v3112
    %v3121 = vmax.f32 %v3113, 0.0
    %v3122 = vmax.f32 %v3114, 0.0
    %v3123 = vmax.f32 %v3115, 0.0
    %v3124 = vmax.f32 %v3116, 0.0
    %v3125 = vmax.f32 %v3117, 0.0
    %v3126 = vmax.f32 %v3118, 0.0
    %v3127 = vmax.f32 %v3119, 0.0
    %v3128 = vmax.f32 %v3120, 0.0
    %v3129 = vlaneseq
    %v3130 = vshrl.u32 %v3129, 7
    %v3131 = vsub.s32 7, %v3130
    %v3132 = vrot.slane %v96, %v3131
    %v3133 = vmul.f32 %v465, %v3132
    %v3134 = vmul.f32 %v466, %v3132
    %v3135 = vmul.f32 %v467, %v3132
    %v3136 = vmul.f32 %v468, %v3132
    %v3137 = vmul.f32 %v469, %v3132
    %v3138 = vmul.f32 %v470, %v3132
    %v3139 = vmul.f32 %v471, %v3132
    %v3140 = vmul.f32 %v472, %v3132
    %v3141 = vlaneseq
    %v3142 = vshrl.u32 %v3141, 7
    %v3143 = vsub.s32 0, %v3142
    %v3144 = vrot.slane %v97, %v3143
    %v3145 = vmul.f32 %v3121, %v3144
    %v3146 = vmul.f32 %v3122, %v3144
    %v3147 = vmul.f32 %v3123, %v3144
    %v3148 = vmul.f32 %v3124, %v3144
    %v3149 = vmul.f32 %v3125, %v3144
    %v3150 = vmul.f32 %v3126, %v3144
    %v3151 = vmul.f32 %v3127, %v3144
    %v3152 = vmul.f32 %v3128, %v3144
    %v3153 = vadd.f32 %v3133, %v3145
    %v3154 = vadd.f32 %v3134, %v3146
    %v3155 = vadd.f32 %v3135, %v3147
    %v3156 = vadd.f32 %v3136, %v3148
    %v3157 = vadd.f32 %v3137, %v3149
    %v3158 = vadd.f32 %v3138, %v3150
    %v3159 = vadd.f32 %v3139, %v3151
    %v3160 = vadd.f32 %v3140, %v3152
    %v3161 = vlaneseq
    %v3162 = vshrl.u32 %v3161, 7
    %v3163 = vsub.s32 4, %v3162
    %v3164 = vrot.slane %v95, %v3163
    %v3165 = vmul.f32 %v1479, %v3164
    %v3166 = vmul.f32 %v1484, %v3164
    %v3167 = vmul.f32 %v1489, %v3164
    %v3168 = vmul.f32 %v1494, %v3164
    %v3169 = vmul.f32 %v1499, %v3164
    %v3170 = vmul.f32 %v1504, %v3164
    %v3171 = vmul.f32 %v1509, %v3164
    %v3172 = vmul.f32 %v1514, %v3164
    %v3173 = vlaneseq
    %v3174 = vshrl.u32 %v3173, 7
    %v3175 = vsub.s32 5, %v3174
    %v3176 = vrot.slane %v95, %v3175
    %v3177 = vmul.f32 %v2482, %v3176
    %v3178 = vmul.f32 %v2487, %v3176
    %v3179 = vmul.f32 %v2492, %v3176
    %v3180 = vmul.f32 %v2497, %v3176
    %v3181 = vmul.f32 %v2502, %v3176
    %v3182 = vmul.f32 %v2507, %v3176
    %v3183 = vmul.f32 %v2512, %v3176
    %v3184 = vmul.f32 %v2517, %v3176
    %v3185 = vadd.f32 %v3165, %v3177
    %v3186 = vadd.f32 %v3166, %v3178
    %v3187 = vadd.f32 %v3167, %v3179
    %v3188 = vadd.f32 %v3168, %v3180
    %v3189 = vadd.f32 %v3169, %v3181
    %v3190 = vadd.f32 %v3170, %v3182
    %v3191 = vadd.f32 %v3171, %v3183
    %v3192 = vadd.f32 %v3172, %v3184
    %v3194 = vsel %vm776, 1.0, 0
    %v3197 = vsel %vm776, %v3185, 0
    %v3200 = vsel %vm776, %v3186, 0
    %v3203 = vsel %vm776, %v3187, 0
    %v3206 = vsel %vm776, %v3188, 0
    %v3209 = vsel %vm776, %v3189, 0
    %v3212 = vsel %vm776, %v3190, 0
    %v3215 = vsel %vm776, %v3191, 0
    %v3218 = vsel %vm776, %v3192, 0
    %3220 = vmatprep.subr.mxu0 0.0
    %3221 = vmatpush1.xpose.msra.mxu0 %v3197
    %3222 = vmatprep.subr.mxu0 0.0
    %3223 = vmatpush1.xpose.msra.mxu0 %v3200
    %3224 = vmatprep.subr.mxu0 0.0
    %3225 = vmatpush1.xpose.msra.mxu0 %v3203
    %3226 = vmatprep.subr.mxu0 0.0
    %3227 = vmatpush1.xpose.msra.mxu0 %v3206
    %3228 = vmatprep.subr.mxu0 0.0
    %3229 = vmatpush1.xpose.msra.mxu0 %v3209
    %3230 = vmatprep.subr.mxu0 0.0
    %3231 = vmatpush1.xpose.msra.mxu0 %v3212
    %3232 = vmatprep.subr.mxu0 0.0
    %3233 = vmatpush1.xpose.msra.mxu0 %v3215
    %3234 = vmatprep.subr.mxu0 0.0
    %3235 = vmatpush1.xpose.msra.mxu0 %v3218
    %3236 = vmatprep.subr.mxu0 0.0
    %3237 = vmatpush1.xpose.msra.mxu0 0.0
    %3238 = vmatprep.subr.mxu0 0.0
    %3239 = vmatpush1.xpose.msra.mxu0 0.0
    %3240 = vmatprep.subr.mxu0 0.0
    %3241 = vmatpush1.xpose.msra.mxu0 0.0
    %3242 = vmatprep.subr.mxu0 0.0
    %3243 = vmatpush1.xpose.msra.mxu0 0.0
    %3244 = vmatprep.subr.mxu0 0.0
    %3245 = vmatpush1.xpose.msra.mxu0 0.0
    %3246 = vmatprep.subr.mxu0 0.0
    %3247 = vmatpush1.xpose.msra.mxu0 0.0
    %3248 = vmatprep.subr.mxu0 0.0
    %3249 = vmatpush1.xpose.msra.mxu0 0.0
    %3250 = vmatprep.subr.mxu0 0.0
    %3251 = vmatpush1.xpose.msra.mxu0 0.0
    %3252 = vmatprep.subr.mxu0 0.0
    %3253 = vmatpush1.xpose.msra.mxu0 0.0
    %3254 = vmatprep.subr.mxu0 0.0
    %3255 = vmatpush1.xpose.msra.mxu0 0.0
    %3256 = vmatprep.subr.mxu0 0.0
    %3257 = vmatpush1.xpose.msra.mxu0 0.0
    %3258 = vmatprep.subr.mxu0 0.0
    %3259 = vmatpush1.xpose.msra.mxu0 0.0
    %3260 = vmatprep.subr.mxu0 0.0
    %3261 = vmatpush1.xpose.msra.mxu0 0.0
    %3262 = vmatprep.subr.mxu0 0.0
    %3263 = vmatpush1.xpose.msra.mxu0 0.0
    %3264 = vmatprep.subr.mxu0 0.0
    %3265 = vmatpush1.xpose.msra.mxu0 0.0
    %3266 = vmatprep.subr.mxu0 0.0
    %3267 = vmatpush1.xpose.msra.mxu0 0.0
    %3268 = vmatprep.subr.mxu0 0.0
    %3269 = vmatpush1.xpose.msra.mxu0 0.0
    %3270 = vmatprep.subr.mxu0 0.0
    %3271 = vmatpush1.xpose.msra.mxu0 0.0
    %3272 = vmatprep.subr.mxu0 0.0
    %3273 = vmatpush1.xpose.msra.mxu0 0.0
    %3274 = vmatprep.subr.mxu0 0.0
    %3275 = vmatpush1.xpose.msra.mxu0 0.0
    %3276 = vmatprep.subr.mxu0 0.0
    %3277 = vmatpush1.xpose.msra.mxu0 0.0
    %3278 = vmatprep.subr.mxu0 0.0
    %3279 = vmatpush1.xpose.msra.mxu0 0.0
    %3280 = vmatprep.subr.mxu0 0.0
    %3281 = vmatpush1.xpose.msra.mxu0 0.0
    %3282 = vmatprep.subr.mxu0 0.0
    %3283 = vmatpush1.xpose.msra.mxu0 0.0
    %3284 = vmatprep.mubr.f32.mxu0 0.0
    %3285 = vmatmul.mubr.f32.gmra.mrb[0].mxu0 %v3194
    %v3286 = vpop.f32.mrb[0].mxu0
    %v3287 = vadd.f32 0.0, %v3286
    %v3288 = vpop.f32.mrb[0].mxu0
    %3289 = vdwg.mxu0
    %v3290 = vsel %vm238, 1.0, 0
    %v3293 = vsel %vm238, %v3153, 0
    %v3296 = vsel %vm238, %v3154, 0
    %v3299 = vsel %vm238, %v3155, 0
    %v3302 = vsel %vm238, %v3156, 0
    %v3305 = vsel %vm238, %v3157, 0
    %v3308 = vsel %vm238, %v3158, 0
    %v3311 = vsel %vm238, %v3159, 0
    %v3314 = vsel %vm238, %v3160, 0
    %3316 = vmatprep.subr.mxu0 0.0
    %3317 = vmatpush1.xpose.msra.mxu0 %v3293
    %3318 = vmatprep.subr.mxu0 0.0
    %3319 = vmatpush1.xpose.msra.mxu0 %v3296
    %3320 = vmatprep.subr.mxu0 0.0
    %3321 = vmatpush1.xpose.msra.mxu0 %v3299
    %3322 = vmatprep.subr.mxu0 0.0
    %3323 = vmatpush1.xpose.msra.mxu0 %v3302
    %3324 = vmatprep.subr.mxu0 0.0
    %3325 = vmatpush1.xpose.msra.mxu0 %v3305
    %3326 = vmatprep.subr.mxu0 0.0
    %3327 = vmatpush1.xpose.msra.mxu0 %v3308
    %3328 = vmatprep.subr.mxu0 0.0
    %3329 = vmatpush1.xpose.msra.mxu0 %v3311
    %3330 = vmatprep.subr.mxu0 0.0
    %3331 = vmatpush1.xpose.msra.mxu0 %v3314
    %3332 = vmatprep.subr.mxu0 0.0
    %3333 = vmatpush1.xpose.msra.mxu0 0.0
    %3334 = vmatprep.subr.mxu0 0.0
    %3335 = vmatpush1.xpose.msra.mxu0 0.0
    %3336 = vmatprep.subr.mxu0 0.0
    %3337 = vmatpush1.xpose.msra.mxu0 0.0
    %3338 = vmatprep.subr.mxu0 0.0
    %3339 = vmatpush1.xpose.msra.mxu0 0.0
    %3340 = vmatprep.subr.mxu0 0.0
    %3341 = vmatpush1.xpose.msra.mxu0 0.0
    %3342 = vmatprep.subr.mxu0 0.0
    %3343 = vmatpush1.xpose.msra.mxu0 0.0
    %3344 = vmatprep.subr.mxu0 0.0
    %3345 = vmatpush1.xpose.msra.mxu0 0.0
    %3346 = vmatprep.subr.mxu0 0.0
    %3347 = vmatpush1.xpose.msra.mxu0 0.0
    %3348 = vmatprep.subr.mxu0 0.0
    %3349 = vmatpush1.xpose.msra.mxu0 0.0
    %3350 = vmatprep.subr.mxu0 0.0
    %3351 = vmatpush1.xpose.msra.mxu0 0.0
    %3352 = vmatprep.subr.mxu0 0.0
    %3353 = vmatpush1.xpose.msra.mxu0 0.0
    %3354 = vmatprep.subr.mxu0 0.0
    %3355 = vmatpush1.xpose.msra.mxu0 0.0
    %3356 = vmatprep.subr.mxu0 0.0
    %3357 = vmatpush1.xpose.msra.mxu0 0.0
    %3358 = vmatprep.subr.mxu0 0.0
    %3359 = vmatpush1.xpose.msra.mxu0 0.0
    %3360 = vmatprep.subr.mxu0 0.0
    %3361 = vmatpush1.xpose.msra.mxu0 0.0
    %3362 = vmatprep.subr.mxu0 0.0
    %3363 = vmatpush1.xpose.msra.mxu0 0.0
    %3364 = vmatprep.subr.mxu0 0.0
    %3365 = vmatpush1.xpose.msra.mxu0 0.0
    %3366 = vmatprep.subr.mxu0 0.0
    %3367 = vmatpush1.xpose.msra.mxu0 0.0
    %3368 = vmatprep.subr.mxu0 0.0
    %3369 = vmatpush1.xpose.msra.mxu0 0.0
    %3370 = vmatprep.subr.mxu0 0.0
    %3371 = vmatpush1.xpose.msra.mxu0 0.0
    %3372 = vmatprep.subr.mxu0 0.0
    %3373 = vmatpush1.xpose.msra.mxu0 0.0
    %3374 = vmatprep.subr.mxu0 0.0
    %3375 = vmatpush1.xpose.msra.mxu0 0.0
    %3376 = vmatprep.subr.mxu0 0.0
    %3377 = vmatpush1.xpose.msra.mxu0 0.0
    %3378 = vmatprep.subr.mxu0 0.0
    %3379 = vmatpush1.xpose.msra.mxu0 0.0
    %3380 = vmatprep.mubr.f32.mxu0 0.0
    %3381 = vmatmul.mubr.f32.gmra.mrb[0].mxu0 %v3290
    %v3382 = vpop.f32.mrb[0].mxu0
    %v3383 = vadd.f32 %v3287, %v3382
    %v3384 = vpop.f32.mrb[0].mxu0
    %3385 = vdwg.mxu0
    %v3387 = vcombine.high %v96, %v96
    %v3389 = vunpack.c.l.s4 1966171168
    %v3390 = vunpack.c.0.s8 %v3389
    %v3391 = vlaneseq
    %v3392 = vshrl.u32 %v3391, 7
    %v3393 = vsub.s32 %v3390, %v3392
    %v3394 = vrot.slane %v3387, %v3393
    %v3396 = vunpack.c.l.s4 1966171168
    %v3397 = vunpack.c.0.s8 %v3396
    %v3398 = vlaneseq
    %v3399 = vshrl.u32 %v3398, 7
    %v3400 = vsub.s32 %v3397, %v3399
    %v3401 = vrot.slane %v3394, %v3400
    %v3402 = vcombine.high %v3401, %v3401
    %v3404 = vmul.f32 %v237, %v3402
    %vm3405 = vcmask 253952
    %v3406 = vsel %vm3405, %v3404, 0.0
    %3407 = vadd.xlane.f32.xlu0 %v3406
    %v3408 = vpop.xlane.xlu0 %3407
    %v3409 = vadd.f32 %v3383, %v3408
    %vm3410 = vcmask 516096
    %v3411 = vsel %vm3410, %v3409, -inf
    %3412 = vmax.xlane.f32.xlu0 %v3411
    %v3413 = vpop.xlane.xlu0 %3412
    %v3414 = vsub.f32 %v3409, %v3413
    %v3415 = vmul.f32 %v3414, 1.442695
    %v3416 = vpow.pop %v3415
    %v3417 = vsel %vm3410, %v3416, 0.0
    %3418 = vadd.xlane.f32.xlu0 %v3417
    %v3419 = vpop.xlane.xlu0 %3418
    %v3420 = vlog2.pop %v3419
    %v3421 = vmul.f32 %v3420, 0.6931472
    %v3422 = vadd.f32 %v3413, %v3421
    %v3423 = vsub.f32 %v3409, %v3422
    %3424 = vst.msk [vmem:[#allocation2] sm:$0x1] %vm3410, %v3423
    %s3425 = scalar_lea.vmem %s2, 1
    %v3426 = vld [vmem:[%s3425] sm:$0x1]
    %v3428 = vsel %vm238, %v3426, 0
    %3430 = vmatprep.subr.mxu0 0.0
    %3431 = vmatpush1.msra.mxu0 %v64
    %3432 = vmatprep.subr.mxu0 0.0
    %3433 = vmatpush1.msra.mxu0 %v65
    %3434 = vmatprep.subr.mxu0 0.0
    %3435 = vmatpush1.msra.mxu0 %v66
    %3436 = vmatprep.subr.mxu0 0.0
    %3437 = vmatpush1.msra.mxu0 %v67
    %3438 = vmatprep.subr.mxu0 0.0
    %3439 = vmatpush1.msra.mxu0 0.0
    %3440 = vmatprep.subr.mxu0 0.0
    %3441 = vmatpush1.msra.mxu0 0.0
    %3442 = vmatprep.subr.mxu0 0.0
    %3443 = vmatpush1.msra.mxu0 0.0
    %3444 = vmatprep.subr.mxu0 0.0
    %3445 = vmatpush1.msra.mxu0 0.0
    %3446 = vmatprep.subr.mxu0 0.0
    %3447 = vmatpush1.msra.mxu0 0.0
    %3448 = vmatprep.subr.mxu0 0.0
    %3449 = vmatpush1.msra.mxu0 0.0
    %3450 = vmatprep.subr.mxu0 0.0
    %3451 = vmatpush1.msra.mxu0 0.0
    %3452 = vmatprep.subr.mxu0 0.0
    %3453 = vmatpush1.msra.mxu0 0.0
    %3454 = vmatprep.subr.mxu0 0.0
    %3455 = vmatpush1.msra.mxu0 0.0
    %3456 = vmatprep.subr.mxu0 0.0
    %3457 = vmatpush1.msra.mxu0 0.0
    %3458 = vmatprep.subr.mxu0 0.0
    %3459 = vmatpush1.msra.mxu0 0.0
    %3460 = vmatprep.subr.mxu0 0.0
    %3461 = vmatpush1.msra.mxu0 0.0
    %3462 = vmatprep.subr.mxu0 0.0
    %3463 = vmatpush1.msra.mxu0 0.0
    %3464 = vmatprep.subr.mxu0 0.0
    %3465 = vmatpush1.msra.mxu0 0.0
    %3466 = vmatprep.subr.mxu0 0.0
    %3467 = vmatpush1.msra.mxu0 0.0
    %3468 = vmatprep.subr.mxu0 0.0
    %3469 = vmatpush1.msra.mxu0 0.0
    %3470 = vmatprep.subr.mxu0 0.0
    %3471 = vmatpush1.msra.mxu0 0.0
    %3472 = vmatprep.subr.mxu0 0.0
    %3473 = vmatpush1.msra.mxu0 0.0
    %3474 = vmatprep.subr.mxu0 0.0
    %3475 = vmatpush1.msra.mxu0 0.0
    %3476 = vmatprep.subr.mxu0 0.0
    %3477 = vmatpush1.msra.mxu0 0.0
    %3478 = vmatprep.subr.mxu0 0.0
    %3479 = vmatpush1.msra.mxu0 0.0
    %3480 = vmatprep.subr.mxu0 0.0
    %3481 = vmatpush1.msra.mxu0 0.0
    %3482 = vmatprep.subr.mxu0 0.0
    %3483 = vmatpush1.msra.mxu0 0.0
    %3484 = vmatprep.subr.mxu0 0.0
    %3485 = vmatpush1.msra.mxu0 0.0
    %3486 = vmatprep.subr.mxu0 0.0
    %3487 = vmatpush1.msra.mxu0 0.0
    %3488 = vmatprep.subr.mxu0 0.0
    %3489 = vmatpush1.msra.mxu0 0.0
    %3490 = vmatprep.subr.mxu0 0.0
    %3491 = vmatpush1.msra.mxu0 0.0
    %3492 = vmatprep.subr.mxu0 0.0
    %3493 = vmatpush1.msra.mxu0 0.0
    %3494 = vmatprep.mubr.f32.mxu0 0.0
    %3495 = vmatmul.mubr.f32.gmra.mrb[0].mxu0 %v3428
    %v3496 = vpop.f32.mrb[0].mxu0
    %v3497 = vadd.f32 0.0, %v3496
    %v3498 = vpop.f32.mrb[0].mxu0
    %3499 = vdwg.mxu0
    %v3500 = vlaneseq
    %v3501 = vshrl.u32 %v3500, 7
    %v3502 = vsub.s32 0, %v3501
    %v3503 = vrot.slane %v3497, %v3502
    %v3504 = vadd.f32 %v199, %v3503
    %v3505 = vadd.f32 %v204, %v3503
    %v3506 = vadd.f32 %v209, %v3503
    %v3507 = vadd.f32 %v214, %v3503
    %v3508 = vadd.f32 %v219, %v3503
    %v3509 = vadd.f32 %v224, %v3503
    %v3510 = vadd.f32 %v229, %v3503
    %v3511 = vadd.f32 %v234, %v3503
    %v3512 = vadd.f32 %v3504, %v327
    %v3513 = vadd.f32 %v3505, %v327
    %v3514 = vadd.f32 %v3506, %v327
    %v3515 = vadd.f32 %v3507, %v327
    %v3516 = vadd.f32 %v3508, %v327
    %v3517 = vadd.f32 %v3509, %v327
    %v3518 = vadd.f32 %v3510, %v327
    %v3519 = vadd.f32 %v3511, %v327
    %v3520 = vsel %vm238, %v3512, 0.0
    %3521 = vadd.xlane.f32.xlu0 %v3520
    %v3522 = vpop.xlane.xlu0 %3521
    %v3523 = vsel %vm238, %v3513, 0.0
    %3524 = vadd.xlane.f32.xlu0 %v3523
    %v3525 = vpop.xlane.xlu0 %3524
    %v3526 = vsel %vm238, %v3514, 0.0
    %3527 = vadd.xlane.f32.xlu0 %v3526
    %v3528 = vpop.xlane.xlu0 %3527
    %v3529 = vsel %vm238, %v3515, 0.0
    %3530 = vadd.xlane.f32.xlu0 %v3529
    %v3531 = vpop.xlane.xlu0 %3530
    %v3532 = vsel %vm238, %v3516, 0.0
    %3533 = vadd.xlane.f32.xlu0 %v3532
    %v3534 = vpop.xlane.xlu0 %3533
    %v3535 = vsel %vm238, %v3517, 0.0
    %3536 = vadd.xlane.f32.xlu0 %v3535
    %v3537 = vpop.xlane.xlu0 %3536
    %v3538 = vsel %vm238, %v3518, 0.0
    %3539 = vadd.xlane.f32.xlu0 %v3538
    %v3540 = vpop.xlane.xlu0 %3539
    %v3541 = vsel %vm238, %v3519, 0.0
    %3542 = vadd.xlane.f32.xlu0 %v3541
    %v3543 = vpop.xlane.xlu0 %3542
    %v3544 = vmul.f32 %v3522, %v360
    %v3545 = vmul.f32 %v3525, %v360
    %v3546 = vmul.f32 %v3528, %v360
    %v3547 = vmul.f32 %v3531, %v360
    %v3548 = vmul.f32 %v3534, %v360
    %v3549 = vmul.f32 %v3537, %v360
    %v3550 = vmul.f32 %v3540, %v360
    %v3551 = vmul.f32 %v3543, %v360
    %v3552 = vsub.f32 %v3512, %v3544
    %v3553 = vsub.f32 %v3513, %v3545
    %v3554 = vsub.f32 %v3514, %v3546
    %v3555 = vsub.f32 %v3515, %v3547
    %v3556 = vsub.f32 %v3516, %v3548
    %v3557 = vsub.f32 %v3517, %v3549
    %v3558 = vsub.f32 %v3518, %v3550
    %v3559 = vsub.f32 %v3519, %v3551
    %v3560 = vmul.f32 %v3552, %v3552
    %v3561 = vmul.f32 %v3553, %v3553
    %v3562 = vmul.f32 %v3554, %v3554
    %v3563 = vmul.f32 %v3555, %v3555
    %v3564 = vmul.f32 %v3556, %v3556
    %v3565 = vmul.f32 %v3557, %v3557
    %v3566 = vmul.f32 %v3558, %v3558
    %v3567 = vmul.f32 %v3559, %v3559
    %v3568 = vsel %vm238, %v3560, 0.0
    %3569 = vadd.xlane.f32.xlu0 %v3568
    %v3570 = vpop.xlane.xlu0 %3569
    %v3571 = vsel %vm238, %v3561, 0.0
    %3572 = vadd.xlane.f32.xlu0 %v3571
    %v3573 = vpop.xlane.xlu0 %3572
    %v3574 = vsel %vm238, %v3562, 0.0
    %3575 = vadd.xlane.f32.xlu0 %v3574
    %v3576 = vpop.xlane.xlu0 %3575
    %v3577 = vsel %vm238, %v3563, 0.0
    %3578 = vadd.xlane.f32.xlu0 %v3577
    %v3579 = vpop.xlane.xlu0 %3578
    %v3580 = vsel %vm238, %v3564, 0.0
    %3581 = vadd.xlane.f32.xlu0 %v3580
    %v3582 = vpop.xlane.xlu0 %3581
    %v3583 = vsel %vm238, %v3565, 0.0
    %3584 = vadd.xlane.f32.xlu0 %v3583
    %v3585 = vpop.xlane.xlu0 %3584
    %v3586 = vsel %vm238, %v3566, 0.0
    %3587 = vadd.xlane.f32.xlu0 %v3586
    %v3588 = vpop.xlane.xlu0 %3587
    %v3589 = vsel %vm238, %v3567, 0.0
    %3590 = vadd.xlane.f32.xlu0 %v3589
    %v3591 = vpop.xlane.xlu0 %3590
    %v3592 = vmul.f32 %v3570, %v360
    %v3593 = vmul.f32 %v3573, %v360
    %v3594 = vmul.f32 %v3576, %v360
    %v3595 = vmul.f32 %v3579, %v360
    %v3596 = vmul.f32 %v3582, %v360
    %v3597 = vmul.f32 %v3585, %v360
    %v3598 = vmul.f32 %v3588, %v360
    %v3599 = vmul.f32 %v3591, %v360
    %v3600 = vadd.f32 %v3592, 1e-05
    %v3601 = vadd.f32 %v3593, 1e-05
    %v3602 = vadd.f32 %v3594, 1e-05
    %v3603 = vadd.f32 %v3595, 1e-05
    %v3604 = vadd.f32 %v3596, 1e-05
    %v3605 = vadd.f32 %v3597, 1e-05
    %v3606 = vadd.f32 %v3598, 1e-05
    %v3607 = vadd.f32 %v3599, 1e-05
    %v3608 = vrsqrt.pop %v3600
    %v3609 = vrsqrt.pop %v3601
    %v3610 = vrsqrt.pop %v3602
    %v3611 = vrsqrt.pop %v3603
    %v3612 = vrsqrt.pop %v3604
    %v3613 = vrsqrt.pop %v3605
    %v3614 = vrsqrt.pop %v3606
    %v3615 = vrsqrt.pop %v3607
    %v3616 = vmul.f32 %v3552, %v3608
    %v3617 = vmul.f32 %v3553, %v3609
    %v3618 = vmul.f32 %v3554, %v3610
    %v3619 = vmul.f32 %v3555, %v3611
    %v3620 = vmul.f32 %v3556, %v3612
    %v3621 = vmul.f32 %v3557, %v3613
    %v3622 = vmul.f32 %v3558, %v3614
    %v3623 = vmul.f32 %v3559, %v3615
    %v3624 = vmul.f32 %v3616, %v444
    %v3625 = vmul.f32 %v3617, %v444
    %v3626 = vmul.f32 %v3618, %v444
    %v3627 = vmul.f32 %v3619, %v444
    %v3628 = vmul.f32 %v3620, %v444
    %v3629 = vmul.f32 %v3621, %v444
    %v3630 = vmul.f32 %v3622, %v444
    %v3631 = vmul.f32 %v3623, %v444
    %v3632 = vadd.f32 %v3624, %v456
    %v3633 = vadd.f32 %v3625, %v456
    %v3634 = vadd.f32 %v3626, %v456
    %v3635 = vadd.f32 %v3627, %v456
    %v3636 = vadd.f32 %v3628, %v456
    %v3637 = vadd.f32 %v3629, %v456
    %v3638 = vadd.f32 %v3630, %v456
    %v3639 = vadd.f32 %v3631, %v456
    %v3640 = vmax.f32 %v3632, 0.0
    %v3641 = vmax.f32 %v3633, 0.0
    %v3642 = vmax.f32 %v3634, 0.0
    %v3643 = vmax.f32 %v3635, 0.0
    %v3644 = vmax.f32 %v3636, 0.0
    %v3645 = vmax.f32 %v3637, 0.0
    %v3646 = vmax.f32 %v3638, 0.0
    %v3647 = vmax.f32 %v3639, 0.0
    %s3648 = scalar_lea.vmem %s4, 1
    %v3649 = vld [vmem:[%s3648] sm:$0x1]
    %v3650 = vsub.f32 1.0, %v3649
    %v3651 = vmul.f32 %v3650, -1e+09
    %s3652 = scalar_lea.vmem %s5, 1
    %v3653 = vld [vmem:[%s3652] sm:$0x1]
    %v3654 = vsub.f32 1.0, %v3653
    %v3655 = vmul.f32 %v3654, -1e+09
    %s3656 = scalar_lea.vmem %s1, 64
    %v3657 = vld [vmem:[%s3656] sm:$0xff]
    %v3658 = vld [vmem:[%s3656 + $0x8] sm:$0xff]
    %v3659 = vld [vmem:[%s3656 + $0x10] sm:$0xff]
    %v3660 = vld [vmem:[%s3656 + $0x18] sm:$0xff]
    %v3661 = vld [vmem:[%s3656 + $0x20] sm:$0xff]
    %v3662 = vld [vmem:[%s3656 + $0x28] sm:$0xff]
    %v3663 = vld [vmem:[%s3656 + $0x30] sm:$0xff]
    %v3664 = vld [vmem:[%s3656 + $0x38] sm:$0xff]
    %v3665 = vld [vmem:[%s7] sm:$0xff]
    %v3666 = vld [vmem:[%s7 + $0x8] sm:$0xff]
    %v3667 = vld [vmem:[%s7 + $0x10] sm:$0xff]
    %v3668 = vld [vmem:[%s7 + $0x18] sm:$0xff]
    %v3669 = vld [vmem:[%s491] sm:$0xff]
    %v3670 = vld [vmem:[%s491 + $0x8] sm:$0xff]
    %v3671 = vld [vmem:[%s491 + $0x10] sm:$0xff]
    %v3672 = vld [vmem:[%s491 + $0x18] sm:$0xff]
    %v3674 = vsel %vm238, %v3640, 0
    %v3677 = vsel %vm238, %v3641, 0
    %v3680 = vsel %vm238, %v3642, 0
    %v3683 = vsel %vm238, %v3643, 0
    %v3686 = vsel %vm238, %v3644, 0
    %v3689 = vsel %vm238, %v3645, 0
    %v3692 = vsel %vm238, %v3646, 0
    %v3695 = vsel %vm238, %v3647, 0
    %3697 = vmatprep.subr.mxu0 0.0
    %3698 = vmatpush1.msra.mxu0 %v3665
    %3699 = vmatprep.subr.mxu0 0.0
    %3700 = vmatpush1.msra.mxu0 %v3666
    %3701 = vmatprep.subr.mxu0 0.0
    %3702 = vmatpush1.msra.mxu0 %v3667
    %3703 = vmatprep.subr.mxu0 0.0
    %3704 = vmatpush1.msra.mxu0 %v3668
    %3705 = vmatprep.subr.mxu0 0.0
    %3706 = vmatpush1.msra.mxu0 0.0
    %3707 = vmatprep.subr.mxu0 0.0
    %3708 = vmatpush1.msra.mxu0 0.0
    %3709 = vmatprep.subr.mxu0 0.0
    %3710 = vmatpush1.msra.mxu0 0.0
    %3711 = vmatprep.subr.mxu0 0.0
    %3712 = vmatpush1.msra.mxu0 0.0
    %3713 = vmatprep.subr.mxu0 0.0
    %3714 = vmatpush1.msra.mxu0 0.0
    %3715 = vmatprep.subr.mxu0 0.0
    %3716 = vmatpush1.msra.mxu0 0.0
    %3717 = vmatprep.subr.mxu0 0.0
    %3718 = vmatpush1.msra.mxu0 0.0
    %3719 = vmatprep.subr.mxu0 0.0
    %3720 = vmatpush1.msra.mxu0 0.0
    %3721 = vmatprep.subr.mxu0 0.0
    %3722 = vmatpush1.msra.mxu0 0.0
    %3723 = vmatprep.subr.mxu0 0.0
    %3724 = vmatpush1.msra.mxu0 0.0
    %3725 = vmatprep.subr.mxu0 0.0
    %3726 = vmatpush1.msra.mxu0 0.0
    %3727 = vmatprep.subr.mxu0 0.0
    %3728 = vmatpush1.msra.mxu0 0.0
    %3729 = vmatprep.subr.mxu0 0.0
    %3730 = vmatpush1.msra.mxu0 0.0
    %3731 = vmatprep.subr.mxu0 0.0
    %3732 = vmatpush1.msra.mxu0 0.0
    %3733 = vmatprep.subr.mxu0 0.0
    %3734 = vmatpush1.msra.mxu0 0.0
    %3735 = vmatprep.subr.mxu0 0.0
    %3736 = vmatpush1.msra.mxu0 0.0
    %3737 = vmatprep.subr.mxu0 0.0
    %3738 = vmatpush1.msra.mxu0 0.0
    %3739 = vmatprep.subr.mxu0 0.0
    %3740 = vmatpush1.msra.mxu0 0.0
    %3741 = vmatprep.subr.mxu0 0.0
    %3742 = vmatpush1.msra.mxu0 0.0
    %3743 = vmatprep.subr.mxu0 0.0
    %3744 = vmatpush1.msra.mxu0 0.0
    %3745 = vmatprep.subr.mxu0 0.0
    %3746 = vmatpush1.msra.mxu0 0.0
    %3747 = vmatprep.subr.mxu0 0.0
    %3748 = vmatpush1.msra.mxu0 0.0
    %3749 = vmatprep.subr.mxu0 0.0
    %3750 = vmatpush1.msra.mxu0 0.0
    %3751 = vmatprep.subr.mxu0 0.0
    %3752 = vmatpush1.msra.mxu0 0.0
    %3753 = vmatprep.subr.mxu0 0.0
    %3754 = vmatpush1.msra.mxu0 0.0
    %3755 = vmatprep.subr.mxu0 0.0
    %3756 = vmatpush1.msra.mxu0 0.0
    %3757 = vmatprep.subr.mxu0 0.0
    %3758 = vmatpush1.msra.mxu0 0.0
    %3759 = vmatprep.subr.mxu0 0.0
    %3760 = vmatpush1.msra.mxu0 0.0
    %3761 = vmatprep.mubr.f32.mxu0 0.0
    %3762 = vmatmul.mubr.f32.gmra.mrb[0].mxu0 %v3674
    %v3763 = vpop.f32.mrb[0].mxu0
    %v3764 = vadd.f32 %v499, %v3763
    %v3765 = vpop.f32.mrb[0].mxu0
    %3766 = vmatprep.mubr.f32.mxu0 0.0
    %3767 = vmatmul.mubr.f32.gmra.mrb[0].mxu0 %v3677
    %v3768 = vpop.f32.mrb[0].mxu0
    %v3769 = vadd.f32 %v499, %v3768
    %v3770 = vpop.f32.mrb[0].mxu0
    %3771 = vmatprep.mubr.f32.mxu0 0.0
    %3772 = vmatmul.mubr.f32.gmra.mrb[0].mxu0 %v3680
    %v3773 = vpop.f32.mrb[0].mxu0
    %v3774 = vadd.f32 %v499, %v3773
    %v3775 = vpop.f32.mrb[0].mxu0
    %3776 = vmatprep.mubr.f32.mxu0 0.0
    %3777 = vmatmul.mubr.f32.gmra.mrb[0].mxu0 %v3683
    %v3778 = vpop.f32.mrb[0].mxu0
    %v3779 = vadd.f32 %v499, %v3778
    %v3780 = vpop.f32.mrb[0].mxu0
    %3781 = vmatprep.mubr.f32.mxu0 0.0
    %3782 = vmatmul.mubr.f32.gmra.mrb[0].mxu0 %v3686
    %v3783 = vpop.f32.mrb[0].mxu0
    %v3784 = vadd.f32 %v499, %v3783
    %v3785 = vpop.f32.mrb[0].mxu0
    %3786 = vmatprep.mubr.f32.mxu0 0.0
    %3787 = vmatmul.mubr.f32.gmra.mrb[0].mxu0 %v3689
    %v3788 = vpop.f32.mrb[0].mxu0
    %v3789 = vadd.f32 %v499, %v3788
    %v3790 = vpop.f32.mrb[0].mxu0
    %3791 = vmatprep.mubr.f32.mxu0 0.0
    %3792 = vmatmul.mubr.f32.gmra.mrb[0].mxu0 %v3692
    %v3793 = vpop.f32.mrb[0].mxu0
    %v3794 = vadd.f32 %v499, %v3793
    %v3795 = vpop.f32.mrb[0].mxu0
    %3796 = vmatprep.mubr.f32.mxu0 0.0
    %3797 = vmatmul.mubr.f32.gmra.mrb[0].mxu0 %v3695
    %v3798 = vpop.f32.mrb[0].mxu0
    %v3799 = vadd.f32 %v499, %v3798
    %v3800 = vpop.f32.mrb[0].mxu0
    %3801 = vdwg.mxu0
    %v3803 = vsel %vm238, %v3657, 0
    %v3806 = vsel %vm238, %v3658, 0
    %v3809 = vsel %vm238, %v3659, 0
    %v3812 = vsel %vm238, %v3660, 0
    %v3815 = vsel %vm238, %v3661, 0
    %v3818 = vsel %vm238, %v3662, 0
    %v3821 = vsel %vm238, %v3663, 0
    %v3824 = vsel %vm238, %v3664, 0
    %3826 = vmatprep.subr.mxu0 0.0
    %3827 = vmatpush1.msra.mxu0 %v3669
    %3828 = vmatprep.subr.mxu0 0.0
    %3829 = vmatpush1.msra.mxu0 %v3670
    %3830 = vmatprep.subr.mxu0 0.0
    %3831 = vmatpush1.msra.mxu0 %v3671
    %3832 = vmatprep.subr.mxu0 0.0
    %3833 = vmatpush1.msra.mxu0 %v3672
    %3834 = vmatprep.subr.mxu0 0.0
    %3835 = vmatpush1.msra.mxu0 0.0
    %3836 = vmatprep.subr.mxu0 0.0
    %3837 = vmatpush1.msra.mxu0 0.0
    %3838 = vmatprep.subr.mxu0 0.0
    %3839 = vmatpush1.msra.mxu0 0.0
    %3840 = vmatprep.subr.mxu0 0.0
    %3841 = vmatpush1.msra.mxu0 0.0
    %3842 = vmatprep.subr.mxu0 0.0
    %3843 = vmatpush1.msra.mxu0 0.0
    %3844 = vmatprep.subr.mxu0 0.0
    %3845 = vmatpush1.msra.mxu0 0.0
    %3846 = vmatprep.subr.mxu0 0.0
    %3847 = vmatpush1.msra.mxu0 0.0
    %3848 = vmatprep.subr.mxu0 0.0
    %3849 = vmatpush1.msra.mxu0 0.0
    %3850 = vmatprep.subr.mxu0 0.0
    %3851 = vmatpush1.msra.mxu0 0.0
    %3852 = vmatprep.subr.mxu0 0.0
    %3853 = vmatpush1.msra.mxu0 0.0
    %3854 = vmatprep.subr.mxu0 0.0
    %3855 = vmatpush1.msra.mxu0 0.0
    %3856 = vmatprep.subr.mxu0 0.0
    %3857 = vmatpush1.msra.mxu0 0.0
    %3858 = vmatprep.subr.mxu0 0.0
    %3859 = vmatpush1.msra.mxu0 0.0
    %3860 = vmatprep.subr.mxu0 0.0
    %3861 = vmatpush1.msra.mxu0 0.0
    %3862 = vmatprep.subr.mxu0 0.0
    %3863 = vmatpush1.msra.mxu0 0.0
    %3864 = vmatprep.subr.mxu0 0.0
    %3865 = vmatpush1.msra.mxu0 0.0
    %3866 = vmatprep.subr.mxu0 0.0
    %3867 = vmatpush1.msra.mxu0 0.0
    %3868 = vmatprep.subr.mxu0 0.0
    %3869 = vmatpush1.msra.mxu0 0.0
    %3870 = vmatprep.subr.mxu0 0.0
    %3871 = vmatpush1.msra.mxu0 0.0
    %3872 = vmatprep.subr.mxu0 0.0
    %3873 = vmatpush1.msra.mxu0 0.0
    %3874 = vmatprep.subr.mxu0 0.0
    %3875 = vmatpush1.msra.mxu0 0.0
    %3876 = vmatprep.subr.mxu0 0.0
    %3877 = vmatpush1.msra.mxu0 0.0
    %3878 = vmatprep.subr.mxu0 0.0
    %3879 = vmatpush1.msra.mxu0 0.0
    %3880 = vmatprep.subr.mxu0 0.0
    %3881 = vmatpush1.msra.mxu0 0.0
    %3882 = vmatprep.subr.mxu0 0.0
    %3883 = vmatpush1.msra.mxu0 0.0
    %3884 = vmatprep.subr.mxu0 0.0
    %3885 = vmatpush1.msra.mxu0 0.0
    %3886 = vmatprep.subr.mxu0 0.0
    %3887 = vmatpush1.msra.mxu0 0.0
    %3888 = vmatprep.subr.mxu0 0.0
    %3889 = vmatpush1.msra.mxu0 0.0
    %3890 = vmatprep.mubr.f32.mxu0 0.0
    %3891 = vmatmul.mubr.f32.gmra.mrb[0].mxu0 %v3803
    %v3892 = vpop.f32.mrb[0].mxu0
    %v3893 = vadd.f32 %v632, %v3892
    %v3894 = vpop.f32.mrb[0].mxu0
    %3895 = vmatprep.mubr.f32.mxu0 0.0
    %3896 = vmatmul.mubr.f32.gmra.mrb[0].mxu0 %v3806
    %v3897 = vpop.f32.mrb[0].mxu0
    %v3898 = vadd.f32 %v632, %v3897
    %v3899 = vpop.f32.mrb[0].mxu0
    %3900 = vmatprep.mubr.f32.mxu0 0.0
    %3901 = vmatmul.mubr.f32.gmra.mrb[0].mxu0 %v3809
    %v3902 = vpop.f32.mrb[0].mxu0
    %v3903 = vadd.f32 %v632, %v3902
    %v3904 = vpop.f32.mrb[0].mxu0
    %3905 = vmatprep.mubr.f32.mxu0 0.0
    %3906 = vmatmul.mubr.f32.gmra.mrb[0].mxu0 %v3812
    %v3907 = vpop.f32.mrb[0].mxu0
    %v3908 = vadd.f32 %v632, %v3907
    %v3909 = vpop.f32.mrb[0].mxu0
    %3910 = vmatprep.mubr.f32.mxu0 0.0
    %3911 = vmatmul.mubr.f32.gmra.mrb[0].mxu0 %v3815
    %v3912 = vpop.f32.mrb[0].mxu0
    %v3913 = vadd.f32 %v632, %v3912
    %v3914 = vpop.f32.mrb[0].mxu0
    %3915 = vmatprep.mubr.f32.mxu0 0.0
    %3916 = vmatmul.mubr.f32.gmra.mrb[0].mxu0 %v3818
    %v3917 = vpop.f32.mrb[0].mxu0
    %v3918 = vadd.f32 %v632, %v3917
    %v3919 = vpop.f32.mrb[0].mxu0
    %3920 = vmatprep.mubr.f32.mxu0 0.0
    %3921 = vmatmul.mubr.f32.gmra.mrb[0].mxu0 %v3821
    %v3922 = vpop.f32.mrb[0].mxu0
    %v3923 = vadd.f32 %v632, %v3922
    %v3924 = vpop.f32.mrb[0].mxu0
    %3925 = vmatprep.mubr.f32.mxu0 0.0
    %3926 = vmatmul.mubr.f32.gmra.mrb[0].mxu0 %v3824
    %v3927 = vpop.f32.mrb[0].mxu0
    %v3928 = vadd.f32 %v632, %v3927
    %v3929 = vpop.f32.mrb[0].mxu0
    %3930 = vdwg.mxu0
    %v3931 = vmul.f32 %v3893, %v48
    %v3932 = vmul.f32 %v3898, %v48
    %v3933 = vmul.f32 %v3903, %v48
    %v3934 = vmul.f32 %v3908, %v48
    %v3935 = vmul.f32 %v3913, %v48
    %v3936 = vmul.f32 %v3918, %v48
    %v3937 = vmul.f32 %v3923, %v48
    %v3938 = vmul.f32 %v3928, %v48
    %v3940 = vlaneseq
    %v3941 = vshrl.u32 %v3940, 7
    %v3942 = vsub.s32 0, %v3941
    %v3943 = vrot.slane %v3651, %v3942
    %v3946 = vsel %vm776, %v3764, 0
    %v3949 = vsel %vm776, %v3769, 0
    %v3952 = vsel %vm776, %v3774, 0
    %v3955 = vsel %vm776, %v3779, 0
    %v3958 = vsel %vm776, %v3784, 0
    %v3961 = vsel %vm776, %v3789, 0
    %v3964 = vsel %vm776, %v3794, 0
    %v3967 = vsel %vm776, %v3799, 0
    %v3970 = vsel %vm776, %v3931, 0
    %v3973 = vsel %vm776, %v3932, 0
    %v3976 = vsel %vm776, %v3933, 0
    %v3979 = vsel %vm776, %v3934, 0
    %v3982 = vsel %vm776, %v3935, 0
    %v3985 = vsel %vm776, %v3936, 0
    %v3988 = vsel %vm776, %v3937, 0
    %v3991 = vsel %vm776, %v3938, 0
    %3993 = vmatprep.subr.mxu0 0.0
    %3994 = vmatpush1.xpose.msra.mxu0 %v3970
    %3995 = vmatprep.subr.mxu0 0.0
    %3996 = vmatpush1.xpose.msra.mxu0 %v3973
    %3997 = vmatprep.subr.mxu0 0.0
    %3998 = vmatpush1.xpose.msra.mxu0 %v3976
    %3999 = vmatprep.subr.mxu0 0.0
    %4000 = vmatpush1.xpose.msra.mxu0 %v3979
    %4001 = vmatprep.subr.mxu0 0.0
    %4002 = vmatpush1.xpose.msra.mxu0 %v3982
    %4003 = vmatprep.subr.mxu0 0.0
    %4004 = vmatpush1.xpose.msra.mxu0 %v3985
    %4005 = vmatprep.subr.mxu0 0.0
    %4006 = vmatpush1.xpose.msra.mxu0 %v3988
    %4007 = vmatprep.subr.mxu0 0.0
    %4008 = vmatpush1.xpose.msra.mxu0 %v3991
    %4009 = vmatprep.subr.mxu0 0.0
    %4010 = vmatpush1.xpose.msra.mxu0 0.0
    %4011 = vmatprep.subr.mxu0 0.0
    %4012 = vmatpush1.xpose.msra.mxu0 0.0
    %4013 = vmatprep.subr.mxu0 0.0
    %4014 = vmatpush1.xpose.msra.mxu0 0.0
    %4015 = vmatprep.subr.mxu0 0.0
    %4016 = vmatpush1.xpose.msra.mxu0 0.0
    %4017 = vmatprep.subr.mxu0 0.0
    %4018 = vmatpush1.xpose.msra.mxu0 0.0
    %4019 = vmatprep.subr.mxu0 0.0
    %4020 = vmatpush1.xpose.msra.mxu0 0.0
    %4021 = vmatprep.subr.mxu0 0.0
    %4022 = vmatpush1.xpose.msra.mxu0 0.0
    %4023 = vmatprep.subr.mxu0 0.0
    %4024 = vmatpush1.xpose.msra.mxu0 0.0
    %4025 = vmatprep.subr.mxu0 0.0
    %4026 = vmatpush1.xpose.msra.mxu0 0.0
    %4027 = vmatprep.subr.mxu0 0.0
    %4028 = vmatpush1.xpose.msra.mxu0 0.0
    %4029 = vmatprep.subr.mxu0 0.0
    %4030 = vmatpush1.xpose.msra.mxu0 0.0
    %4031 = vmatprep.subr.mxu0 0.0
    %4032 = vmatpush1.xpose.msra.mxu0 0.0
    %4033 = vmatprep.subr.mxu0 0.0
    %4034 = vmatpush1.xpose.msra.mxu0 0.0
    %4035 = vmatprep.subr.mxu0 0.0
    %4036 = vmatpush1.xpose.msra.mxu0 0.0
    %4037 = vmatprep.subr.mxu0 0.0
    %4038 = vmatpush1.xpose.msra.mxu0 0.0
    %4039 = vmatprep.subr.mxu0 0.0
    %4040 = vmatpush1.xpose.msra.mxu0 0.0
    %4041 = vmatprep.subr.mxu0 0.0
    %4042 = vmatpush1.xpose.msra.mxu0 0.0
    %4043 = vmatprep.subr.mxu0 0.0
    %4044 = vmatpush1.xpose.msra.mxu0 0.0
    %4045 = vmatprep.subr.mxu0 0.0
    %4046 = vmatpush1.xpose.msra.mxu0 0.0
    %4047 = vmatprep.subr.mxu0 0.0
    %4048 = vmatpush1.xpose.msra.mxu0 0.0
    %4049 = vmatprep.subr.mxu0 0.0
    %4050 = vmatpush1.xpose.msra.mxu0 0.0
    %4051 = vmatprep.subr.mxu0 0.0
    %4052 = vmatpush1.xpose.msra.mxu0 0.0
    %4053 = vmatprep.subr.mxu0 0.0
    %4054 = vmatpush1.xpose.msra.mxu0 0.0
    %4055 = vmatprep.subr.mxu0 0.0
    %4056 = vmatpush1.xpose.msra.mxu0 0.0
    %4057 = vmatprep.mubr.f32.mxu0 0.0
    %4058 = vmatmul.mubr.f32.gmra.mrb[0].mxu0 %v3946
    %v4059 = vpop.f32.mrb[0].mxu0
    %v4060 = vadd.f32 %v3943, %v4059
    %v4061 = vpop.f32.mrb[0].mxu0
    %4062 = vmatprep.mubr.f32.mxu0 0.0
    %4063 = vmatmul.mubr.f32.gmra.mrb[0].mxu0 %v3949
    %v4064 = vpop.f32.mrb[0].mxu0
    %v4065 = vadd.f32 %v3943, %v4064
    %v4066 = vpop.f32.mrb[0].mxu0
    %4067 = vmatprep.mubr.f32.mxu0 0.0
    %4068 = vmatmul.mubr.f32.gmra.mrb[0].mxu0 %v3952
    %v4069 = vpop.f32.mrb[0].mxu0
    %v4070 = vadd.f32 %v3943, %v4069
    %v4071 = vpop.f32.mrb[0].mxu0
    %4072 = vmatprep.mubr.f32.mxu0 0.0
    %4073 = vmatmul.mubr.f32.gmra.mrb[0].mxu0 %v3955
    %v4074 = vpop.f32.mrb[0].mxu0
    %v4075 = vadd.f32 %v3943, %v4074
    %v4076 = vpop.f32.mrb[0].mxu0
    %4077 = vmatprep.mubr.f32.mxu0 0.0
    %4078 = vmatmul.mubr.f32.gmra.mrb[0].mxu0 %v3958
    %v4079 = vpop.f32.mrb[0].mxu0
    %v4080 = vadd.f32 %v3943, %v4079
    %v4081 = vpop.f32.mrb[0].mxu0
    %4082 = vmatprep.mubr.f32.mxu0 0.0
    %4083 = vmatmul.mubr.f32.gmra.mrb[0].mxu0 %v3961
    %v4084 = vpop.f32.mrb[0].mxu0
    %v4085 = vadd.f32 %v3943, %v4084
    %v4086 = vpop.f32.mrb[0].mxu0
    %4087 = vmatprep.mubr.f32.mxu0 0.0
    %4088 = vmatmul.mubr.f32.gmra.mrb[0].mxu0 %v3964
    %v4089 = vpop.f32.mrb[0].mxu0
    %v4090 = vadd.f32 %v3943, %v4089
    %v4091 = vpop.f32.mrb[0].mxu0
    %4092 = vmatprep.mubr.f32.mxu0 0.0
    %4093 = vmatmul.mubr.f32.gmra.mrb[0].mxu0 %v3967
    %v4094 = vpop.f32.mrb[0].mxu0
    %v4095 = vadd.f32 %v3943, %v4094
    %v4096 = vpop.f32.mrb[0].mxu0
    %4097 = vdwg.mxu0
    %v4098 = vsel %vm776, %v4060, -inf
    %4099 = vmax.xlane.f32.xlu0 %v4098
    %v4100 = vpop.xlane.xlu0 %4099
    %v4101 = vsel %vm776, %v4065, -inf
    %4102 = vmax.xlane.f32.xlu0 %v4101
    %v4103 = vpop.xlane.xlu0 %4102
    %v4104 = vsel %vm776, %v4070, -inf
    %4105 = vmax.xlane.f32.xlu0 %v4104
    %v4106 = vpop.xlane.xlu0 %4105
    %v4107 = vsel %vm776, %v4075, -inf
    %4108 = vmax.xlane.f32.xlu0 %v4107
    %v4109 = vpop.xlane.xlu0 %4108
    %v4110 = vsel %vm776, %v4080, -inf
    %4111 = vmax.xlane.f32.xlu0 %v4110
    %v4112 = vpop.xlane.xlu0 %4111
    %v4113 = vsel %vm776, %v4085, -inf
    %4114 = vmax.xlane.f32.xlu0 %v4113
    %v4115 = vpop.xlane.xlu0 %4114
    %v4116 = vsel %vm776, %v4090, -inf
    %4117 = vmax.xlane.f32.xlu0 %v4116
    %v4118 = vpop.xlane.xlu0 %4117
    %v4119 = vsel %vm776, %v4095, -inf
    %4120 = vmax.xlane.f32.xlu0 %v4119
    %v4121 = vpop.xlane.xlu0 %4120
    %v4122 = vsub.f32 %v4060, %v4100
    %v4123 = vsub.f32 %v4065, %v4103
    %v4124 = vsub.f32 %v4070, %v4106
    %v4125 = vsub.f32 %v4075, %v4109
    %v4126 = vsub.f32 %v4080, %v4112
    %v4127 = vsub.f32 %v4085, %v4115
    %v4128 = vsub.f32 %v4090, %v4118
    %v4129 = vsub.f32 %v4095, %v4121
    %v4130 = vmul.f32 %v4122, 1.442695
    %v4131 = vpow.pop %v4130
    %v4132 = vmul.f32 %v4123, 1.442695
    %v4133 = vpow.pop %v4132
    %v4134 = vmul.f32 %v4124, 1.442695
    %v4135 = vpow.pop %v4134
    %v4136 = vmul.f32 %v4125, 1.442695
    %v4137 = vpow.pop %v4136
    %v4138 = vmul.f32 %v4126, 1.442695
    %v4139 = vpow.pop %v4138
    %v4140 = vmul.f32 %v4127, 1.442695
    %v4141 = vpow.pop %v4140
    %v4142 = vmul.f32 %v4128, 1.442695
    %v4143 = vpow.pop %v4142
    %v4144 = vmul.f32 %v4129, 1.442695
    %v4145 = vpow.pop %v4144
    %v4146 = vsel %vm776, %v4131, 0.0
    %4147 = vadd.xlane.f32.xlu0 %v4146
    %v4148 = vpop.xlane.xlu0 %4147
    %v4149 = vsel %vm776, %v4133, 0.0
    %4150 = vadd.xlane.f32.xlu0 %v4149
    %v4151 = vpop.xlane.xlu0 %4150
    %v4152 = vsel %vm776, %v4135, 0.0
    %4153 = vadd.xlane.f32.xlu0 %v4152
    %v4154 = vpop.xlane.xlu0 %4153
    %v4155 = vsel %vm776, %v4137, 0.0
    %4156 = vadd.xlane.f32.xlu0 %v4155
    %v4157 = vpop.xlane.xlu0 %4156
    %v4158 = vsel %vm776, %v4139, 0.0
    %4159 = vadd.xlane.f32.xlu0 %v4158
    %v4160 = vpop.xlane.xlu0 %4159
    %v4161 = vsel %vm776, %v4141, 0.0
    %4162 = vadd.xlane.f32.xlu0 %v4161
    %v4163 = vpop.xlane.xlu0 %4162
    %v4164 = vsel %vm776, %v4143, 0.0
    %4165 = vadd.xlane.f32.xlu0 %v4164
    %v4166 = vpop.xlane.xlu0 %4165
    %v4167 = vsel %vm776, %v4145, 0.0
    %4168 = vadd.xlane.f32.xlu0 %v4167
    %v4169 = vpop.xlane.xlu0 %4168
    %v4170 = vrcp.pop %v4148
    %v4171 = vmul.f32 %v4131, %v4170
    %v4172 = vrcp.pop %v4151
    %v4173 = vmul.f32 %v4133, %v4172
    %v4174 = vrcp.pop %v4154
    %v4175 = vmul.f32 %v4135, %v4174
    %v4176 = vrcp.pop %v4157
    %v4177 = vmul.f32 %v4137, %v4176
    %v4178 = vrcp.pop %v4160
    %v4179 = vmul.f32 %v4139, %v4178
    %v4180 = vrcp.pop %v4163
    %v4181 = vmul.f32 %v4141, %v4180
    %v4182 = vrcp.pop %v4166
    %v4183 = vmul.f32 %v4143, %v4182
    %v4184 = vrcp.pop %v4169
    %v4185 = vmul.f32 %v4145, %v4184
    %v4186 = vmul.f32 %v3893, %v58
    %v4187 = vmul.f32 %v3898, %v58
    %v4188 = vmul.f32 %v3903, %v58
    %v4189 = vmul.f32 %v3908, %v58
    %v4190 = vmul.f32 %v3913, %v58
    %v4191 = vmul.f32 %v3918, %v58
    %v4192 = vmul.f32 %v3923, %v58
    %v4193 = vmul.f32 %v3928, %v58
    %v4194 = vmul.f32 %v3893, %v53
    %v4195 = vmul.f32 %v3898, %v53
    %v4196 = vmul.f32 %v3903, %v53
    %v4197 = vmul.f32 %v3908, %v53
    %v4198 = vmul.f32 %v3913, %v53
    %v4199 = vmul.f32 %v3918, %v53
    %v4200 = vmul.f32 %v3923, %v53
    %v4201 = vmul.f32 %v3928, %v53
    %v4203 = vsel %vm776, %v4194, 0
    %v4206 = vsel %vm776, %v4195, 0
    %v4209 = vsel %vm776, %v4196, 0
    %v4212 = vsel %vm776, %v4197, 0
    %v4215 = vsel %vm776, %v4198, 0
    %v4218 = vsel %vm776, %v4199, 0
    %v4221 = vsel %vm776, %v4200, 0
    %v4224 = vsel %vm776, %v4201, 0
    %4226 = vmatprep.subr.mxu0 0.0
    %4227 = vmatpush1.xpose.msra.mxu0 %v4203
    %4228 = vmatprep.subr.mxu0 0.0
    %4229 = vmatpush1.xpose.msra.mxu0 %v4206
    %4230 = vmatprep.subr.mxu0 0.0
    %4231 = vmatpush1.xpose.msra.mxu0 %v4209
    %4232 = vmatprep.subr.mxu0 0.0
    %4233 = vmatpush1.xpose.msra.mxu0 %v4212
    %4234 = vmatprep.subr.mxu0 0.0
    %4235 = vmatpush1.xpose.msra.mxu0 %v4215
    %4236 = vmatprep.subr.mxu0 0.0
    %4237 = vmatpush1.xpose.msra.mxu0 %v4218
    %4238 = vmatprep.subr.mxu0 0.0
    %4239 = vmatpush1.xpose.msra.mxu0 %v4221
    %4240 = vmatprep.subr.mxu0 0.0
    %4241 = vmatpush1.xpose.msra.mxu0 %v4224
    %4242 = vmatprep.subr.mxu0 0.0
    %4243 = vmatpush1.xpose.msra.mxu0 0.0
    %4244 = vmatprep.subr.mxu0 0.0
    %4245 = vmatpush1.xpose.msra.mxu0 0.0
    %4246 = vmatprep.subr.mxu0 0.0
    %4247 = vmatpush1.xpose.msra.mxu0 0.0
    %4248 = vmatprep.subr.mxu0 0.0
    %4249 = vmatpush1.xpose.msra.mxu0 0.0
    %4250 = vmatprep.subr.mxu0 0.0
    %4251 = vmatpush1.xpose.msra.mxu0 0.0
    %4252 = vmatprep.subr.mxu0 0.0
    %4253 = vmatpush1.xpose.msra.mxu0 0.0
    %4254 = vmatprep.subr.mxu0 0.0
    %4255 = vmatpush1.xpose.msra.mxu0 0.0
    %4256 = vmatprep.subr.mxu0 0.0
    %4257 = vmatpush1.xpose.msra.mxu0 0.0
    %4258 = vmatprep.subr.mxu0 0.0
    %4259 = vmatpush1.xpose.msra.mxu0 0.0
    %4260 = vmatprep.subr.mxu0 0.0
    %4261 = vmatpush1.xpose.msra.mxu0 0.0
    %4262 = vmatprep.subr.mxu0 0.0
    %4263 = vmatpush1.xpose.msra.mxu0 0.0
    %4264 = vmatprep.subr.mxu0 0.0
    %4265 = vmatpush1.xpose.msra.mxu0 0.0
    %4266 = vmatprep.subr.mxu0 0.0
    %4267 = vmatpush1.xpose.msra.mxu0 0.0
    %4268 = vmatprep.subr.mxu0 0.0
    %4269 = vmatpush1.xpose.msra.mxu0 0.0
    %4270 = vmatprep.subr.mxu0 0.0
    %4271 = vmatpush1.xpose.msra.mxu0 0.0
    %4272 = vmatprep.subr.mxu0 0.0
    %4273 = vmatpush1.xpose.msra.mxu0 0.0
    %4274 = vmatprep.subr.mxu0 0.0
    %4275 = vmatpush1.xpose.msra.mxu0 0.0
    %4276 = vmatprep.subr.mxu0 0.0
    %4277 = vmatpush1.xpose.msra.mxu0 0.0
    %4278 = vmatprep.subr.mxu0 0.0
    %4279 = vmatpush1.xpose.msra.mxu0 0.0
    %4280 = vmatprep.subr.mxu0 0.0
    %4281 = vmatpush1.xpose.msra.mxu0 0.0
    %4282 = vmatprep.subr.mxu0 0.0
    %4283 = vmatpush1.xpose.msra.mxu0 0.0
    %4284 = vmatprep.subr.mxu0 0.0
    %4285 = vmatpush1.xpose.msra.mxu0 0.0
    %4286 = vmatprep.subr.mxu0 0.0
    %4287 = vmatpush1.xpose.msra.mxu0 0.0
    %4288 = vmatprep.subr.mxu0 0.0
    %4289 = vmatpush1.xpose.msra.mxu0 0.0
    %4290 = vmatprep.mubr.f32.mxu0 0.0
    %4291 = vmatmul.mubr.f32.gmra.mrb[0].mxu0 %v3946
    %v4292 = vpop.f32.mrb[0].mxu0
    %v4293 = vadd.f32 %v3943, %v4292
    %v4294 = vpop.f32.mrb[0].mxu0
    %4295 = vmatprep.mubr.f32.mxu0 0.0
    %4296 = vmatmul.mubr.f32.gmra.mrb[0].mxu0 %v3949
    %v4297 = vpop.f32.mrb[0].mxu0
    %v4298 = vadd.f32 %v3943, %v4297
    %v4299 = vpop.f32.mrb[0].mxu0
    %4300 = vmatprep.mubr.f32.mxu0 0.0
    %4301 = vmatmul.mubr.f32.gmra.mrb[0].mxu0 %v3952
    %v4302 = vpop.f32.mrb[0].mxu0
    %v4303 = vadd.f32 %v3943, %v4302
    %v4304 = vpop.f32.mrb[0].mxu0
    %4305 = vmatprep.mubr.f32.mxu0 0.0
    %4306 = vmatmul.mubr.f32.gmra.mrb[0].mxu0 %v3955
    %v4307 = vpop.f32.mrb[0].mxu0
    %v4308 = vadd.f32 %v3943, %v4307
    %v4309 = vpop.f32.mrb[0].mxu0
    %4310 = vmatprep.mubr.f32.mxu0 0.0
    %4311 = vmatmul.mubr.f32.gmra.mrb[0].mxu0 %v3958
    %v4312 = vpop.f32.mrb[0].mxu0
    %v4313 = vadd.f32 %v3943, %v4312
    %v4314 = vpop.f32.mrb[0].mxu0
    %4315 = vmatprep.mubr.f32.mxu0 0.0
    %4316 = vmatmul.mubr.f32.gmra.mrb[0].mxu0 %v3961
    %v4317 = vpop.f32.mrb[0].mxu0
    %v4318 = vadd.f32 %v3943, %v4317
    %v4319 = vpop.f32.mrb[0].mxu0
    %4320 = vmatprep.mubr.f32.mxu0 0.0
    %4321 = vmatmul.mubr.f32.gmra.mrb[0].mxu0 %v3964
    %v4322 = vpop.f32.mrb[0].mxu0
    %v4323 = vadd.f32 %v3943, %v4322
    %v4324 = vpop.f32.mrb[0].mxu0
    %4325 = vmatprep.mubr.f32.mxu0 0.0
    %4326 = vmatmul.mubr.f32.gmra.mrb[0].mxu0 %v3967
    %v4327 = vpop.f32.mrb[0].mxu0
    %v4328 = vadd.f32 %v3943, %v4327
    %v4329 = vpop.f32.mrb[0].mxu0
    %4330 = vdwg.mxu0
    %v4331 = vsel %vm776, %v4293, -inf
    %4332 = vmax.xlane.f32.xlu0 %v4331
    %v4333 = vpop.xlane.xlu0 %4332
    %v4334 = vsel %vm776, %v4298, -inf
    %4335 = vmax.xlane.f32.xlu0 %v4334
    %v4336 = vpop.xlane.xlu0 %4335
    %v4337 = vsel %vm776, %v4303, -inf
    %4338 = vmax.xlane.f32.xlu0 %v4337
    %v4339 = vpop.xlane.xlu0 %4338
    %v4340 = vsel %vm776, %v4308, -inf
    %4341 = vmax.xlane.f32.xlu0 %v4340
    %v4342 = vpop.xlane.xlu0 %4341
    %v4343 = vsel %vm776, %v4313, -inf
    %4344 = vmax.xlane.f32.xlu0 %v4343
    %v4345 = vpop.xlane.xlu0 %4344
    %v4346 = vsel %vm776, %v4318, -inf
    %4347 = vmax.xlane.f32.xlu0 %v4346
    %v4348 = vpop.xlane.xlu0 %4347
    %v4349 = vsel %vm776, %v4323, -inf
    %4350 = vmax.xlane.f32.xlu0 %v4349
    %v4351 = vpop.xlane.xlu0 %4350
    %v4352 = vsel %vm776, %v4328, -inf
    %4353 = vmax.xlane.f32.xlu0 %v4352
    %v4354 = vpop.xlane.xlu0 %4353
    %v4355 = vsub.f32 %v4293, %v4333
    %v4356 = vsub.f32 %v4298, %v4336
    %v4357 = vsub.f32 %v4303, %v4339
    %v4358 = vsub.f32 %v4308, %v4342
    %v4359 = vsub.f32 %v4313, %v4345
    %v4360 = vsub.f32 %v4318, %v4348
    %v4361 = vsub.f32 %v4323, %v4351
    %v4362 = vsub.f32 %v4328, %v4354
    %v4363 = vmul.f32 %v4355, 1.442695
    %v4364 = vpow.pop %v4363
    %v4365 = vmul.f32 %v4356, 1.442695
    %v4366 = vpow.pop %v4365
    %v4367 = vmul.f32 %v4357, 1.442695
    %v4368 = vpow.pop %v4367
    %v4369 = vmul.f32 %v4358, 1.442695
    %v4370 = vpow.pop %v4369
    %v4371 = vmul.f32 %v4359, 1.442695
    %v4372 = vpow.pop %v4371
    %v4373 = vmul.f32 %v4360, 1.442695
    %v4374 = vpow.pop %v4373
    %v4375 = vmul.f32 %v4361, 1.442695
    %v4376 = vpow.pop %v4375
    %v4377 = vmul.f32 %v4362, 1.442695
    %v4378 = vpow.pop %v4377
    %v4379 = vsel %vm776, %v4364, 0.0
    %4380 = vadd.xlane.f32.xlu0 %v4379
    %v4381 = vpop.xlane.xlu0 %4380
    %v4382 = vsel %vm776, %v4366, 0.0
    %4383 = vadd.xlane.f32.xlu0 %v4382
    %v4384 = vpop.xlane.xlu0 %4383
    %v4385 = vsel %vm776, %v4368, 0.0
    %4386 = vadd.xlane.f32.xlu0 %v4385
    %v4387 = vpop.xlane.xlu0 %4386
    %v4388 = vsel %vm776, %v4370, 0.0
    %4389 = vadd.xlane.f32.xlu0 %v4388
    %v4390 = vpop.xlane.xlu0 %4389
    %v4391 = vsel %vm776, %v4372, 0.0
    %4392 = vadd.xlane.f32.xlu0 %v4391
    %v4393 = vpop.xlane.xlu0 %4392
    %v4394 = vsel %vm776, %v4374, 0.0
    %4395 = vadd.xlane.f32.xlu0 %v4394
    %v4396 = vpop.xlane.xlu0 %4395
    %v4397 = vsel %vm776, %v4376, 0.0
    %4398 = vadd.xlane.f32.xlu0 %v4397
    %v4399 = vpop.xlane.xlu0 %4398
    %v4400 = vsel %vm776, %v4378, 0.0
    %4401 = vadd.xlane.f32.xlu0 %v4400
    %v4402 = vpop.xlane.xlu0 %4401
    %v4403 = vrcp.pop %v4381
    %v4404 = vmul.f32 %v4364, %v4403
    %v4405 = vrcp.pop %v4384
    %v4406 = vmul.f32 %v4366, %v4405
    %v4407 = vrcp.pop %v4387
    %v4408 = vmul.f32 %v4368, %v4407
    %v4409 = vrcp.pop %v4390
    %v4410 = vmul.f32 %v4370, %v4409
    %v4411 = vrcp.pop %v4393
    %v4412 = vmul.f32 %v4372, %v4411
    %v4413 = vrcp.pop %v4396
    %v4414 = vmul.f32 %v4374, %v4413
    %v4415 = vrcp.pop %v4399
    %v4416 = vmul.f32 %v4376, %v4415
    %v4417 = vrcp.pop %v4402
    %v4418 = vmul.f32 %v4378, %v4417
    %v4419 = vmul.f32 %v3893, %v63
    %v4420 = vmul.f32 %v3898, %v63
    %v4421 = vmul.f32 %v3903, %v63
    %v4422 = vmul.f32 %v3908, %v63
    %v4423 = vmul.f32 %v3913, %v63
    %v4424 = vmul.f32 %v3918, %v63
    %v4425 = vmul.f32 %v3923, %v63
    %v4426 = vmul.f32 %v3928, %v63
    %v4428 = vsel %vm776, %v4404, 0
    %v4431 = vsel %vm776, %v4406, 0
    %v4434 = vsel %vm776, %v4408, 0
    %v4437 = vsel %vm776, %v4410, 0
    %v4440 = vsel %vm776, %v4412, 0
    %v4443 = vsel %vm776, %v4414, 0
    %v4446 = vsel %vm776, %v4416, 0
    %v4449 = vsel %vm776, %v4418, 0
    %4451 = vmatprep.subr.mxu0 0.0
    %4452 = vmatpush1.msra.mxu0 %v4419
    %4453 = vmatprep.subr.mxu0 0.0
    %4454 = vmatpush1.msra.mxu0 %v4420
    %4455 = vmatprep.subr.mxu0 0.0
    %4456 = vmatpush1.msra.mxu0 %v4421
    %4457 = vmatprep.subr.mxu0 0.0
    %4458 = vmatpush1.msra.mxu0 %v4422
    %4459 = vmatprep.subr.mxu0 0.0
    %4460 = vmatpush1.msra.mxu0 %v4423
    %4461 = vmatprep.subr.mxu0 0.0
    %4462 = vmatpush1.msra.mxu0 %v4424
    %4463 = vmatprep.subr.mxu0 0.0
    %4464 = vmatpush1.msra.mxu0 %v4425
    %4465 = vmatprep.subr.mxu0 0.0
    %4466 = vmatpush1.msra.mxu0 %v4426
    %4467 = vmatprep.subr.mxu0 0.0
    %4468 = vmatpush1.msra.mxu0 0.0
    %4469 = vmatprep.subr.mxu0 0.0
    %4470 = vmatpush1.msra.mxu0 0.0
    %4471 = vmatprep.subr.mxu0 0.0
    %4472 = vmatpush1.msra.mxu0 0.0
    %4473 = vmatprep.subr.mxu0 0.0
    %4474 = vmatpush1.msra.mxu0 0.0
    %4475 = vmatprep.subr.mxu0 0.0
    %4476 = vmatpush1.msra.mxu0 0.0
    %4477 = vmatprep.subr.mxu0 0.0
    %4478 = vmatpush1.msra.mxu0 0.0
    %4479 = vmatprep.subr.mxu0 0.0
    %4480 = vmatpush1.msra.mxu0 0.0
    %4481 = vmatprep.subr.mxu0 0.0
    %4482 = vmatpush1.msra.mxu0 0.0
    %4483 = vmatprep.subr.mxu0 0.0
    %4484 = vmatpush1.msra.mxu0 0.0
    %4485 = vmatprep.subr.mxu0 0.0
    %4486 = vmatpush1.msra.mxu0 0.0
    %4487 = vmatprep.subr.mxu0 0.0
    %4488 = vmatpush1.msra.mxu0 0.0
    %4489 = vmatprep.subr.mxu0 0.0
    %4490 = vmatpush1.msra.mxu0 0.0
    %4491 = vmatprep.subr.mxu0 0.0
    %4492 = vmatpush1.msra.mxu0 0.0
    %4493 = vmatprep.subr.mxu0 0.0
    %4494 = vmatpush1.msra.mxu0 0.0
    %4495 = vmatprep.subr.mxu0 0.0
    %4496 = vmatpush1.msra.mxu0 0.0
    %4497 = vmatprep.subr.mxu0 0.0
    %4498 = vmatpush1.msra.mxu0 0.0
    %4499 = vmatprep.subr.mxu0 0.0
    %4500 = vmatpush1.msra.mxu0 0.0
    %4501 = vmatprep.subr.mxu0 0.0
    %4502 = vmatpush1.msra.mxu0 0.0
    %4503 = vmatprep.subr.mxu0 0.0
    %4504 = vmatpush1.msra.mxu0 0.0
    %4505 = vmatprep.subr.mxu0 0.0
    %4506 = vmatpush1.msra.mxu0 0.0
    %4507 = vmatprep.subr.mxu0 0.0
    %4508 = vmatpush1.msra.mxu0 0.0
    %4509 = vmatprep.subr.mxu0 0.0
    %4510 = vmatpush1.msra.mxu0 0.0
    %4511 = vmatprep.subr.mxu0 0.0
    %4512 = vmatpush1.msra.mxu0 0.0
    %4513 = vmatprep.subr.mxu0 0.0
    %4514 = vmatpush1.msra.mxu0 0.0
    %4515 = vmatprep.mubr.f32.mxu0 0.0
    %4516 = vmatmul.mubr.f32.gmra.mrb[0].mxu0 %v4428
    %v4517 = vpop.f32.mrb[0].mxu0
    %v4518 = vadd.f32 0.0, %v4517
    %v4519 = vpop.f32.mrb[0].mxu0
    %4520 = vmatprep.mubr.f32.mxu0 0.0
    %4521 = vmatmul.mubr.f32.gmra.mrb[0].mxu0 %v4431
    %v4522 = vpop.f32.mrb[0].mxu0
    %v4523 = vadd.f32 0.0, %v4522
    %v4524 = vpop.f32.mrb[0].mxu0
    %4525 = vmatprep.mubr.f32.mxu0 0.0
    %4526 = vmatmul.mubr.f32.gmra.mrb[0].mxu0 %v4434
    %v4527 = vpop.f32.mrb[0].mxu0
    %v4528 = vadd.f32 0.0, %v4527
    %v4529 = vpop.f32.mrb[0].mxu0
    %4530 = vmatprep.mubr.f32.mxu0 0.0
    %4531 = vmatmul.mubr.f32.gmra.mrb[0].mxu0 %v4437
    %v4532 = vpop.f32.mrb[0].mxu0
    %v4533 = vadd.f32 0.0, %v4532
    %v4534 = vpop.f32.mrb[0].mxu0
    %4535 = vmatprep.mubr.f32.mxu0 0.0
    %4536 = vmatmul.mubr.f32.gmra.mrb[0].mxu0 %v4440
    %v4537 = vpop.f32.mrb[0].mxu0
    %v4538 = vadd.f32 0.0, %v4537
    %v4539 = vpop.f32.mrb[0].mxu0
    %4540 = vmatprep.mubr.f32.mxu0 0.0
    %4541 = vmatmul.mubr.f32.gmra.mrb[0].mxu0 %v4443
    %v4542 = vpop.f32.mrb[0].mxu0
    %v4543 = vadd.f32 0.0, %v4542
    %v4544 = vpop.f32.mrb[0].mxu0
    %4545 = vmatprep.mubr.f32.mxu0 0.0
    %4546 = vmatmul.mubr.f32.gmra.mrb[0].mxu0 %v4446
    %v4547 = vpop.f32.mrb[0].mxu0
    %v4548 = vadd.f32 0.0, %v4547
    %v4549 = vpop.f32.mrb[0].mxu0
    %4550 = vmatprep.mubr.f32.mxu0 0.0
    %4551 = vmatmul.mubr.f32.gmra.mrb[0].mxu0 %v4449
    %v4552 = vpop.f32.mrb[0].mxu0
    %v4553 = vadd.f32 0.0, %v4552
    %v4554 = vpop.f32.mrb[0].mxu0
    %4555 = vdwg.mxu0
    %v4557 = vsel %vm776, %v4171, 0
    %v4560 = vsel %vm776, %v4173, 0
    %v4563 = vsel %vm776, %v4175, 0
    %v4566 = vsel %vm776, %v4177, 0
    %v4569 = vsel %vm776, %v4179, 0
    %v4572 = vsel %vm776, %v4181, 0
    %v4575 = vsel %vm776, %v4183, 0
    %v4578 = vsel %vm776, %v4185, 0
    %4580 = vmatprep.subr.mxu0 0.0
    %4581 = vmatpush1.msra.mxu0 %v4186
    %4582 = vmatprep.subr.mxu0 0.0
    %4583 = vmatpush1.msra.mxu0 %v4187
    %4584 = vmatprep.subr.mxu0 0.0
    %4585 = vmatpush1.msra.mxu0 %v4188
    %4586 = vmatprep.subr.mxu0 0.0
    %4587 = vmatpush1.msra.mxu0 %v4189
    %4588 = vmatprep.subr.mxu0 0.0
    %4589 = vmatpush1.msra.mxu0 %v4190
    %4590 = vmatprep.subr.mxu0 0.0
    %4591 = vmatpush1.msra.mxu0 %v4191
    %4592 = vmatprep.subr.mxu0 0.0
    %4593 = vmatpush1.msra.mxu0 %v4192
    %4594 = vmatprep.subr.mxu0 0.0
    %4595 = vmatpush1.msra.mxu0 %v4193
    %4596 = vmatprep.subr.mxu0 0.0
    %4597 = vmatpush1.msra.mxu0 0.0
    %4598 = vmatprep.subr.mxu0 0.0
    %4599 = vmatpush1.msra.mxu0 0.0
    %4600 = vmatprep.subr.mxu0 0.0
    %4601 = vmatpush1.msra.mxu0 0.0
    %4602 = vmatprep.subr.mxu0 0.0
    %4603 = vmatpush1.msra.mxu0 0.0
    %4604 = vmatprep.subr.mxu0 0.0
    %4605 = vmatpush1.msra.mxu0 0.0
    %4606 = vmatprep.subr.mxu0 0.0
    %4607 = vmatpush1.msra.mxu0 0.0
    %4608 = vmatprep.subr.mxu0 0.0
    %4609 = vmatpush1.msra.mxu0 0.0
    %4610 = vmatprep.subr.mxu0 0.0
    %4611 = vmatpush1.msra.mxu0 0.0
    %4612 = vmatprep.subr.mxu0 0.0
    %4613 = vmatpush1.msra.mxu0 0.0
    %4614 = vmatprep.subr.mxu0 0.0
    %4615 = vmatpush1.msra.mxu0 0.0
    %4616 = vmatprep.subr.mxu0 0.0
    %4617 = vmatpush1.msra.mxu0 0.0
    %4618 = vmatprep.subr.mxu0 0.0
    %4619 = vmatpush1.msra.mxu0 0.0
    %4620 = vmatprep.subr.mxu0 0.0
    %4621 = vmatpush1.msra.mxu0 0.0
    %4622 = vmatprep.subr.mxu0 0.0
    %4623 = vmatpush1.msra.mxu0 0.0
    %4624 = vmatprep.subr.mxu0 0.0
    %4625 = vmatpush1.msra.mxu0 0.0
    %4626 = vmatprep.subr.mxu0 0.0
    %4627 = vmatpush1.msra.mxu0 0.0
    %4628 = vmatprep.subr.mxu0 0.0
    %4629 = vmatpush1.msra.mxu0 0.0
    %4630 = vmatprep.subr.mxu0 0.0
    %4631 = vmatpush1.msra.mxu0 0.0
    %4632 = vmatprep.subr.mxu0 0.0
    %4633 = vmatpush1.msra.mxu0 0.0
    %4634 = vmatprep.subr.mxu0 0.0
    %4635 = vmatpush1.msra.mxu0 0.0
    %4636 = vmatprep.subr.mxu0 0.0
    %4637 = vmatpush1.msra.mxu0 0.0
    %4638 = vmatprep.subr.mxu0 0.0
    %4639 = vmatpush1.msra.mxu0 0.0
    %4640 = vmatprep.subr.mxu0 0.0
    %4641 = vmatpush1.msra.mxu0 0.0
    %4642 = vmatprep.subr.mxu0 0.0
    %4643 = vmatpush1.msra.mxu0 0.0
    %4644 = vmatprep.mubr.f32.mxu0 0.0
    %4645 = vmatmul.mubr.f32.gmra.mrb[0].mxu0 %v4557
    %v4646 = vpop.f32.mrb[0].mxu0
    %v4647 = vadd.f32 %v4518, %v4646
    %v4648 = vpop.f32.mrb[0].mxu0
    %4649 = vmatprep.mubr.f32.mxu0 0.0
    %4650 = vmatmul.mubr.f32.gmra.mrb[0].mxu0 %v4560
    %v4651 = vpop.f32.mrb[0].mxu0
    %v4652 = vadd.f32 %v4523, %v4651
    %v4653 = vpop.f32.mrb[0].mxu0
    %4654 = vmatprep.mubr.f32.mxu0 0.0
    %4655 = vmatmul.mubr.f32.gmra.mrb[0].mxu0 %v4563
    %v4656 = vpop.f32.mrb[0].mxu0
    %v4657 = vadd.f32 %v4528, %v4656
    %v4658 = vpop.f32.mrb[0].mxu0
    %4659 = vmatprep.mubr.f32.mxu0 0.0
    %4660 = vmatmul.mubr.f32.gmra.mrb[0].mxu0 %v4566
    %v4661 = vpop.f32.mrb[0].mxu0
    %v4662 = vadd.f32 %v4533, %v4661
    %v4663 = vpop.f32.mrb[0].mxu0
    %4664 = vmatprep.mubr.f32.mxu0 0.0
    %4665 = vmatmul.mubr.f32.gmra.mrb[0].mxu0 %v4569
    %v4666 = vpop.f32.mrb[0].mxu0
    %v4667 = vadd.f32 %v4538, %v4666
    %v4668 = vpop.f32.mrb[0].mxu0
    %4669 = vmatprep.mubr.f32.mxu0 0.0
    %4670 = vmatmul.mubr.f32.gmra.mrb[0].mxu0 %v4572
    %v4671 = vpop.f32.mrb[0].mxu0
    %v4672 = vadd.f32 %v4543, %v4671
    %v4673 = vpop.f32.mrb[0].mxu0
    %4674 = vmatprep.mubr.f32.mxu0 0.0
    %4675 = vmatmul.mubr.f32.gmra.mrb[0].mxu0 %v4575
    %v4676 = vpop.f32.mrb[0].mxu0
    %v4677 = vadd.f32 %v4548, %v4676
    %v4678 = vpop.f32.mrb[0].mxu0
    %4679 = vmatprep.mubr.f32.mxu0 0.0
    %4680 = vmatmul.mubr.f32.gmra.mrb[0].mxu0 %v4578
    %v4681 = vpop.f32.mrb[0].mxu0
    %v4682 = vadd.f32 %v4553, %v4681
    %v4683 = vpop.f32.mrb[0].mxu0
    %4684 = vdwg.mxu0
    %s4685 = scalar_lea.vmem %s0, 56
    %v4686 = vld [vmem:[%s4685] sm:$0xff]
    %v4687 = vld [vmem:[%s4685 + $0x8] sm:$0xff]
    %v4688 = vld [vmem:[%s4685 + $0x10] sm:$0xff]
    %v4689 = vld [vmem:[%s4685 + $0x18] sm:$0xff]
    %v4690 = vld [vmem:[%s4685 + $0x20] sm:$0xff]
    %v4691 = vld [vmem:[%s4685 + $0x28] sm:$0xff]
    %v4692 = vld [vmem:[%s4685 + $0x30] sm:$0x7f]
    %v4693 = vld [vmem:[%s1524] sm:$0xff]
    %v4694 = vld [vmem:[%s1524 + $0x8] sm:$0xff]
    %v4695 = vld [vmem:[%s1524 + $0x10] sm:$0xff]
    %v4696 = vld [vmem:[%s1524 + $0x18] sm:$0xff]
    %v4697 = vld [vmem:[%s1529] sm:$0xff]
    %v4698 = vld [vmem:[%s1529 + $0x8] sm:$0xff]
    %v4699 = vld [vmem:[%s1529 + $0x10] sm:$0xff]
    %v4700 = vld [vmem:[%s1529 + $0x18] sm:$0xff]
    %4701 = vmatprep.subr.mxu0 0.0
    %4702 = vmatpush1.msra.mxu0 %v4693
    %4703 = vmatprep.subr.mxu0 0.0
    %4704 = vmatpush1.msra.mxu0 %v4694
    %4705 = vmatprep.subr.mxu0 0.0
    %4706 = vmatpush1.msra.mxu0 %v4695
    %4707 = vmatprep.subr.mxu0 0.0
    %4708 = vmatpush1.msra.mxu0 %v4696
    %4709 = vmatprep.subr.mxu0 0.0
    %4710 = vmatpush1.msra.mxu0 0.0
    %4711 = vmatprep.subr.mxu0 0.0
    %4712 = vmatpush1.msra.mxu0 0.0
    %4713 = vmatprep.subr.mxu0 0.0
    %4714 = vmatpush1.msra.mxu0 0.0
    %4715 = vmatprep.subr.mxu0 0.0
    %4716 = vmatpush1.msra.mxu0 0.0
    %4717 = vmatprep.subr.mxu0 0.0
    %4718 = vmatpush1.msra.mxu0 0.0
    %4719 = vmatprep.subr.mxu0 0.0
    %4720 = vmatpush1.msra.mxu0 0.0
    %4721 = vmatprep.subr.mxu0 0.0
    %4722 = vmatpush1.msra.mxu0 0.0
    %4723 = vmatprep.subr.mxu0 0.0
    %4724 = vmatpush1.msra.mxu0 0.0
    %4725 = vmatprep.subr.mxu0 0.0
    %4726 = vmatpush1.msra.mxu0 0.0
    %4727 = vmatprep.subr.mxu0 0.0
    %4728 = vmatpush1.msra.mxu0 0.0
    %4729 = vmatprep.subr.mxu0 0.0
    %4730 = vmatpush1.msra.mxu0 0.0
    %4731 = vmatprep.subr.mxu0 0.0
    %4732 = vmatpush1.msra.mxu0 0.0
    %4733 = vmatprep.subr.mxu0 0.0
    %4734 = vmatpush1.msra.mxu0 0.0
    %4735 = vmatprep.subr.mxu0 0.0
    %4736 = vmatpush1.msra.mxu0 0.0
    %4737 = vmatprep.subr.mxu0 0.0
    %4738 = vmatpush1.msra.mxu0 0.0
    %4739 = vmatprep.subr.mxu0 0.0
    %4740 = vmatpush1.msra.mxu0 0.0
    %4741 = vmatprep.subr.mxu0 0.0
    %4742 = vmatpush1.msra.mxu0 0.0
    %4743 = vmatprep.subr.mxu0 0.0
    %4744 = vmatpush1.msra.mxu0 0.0
    %4745 = vmatprep.subr.mxu0 0.0
    %4746 = vmatpush1.msra.mxu0 0.0
    %4747 = vmatprep.subr.mxu0 0.0
    %4748 = vmatpush1.msra.mxu0 0.0
    %4749 = vmatprep.subr.mxu0 0.0
    %4750 = vmatpush1.msra.mxu0 0.0
    %4751 = vmatprep.subr.mxu0 0.0
    %4752 = vmatpush1.msra.mxu0 0.0
    %4753 = vmatprep.subr.mxu0 0.0
    %4754 = vmatpush1.msra.mxu0 0.0
    %4755 = vmatprep.subr.mxu0 0.0
    %4756 = vmatpush1.msra.mxu0 0.0
    %4757 = vmatprep.subr.mxu0 0.0
    %4758 = vmatpush1.msra.mxu0 0.0
    %4759 = vmatprep.subr.mxu0 0.0
    %4760 = vmatpush1.msra.mxu0 0.0
    %4761 = vmatprep.subr.mxu0 0.0
    %4762 = vmatpush1.msra.mxu0 0.0
    %4763 = vmatprep.subr.mxu0 0.0
    %4764 = vmatpush1.msra.mxu0 0.0
    %4765 = vmatprep.mubr.f32.mxu0 0.0
    %4766 = vmatmul.mubr.f32.gmra.mrb[0].mxu0 %v3674
    %v4767 = vpop.f32.mrb[0].mxu0
    %v4768 = vadd.f32 %v1537, %v4767
    %v4769 = vpop.f32.mrb[0].mxu0
    %4770 = vmatprep.mubr.f32.mxu0 0.0
    %4771 = vmatmul.mubr.f32.gmra.mrb[0].mxu0 %v3677
    %v4772 = vpop.f32.mrb[0].mxu0
    %v4773 = vadd.f32 %v1537, %v4772
    %v4774 = vpop.f32.mrb[0].mxu0
    %4775 = vmatprep.mubr.f32.mxu0 0.0
    %4776 = vmatmul.mubr.f32.gmra.mrb[0].mxu0 %v3680
    %v4777 = vpop.f32.mrb[0].mxu0
    %v4778 = vadd.f32 %v1537, %v4777
    %v4779 = vpop.f32.mrb[0].mxu0
    %4780 = vmatprep.mubr.f32.mxu0 0.0
    %4781 = vmatmul.mubr.f32.gmra.mrb[0].mxu0 %v3683
    %v4782 = vpop.f32.mrb[0].mxu0
    %v4783 = vadd.f32 %v1537, %v4782
    %v4784 = vpop.f32.mrb[0].mxu0
    %4785 = vmatprep.mubr.f32.mxu0 0.0
    %4786 = vmatmul.mubr.f32.gmra.mrb[0].mxu0 %v3686
    %v4787 = vpop.f32.mrb[0].mxu0
    %v4788 = vadd.f32 %v1537, %v4787
    %v4789 = vpop.f32.mrb[0].mxu0
    %4790 = vmatprep.mubr.f32.mxu0 0.0
    %4791 = vmatmul.mubr.f32.gmra.mrb[0].mxu0 %v3689
    %v4792 = vpop.f32.mrb[0].mxu0
    %v4793 = vadd.f32 %v1537, %v4792
    %v4794 = vpop.f32.mrb[0].mxu0
    %4795 = vmatprep.mubr.f32.mxu0 0.0
    %4796 = vmatmul.mubr.f32.gmra.mrb[0].mxu0 %v3692
    %v4797 = vpop.f32.mrb[0].mxu0
    %v4798 = vadd.f32 %v1537, %v4797
    %v4799 = vpop.f32.mrb[0].mxu0
    %4800 = vmatprep.mubr.f32.mxu0 0.0
    %4801 = vmatmul.mubr.f32.gmra.mrb[0].mxu0 %v3695
    %v4802 = vpop.f32.mrb[0].mxu0
    %v4803 = vadd.f32 %v1537, %v4802
    %v4804 = vpop.f32.mrb[0].mxu0
    %4805 = vdwg.mxu0
    %v4807 = vsel %vm238, %v4686, 0
    %v4810 = vsel %vm238, %v4687, 0
    %v4813 = vsel %vm238, %v4688, 0
    %v4816 = vsel %vm238, %v4689, 0
    %v4819 = vsel %vm238, %v4690, 0
    %v4822 = vsel %vm238, %v4691, 0
    %v4825 = vsel %vm238, %v4692, 0
    %4827 = vmatprep.subr.mxu0 0.0
    %4828 = vmatpush1.msra.mxu0 %v4697
    %4829 = vmatprep.subr.mxu0 0.0
    %4830 = vmatpush1.msra.mxu0 %v4698
    %4831 = vmatprep.subr.mxu0 0.0
    %4832 = vmatpush1.msra.mxu0 %v4699
    %4833 = vmatprep.subr.mxu0 0.0
    %4834 = vmatpush1.msra.mxu0 %v4700
    %4835 = vmatprep.subr.mxu0 0.0
    %4836 = vmatpush1.msra.mxu0 0.0
    %4837 = vmatprep.subr.mxu0 0.0
    %4838 = vmatpush1.msra.mxu0 0.0
    %4839 = vmatprep.subr.mxu0 0.0
    %4840 = vmatpush1.msra.mxu0 0.0
    %4841 = vmatprep.subr.mxu0 0.0
    %4842 = vmatpush1.msra.mxu0 0.0
    %4843 = vmatprep.subr.mxu0 0.0
    %4844 = vmatpush1.msra.mxu0 0.0
    %4845 = vmatprep.subr.mxu0 0.0
    %4846 = vmatpush1.msra.mxu0 0.0
    %4847 = vmatprep.subr.mxu0 0.0
    %4848 = vmatpush1.msra.mxu0 0.0
    %4849 = vmatprep.subr.mxu0 0.0
    %4850 = vmatpush1.msra.mxu0 0.0
    %4851 = vmatprep.subr.mxu0 0.0
    %4852 = vmatpush1.msra.mxu0 0.0
    %4853 = vmatprep.subr.mxu0 0.0
    %4854 = vmatpush1.msra.mxu0 0.0
    %4855 = vmatprep.subr.mxu0 0.0
    %4856 = vmatpush1.msra.mxu0 0.0
    %4857 = vmatprep.subr.mxu0 0.0
    %4858 = vmatpush1.msra.mxu0 0.0
    %4859 = vmatprep.subr.mxu0 0.0
    %4860 = vmatpush1.msra.mxu0 0.0
    %4861 = vmatprep.subr.mxu0 0.0
    %4862 = vmatpush1.msra.mxu0 0.0
    %4863 = vmatprep.subr.mxu0 0.0
    %4864 = vmatpush1.msra.mxu0 0.0
    %4865 = vmatprep.subr.mxu0 0.0
    %4866 = vmatpush1.msra.mxu0 0.0
    %4867 = vmatprep.subr.mxu0 0.0
    %4868 = vmatpush1.msra.mxu0 0.0
    %4869 = vmatprep.subr.mxu0 0.0
    %4870 = vmatpush1.msra.mxu0 0.0
    %4871 = vmatprep.subr.mxu0 0.0
    %4872 = vmatpush1.msra.mxu0 0.0
    %4873 = vmatprep.subr.mxu0 0.0
    %4874 = vmatpush1.msra.mxu0 0.0
    %4875 = vmatprep.subr.mxu0 0.0
    %4876 = vmatpush1.msra.mxu0 0.0
    %4877 = vmatprep.subr.mxu0 0.0
    %4878 = vmatpush1.msra.mxu0 0.0
    %4879 = vmatprep.subr.mxu0 0.0
    %4880 = vmatpush1.msra.mxu0 0.0
    %4881 = vmatprep.subr.mxu0 0.0
    %4882 = vmatpush1.msra.mxu0 0.0
    %4883 = vmatprep.subr.mxu0 0.0
    %4884 = vmatpush1.msra.mxu0 0.0
    %4885 = vmatprep.subr.mxu0 0.0
    %4886 = vmatpush1.msra.mxu0 0.0
    %4887 = vmatprep.subr.mxu0 0.0
    %4888 = vmatpush1.msra.mxu0 0.0
    %4889 = vmatprep.subr.mxu0 0.0
    %4890 = vmatpush1.msra.mxu0 0.0
    %4891 = vmatprep.mubr.f32.mxu0 0.0
    %4892 = vmatmul.mubr.f32.gmra.mrb[0].mxu0 %v4807
    %v4893 = vpop.f32.mrb[0].mxu0
    %v4894 = vadd.f32 %v1646, %v4893
    %v4895 = vpop.f32.mrb[0].mxu0
    %4896 = vmatprep.mubr.f32.mxu0 0.0
    %4897 = vmatmul.mubr.f32.gmra.mrb[0].mxu0 %v4810
    %v4898 = vpop.f32.mrb[0].mxu0
    %v4899 = vadd.f32 %v1646, %v4898
    %v4900 = vpop.f32.mrb[0].mxu0
    %4901 = vmatprep.mubr.f32.mxu0 0.0
    %4902 = vmatmul.mubr.f32.gmra.mrb[0].mxu0 %v4813
    %v4903 = vpop.f32.mrb[0].mxu0
    %v4904 = vadd.f32 %v1646, %v4903
    %v4905 = vpop.f32.mrb[0].mxu0
    %4906 = vmatprep.mubr.f32.mxu0 0.0
    %4907 = vmatmul.mubr.f32.gmra.mrb[0].mxu0 %v4816
    %v4908 = vpop.f32.mrb[0].mxu0
    %v4909 = vadd.f32 %v1646, %v4908
    %v4910 = vpop.f32.mrb[0].mxu0
    %4911 = vmatprep.mubr.f32.mxu0 0.0
    %4912 = vmatmul.mubr.f32.gmra.mrb[0].mxu0 %v4819
    %v4913 = vpop.f32.mrb[0].mxu0
    %v4914 = vadd.f32 %v1646, %v4913
    %v4915 = vpop.f32.mrb[0].mxu0
    %4916 = vmatprep.mubr.f32.mxu0 0.0
    %4917 = vmatmul.mubr.f32.gmra.mrb[0].mxu0 %v4822
    %v4918 = vpop.f32.mrb[0].mxu0
    %v4919 = vadd.f32 %v1646, %v4918
    %v4920 = vpop.f32.mrb[0].mxu0
    %4921 = vmatprep.mubr.f32.mxu0 0.0
    %4922 = vmatmul.mubr.f32.gmra.mrb[0].mxu0 %v4825
    %v4923 = vpop.f32.mrb[0].mxu0
    %v4924 = vadd.f32 %v1646, %v4923
    %v4925 = vpop.f32.mrb[0].mxu0
    %4926 = vdwg.mxu0
    %v4927 = vmul.f32 %v4894, %v48
    %v4928 = vmul.f32 %v4899, %v48
    %v4929 = vmul.f32 %v4904, %v48
    %v4930 = vmul.f32 %v4909, %v48
    %v4931 = vmul.f32 %v4914, %v48
    %v4932 = vmul.f32 %v4919, %v48
    %v4933 = vmul.f32 %v4924, %v48
    %v4935 = vlaneseq
    %v4936 = vshrl.u32 %v4935, 7
    %v4937 = vsub.s32 0, %v4936
    %v4938 = vrot.slane %v3655, %v4937
    %v4941 = vsel %vm776, %v4768, 0
    %v4944 = vsel %vm776, %v4773, 0
    %v4947 = vsel %vm776, %v4778, 0
    %v4950 = vsel %vm776, %v4783, 0
    %v4953 = vsel %vm776, %v4788, 0
    %v4956 = vsel %vm776, %v4793, 0
    %v4959 = vsel %vm776, %v4798, 0
    %v4962 = vsel %vm776, %v4803, 0
    %v4965 = vsel %vm776, %v4927, 0
    %v4968 = vsel %vm776, %v4928, 0
    %v4971 = vsel %vm776, %v4929, 0
    %v4974 = vsel %vm776, %v4930, 0
    %v4977 = vsel %vm776, %v4931, 0
    %v4980 = vsel %vm776, %v4932, 0
    %v4983 = vsel %vm776, %v4933, 0
    %4985 = vmatprep.subr.mxu0 0.0
    %4986 = vmatpush1.xpose.msra.mxu0 %v4965
    %4987 = vmatprep.subr.mxu0 0.0
    %4988 = vmatpush1.xpose.msra.mxu0 %v4968
    %4989 = vmatprep.subr.mxu0 0.0
    %4990 = vmatpush1.xpose.msra.mxu0 %v4971
    %4991 = vmatprep.subr.mxu0 0.0
    %4992 = vmatpush1.xpose.msra.mxu0 %v4974
    %4993 = vmatprep.subr.mxu0 0.0
    %4994 = vmatpush1.xpose.msra.mxu0 %v4977
    %4995 = vmatprep.subr.mxu0 0.0
    %4996 = vmatpush1.xpose.msra.mxu0 %v4980
    %4997 = vmatprep.subr.mxu0 0.0
    %4998 = vmatpush1.xpose.msra.mxu0 %v4983
    %4999 = vmatprep.subr.mxu0 0.0
    %5000 = vmatpush1.xpose.msra.mxu0 0.0
    %5001 = vmatprep.subr.mxu0 0.0
    %5002 = vmatpush1.xpose.msra.mxu0 0.0
    %5003 = vmatprep.subr.mxu0 0.0
    %5004 = vmatpush1.xpose.msra.mxu0 0.0
    %5005 = vmatprep.subr.mxu0 0.0
    %5006 = vmatpush1.xpose.msra.mxu0 0.0
    %5007 = vmatprep.subr.mxu0 0.0
    %5008 = vmatpush1.xpose.msra.mxu0 0.0
    %5009 = vmatprep.subr.mxu0 0.0
    %5010 = vmatpush1.xpose.msra.mxu0 0.0
    %5011 = vmatprep.subr.mxu0 0.0
    %5012 = vmatpush1.xpose.msra.mxu0 0.0
    %5013 = vmatprep.subr.mxu0 0.0
    %5014 = vmatpush1.xpose.msra.mxu0 0.0
    %5015 = vmatprep.subr.mxu0 0.0
    %5016 = vmatpush1.xpose.msra.mxu0 0.0
    %5017 = vmatprep.subr.mxu0 0.0
    %5018 = vmatpush1.xpose.msra.mxu0 0.0
    %5019 = vmatprep.subr.mxu0 0.0
    %5020 = vmatpush1.xpose.msra.mxu0 0.0
    %5021 = vmatprep.subr.mxu0 0.0
    %5022 = vmatpush1.xpose.msra.mxu0 0.0
    %5023 = vmatprep.subr.mxu0 0.0
    %5024 = vmatpush1.xpose.msra.mxu0 0.0
    %5025 = vmatprep.subr.mxu0 0.0
    %5026 = vmatpush1.xpose.msra.mxu0 0.0
    %5027 = vmatprep.subr.mxu0 0.0
    %5028 = vmatpush1.xpose.msra.mxu0 0.0
    %5029 = vmatprep.subr.mxu0 0.0
    %5030 = vmatpush1.xpose.msra.mxu0 0.0
    %5031 = vmatprep.subr.mxu0 0.0
    %5032 = vmatpush1.xpose.msra.mxu0 0.0
    %5033 = vmatprep.subr.mxu0 0.0
    %5034 = vmatpush1.xpose.msra.mxu0 0.0
    %5035 = vmatprep.subr.mxu0 0.0
    %5036 = vmatpush1.xpose.msra.mxu0 0.0
    %5037 = vmatprep.subr.mxu0 0.0
    %5038 = vmatpush1.xpose.msra.mxu0 0.0
    %5039 = vmatprep.subr.mxu0 0.0
    %5040 = vmatpush1.xpose.msra.mxu0 0.0
    %5041 = vmatprep.subr.mxu0 0.0
    %5042 = vmatpush1.xpose.msra.mxu0 0.0
    %5043 = vmatprep.subr.mxu0 0.0
    %5044 = vmatpush1.xpose.msra.mxu0 0.0
    %5045 = vmatprep.subr.mxu0 0.0
    %5046 = vmatpush1.xpose.msra.mxu0 0.0
    %5047 = vmatprep.subr.mxu0 0.0
    %5048 = vmatpush1.xpose.msra.mxu0 0.0
    %5049 = vmatprep.mubr.f32.mxu0 0.0
    %5050 = vmatmul.mubr.f32.gmra.mrb[0].mxu0 %v4941
    %v5051 = vpop.f32.mrb[0].mxu0
    %v5052 = vadd.f32 %v4938, %v5051
    %v5053 = vpop.f32.mrb[0].mxu0
    %5054 = vmatprep.mubr.f32.mxu0 0.0
    %5055 = vmatmul.mubr.f32.gmra.mrb[0].mxu0 %v4944
    %v5056 = vpop.f32.mrb[0].mxu0
    %v5057 = vadd.f32 %v4938, %v5056
    %v5058 = vpop.f32.mrb[0].mxu0
    %5059 = vmatprep.mubr.f32.mxu0 0.0
    %5060 = vmatmul.mubr.f32.gmra.mrb[0].mxu0 %v4947
    %v5061 = vpop.f32.mrb[0].mxu0
    %v5062 = vadd.f32 %v4938, %v5061
    %v5063 = vpop.f32.mrb[0].mxu0
    %5064 = vmatprep.mubr.f32.mxu0 0.0
    %5065 = vmatmul.mubr.f32.gmra.mrb[0].mxu0 %v4950
    %v5066 = vpop.f32.mrb[0].mxu0
    %v5067 = vadd.f32 %v4938, %v5066
    %v5068 = vpop.f32.mrb[0].mxu0
    %5069 = vmatprep.mubr.f32.mxu0 0.0
    %5070 = vmatmul.mubr.f32.gmra.mrb[0].mxu0 %v4953
    %v5071 = vpop.f32.mrb[0].mxu0
    %v5072 = vadd.f32 %v4938, %v5071
    %v5073 = vpop.f32.mrb[0].mxu0
    %5074 = vmatprep.mubr.f32.mxu0 0.0
    %5075 = vmatmul.mubr.f32.gmra.mrb[0].mxu0 %v4956
    %v5076 = vpop.f32.mrb[0].mxu0
    %v5077 = vadd.f32 %v4938, %v5076
    %v5078 = vpop.f32.mrb[0].mxu0
    %5079 = vmatprep.mubr.f32.mxu0 0.0
    %5080 = vmatmul.mubr.f32.gmra.mrb[0].mxu0 %v4959
    %v5081 = vpop.f32.mrb[0].mxu0
    %v5082 = vadd.f32 %v4938, %v5081
    %v5083 = vpop.f32.mrb[0].mxu0
    %5084 = vmatprep.mubr.f32.mxu0 0.0
    %5085 = vmatmul.mubr.f32.gmra.mrb[0].mxu0 %v4962
    %v5086 = vpop.f32.mrb[0].mxu0
    %v5087 = vadd.f32 %v4938, %v5086
    %v5088 = vpop.f32.mrb[0].mxu0
    %5089 = vdwg.mxu0
    %v5090 = vsel %vm1931, %v5052, -inf
    %5091 = vmax.xlane.f32.xlu0 %v5090
    %v5092 = vpop.xlane.xlu0 %5091
    %v5093 = vsel %vm1931, %v5057, -inf
    %5094 = vmax.xlane.f32.xlu0 %v5093
    %v5095 = vpop.xlane.xlu0 %5094
    %v5096 = vsel %vm1931, %v5062, -inf
    %5097 = vmax.xlane.f32.xlu0 %v5096
    %v5098 = vpop.xlane.xlu0 %5097
    %v5099 = vsel %vm1931, %v5067, -inf
    %5100 = vmax.xlane.f32.xlu0 %v5099
    %v5101 = vpop.xlane.xlu0 %5100
    %v5102 = vsel %vm1931, %v5072, -inf
    %5103 = vmax.xlane.f32.xlu0 %v5102
    %v5104 = vpop.xlane.xlu0 %5103
    %v5105 = vsel %vm1931, %v5077, -inf
    %5106 = vmax.xlane.f32.xlu0 %v5105
    %v5107 = vpop.xlane.xlu0 %5106
    %v5108 = vsel %vm1931, %v5082, -inf
    %5109 = vmax.xlane.f32.xlu0 %v5108
    %v5110 = vpop.xlane.xlu0 %5109
    %v5111 = vsel %vm1931, %v5087, -inf
    %5112 = vmax.xlane.f32.xlu0 %v5111
    %v5113 = vpop.xlane.xlu0 %5112
    %v5114 = vsub.f32 %v5052, %v5092
    %v5115 = vsub.f32 %v5057, %v5095
    %v5116 = vsub.f32 %v5062, %v5098
    %v5117 = vsub.f32 %v5067, %v5101
    %v5118 = vsub.f32 %v5072, %v5104
    %v5119 = vsub.f32 %v5077, %v5107
    %v5120 = vsub.f32 %v5082, %v5110
    %v5121 = vsub.f32 %v5087, %v5113
    %v5122 = vmul.f32 %v5114, 1.442695
    %v5123 = vpow.pop %v5122
    %v5124 = vmul.f32 %v5115, 1.442695
    %v5125 = vpow.pop %v5124
    %v5126 = vmul.f32 %v5116, 1.442695
    %v5127 = vpow.pop %v5126
    %v5128 = vmul.f32 %v5117, 1.442695
    %v5129 = vpow.pop %v5128
    %v5130 = vmul.f32 %v5118, 1.442695
    %v5131 = vpow.pop %v5130
    %v5132 = vmul.f32 %v5119, 1.442695
    %v5133 = vpow.pop %v5132
    %v5134 = vmul.f32 %v5120, 1.442695
    %v5135 = vpow.pop %v5134
    %v5136 = vmul.f32 %v5121, 1.442695
    %v5137 = vpow.pop %v5136
    %v5138 = vsel %vm1931, %v5123, 0.0
    %5139 = vadd.xlane.f32.xlu0 %v5138
    %v5140 = vpop.xlane.xlu0 %5139
    %v5141 = vsel %vm1931, %v5125, 0.0
    %5142 = vadd.xlane.f32.xlu0 %v5141
    %v5143 = vpop.xlane.xlu0 %5142
    %v5144 = vsel %vm1931, %v5127, 0.0
    %5145 = vadd.xlane.f32.xlu0 %v5144
    %v5146 = vpop.xlane.xlu0 %5145
    %v5147 = vsel %vm1931, %v5129, 0.0
    %5148 = vadd.xlane.f32.xlu0 %v5147
    %v5149 = vpop.xlane.xlu0 %5148
    %v5150 = vsel %vm1931, %v5131, 0.0
    %5151 = vadd.xlane.f32.xlu0 %v5150
    %v5152 = vpop.xlane.xlu0 %5151
    %v5153 = vsel %vm1931, %v5133, 0.0
    %5154 = vadd.xlane.f32.xlu0 %v5153
    %v5155 = vpop.xlane.xlu0 %5154
    %v5156 = vsel %vm1931, %v5135, 0.0
    %5157 = vadd.xlane.f32.xlu0 %v5156
    %v5158 = vpop.xlane.xlu0 %5157
    %v5159 = vsel %vm1931, %v5137, 0.0
    %5160 = vadd.xlane.f32.xlu0 %v5159
    %v5161 = vpop.xlane.xlu0 %5160
    %v5162 = vrcp.pop %v5140
    %v5163 = vmul.f32 %v5123, %v5162
    %v5164 = vrcp.pop %v5143
    %v5165 = vmul.f32 %v5125, %v5164
    %v5166 = vrcp.pop %v5146
    %v5167 = vmul.f32 %v5127, %v5166
    %v5168 = vrcp.pop %v5149
    %v5169 = vmul.f32 %v5129, %v5168
    %v5170 = vrcp.pop %v5152
    %v5171 = vmul.f32 %v5131, %v5170
    %v5172 = vrcp.pop %v5155
    %v5173 = vmul.f32 %v5133, %v5172
    %v5174 = vrcp.pop %v5158
    %v5175 = vmul.f32 %v5135, %v5174
    %v5176 = vrcp.pop %v5161
    %v5177 = vmul.f32 %v5137, %v5176
    %v5178 = vmul.f32 %v4894, %v58
    %v5179 = vmul.f32 %v4899, %v58
    %v5180 = vmul.f32 %v4904, %v58
    %v5181 = vmul.f32 %v4909, %v58
    %v5182 = vmul.f32 %v4914, %v58
    %v5183 = vmul.f32 %v4919, %v58
    %v5184 = vmul.f32 %v4924, %v58
    %v5185 = vmul.f32 %v4894, %v53
    %v5186 = vmul.f32 %v4899, %v53
    %v5187 = vmul.f32 %v4904, %v53
    %v5188 = vmul.f32 %v4909, %v53
    %v5189 = vmul.f32 %v4914, %v53
    %v5190 = vmul.f32 %v4919, %v53
    %v5191 = vmul.f32 %v4924, %v53
    %v5193 = vsel %vm776, %v5185, 0
    %v5196 = vsel %vm776, %v5186, 0
    %v5199 = vsel %vm776, %v5187, 0
    %v5202 = vsel %vm776, %v5188, 0
    %v5205 = vsel %vm776, %v5189, 0
    %v5208 = vsel %vm776, %v5190, 0
    %v5211 = vsel %vm776, %v5191, 0
    %5213 = vmatprep.subr.mxu0 0.0
    %5214 = vmatpush1.xpose.msra.mxu0 %v5193
    %5215 = vmatprep.subr.mxu0 0.0
    %5216 = vmatpush1.xpose.msra.mxu0 %v5196
    %5217 = vmatprep.subr.mxu0 0.0
    %5218 = vmatpush1.xpose.msra.mxu0 %v5199
    %5219 = vmatprep.subr.mxu0 0.0
    %5220 = vmatpush1.xpose.msra.mxu0 %v5202
    %5221 = vmatprep.subr.mxu0 0.0
    %5222 = vmatpush1.xpose.msra.mxu0 %v5205
    %5223 = vmatprep.subr.mxu0 0.0
    %5224 = vmatpush1.xpose.msra.mxu0 %v5208
    %5225 = vmatprep.subr.mxu0 0.0
    %5226 = vmatpush1.xpose.msra.mxu0 %v5211
    %5227 = vmatprep.subr.mxu0 0.0
    %5228 = vmatpush1.xpose.msra.mxu0 0.0
    %5229 = vmatprep.subr.mxu0 0.0
    %5230 = vmatpush1.xpose.msra.mxu0 0.0
    %5231 = vmatprep.subr.mxu0 0.0
    %5232 = vmatpush1.xpose.msra.mxu0 0.0
    %5233 = vmatprep.subr.mxu0 0.0
    %5234 = vmatpush1.xpose.msra.mxu0 0.0
    %5235 = vmatprep.subr.mxu0 0.0
    %5236 = vmatpush1.xpose.msra.mxu0 0.0
    %5237 = vmatprep.subr.mxu0 0.0
    %5238 = vmatpush1.xpose.msra.mxu0 0.0
    %5239 = vmatprep.subr.mxu0 0.0
    %5240 = vmatpush1.xpose.msra.mxu0 0.0
    %5241 = vmatprep.subr.mxu0 0.0
    %5242 = vmatpush1.xpose.msra.mxu0 0.0
    %5243 = vmatprep.subr.mxu0 0.0
    %5244 = vmatpush1.xpose.msra.mxu0 0.0
    %5245 = vmatprep.subr.mxu0 0.0
    %5246 = vmatpush1.xpose.msra.mxu0 0.0
    %5247 = vmatprep.subr.mxu0 0.0
    %5248 = vmatpush1.xpose.msra.mxu0 0.0
    %5249 = vmatprep.subr.mxu0 0.0
    %5250 = vmatpush1.xpose.msra.mxu0 0.0
    %5251 = vmatprep.subr.mxu0 0.0
    %5252 = vmatpush1.xpose.msra.mxu0 0.0
    %5253 = vmatprep.subr.mxu0 0.0
    %5254 = vmatpush1.xpose.msra.mxu0 0.0
    %5255 = vmatprep.subr.mxu0 0.0
    %5256 = vmatpush1.xpose.msra.mxu0 0.0
    %5257 = vmatprep.subr.mxu0 0.0
    %5258 = vmatpush1.xpose.msra.mxu0 0.0
    %5259 = vmatprep.subr.mxu0 0.0
    %5260 = vmatpush1.xpose.msra.mxu0 0.0
    %5261 = vmatprep.subr.mxu0 0.0
    %5262 = vmatpush1.xpose.msra.mxu0 0.0
    %5263 = vmatprep.subr.mxu0 0.0
    %5264 = vmatpush1.xpose.msra.mxu0 0.0
    %5265 = vmatprep.subr.mxu0 0.0
    %5266 = vmatpush1.xpose.msra.mxu0 0.0
    %5267 = vmatprep.subr.mxu0 0.0
    %5268 = vmatpush1.xpose.msra.mxu0 0.0
    %5269 = vmatprep.subr.mxu0 0.0
    %5270 = vmatpush1.xpose.msra.mxu0 0.0
    %5271 = vmatprep.subr.mxu0 0.0
    %5272 = vmatpush1.xpose.msra.mxu0 0.0
    %5273 = vmatprep.subr.mxu0 0.0
    %5274 = vmatpush1.xpose.msra.mxu0 0.0
    %5275 = vmatprep.subr.mxu0 0.0
    %5276 = vmatpush1.xpose.msra.mxu0 0.0
    %5277 = vmatprep.mubr.f32.mxu0 0.0
    %5278 = vmatmul.mubr.f32.gmra.mrb[0].mxu0 %v4941
    %v5279 = vpop.f32.mrb[0].mxu0
    %v5280 = vadd.f32 %v4938, %v5279
    %v5281 = vpop.f32.mrb[0].mxu0
    %5282 = vmatprep.mubr.f32.mxu0 0.0
    %5283 = vmatmul.mubr.f32.gmra.mrb[0].mxu0 %v4944
    %v5284 = vpop.f32.mrb[0].mxu0
    %v5285 = vadd.f32 %v4938, %v5284
    %v5286 = vpop.f32.mrb[0].mxu0
    %5287 = vmatprep.mubr.f32.mxu0 0.0
    %5288 = vmatmul.mubr.f32.gmra.mrb[0].mxu0 %v4947
    %v5289 = vpop.f32.mrb[0].mxu0
    %v5290 = vadd.f32 %v4938, %v5289
    %v5291 = vpop.f32.mrb[0].mxu0
    %5292 = vmatprep.mubr.f32.mxu0 0.0
    %5293 = vmatmul.mubr.f32.gmra.mrb[0].mxu0 %v4950
    %v5294 = vpop.f32.mrb[0].mxu0
    %v5295 = vadd.f32 %v4938, %v5294
    %v5296 = vpop.f32.mrb[0].mxu0
    %5297 = vmatprep.mubr.f32.mxu0 0.0
    %5298 = vmatmul.mubr.f32.gmra.mrb[0].mxu0 %v4953
    %v5299 = vpop.f32.mrb[0].mxu0
    %v5300 = vadd.f32 %v4938, %v5299
    %v5301 = vpop.f32.mrb[0].mxu0
    %5302 = vmatprep.mubr.f32.mxu0 0.0
    %5303 = vmatmul.mubr.f32.gmra.mrb[0].mxu0 %v4956
    %v5304 = vpop.f32.mrb[0].mxu0
    %v5305 = vadd.f32 %v4938, %v5304
    %v5306 = vpop.f32.mrb[0].mxu0
    %5307 = vmatprep.mubr.f32.mxu0 0.0
    %5308 = vmatmul.mubr.f32.gmra.mrb[0].mxu0 %v4959
    %v5309 = vpop.f32.mrb[0].mxu0
    %v5310 = vadd.f32 %v4938, %v5309
    %v5311 = vpop.f32.mrb[0].mxu0
    %5312 = vmatprep.mubr.f32.mxu0 0.0
    %5313 = vmatmul.mubr.f32.gmra.mrb[0].mxu0 %v4962
    %v5314 = vpop.f32.mrb[0].mxu0
    %v5315 = vadd.f32 %v4938, %v5314
    %v5316 = vpop.f32.mrb[0].mxu0
    %5317 = vdwg.mxu0
    %v5318 = vsel %vm1931, %v5280, -inf
    %5319 = vmax.xlane.f32.xlu0 %v5318
    %v5320 = vpop.xlane.xlu0 %5319
    %v5321 = vsel %vm1931, %v5285, -inf
    %5322 = vmax.xlane.f32.xlu0 %v5321
    %v5323 = vpop.xlane.xlu0 %5322
    %v5324 = vsel %vm1931, %v5290, -inf
    %5325 = vmax.xlane.f32.xlu0 %v5324
    %v5326 = vpop.xlane.xlu0 %5325
    %v5327 = vsel %vm1931, %v5295, -inf
    %5328 = vmax.xlane.f32.xlu0 %v5327
    %v5329 = vpop.xlane.xlu0 %5328
    %v5330 = vsel %vm1931, %v5300, -inf
    %5331 = vmax.xlane.f32.xlu0 %v5330
    %v5332 = vpop.xlane.xlu0 %5331
    %v5333 = vsel %vm1931, %v5305, -inf
    %5334 = vmax.xlane.f32.xlu0 %v5333
    %v5335 = vpop.xlane.xlu0 %5334
    %v5336 = vsel %vm1931, %v5310, -inf
    %5337 = vmax.xlane.f32.xlu0 %v5336
    %v5338 = vpop.xlane.xlu0 %5337
    %v5339 = vsel %vm1931, %v5315, -inf
    %5340 = vmax.xlane.f32.xlu0 %v5339
    %v5341 = vpop.xlane.xlu0 %5340
    %v5342 = vsub.f32 %v5280, %v5320
    %v5343 = vsub.f32 %v5285, %v5323
    %v5344 = vsub.f32 %v5290, %v5326
    %v5345 = vsub.f32 %v5295, %v5329
    %v5346 = vsub.f32 %v5300, %v5332
    %v5347 = vsub.f32 %v5305, %v5335
    %v5348 = vsub.f32 %v5310, %v5338
    %v5349 = vsub.f32 %v5315, %v5341
    %v5350 = vmul.f32 %v5342, 1.442695
    %v5351 = vpow.pop %v5350
    %v5352 = vmul.f32 %v5343, 1.442695
    %v5353 = vpow.pop %v5352
    %v5354 = vmul.f32 %v5344, 1.442695
    %v5355 = vpow.pop %v5354
    %v5356 = vmul.f32 %v5345, 1.442695
    %v5357 = vpow.pop %v5356
    %v5358 = vmul.f32 %v5346, 1.442695
    %v5359 = vpow.pop %v5358
    %v5360 = vmul.f32 %v5347, 1.442695
    %v5361 = vpow.pop %v5360
    %v5362 = vmul.f32 %v5348, 1.442695
    %v5363 = vpow.pop %v5362
    %v5364 = vmul.f32 %v5349, 1.442695
    %v5365 = vpow.pop %v5364
    %v5366 = vsel %vm1931, %v5351, 0.0
    %5367 = vadd.xlane.f32.xlu0 %v5366
    %v5368 = vpop.xlane.xlu0 %5367
    %v5369 = vsel %vm1931, %v5353, 0.0
    %5370 = vadd.xlane.f32.xlu0 %v5369
    %v5371 = vpop.xlane.xlu0 %5370
    %v5372 = vsel %vm1931, %v5355, 0.0
    %5373 = vadd.xlane.f32.xlu0 %v5372
    %v5374 = vpop.xlane.xlu0 %5373
    %v5375 = vsel %vm1931, %v5357, 0.0
    %5376 = vadd.xlane.f32.xlu0 %v5375
    %v5377 = vpop.xlane.xlu0 %5376
    %v5378 = vsel %vm1931, %v5359, 0.0
    %5379 = vadd.xlane.f32.xlu0 %v5378
    %v5380 = vpop.xlane.xlu0 %5379
    %v5381 = vsel %vm1931, %v5361, 0.0
    %5382 = vadd.xlane.f32.xlu0 %v5381
    %v5383 = vpop.xlane.xlu0 %5382
    %v5384 = vsel %vm1931, %v5363, 0.0
    %5385 = vadd.xlane.f32.xlu0 %v5384
    %v5386 = vpop.xlane.xlu0 %5385
    %v5387 = vsel %vm1931, %v5365, 0.0
    %5388 = vadd.xlane.f32.xlu0 %v5387
    %v5389 = vpop.xlane.xlu0 %5388
    %v5390 = vrcp.pop %v5368
    %v5391 = vmul.f32 %v5351, %v5390
    %v5392 = vrcp.pop %v5371
    %v5393 = vmul.f32 %v5353, %v5392
    %v5394 = vrcp.pop %v5374
    %v5395 = vmul.f32 %v5355, %v5394
    %v5396 = vrcp.pop %v5377
    %v5397 = vmul.f32 %v5357, %v5396
    %v5398 = vrcp.pop %v5380
    %v5399 = vmul.f32 %v5359, %v5398
    %v5400 = vrcp.pop %v5383
    %v5401 = vmul.f32 %v5361, %v5400
    %v5402 = vrcp.pop %v5386
    %v5403 = vmul.f32 %v5363, %v5402
    %v5404 = vrcp.pop %v5389
    %v5405 = vmul.f32 %v5365, %v5404
    %v5406 = vmul.f32 %v4894, %v63
    %v5407 = vmul.f32 %v4899, %v63
    %v5408 = vmul.f32 %v4904, %v63
    %v5409 = vmul.f32 %v4909, %v63
    %v5410 = vmul.f32 %v4914, %v63
    %v5411 = vmul.f32 %v4919, %v63
    %v5412 = vmul.f32 %v4924, %v63
    %v5414 = vsel %vm1931, %v5391, 0
    %v5417 = vsel %vm1931, %v5393, 0
    %v5420 = vsel %vm1931, %v5395, 0
    %v5423 = vsel %vm1931, %v5397, 0
    %v5426 = vsel %vm1931, %v5399, 0
    %v5429 = vsel %vm1931, %v5401, 0
    %v5432 = vsel %vm1931, %v5403, 0
    %v5435 = vsel %vm1931, %v5405, 0
    %v5438 = vsel %vm2279, %v5412, 0
    %5440 = vmatprep.subr.mxu0 0.0
    %5441 = vmatpush1.msra.mxu0 %v5406
    %5442 = vmatprep.subr.mxu0 0.0
    %5443 = vmatpush1.msra.mxu0 %v5407
    %5444 = vmatprep.subr.mxu0 0.0
    %5445 = vmatpush1.msra.mxu0 %v5408
    %5446 = vmatprep.subr.mxu0 0.0
    %5447 = vmatpush1.msra.mxu0 %v5409
    %5448 = vmatprep.subr.mxu0 0.0
    %5449 = vmatpush1.msra.mxu0 %v5410
    %5450 = vmatprep.subr.mxu0 0.0
    %5451 = vmatpush1.msra.mxu0 %v5411
    %5452 = vmatprep.subr.mxu0 0.0
    %5453 = vmatpush1.msra.mxu0 %v5438
    %5454 = vmatprep.subr.mxu0 0.0
    %5455 = vmatpush1.msra.mxu0 0.0
    %5456 = vmatprep.subr.mxu0 0.0
    %5457 = vmatpush1.msra.mxu0 0.0
    %5458 = vmatprep.subr.mxu0 0.0
    %5459 = vmatpush1.msra.mxu0 0.0
    %5460 = vmatprep.subr.mxu0 0.0
    %5461 = vmatpush1.msra.mxu0 0.0
    %5462 = vmatprep.subr.mxu0 0.0
    %5463 = vmatpush1.msra.mxu0 0.0
    %5464 = vmatprep.subr.mxu0 0.0
    %5465 = vmatpush1.msra.mxu0 0.0
    %5466 = vmatprep.subr.mxu0 0.0
    %5467 = vmatpush1.msra.mxu0 0.0
    %5468 = vmatprep.subr.mxu0 0.0
    %5469 = vmatpush1.msra.mxu0 0.0
    %5470 = vmatprep.subr.mxu0 0.0
    %5471 = vmatpush1.msra.mxu0 0.0
    %5472 = vmatprep.subr.mxu0 0.0
    %5473 = vmatpush1.msra.mxu0 0.0
    %5474 = vmatprep.subr.mxu0 0.0
    %5475 = vmatpush1.msra.mxu0 0.0
    %5476 = vmatprep.subr.mxu0 0.0
    %5477 = vmatpush1.msra.mxu0 0.0
    %5478 = vmatprep.subr.mxu0 0.0
    %5479 = vmatpush1.msra.mxu0 0.0
    %5480 = vmatprep.subr.mxu0 0.0
    %5481 = vmatpush1.msra.mxu0 0.0
    %5482 = vmatprep.subr.mxu0 0.0
    %5483 = vmatpush1.msra.mxu0 0.0
    %5484 = vmatprep.subr.mxu0 0.0
    %5485 = vmatpush1.msra.mxu0 0.0
    %5486 = vmatprep.subr.mxu0 0.0
    %5487 = vmatpush1.msra.mxu0 0.0
    %5488 = vmatprep.subr.mxu0 0.0
    %5489 = vmatpush1.msra.mxu0 0.0
    %5490 = vmatprep.subr.mxu0 0.0
    %5491 = vmatpush1.msra.mxu0 0.0
    %5492 = vmatprep.subr.mxu0 0.0
    %5493 = vmatpush1.msra.mxu0 0.0
    %5494 = vmatprep.subr.mxu0 0.0
    %5495 = vmatpush1.msra.mxu0 0.0
    %5496 = vmatprep.subr.mxu0 0.0
    %5497 = vmatpush1.msra.mxu0 0.0
    %5498 = vmatprep.subr.mxu0 0.0
    %5499 = vmatpush1.msra.mxu0 0.0
    %5500 = vmatprep.subr.mxu0 0.0
    %5501 = vmatpush1.msra.mxu0 0.0
    %5502 = vmatprep.subr.mxu0 0.0
    %5503 = vmatpush1.msra.mxu0 0.0
    %5504 = vmatprep.mubr.f32.mxu0 0.0
    %5505 = vmatmul.mubr.f32.gmra.mrb[0].mxu0 %v5414
    %v5506 = vpop.f32.mrb[0].mxu0
    %v5507 = vadd.f32 0.0, %v5506
    %v5508 = vpop.f32.mrb[0].mxu0
    %5509 = vmatprep.mubr.f32.mxu0 0.0
    %5510 = vmatmul.mubr.f32.gmra.mrb[0].mxu0 %v5417
    %v5511 = vpop.f32.mrb[0].mxu0
    %v5512 = vadd.f32 0.0, %v5511
    %v5513 = vpop.f32.mrb[0].mxu0
    %5514 = vmatprep.mubr.f32.mxu0 0.0
    %5515 = vmatmul.mubr.f32.gmra.mrb[0].mxu0 %v5420
    %v5516 = vpop.f32.mrb[0].mxu0
    %v5517 = vadd.f32 0.0, %v5516
    %v5518 = vpop.f32.mrb[0].mxu0
    %5519 = vmatprep.mubr.f32.mxu0 0.0
    %5520 = vmatmul.mubr.f32.gmra.mrb[0].mxu0 %v5423
    %v5521 = vpop.f32.mrb[0].mxu0
    %v5522 = vadd.f32 0.0, %v5521
    %v5523 = vpop.f32.mrb[0].mxu0
    %5524 = vmatprep.mubr.f32.mxu0 0.0
    %5525 = vmatmul.mubr.f32.gmra.mrb[0].mxu0 %v5426
    %v5526 = vpop.f32.mrb[0].mxu0
    %v5527 = vadd.f32 0.0, %v5526
    %v5528 = vpop.f32.mrb[0].mxu0
    %5529 = vmatprep.mubr.f32.mxu0 0.0
    %5530 = vmatmul.mubr.f32.gmra.mrb[0].mxu0 %v5429
    %v5531 = vpop.f32.mrb[0].mxu0
    %v5532 = vadd.f32 0.0, %v5531
    %v5533 = vpop.f32.mrb[0].mxu0
    %5534 = vmatprep.mubr.f32.mxu0 0.0
    %5535 = vmatmul.mubr.f32.gmra.mrb[0].mxu0 %v5432
    %v5536 = vpop.f32.mrb[0].mxu0
    %v5537 = vadd.f32 0.0, %v5536
    %v5538 = vpop.f32.mrb[0].mxu0
    %5539 = vmatprep.mubr.f32.mxu0 0.0
    %5540 = vmatmul.mubr.f32.gmra.mrb[0].mxu0 %v5435
    %v5541 = vpop.f32.mrb[0].mxu0
    %v5542 = vadd.f32 0.0, %v5541
    %v5543 = vpop.f32.mrb[0].mxu0
    %5544 = vdwg.mxu0
    %v5546 = vsel %vm1931, %v5163, 0
    %v5549 = vsel %vm1931, %v5165, 0
    %v5552 = vsel %vm1931, %v5167, 0
    %v5555 = vsel %vm1931, %v5169, 0
    %v5558 = vsel %vm1931, %v5171, 0
    %v5561 = vsel %vm1931, %v5173, 0
    %v5564 = vsel %vm1931, %v5175, 0
    %v5567 = vsel %vm1931, %v5177, 0
    %v5570 = vsel %vm2279, %v5184, 0
    %5572 = vmatprep.subr.mxu0 0.0
    %5573 = vmatpush1.msra.mxu0 %v5178
    %5574 = vmatprep.subr.mxu0 0.0
    %5575 = vmatpush1.msra.mxu0 %v5179
    %5576 = vmatprep.subr.mxu0 0.0
    %5577 = vmatpush1.msra.mxu0 %v5180
    %5578 = vmatprep.subr.mxu0 0.0
    %5579 = vmatpush1.msra.mxu0 %v5181
    %5580 = vmatprep.subr.mxu0 0.0
    %5581 = vmatpush1.msra.mxu0 %v5182
    %5582 = vmatprep.subr.mxu0 0.0
    %5583 = vmatpush1.msra.mxu0 %v5183
    %5584 = vmatprep.subr.mxu0 0.0
    %5585 = vmatpush1.msra.mxu0 %v5570
    %5586 = vmatprep.subr.mxu0 0.0
    %5587 = vmatpush1.msra.mxu0 0.0
    %5588 = vmatprep.subr.mxu0 0.0
    %5589 = vmatpush1.msra.mxu0 0.0
    %5590 = vmatprep.subr.mxu0 0.0
    %5591 = vmatpush1.msra.mxu0 0.0
    %5592 = vmatprep.subr.mxu0 0.0
    %5593 = vmatpush1.msra.mxu0 0.0
    %5594 = vmatprep.subr.mxu0 0.0
    %5595 = vmatpush1.msra.mxu0 0.0
    %5596 = vmatprep.subr.mxu0 0.0
    %5597 = vmatpush1.msra.mxu0 0.0
    %5598 = vmatprep.subr.mxu0 0.0
    %5599 = vmatpush1.msra.mxu0 0.0
    %5600 = vmatprep.subr.mxu0 0.0
    %5601 = vmatpush1.msra.mxu0 0.0
    %5602 = vmatprep.subr.mxu0 0.0
    %5603 = vmatpush1.msra.mxu0 0.0
    %5604 = vmatprep.subr.mxu0 0.0
    %5605 = vmatpush1.msra.mxu0 0.0
    %5606 = vmatprep.subr.mxu0 0.0
    %5607 = vmatpush1.msra.mxu0 0.0
    %5608 = vmatprep.subr.mxu0 0.0
    %5609 = vmatpush1.msra.mxu0 0.0
    %5610 = vmatprep.subr.mxu0 0.0
    %5611 = vmatpush1.msra.mxu0 0.0
    %5612 = vmatprep.subr.mxu0 0.0
    %5613 = vmatpush1.msra.mxu0 0.0
    %5614 = vmatprep.subr.mxu0 0.0
    %5615 = vmatpush1.msra.mxu0 0.0
    %5616 = vmatprep.subr.mxu0 0.0
    %5617 = vmatpush1.msra.mxu0 0.0
    %5618 = vmatprep.subr.mxu0 0.0
    %5619 = vmatpush1.msra.mxu0 0.0
    %5620 = vmatprep.subr.mxu0 0.0
    %5621 = vmatpush1.msra.mxu0 0.0
    %5622 = vmatprep.subr.mxu0 0.0
    %5623 = vmatpush1.msra.mxu0 0.0
    %5624 = vmatprep.subr.mxu0 0.0
    %5625 = vmatpush1.msra.mxu0 0.0
    %5626 = vmatprep.subr.mxu0 0.0
    %5627 = vmatpush1.msra.mxu0 0.0
    %5628 = vmatprep.subr.mxu0 0.0
    %5629 = vmatpush1.msra.mxu0 0.0
    %5630 = vmatprep.subr.mxu0 0.0
    %5631 = vmatpush1.msra.mxu0 0.0
    %5632 = vmatprep.subr.mxu0 0.0
    %5633 = vmatpush1.msra.mxu0 0.0
    %5634 = vmatprep.subr.mxu0 0.0
    %5635 = vmatpush1.msra.mxu0 0.0
    %5636 = vmatprep.mubr.f32.mxu0 0.0
    %5637 = vmatmul.mubr.f32.gmra.mrb[0].mxu0 %v5546
    %v5638 = vpop.f32.mrb[0].mxu0
    %v5639 = vadd.f32 %v5507, %v5638
    %v5640 = vpop.f32.mrb[0].mxu0
    %5641 = vmatprep.mubr.f32.mxu0 0.0
    %5642 = vmatmul.mubr.f32.gmra.mrb[0].mxu0 %v5549
    %v5643 = vpop.f32.mrb[0].mxu0
    %v5644 = vadd.f32 %v5512, %v5643
    %v5645 = vpop.f32.mrb[0].mxu0
    %5646 = vmatprep.mubr.f32.mxu0 0.0
    %5647 = vmatmul.mubr.f32.gmra.mrb[0].mxu0 %v5552
    %v5648 = vpop.f32.mrb[0].mxu0
    %v5649 = vadd.f32 %v5517, %v5648
    %v5650 = vpop.f32.mrb[0].mxu0
    %5651 = vmatprep.mubr.f32.mxu0 0.0
    %5652 = vmatmul.mubr.f32.gmra.mrb[0].mxu0 %v5555
    %v5653 = vpop.f32.mrb[0].mxu0
    %v5654 = vadd.f32 %v5522, %v5653
    %v5655 = vpop.f32.mrb[0].mxu0
    %5656 = vmatprep.mubr.f32.mxu0 0.0
    %5657 = vmatmul.mubr.f32.gmra.mrb[0].mxu0 %v5558
    %v5658 = vpop.f32.mrb[0].mxu0
    %v5659 = vadd.f32 %v5527, %v5658
    %v5660 = vpop.f32.mrb[0].mxu0
    %5661 = vmatprep.mubr.f32.mxu0 0.0
    %5662 = vmatmul.mubr.f32.gmra.mrb[0].mxu0 %v5561
    %v5663 = vpop.f32.mrb[0].mxu0
    %v5664 = vadd.f32 %v5532, %v5663
    %v5665 = vpop.f32.mrb[0].mxu0
    %5666 = vmatprep.mubr.f32.mxu0 0.0
    %5667 = vmatmul.mubr.f32.gmra.mrb[0].mxu0 %v5564
    %v5668 = vpop.f32.mrb[0].mxu0
    %v5669 = vadd.f32 %v5537, %v5668
    %v5670 = vpop.f32.mrb[0].mxu0
    %5671 = vmatprep.mubr.f32.mxu0 0.0
    %5672 = vmatmul.mubr.f32.gmra.mrb[0].mxu0 %v5567
    %v5673 = vpop.f32.mrb[0].mxu0
    %v5674 = vadd.f32 %v5542, %v5673
    %v5675 = vpop.f32.mrb[0].mxu0
    %5676 = vdwg.mxu0
    %5677 = vmatprep.subr.mxu0 0.0
    %5678 = vmatpush1.msra.mxu0 %v69
    %5679 = vmatprep.subr.mxu0 0.0
    %5680 = vmatpush1.msra.mxu0 %v70
    %5681 = vmatprep.subr.mxu0 0.0
    %5682 = vmatpush1.msra.mxu0 %v71
    %5683 = vmatprep.subr.mxu0 0.0
    %5684 = vmatpush1.msra.mxu0 %v72
    %5685 = vmatprep.subr.mxu0 0.0
    %5686 = vmatpush1.msra.mxu0 0.0
    %5687 = vmatprep.subr.mxu0 0.0
    %5688 = vmatpush1.msra.mxu0 0.0
    %5689 = vmatprep.subr.mxu0 0.0
    %5690 = vmatpush1.msra.mxu0 0.0
    %5691 = vmatprep.subr.mxu0 0.0
    %5692 = vmatpush1.msra.mxu0 0.0
    %5693 = vmatprep.subr.mxu0 0.0
    %5694 = vmatpush1.msra.mxu0 0.0
    %5695 = vmatprep.subr.mxu0 0.0
    %5696 = vmatpush1.msra.mxu0 0.0
    %5697 = vmatprep.subr.mxu0 0.0
    %5698 = vmatpush1.msra.mxu0 0.0
    %5699 = vmatprep.subr.mxu0 0.0
    %5700 = vmatpush1.msra.mxu0 0.0
    %5701 = vmatprep.subr.mxu0 0.0
    %5702 = vmatpush1.msra.mxu0 0.0
    %5703 = vmatprep.subr.mxu0 0.0
    %5704 = vmatpush1.msra.mxu0 0.0
    %5705 = vmatprep.subr.mxu0 0.0
    %5706 = vmatpush1.msra.mxu0 0.0
    %5707 = vmatprep.subr.mxu0 0.0
    %5708 = vmatpush1.msra.mxu0 0.0
    %5709 = vmatprep.subr.mxu0 0.0
    %5710 = vmatpush1.msra.mxu0 0.0
    %5711 = vmatprep.subr.mxu0 0.0
    %5712 = vmatpush1.msra.mxu0 0.0
    %5713 = vmatprep.subr.mxu0 0.0
    %5714 = vmatpush1.msra.mxu0 0.0
    %5715 = vmatprep.subr.mxu0 0.0
    %5716 = vmatpush1.msra.mxu0 0.0
    %5717 = vmatprep.subr.mxu0 0.0
    %5718 = vmatpush1.msra.mxu0 0.0
    %5719 = vmatprep.subr.mxu0 0.0
    %5720 = vmatpush1.msra.mxu0 0.0
    %5721 = vmatprep.subr.mxu0 0.0
    %5722 = vmatpush1.msra.mxu0 0.0
    %5723 = vmatprep.subr.mxu0 0.0
    %5724 = vmatpush1.msra.mxu0 0.0
    %5725 = vmatprep.subr.mxu0 0.0
    %5726 = vmatpush1.msra.mxu0 0.0
    %5727 = vmatprep.subr.mxu0 0.0
    %5728 = vmatpush1.msra.mxu0 0.0
    %5729 = vmatprep.subr.mxu0 0.0
    %5730 = vmatpush1.msra.mxu0 0.0
    %5731 = vmatprep.subr.mxu0 0.0
    %5732 = vmatpush1.msra.mxu0 0.0
    %5733 = vmatprep.subr.mxu0 0.0
    %5734 = vmatpush1.msra.mxu0 0.0
    %5735 = vmatprep.subr.mxu0 0.0
    %5736 = vmatpush1.msra.mxu0 0.0
    %5737 = vmatprep.subr.mxu0 0.0
    %5738 = vmatpush1.msra.mxu0 0.0
    %5739 = vmatprep.subr.mxu0 0.0
    %5740 = vmatpush1.msra.mxu0 0.0
    %5741 = vmatprep.mubr.f32.mxu0 0.0
    %5742 = vmatmul.mubr.f32.gmra.mrb[0].mxu0 %v3428
    %v5743 = vpop.f32.mrb[0].mxu0
    %v5744 = vadd.f32 0.0, %v5743
    %v5745 = vpop.f32.mrb[0].mxu0
    %5746 = vdwg.mxu0
    %5747 = vmatprep.subr.mxu0 0.0
    %5748 = vmatpush1.msra.mxu0 %v74
    %5749 = vmatprep.subr.mxu0 0.0
    %5750 = vmatpush1.msra.mxu0 %v75
    %5751 = vmatprep.subr.mxu0 0.0
    %5752 = vmatpush1.msra.mxu0 %v76
    %5753 = vmatprep.subr.mxu0 0.0
    %5754 = vmatpush1.msra.mxu0 %v77
    %5755 = vmatprep.subr.mxu0 0.0
    %5756 = vmatpush1.msra.mxu0 0.0
    %5757 = vmatprep.subr.mxu0 0.0
    %5758 = vmatpush1.msra.mxu0 0.0
    %5759 = vmatprep.subr.mxu0 0.0
    %5760 = vmatpush1.msra.mxu0 0.0
    %5761 = vmatprep.subr.mxu0 0.0
    %5762 = vmatpush1.msra.mxu0 0.0
    %5763 = vmatprep.subr.mxu0 0.0
    %5764 = vmatpush1.msra.mxu0 0.0
    %5765 = vmatprep.subr.mxu0 0.0
    %5766 = vmatpush1.msra.mxu0 0.0
    %5767 = vmatprep.subr.mxu0 0.0
    %5768 = vmatpush1.msra.mxu0 0.0
    %5769 = vmatprep.subr.mxu0 0.0
    %5770 = vmatpush1.msra.mxu0 0.0
    %5771 = vmatprep.subr.mxu0 0.0
    %5772 = vmatpush1.msra.mxu0 0.0
    %5773 = vmatprep.subr.mxu0 0.0
    %5774 = vmatpush1.msra.mxu0 0.0
    %5775 = vmatprep.subr.mxu0 0.0
    %5776 = vmatpush1.msra.mxu0 0.0
    %5777 = vmatprep.subr.mxu0 0.0
    %5778 = vmatpush1.msra.mxu0 0.0
    %5779 = vmatprep.subr.mxu0 0.0
    %5780 = vmatpush1.msra.mxu0 0.0
    %5781 = vmatprep.subr.mxu0 0.0
    %5782 = vmatpush1.msra.mxu0 0.0
    %5783 = vmatprep.subr.mxu0 0.0
    %5784 = vmatpush1.msra.mxu0 0.0
    %5785 = vmatprep.subr.mxu0 0.0
    %5786 = vmatpush1.msra.mxu0 0.0
    %5787 = vmatprep.subr.mxu0 0.0
    %5788 = vmatpush1.msra.mxu0 0.0
    %5789 = vmatprep.subr.mxu0 0.0
    %5790 = vmatpush1.msra.mxu0 0.0
    %5791 = vmatprep.subr.mxu0 0.0
    %5792 = vmatpush1.msra.mxu0 0.0
    %5793 = vmatprep.subr.mxu0 0.0
    %5794 = vmatpush1.msra.mxu0 0.0
    %5795 = vmatprep.subr.mxu0 0.0
    %5796 = vmatpush1.msra.mxu0 0.0
    %5797 = vmatprep.subr.mxu0 0.0
    %5798 = vmatpush1.msra.mxu0 0.0
    %5799 = vmatprep.subr.mxu0 0.0
    %5800 = vmatpush1.msra.mxu0 0.0
    %5801 = vmatprep.subr.mxu0 0.0
    %5802 = vmatpush1.msra.mxu0 0.0
    %5803 = vmatprep.subr.mxu0 0.0
    %5804 = vmatpush1.msra.mxu0 0.0
    %5805 = vmatprep.subr.mxu0 0.0
    %5806 = vmatpush1.msra.mxu0 0.0
    %5807 = vmatprep.subr.mxu0 0.0
    %5808 = vmatpush1.msra.mxu0 0.0
    %5809 = vmatprep.subr.mxu0 0.0
    %5810 = vmatpush1.msra.mxu0 0.0
    %5811 = vmatprep.mubr.f32.mxu0 0.0
    %5812 = vmatmul.mubr.f32.gmra.mrb[0].mxu0 %v3674
    %v5813 = vpop.f32.mrb[0].mxu0
    %v5814 = vadd.f32 0.0, %v5813
    %v5815 = vpop.f32.mrb[0].mxu0
    %5816 = vmatprep.mubr.f32.mxu0 0.0
    %5817 = vmatmul.mubr.f32.gmra.mrb[0].mxu0 %v3677
    %v5818 = vpop.f32.mrb[0].mxu0
    %v5819 = vadd.f32 0.0, %v5818
    %v5820 = vpop.f32.mrb[0].mxu0
    %5821 = vmatprep.mubr.f32.mxu0 0.0
    %5822 = vmatmul.mubr.f32.gmra.mrb[0].mxu0 %v3680
    %v5823 = vpop.f32.mrb[0].mxu0
    %v5824 = vadd.f32 0.0, %v5823
    %v5825 = vpop.f32.mrb[0].mxu0
    %5826 = vmatprep.mubr.f32.mxu0 0.0
    %5827 = vmatmul.mubr.f32.gmra.mrb[0].mxu0 %v3683
    %v5828 = vpop.f32.mrb[0].mxu0
    %v5829 = vadd.f32 0.0, %v5828
    %v5830 = vpop.f32.mrb[0].mxu0
    %5831 = vmatprep.mubr.f32.mxu0 0.0
    %5832 = vmatmul.mubr.f32.gmra.mrb[0].mxu0 %v3686
    %v5833 = vpop.f32.mrb[0].mxu0
    %v5834 = vadd.f32 0.0, %v5833
    %v5835 = vpop.f32.mrb[0].mxu0
    %5836 = vmatprep.mubr.f32.mxu0 0.0
    %5837 = vmatmul.mubr.f32.gmra.mrb[0].mxu0 %v3689
    %v5838 = vpop.f32.mrb[0].mxu0
    %v5839 = vadd.f32 0.0, %v5838
    %v5840 = vpop.f32.mrb[0].mxu0
    %5841 = vmatprep.mubr.f32.mxu0 0.0
    %5842 = vmatmul.mubr.f32.gmra.mrb[0].mxu0 %v3692
    %v5843 = vpop.f32.mrb[0].mxu0
    %v5844 = vadd.f32 0.0, %v5843
    %v5845 = vpop.f32.mrb[0].mxu0
    %5846 = vmatprep.mubr.f32.mxu0 0.0
    %5847 = vmatmul.mubr.f32.gmra.mrb[0].mxu0 %v3695
    %v5848 = vpop.f32.mrb[0].mxu0
    %v5849 = vadd.f32 0.0, %v5848
    %v5850 = vpop.f32.mrb[0].mxu0
    %5851 = vdwg.mxu0
    %v5852 = vlaneseq
    %v5853 = vshrl.u32 %v5852, 7
    %v5854 = vsub.s32 0, %v5853
    %v5855 = vrot.slane %v5744, %v5854
    %v5856 = vadd.f32 %v5855, %v5814
    %v5857 = vadd.f32 %v5855, %v5819
    %v5858 = vadd.f32 %v5855, %v5824
    %v5859 = vadd.f32 %v5855, %v5829
    %v5860 = vadd.f32 %v5855, %v5834
    %v5861 = vadd.f32 %v5855, %v5839
    %v5862 = vadd.f32 %v5855, %v5844
    %v5863 = vadd.f32 %v5855, %v5849
    %v5865 = vsel %vm776, %v4647, 0
    %v5868 = vsel %vm776, %v4652, 0
    %v5871 = vsel %vm776, %v4657, 0
    %v5874 = vsel %vm776, %v4662, 0
    %v5877 = vsel %vm776, %v4667, 0
    %v5880 = vsel %vm776, %v4672, 0
    %v5883 = vsel %vm776, %v4677, 0
    %v5886 = vsel %vm776, %v4682, 0
    %5888 = vmatprep.subr.mxu0 0.0
    %5889 = vmatpush1.msra.mxu0 %v78
    %5890 = vmatprep.subr.mxu0 0.0
    %5891 = vmatpush1.msra.mxu0 %v79
    %5892 = vmatprep.subr.mxu0 0.0
    %5893 = vmatpush1.msra.mxu0 %v80
    %5894 = vmatprep.subr.mxu0 0.0
    %5895 = vmatpush1.msra.mxu0 %v81
    %5896 = vmatprep.subr.mxu0 0.0
    %5897 = vmatpush1.msra.mxu0 %v82
    %5898 = vmatprep.subr.mxu0 0.0
    %5899 = vmatpush1.msra.mxu0 %v83
    %5900 = vmatprep.subr.mxu0 0.0
    %5901 = vmatpush1.msra.mxu0 %v84
    %5902 = vmatprep.subr.mxu0 0.0
    %5903 = vmatpush1.msra.mxu0 %v85
    %5904 = vmatprep.subr.mxu0 0.0
    %5905 = vmatpush1.msra.mxu0 0.0
    %5906 = vmatprep.subr.mxu0 0.0
    %5907 = vmatpush1.msra.mxu0 0.0
    %5908 = vmatprep.subr.mxu0 0.0
    %5909 = vmatpush1.msra.mxu0 0.0
    %5910 = vmatprep.subr.mxu0 0.0
    %5911 = vmatpush1.msra.mxu0 0.0
    %5912 = vmatprep.subr.mxu0 0.0
    %5913 = vmatpush1.msra.mxu0 0.0
    %5914 = vmatprep.subr.mxu0 0.0
    %5915 = vmatpush1.msra.mxu0 0.0
    %5916 = vmatprep.subr.mxu0 0.0
    %5917 = vmatpush1.msra.mxu0 0.0
    %5918 = vmatprep.subr.mxu0 0.0
    %5919 = vmatpush1.msra.mxu0 0.0
    %5920 = vmatprep.subr.mxu0 0.0
    %5921 = vmatpush1.msra.mxu0 0.0
    %5922 = vmatprep.subr.mxu0 0.0
    %5923 = vmatpush1.msra.mxu0 0.0
    %5924 = vmatprep.subr.mxu0 0.0
    %5925 = vmatpush1.msra.mxu0 0.0
    %5926 = vmatprep.subr.mxu0 0.0
    %5927 = vmatpush1.msra.mxu0 0.0
    %5928 = vmatprep.subr.mxu0 0.0
    %5929 = vmatpush1.msra.mxu0 0.0
    %5930 = vmatprep.subr.mxu0 0.0
    %5931 = vmatpush1.msra.mxu0 0.0
    %5932 = vmatprep.subr.mxu0 0.0
    %5933 = vmatpush1.msra.mxu0 0.0
    %5934 = vmatprep.subr.mxu0 0.0
    %5935 = vmatpush1.msra.mxu0 0.0
    %5936 = vmatprep.subr.mxu0 0.0
    %5937 = vmatpush1.msra.mxu0 0.0
    %5938 = vmatprep.subr.mxu0 0.0
    %5939 = vmatpush1.msra.mxu0 0.0
    %5940 = vmatprep.subr.mxu0 0.0
    %5941 = vmatpush1.msra.mxu0 0.0
    %5942 = vmatprep.subr.mxu0 0.0
    %5943 = vmatpush1.msra.mxu0 0.0
    %5944 = vmatprep.subr.mxu0 0.0
    %5945 = vmatpush1.msra.mxu0 0.0
    %5946 = vmatprep.subr.mxu0 0.0
    %5947 = vmatpush1.msra.mxu0 0.0
    %5948 = vmatprep.subr.mxu0 0.0
    %5949 = vmatpush1.msra.mxu0 0.0
    %5950 = vmatprep.subr.mxu0 0.0
    %5951 = vmatpush1.msra.mxu0 0.0
    %5952 = vmatprep.mubr.f32.mxu0 0.0
    %5953 = vmatmul.mubr.f32.gmra.mrb[0].mxu0 %v5865
    %v5954 = vpop.f32.mrb[0].mxu0
    %v5955 = vadd.f32 0.0, %v5954
    %v5956 = vpop.f32.mrb[0].mxu0
    %5957 = vmatprep.mubr.f32.mxu0 0.0
    %5958 = vmatmul.mubr.f32.gmra.mrb[0].mxu0 %v5868
    %v5959 = vpop.f32.mrb[0].mxu0
    %v5960 = vadd.f32 0.0, %v5959
    %v5961 = vpop.f32.mrb[0].mxu0
    %5962 = vmatprep.mubr.f32.mxu0 0.0
    %5963 = vmatmul.mubr.f32.gmra.mrb[0].mxu0 %v5871
    %v5964 = vpop.f32.mrb[0].mxu0
    %v5965 = vadd.f32 0.0, %v5964
    %v5966 = vpop.f32.mrb[0].mxu0
    %5967 = vmatprep.mubr.f32.mxu0 0.0
    %5968 = vmatmul.mubr.f32.gmra.mrb[0].mxu0 %v5874
    %v5969 = vpop.f32.mrb[0].mxu0
    %v5970 = vadd.f32 0.0, %v5969
    %v5971 = vpop.f32.mrb[0].mxu0
    %5972 = vmatprep.mubr.f32.mxu0 0.0
    %5973 = vmatmul.mubr.f32.gmra.mrb[0].mxu0 %v5877
    %v5974 = vpop.f32.mrb[0].mxu0
    %v5975 = vadd.f32 0.0, %v5974
    %v5976 = vpop.f32.mrb[0].mxu0
    %5977 = vmatprep.mubr.f32.mxu0 0.0
    %5978 = vmatmul.mubr.f32.gmra.mrb[0].mxu0 %v5880
    %v5979 = vpop.f32.mrb[0].mxu0
    %v5980 = vadd.f32 0.0, %v5979
    %v5981 = vpop.f32.mrb[0].mxu0
    %5982 = vmatprep.mubr.f32.mxu0 0.0
    %5983 = vmatmul.mubr.f32.gmra.mrb[0].mxu0 %v5883
    %v5984 = vpop.f32.mrb[0].mxu0
    %v5985 = vadd.f32 0.0, %v5984
    %v5986 = vpop.f32.mrb[0].mxu0
    %5987 = vmatprep.mubr.f32.mxu0 0.0
    %5988 = vmatmul.mubr.f32.gmra.mrb[0].mxu0 %v5886
    %v5989 = vpop.f32.mrb[0].mxu0
    %v5990 = vadd.f32 0.0, %v5989
    %v5991 = vpop.f32.mrb[0].mxu0
    %5992 = vdwg.mxu0
    %v5993 = vadd.f32 %v5856, %v5955
    %v5994 = vadd.f32 %v5857, %v5960
    %v5995 = vadd.f32 %v5858, %v5965
    %v5996 = vadd.f32 %v5859, %v5970
    %v5997 = vadd.f32 %v5860, %v5975
    %v5998 = vadd.f32 %v5861, %v5980
    %v5999 = vadd.f32 %v5862, %v5985
    %v6000 = vadd.f32 %v5863, %v5990
    %v6002 = vsel %vm776, %v5639, 0
    %v6005 = vsel %vm776, %v5644, 0
    %v6008 = vsel %vm776, %v5649, 0
    %v6011 = vsel %vm776, %v5654, 0
    %v6014 = vsel %vm776, %v5659, 0
    %v6017 = vsel %vm776, %v5664, 0
    %v6020 = vsel %vm776, %v5669, 0
    %v6023 = vsel %vm776, %v5674, 0
    %6025 = vmatprep.subr.mxu0 0.0
    %6026 = vmatpush1.msra.mxu0 %v87
    %6027 = vmatprep.subr.mxu0 0.0
    %6028 = vmatpush1.msra.mxu0 %v88
    %6029 = vmatprep.subr.mxu0 0.0
    %6030 = vmatpush1.msra.mxu0 %v89
    %6031 = vmatprep.subr.mxu0 0.0
    %6032 = vmatpush1.msra.mxu0 %v90
    %6033 = vmatprep.subr.mxu0 0.0
    %6034 = vmatpush1.msra.mxu0 %v91
    %6035 = vmatprep.subr.mxu0 0.0
    %6036 = vmatpush1.msra.mxu0 %v92
    %6037 = vmatprep.subr.mxu0 0.0
    %6038 = vmatpush1.msra.mxu0 %v93
    %6039 = vmatprep.subr.mxu0 0.0
    %6040 = vmatpush1.msra.mxu0 %v94
    %6041 = vmatprep.subr.mxu0 0.0
    %6042 = vmatpush1.msra.mxu0 0.0
    %6043 = vmatprep.subr.mxu0 0.0
    %6044 = vmatpush1.msra.mxu0 0.0
    %6045 = vmatprep.subr.mxu0 0.0
    %6046 = vmatpush1.msra.mxu0 0.0
    %6047 = vmatprep.subr.mxu0 0.0
    %6048 = vmatpush1.msra.mxu0 0.0
    %6049 = vmatprep.subr.mxu0 0.0
    %6050 = vmatpush1.msra.mxu0 0.0
    %6051 = vmatprep.subr.mxu0 0.0
    %6052 = vmatpush1.msra.mxu0 0.0
    %6053 = vmatprep.subr.mxu0 0.0
    %6054 = vmatpush1.msra.mxu0 0.0
    %6055 = vmatprep.subr.mxu0 0.0
    %6056 = vmatpush1.msra.mxu0 0.0
    %6057 = vmatprep.subr.mxu0 0.0
    %6058 = vmatpush1.msra.mxu0 0.0
    %6059 = vmatprep.subr.mxu0 0.0
    %6060 = vmatpush1.msra.mxu0 0.0
    %6061 = vmatprep.subr.mxu0 0.0
    %6062 = vmatpush1.msra.mxu0 0.0
    %6063 = vmatprep.subr.mxu0 0.0
    %6064 = vmatpush1.msra.mxu0 0.0
    %6065 = vmatprep.subr.mxu0 0.0
    %6066 = vmatpush1.msra.mxu0 0.0
    %6067 = vmatprep.subr.mxu0 0.0
    %6068 = vmatpush1.msra.mxu0 0.0
    %6069 = vmatprep.subr.mxu0 0.0
    %6070 = vmatpush1.msra.mxu0 0.0
    %6071 = vmatprep.subr.mxu0 0.0
    %6072 = vmatpush1.msra.mxu0 0.0
    %6073 = vmatprep.subr.mxu0 0.0
    %6074 = vmatpush1.msra.mxu0 0.0
    %6075 = vmatprep.subr.mxu0 0.0
    %6076 = vmatpush1.msra.mxu0 0.0
    %6077 = vmatprep.subr.mxu0 0.0
    %6078 = vmatpush1.msra.mxu0 0.0
    %6079 = vmatprep.subr.mxu0 0.0
    %6080 = vmatpush1.msra.mxu0 0.0
    %6081 = vmatprep.subr.mxu0 0.0
    %6082 = vmatpush1.msra.mxu0 0.0
    %6083 = vmatprep.subr.mxu0 0.0
    %6084 = vmatpush1.msra.mxu0 0.0
    %6085 = vmatprep.subr.mxu0 0.0
    %6086 = vmatpush1.msra.mxu0 0.0
    %6087 = vmatprep.subr.mxu0 0.0
    %6088 = vmatpush1.msra.mxu0 0.0
    %6089 = vmatprep.mubr.f32.mxu0 0.0
    %6090 = vmatmul.mubr.f32.gmra.mrb[0].mxu0 %v6002
    %v6091 = vpop.f32.mrb[0].mxu0
    %v6092 = vadd.f32 0.0, %v6091
    %v6093 = vpop.f32.mrb[0].mxu0
    %6094 = vmatprep.mubr.f32.mxu0 0.0
    %6095 = vmatmul.mubr.f32.gmra.mrb[0].mxu0 %v6005
    %v6096 = vpop.f32.mrb[0].mxu0
    %v6097 = vadd.f32 0.0, %v6096
    %v6098 = vpop.f32.mrb[0].mxu0
    %6099 = vmatprep.mubr.f32.mxu0 0.0
    %6100 = vmatmul.mubr.f32.gmra.mrb[0].mxu0 %v6008
    %v6101 = vpop.f32.mrb[0].mxu0
    %v6102 = vadd.f32 0.0, %v6101
    %v6103 = vpop.f32.mrb[0].mxu0
    %6104 = vmatprep.mubr.f32.mxu0 0.0
    %6105 = vmatmul.mubr.f32.gmra.mrb[0].mxu0 %v6011
    %v6106 = vpop.f32.mrb[0].mxu0
    %v6107 = vadd.f32 0.0, %v6106
    %v6108 = vpop.f32.mrb[0].mxu0
    %6109 = vmatprep.mubr.f32.mxu0 0.0
    %6110 = vmatmul.mubr.f32.gmra.mrb[0].mxu0 %v6014
    %v6111 = vpop.f32.mrb[0].mxu0
    %v6112 = vadd.f32 0.0, %v6111
    %v6113 = vpop.f32.mrb[0].mxu0
    %6114 = vmatprep.mubr.f32.mxu0 0.0
    %6115 = vmatmul.mubr.f32.gmra.mrb[0].mxu0 %v6017
    %v6116 = vpop.f32.mrb[0].mxu0
    %v6117 = vadd.f32 0.0, %v6116
    %v6118 = vpop.f32.mrb[0].mxu0
    %6119 = vmatprep.mubr.f32.mxu0 0.0
    %6120 = vmatmul.mubr.f32.gmra.mrb[0].mxu0 %v6020
    %v6121 = vpop.f32.mrb[0].mxu0
    %v6122 = vadd.f32 0.0, %v6121
    %v6123 = vpop.f32.mrb[0].mxu0
    %6124 = vmatprep.mubr.f32.mxu0 0.0
    %6125 = vmatmul.mubr.f32.gmra.mrb[0].mxu0 %v6023
    %v6126 = vpop.f32.mrb[0].mxu0
    %v6127 = vadd.f32 0.0, %v6126
    %v6128 = vpop.f32.mrb[0].mxu0
    %6129 = vdwg.mxu0
    %v6130 = vadd.f32 %v5993, %v6092
    %v6131 = vadd.f32 %v5994, %v6097
    %v6132 = vadd.f32 %v5995, %v6102
    %v6133 = vadd.f32 %v5996, %v6107
    %v6134 = vadd.f32 %v5997, %v6112
    %v6135 = vadd.f32 %v5998, %v6117
    %v6136 = vadd.f32 %v5999, %v6122
    %v6137 = vadd.f32 %v6000, %v6127
    %v6138 = vadd.f32 %v6130, %v2984
    %v6139 = vadd.f32 %v6131, %v2984
    %v6140 = vadd.f32 %v6132, %v2984
    %v6141 = vadd.f32 %v6133, %v2984
    %v6142 = vadd.f32 %v6134, %v2984
    %v6143 = vadd.f32 %v6135, %v2984
    %v6144 = vadd.f32 %v6136, %v2984
    %v6145 = vadd.f32 %v6137, %v2984
    %v6146 = vsel %vm238, %v6138, 0.0
    %6147 = vadd.xlane.f32.xlu0 %v6146
    %v6148 = vpop.xlane.xlu0 %6147
    %v6149 = vsel %vm238, %v6139, 0.0
    %6150 = vadd.xlane.f32.xlu0 %v6149
    %v6151 = vpop.xlane.xlu0 %6150
    %v6152 = vsel %vm238, %v6140, 0.0
    %6153 = vadd.xlane.f32.xlu0 %v6152
    %v6154 = vpop.xlane.xlu0 %6153
    %v6155 = vsel %vm238, %v6141, 0.0
    %6156 = vadd.xlane.f32.xlu0 %v6155
    %v6157 = vpop.xlane.xlu0 %6156
    %v6158 = vsel %vm238, %v6142, 0.0
    %6159 = vadd.xlane.f32.xlu0 %v6158
    %v6160 = vpop.xlane.xlu0 %6159
    %v6161 = vsel %vm238, %v6143, 0.0
    %6162 = vadd.xlane.f32.xlu0 %v6161
    %v6163 = vpop.xlane.xlu0 %6162
    %v6164 = vsel %vm238, %v6144, 0.0
    %6165 = vadd.xlane.f32.xlu0 %v6164
    %v6166 = vpop.xlane.xlu0 %6165
    %v6167 = vsel %vm238, %v6145, 0.0
    %6168 = vadd.xlane.f32.xlu0 %v6167
    %v6169 = vpop.xlane.xlu0 %6168
    %v6170 = vmul.f32 %v6148, %v360
    %v6171 = vmul.f32 %v6151, %v360
    %v6172 = vmul.f32 %v6154, %v360
    %v6173 = vmul.f32 %v6157, %v360
    %v6174 = vmul.f32 %v6160, %v360
    %v6175 = vmul.f32 %v6163, %v360
    %v6176 = vmul.f32 %v6166, %v360
    %v6177 = vmul.f32 %v6169, %v360
    %v6178 = vsub.f32 %v6138, %v6170
    %v6179 = vsub.f32 %v6139, %v6171
    %v6180 = vsub.f32 %v6140, %v6172
    %v6181 = vsub.f32 %v6141, %v6173
    %v6182 = vsub.f32 %v6142, %v6174
    %v6183 = vsub.f32 %v6143, %v6175
    %v6184 = vsub.f32 %v6144, %v6176
    %v6185 = vsub.f32 %v6145, %v6177
    %v6186 = vmul.f32 %v6178, %v6178
    %v6187 = vmul.f32 %v6179, %v6179
    %v6188 = vmul.f32 %v6180, %v6180
    %v6189 = vmul.f32 %v6181, %v6181
    %v6190 = vmul.f32 %v6182, %v6182
    %v6191 = vmul.f32 %v6183, %v6183
    %v6192 = vmul.f32 %v6184, %v6184
    %v6193 = vmul.f32 %v6185, %v6185
    %v6194 = vsel %vm238, %v6186, 0.0
    %6195 = vadd.xlane.f32.xlu0 %v6194
    %v6196 = vpop.xlane.xlu0 %6195
    %v6197 = vsel %vm238, %v6187, 0.0
    %6198 = vadd.xlane.f32.xlu0 %v6197
    %v6199 = vpop.xlane.xlu0 %6198
    %v6200 = vsel %vm238, %v6188, 0.0
    %6201 = vadd.xlane.f32.xlu0 %v6200
    %v6202 = vpop.xlane.xlu0 %6201
    %v6203 = vsel %vm238, %v6189, 0.0
    %6204 = vadd.xlane.f32.xlu0 %v6203
    %v6205 = vpop.xlane.xlu0 %6204
    %v6206 = vsel %vm238, %v6190, 0.0
    %6207 = vadd.xlane.f32.xlu0 %v6206
    %v6208 = vpop.xlane.xlu0 %6207
    %v6209 = vsel %vm238, %v6191, 0.0
    %6210 = vadd.xlane.f32.xlu0 %v6209
    %v6211 = vpop.xlane.xlu0 %6210
    %v6212 = vsel %vm238, %v6192, 0.0
    %6213 = vadd.xlane.f32.xlu0 %v6212
    %v6214 = vpop.xlane.xlu0 %6213
    %v6215 = vsel %vm238, %v6193, 0.0
    %6216 = vadd.xlane.f32.xlu0 %v6215
    %v6217 = vpop.xlane.xlu0 %6216
    %v6218 = vmul.f32 %v6196, %v360
    %v6219 = vmul.f32 %v6199, %v360
    %v6220 = vmul.f32 %v6202, %v360
    %v6221 = vmul.f32 %v6205, %v360
    %v6222 = vmul.f32 %v6208, %v360
    %v6223 = vmul.f32 %v6211, %v360
    %v6224 = vmul.f32 %v6214, %v360
    %v6225 = vmul.f32 %v6217, %v360
    %v6226 = vadd.f32 %v6218, 1e-05
    %v6227 = vadd.f32 %v6219, 1e-05
    %v6228 = vadd.f32 %v6220, 1e-05
    %v6229 = vadd.f32 %v6221, 1e-05
    %v6230 = vadd.f32 %v6222, 1e-05
    %v6231 = vadd.f32 %v6223, 1e-05
    %v6232 = vadd.f32 %v6224, 1e-05
    %v6233 = vadd.f32 %v6225, 1e-05
    %v6234 = vrsqrt.pop %v6226
    %v6235 = vrsqrt.pop %v6227
    %v6236 = vrsqrt.pop %v6228
    %v6237 = vrsqrt.pop %v6229
    %v6238 = vrsqrt.pop %v6230
    %v6239 = vrsqrt.pop %v6231
    %v6240 = vrsqrt.pop %v6232
    %v6241 = vrsqrt.pop %v6233
    %v6242 = vmul.f32 %v6178, %v6234
    %v6243 = vmul.f32 %v6179, %v6235
    %v6244 = vmul.f32 %v6180, %v6236
    %v6245 = vmul.f32 %v6181, %v6237
    %v6246 = vmul.f32 %v6182, %v6238
    %v6247 = vmul.f32 %v6183, %v6239
    %v6248 = vmul.f32 %v6184, %v6240
    %v6249 = vmul.f32 %v6185, %v6241
    %v6250 = vmul.f32 %v6242, %v3100
    %v6251 = vmul.f32 %v6243, %v3100
    %v6252 = vmul.f32 %v6244, %v3100
    %v6253 = vmul.f32 %v6245, %v3100
    %v6254 = vmul.f32 %v6246, %v3100
    %v6255 = vmul.f32 %v6247, %v3100
    %v6256 = vmul.f32 %v6248, %v3100
    %v6257 = vmul.f32 %v6249, %v3100
    %v6258 = vadd.f32 %v6250, %v3112
    %v6259 = vadd.f32 %v6251, %v3112
    %v6260 = vadd.f32 %v6252, %v3112
    %v6261 = vadd.f32 %v6253, %v3112
    %v6262 = vadd.f32 %v6254, %v3112
    %v6263 = vadd.f32 %v6255, %v3112
    %v6264 = vadd.f32 %v6256, %v3112
    %v6265 = vadd.f32 %v6257, %v3112
    %v6266 = vmax.f32 %v6258, 0.0
    %v6267 = vmax.f32 %v6259, 0.0
    %v6268 = vmax.f32 %v6260, 0.0
    %v6269 = vmax.f32 %v6261, 0.0
    %v6270 = vmax.f32 %v6262, 0.0
    %v6271 = vmax.f32 %v6263, 0.0
    %v6272 = vmax.f32 %v6264, 0.0
    %v6273 = vmax.f32 %v6265, 0.0
    %v6274 = vmul.f32 %v3640, %v3132
    %v6275 = vmul.f32 %v3641, %v3132
    %v6276 = vmul.f32 %v3642, %v3132
    %v6277 = vmul.f32 %v3643, %v3132
    %v6278 = vmul.f32 %v3644, %v3132
    %v6279 = vmul.f32 %v3645, %v3132
    %v6280 = vmul.f32 %v3646, %v3132
    %v6281 = vmul.f32 %v3647, %v3132
    %v6282 = vmul.f32 %v6266, %v3144
    %v6283 = vmul.f32 %v6267, %v3144
    %v6284 = vmul.f32 %v6268, %v3144
    %v6285 = vmul.f32 %v6269, %v3144
    %v6286 = vmul.f32 %v6270, %v3144
    %v6287 = vmul.f32 %v6271, %v3144
    %v6288 = vmul.f32 %v6272, %v3144
    %v6289 = vmul.f32 %v6273, %v3144
    %v6290 = vadd.f32 %v6274, %v6282
    %v6291 = vadd.f32 %v6275, %v6283
    %v6292 = vadd.f32 %v6276, %v6284
    %v6293 = vadd.f32 %v6277, %v6285
    %v6294 = vadd.f32 %v6278, %v6286
    %v6295 = vadd.f32 %v6279, %v6287
    %v6296 = vadd.f32 %v6280, %v6288
    %v6297 = vadd.f32 %v6281, %v6289
    %v6298 = vmul.f32 %v4647, %v3164
    %v6299 = vmul.f32 %v4652, %v3164
    %v6300 = vmul.f32 %v4657, %v3164
    %v6301 = vmul.f32 %v4662, %v3164
    %v6302 = vmul.f32 %v4667, %v3164
    %v6303 = vmul.f32 %v4672, %v3164
    %v6304 = vmul.f32 %v4677, %v3164
    %v6305 = vmul.f32 %v4682, %v3164
    %v6306 = vmul.f32 %v5639, %v3176
    %v6307 = vmul.f32 %v5644, %v3176
    %v6308 = vmul.f32 %v5649, %v3176
    %v6309 = vmul.f32 %v5654, %v3176
    %v6310 = vmul.f32 %v5659, %v3176
    %v6311 = vmul.f32 %v5664, %v3176
    %v6312 = vmul.f32 %v5669, %v3176
    %v6313 = vmul.f32 %v5674, %v3176
    %v6314 = vadd.f32 %v6298, %v6306
    %v6315 = vadd.f32 %v6299, %v6307
    %v6316 = vadd.f32 %v6300, %v6308
    %v6317 = vadd.f32 %v6301, %v6309
    %v6318 = vadd.f32 %v6302, %v6310
    %v6319 = vadd.f32 %v6303, %v6311
    %v6320 = vadd.f32 %v6304, %v6312
    %v6321 = vadd.f32 %v6305, %v6313
    %v6323 = vsel %vm776, %v6314, 0
    %v6326 = vsel %vm776, %v6315, 0
    %v6329 = vsel %vm776, %v6316, 0
    %v6332 = vsel %vm776, %v6317, 0
    %v6335 = vsel %vm776, %v6318, 0
    %v6338 = vsel %vm776, %v6319, 0
    %v6341 = vsel %vm776, %v6320, 0
    %v6344 = vsel %vm776, %v6321, 0
    %6346 = vmatprep.subr.mxu0 0.0
    %6347 = vmatpush1.xpose.msra.mxu0 %v6323
    %6348 = vmatprep.subr.mxu0 0.0
    %6349 = vmatpush1.xpose.msra.mxu0 %v6326
    %6350 = vmatprep.subr.mxu0 0.0
    %6351 = vmatpush1.xpose.msra.mxu0 %v6329
    %6352 = vmatprep.subr.mxu0 0.0
    %6353 = vmatpush1.xpose.msra.mxu0 %v6332
    %6354 = vmatprep.subr.mxu0 0.0
    %6355 = vmatpush1.xpose.msra.mxu0 %v6335
    %6356 = vmatprep.subr.mxu0 0.0
    %6357 = vmatpush1.xpose.msra.mxu0 %v6338
    %6358 = vmatprep.subr.mxu0 0.0
    %6359 = vmatpush1.xpose.msra.mxu0 %v6341
    %6360 = vmatprep.subr.mxu0 0.0
    %6361 = vmatpush1.xpose.msra.mxu0 %v6344
    %6362 = vmatprep.subr.mxu0 0.0
    %6363 = vmatpush1.xpose.msra.mxu0 0.0
    %6364 = vmatprep.subr.mxu0 0.0
    %6365 = vmatpush1.xpose.msra.mxu0 0.0
    %6366 = vmatprep.subr.mxu0 0.0
    %6367 = vmatpush1.xpose.msra.mxu0 0.0
    %6368 = vmatprep.subr.mxu0 0.0
    %6369 = vmatpush1.xpose.msra.mxu0 0.0
    %6370 = vmatprep.subr.mxu0 0.0
    %6371 = vmatpush1.xpose.msra.mxu0 0.0
    %6372 = vmatprep.subr.mxu0 0.0
    %6373 = vmatpush1.xpose.msra.mxu0 0.0
    %6374 = vmatprep.subr.mxu0 0.0
    %6375 = vmatpush1.xpose.msra.mxu0 0.0
    %6376 = vmatprep.subr.mxu0 0.0
    %6377 = vmatpush1.xpose.msra.mxu0 0.0
    %6378 = vmatprep.subr.mxu0 0.0
    %6379 = vmatpush1.xpose.msra.mxu0 0.0
    %6380 = vmatprep.subr.mxu0 0.0
    %6381 = vmatpush1.xpose.msra.mxu0 0.0
    %6382 = vmatprep.subr.mxu0 0.0
    %6383 = vmatpush1.xpose.msra.mxu0 0.0
    %6384 = vmatprep.subr.mxu0 0.0
    %6385 = vmatpush1.xpose.msra.mxu0 0.0
    %6386 = vmatprep.subr.mxu0 0.0
    %6387 = vmatpush1.xpose.msra.mxu0 0.0
    %6388 = vmatprep.subr.mxu0 0.0
    %6389 = vmatpush1.xpose.msra.mxu0 0.0
    %6390 = vmatprep.subr.mxu0 0.0
    %6391 = vmatpush1.xpose.msra.mxu0 0.0
    %6392 = vmatprep.subr.mxu0 0.0
    %6393 = vmatpush1.xpose.msra.mxu0 0.0
    %6394 = vmatprep.subr.mxu0 0.0
    %6395 = vmatpush1.xpose.msra.mxu0 0.0
    %6396 = vmatprep.subr.mxu0 0.0
    %6397 = vmatpush1.xpose.msra.mxu0 0.0
    %6398 = vmatprep.subr.mxu0 0.0
    %6399 = vmatpush1.xpose.msra.mxu0 0.0
    %6400 = vmatprep.subr.mxu0 0.0
    %6401 = vmatpush1.xpose.msra.mxu0 0.0
    %6402 = vmatprep.subr.mxu0 0.0
    %6403 = vmatpush1.xpose.msra.mxu0 0.0
    %6404 = vmatprep.subr.mxu0 0.0
    %6405 = vmatpush1.xpose.msra.mxu0 0.0
    %6406 = vmatprep.subr.mxu0 0.0
    %6407 = vmatpush1.xpose.msra.mxu0 0.0
    %6408 = vmatprep.subr.mxu0 0.0
    %6409 = vmatpush1.xpose.msra.mxu0 0.0
    %6410 = vmatprep.mubr.f32.mxu0 0.0
    %6411 = vmatmul.mubr.f32.gmra.mrb[0].mxu0 %v3194
    %v6412 = vpop.f32.mrb[0].mxu0
    %v6413 = vadd.f32 0.0, %v6412
    %v6414 = vpop.f32.mrb[0].mxu0
    %6415 = vdwg.mxu0
    %v6417 = vsel %vm238, %v6290, 0
    %v6420 = vsel %vm238, %v6291, 0
    %v6423 = vsel %vm238, %v6292, 0
    %v6426 = vsel %vm238, %v6293, 0
    %v6429 = vsel %vm238, %v6294, 0
    %v6432 = vsel %vm238, %v6295, 0
    %v6435 = vsel %vm238, %v6296, 0
    %v6438 = vsel %vm238, %v6297, 0
    %6440 = vmatprep.subr.mxu0 0.0
    %6441 = vmatpush1.xpose.msra.mxu0 %v6417
    %6442 = vmatprep.subr.mxu0 0.0
    %6443 = vmatpush1.xpose.msra.mxu0 %v6420
    %6444 = vmatprep.subr.mxu0 0.0
    %6445 = vmatpush1.xpose.msra.mxu0 %v6423
    %6446 = vmatprep.subr.mxu0 0.0
    %6447 = vmatpush1.xpose.msra.mxu0 %v6426
    %6448 = vmatprep.subr.mxu0 0.0
    %6449 = vmatpush1.xpose.msra.mxu0 %v6429
    %6450 = vmatprep.subr.mxu0 0.0
    %6451 = vmatpush1.xpose.msra.mxu0 %v6432
    %6452 = vmatprep.subr.mxu0 0.0
    %6453 = vmatpush1.xpose.msra.mxu0 %v6435
    %6454 = vmatprep.subr.mxu0 0.0
    %6455 = vmatpush1.xpose.msra.mxu0 %v6438
    %6456 = vmatprep.subr.mxu0 0.0
    %6457 = vmatpush1.xpose.msra.mxu0 0.0
    %6458 = vmatprep.subr.mxu0 0.0
    %6459 = vmatpush1.xpose.msra.mxu0 0.0
    %6460 = vmatprep.subr.mxu0 0.0
    %6461 = vmatpush1.xpose.msra.mxu0 0.0
    %6462 = vmatprep.subr.mxu0 0.0
    %6463 = vmatpush1.xpose.msra.mxu0 0.0
    %6464 = vmatprep.subr.mxu0 0.0
    %6465 = vmatpush1.xpose.msra.mxu0 0.0
    %6466 = vmatprep.subr.mxu0 0.0
    %6467 = vmatpush1.xpose.msra.mxu0 0.0
    %6468 = vmatprep.subr.mxu0 0.0
    %6469 = vmatpush1.xpose.msra.mxu0 0.0
    %6470 = vmatprep.subr.mxu0 0.0
    %6471 = vmatpush1.xpose.msra.mxu0 0.0
    %6472 = vmatprep.subr.mxu0 0.0
    %6473 = vmatpush1.xpose.msra.mxu0 0.0
    %6474 = vmatprep.subr.mxu0 0.0
    %6475 = vmatpush1.xpose.msra.mxu0 0.0
    %6476 = vmatprep.subr.mxu0 0.0
    %6477 = vmatpush1.xpose.msra.mxu0 0.0
    %6478 = vmatprep.subr.mxu0 0.0
    %6479 = vmatpush1.xpose.msra.mxu0 0.0
    %6480 = vmatprep.subr.mxu0 0.0
    %6481 = vmatpush1.xpose.msra.mxu0 0.0
    %6482 = vmatprep.subr.mxu0 0.0
    %6483 = vmatpush1.xpose.msra.mxu0 0.0
    %6484 = vmatprep.subr.mxu0 0.0
    %6485 = vmatpush1.xpose.msra.mxu0 0.0
    %6486 = vmatprep.subr.mxu0 0.0
    %6487 = vmatpush1.xpose.msra.mxu0 0.0
    %6488 = vmatprep.subr.mxu0 0.0
    %6489 = vmatpush1.xpose.msra.mxu0 0.0
    %6490 = vmatprep.subr.mxu0 0.0
    %6491 = vmatpush1.xpose.msra.mxu0 0.0
    %6492 = vmatprep.subr.mxu0 0.0
    %6493 = vmatpush1.xpose.msra.mxu0 0.0
    %6494 = vmatprep.subr.mxu0 0.0
    %6495 = vmatpush1.xpose.msra.mxu0 0.0
    %6496 = vmatprep.subr.mxu0 0.0
    %6497 = vmatpush1.xpose.msra.mxu0 0.0
    %6498 = vmatprep.subr.mxu0 0.0
    %6499 = vmatpush1.xpose.msra.mxu0 0.0
    %6500 = vmatprep.subr.mxu0 0.0
    %6501 = vmatpush1.xpose.msra.mxu0 0.0
    %6502 = vmatprep.subr.mxu0 0.0
    %6503 = vmatpush1.xpose.msra.mxu0 0.0
    %6504 = vmatprep.mubr.f32.mxu0 0.0
    %6505 = vmatmul.mubr.f32.gmra.mrb[0].mxu0 %v3290
    %v6506 = vpop.f32.mrb[0].mxu0
    %v6507 = vadd.f32 %v6413, %v6506
    %v6508 = vpop.f32.mrb[0].mxu0
    %6509 = vdwg.mxu0
    %v6510 = vmul.f32 %v3426, %v3402
    %v6511 = vsel %vm3405, %v6510, 0.0
    %6512 = vadd.xlane.f32.xlu0 %v6511
    %v6513 = vpop.xlane.xlu0 %6512
    %v6514 = vadd.f32 %v6507, %v6513
    %v6515 = vsel %vm3410, %v6514, -inf
    %6516 = vmax.xlane.f32.xlu0 %v6515
    %v6517 = vpop.xlane.xlu0 %6516
    %v6518 = vsub.f32 %v6514, %v6517
    %v6519 = vmul.f32 %v6518, 1.442695
    %v6520 = vpow.pop %v6519
    %v6521 = vsel %vm3410, %v6520, 0.0
    %6522 = vadd.xlane.f32.xlu0 %v6521
    %v6523 = vpop.xlane.xlu0 %6522
    %v6524 = vlog2.pop %v6523
    %v6525 = vmul.f32 %v6524, 0.6931472
    %v6526 = vadd.f32 %v6517, %v6525
    %v6527 = vsub.f32 %v6514, %v6526
    %s6528 = scalar_lea.vmem [#allocation2], 1
    %6529 = vst.msk [vmem:[%s6528] sm:$0x1] %vm3410, %v6527
    // Predicated region
    $region50: #{vector_decoder_forward.3} parent=1 // pred_check
      _
    $region51: #{vector_decoder_forward.3} parent=1 // pred_check_branch
      %6531 = sbr.rel (0) target = $region53
    $region52: #{vector_decoder_forward.3} parent=1 // pred_region
      %s6533 = ssub.s32 32, 32
      %6534 = vsyncadd [#allocation3], %s6533
      %s6535 = sshll.u32 [#allocation2], 4
      %s6536 = int_to_ptr.vmem [resolvable:$true] %s6535
      %6541 = dma.vmem_to_hbm [thread:$0]  %s6536, 32, %s12, [#allocation3], 16, 16, 1
    $region53: #{vector_decoder_forward.3} parent=1 // pred_fallthru
      _
    // Predicated region
    $region54: #{vector_decoder_forward.3} parent=1 // pred_check
      _
    $region55: #{vector_decoder_forward.3} parent=1 // pred_check_branch
      %6543 = sbr.rel (0) target = $region57
    $region56: #{vector_decoder_forward.3} parent=1 // pred_region
      %6544 = dma.done [#allocation3], 32
    $region57: #{vector_decoder_forward.3} parent=1 // pred_fallthru
      _
    %6545 = vsyncpa [#allocation3], 1

</llo_original>
